<compile_context>
chip_gen: v6e
topology: v6e:2x2x1
jax: 0.10.0
libtpu: 0.0.40
codegen_flags: <defaults>
</compile_context>

<pallas_src>
import jax
import jax.numpy as jnp
from jax.experimental import pallas as pl
from jax.experimental.pallas import tpu as pltpu

EPS = 1e-5


def _patch_expand_kernel(x_ref, w_ref, g_ref, b_ref, o_ref):
    """One row-tile: fused expand matmul + per-group LayerNorm + shuffled store.

    x_ref : (1, TL, C)        f32 input tokens (TH full rows of the H x W grid)
    w_ref : (C, 2C)           bf16 expand weight, native column order  (resident)
    g_ref : (1, C)            f32 LayerNorm gamma tiled twice          (resident)
    b_ref : (1, C)            f32 LayerNorm beta  tiled twice          (resident)
    o_ref : (1, TH, 2, W, C)  output block, already in pixel-shuffle layout
    """
    _, th, _, w_res, c2 = o_ref.shape          # c2 == dim == 2 * (dim // 2)
    c = c2 // 2
    inv_c = 1.0 / c

    # Cast to bf16 at the point of use (input DMA stays f32; no extra HBM pass).
    x = x_ref[0].astype(jnp.bfloat16)          # (TL, C)
    gamma = g_ref[...]                         # (1, 2c) f32 — hoisted out of the loop
    beta = b_ref[...]

    # Single fused (TL, C) @ (C, 2C) dot with f32 accumulation: one LHS stream,
    # full MXU column utilization. Columns are ordered (p1, p2, c) with p1 slowest,
    # so y[:, p1*C:(p1+1)*C] is exactly the p1-parity output row's channels.
    y = jnp.dot(x, w_ref[...], preferred_element_type=jnp.float32)   # (TL, 2C) f32

    aligned = (c % 128 == 0)                   # static (trace-time) branch
    if not aligned:
        lane = jax.lax.broadcasted_iota(jnp.int32, (1, c2), 1)
        in_lo = lane < c                       # lanes of shuffle group p2 == 0

    for p1 in range(2):                        # static unroll: output-row parity
        yp = y[:, p1 * c2:(p1 + 1) * c2]       # (TL, 2c) f32

        if aligned:
            # vreg-aligned half slices: plain half-width reductions, no (T,2c)
            # selects, aligned half-width stores.
            y_lo = yp[:, :c]
            y_hi = yp[:, c:]
            m_lo = jnp.sum(y_lo, axis=-1, keepdims=True) * inv_c
            m_hi = jnp.sum(y_hi, axis=-1, keepdims=True) * inv_c
            d_lo = y_lo - m_lo
            d_hi = y_hi - m_hi
            v_lo = jnp.sum(d_lo * d_lo, axis=-1, keepdims=True) * inv_c
            v_hi = jnp.sum(d_hi * d_hi, axis=-1, keepdims=True) * inv_c
            yn_lo = d_lo * jax.lax.rsqrt(v_lo + EPS) * gamma[:, :c] + beta[:, :c]
            yn_hi = d_hi * jax.lax.rsqrt(v_hi + EPS) * gamma[:, c:] + beta[:, c:]
            o_ref[0, :, p1, :, :c] = yn_lo.reshape(th, w_res, c).astype(o_ref.dtype)
            o_ref[0, :, p1, :, c:] = yn_hi.reshape(th, w_res, c).astype(o_ref.dtype)
        else:
            # Masked lane reductions keep everything lane-dense for any c.
            s_lo = jnp.sum(jnp.where(in_lo, yp, 0.0), axis=-1, keepdims=True)
            s_all = jnp.sum(yp, axis=-1, keepdims=True)
            mean = jnp.where(in_lo, s_lo, s_all - s_lo) * inv_c      # (T, 2c)
            d = yp - mean
            dsq = d * d
            q_lo = jnp.sum(jnp.where(in_lo, dsq, 0.0), axis=-1, keepdims=True)
            q_all = jnp.sum(dsq, axis=-1, keepdims=True)
            # rsqrt on the narrow (T,1) per-group variances, then broadcast:
            # EUP pushes independent of channel width.
            inv_lo = jax.lax.rsqrt(q_lo * inv_c + EPS)
            inv_hi = jax.lax.rsqrt((q_all - q_lo) * inv_c + EPS)
            inv_std = jnp.where(in_lo, inv_lo, inv_hi)               # (T, 2c)
            yn = d * inv_std * gamma + beta
            # Direct store into the shuffled layout (all output rows of parity p1).
            # Layout-preserving reshape when W % 8 == 0; still correct otherwise.
            o_ref[0, :, p1, :, :] = yn.reshape(th, w_res, c2).astype(o_ref.dtype)


def _tile_footprint_bytes(tl, dim, out_bytes):
    """Conservative per-step VMEM estimate for a TL-token tile."""
    x_t = tl * dim * 4                       # f32 input tile
    o_t = tl * 2 * dim * out_bytes           # (TH, 2, W, 2c) output tile
    w_t = dim * 2 * dim * 2                  # bf16 resident expand weight
    tmp = 3 * tl * 2 * dim * 4               # f32 matmul result + LN temporaries
    return 2 * (x_t + o_t) + 2 * w_t + tmp + (1 << 20)


def _choose_row_tile(h, w, dim, batch, out_bytes, vmem_budget=32 * 1024 * 1024):
    """Smallest divisor TH of H reaching >=1024 tokens whose double-buffered
    footprint fits the VMEM budget; largest fitting divisor otherwise.
    Keeps >=2 grid steps when B == 1 so both v7x TensorCores get work."""
    def ok_shape(th):
        tl = th * w
        return th == h or tl % 8 == 0        # (8,128) rule on the x block

    divs = [d for d in range(1, h + 1) if h % d == 0 and ok_shape(d)]
    fitting = [d for d in divs if _tile_footprint_bytes(d * w, dim, out_bytes) <= vmem_budget]
    if not fitting:
        fitting = [min(divs)]
    big = [d for d in fitting if d * w >= 1024]
    th = min(big) if big else max(fitting)
    if batch == 1 and th == h:
        smaller = [d for d in fitting if d < h]
        if smaller:
            th = max(smaller)
    return th


def patch_expand(x, w_expand, ln_gamma, ln_beta, input_resolution,
                 out_dtype=jnp.bfloat16):
    """
    x            : (B, H*W, C)   float32 (any float dtype; cast to bf16 in-kernel)
    w_expand     : (C, 2C)       expand weight, already transposed (y = x @ w_expand)
    ln_gamma     : (C//2,)       LayerNorm weight
    ln_beta      : (C//2,)       LayerNorm bias
    returns      : (B, 4*H*W, C//2)  out_dtype (default bf16 — halves HBM writeback)
    """
    H, W = input_resolution
    B, L, C = x.shape
    assert L == H * W, "input feature has wrong size"
    assert C % 2 == 0, "dim must be even"
    assert w_expand.shape == (C, 2 * C), "expand weight must be (dim, 2*dim)"
    c = C // 2
    out_bytes = jnp.dtype(out_dtype).itemsize

    TH = _choose_row_tile(H, W, C, B, out_bytes)   # input rows per grid step
    TL = TH * W                                    # tokens per grid step
    # Right-sized scoped VMEM request (v7x has only 64 MiB per TensorCore).
    vmem_limit = int(max(_tile_footprint_bytes(TL, C, out_bytes) + (4 << 20),
                         16 << 20))

    # Resident operands (one-time tiny converts; weight stays in native column
    # order — p1 is already the slowest of the (p1, p2, c) output-channel split).
    w_bf = w_expand.astype(jnp.bfloat16)
    gamma2 = jnp.tile(ln_gamma.reshape(1, c).astype(jnp.float32), (1, 2))
    beta2 = jnp.tile(ln_beta.reshape(1, c).astype(jnp.float32), (1, 2))

    out5 = pl.pallas_call(
        _patch_expand_kernel,
        out_shape=jax.ShapeDtypeStruct((B, H, 2, W, C), out_dtype),
        grid_spec=pltpu.PrefetchScalarGridSpec(
            num_scalar_prefetch=0,
            grid=(B, H // TH),
            in_specs=[
                pl.BlockSpec((1, TL, C), lambda b, t: (b, t, 0)),       # f32 x tile
                pl.BlockSpec((C, 2 * C), lambda b, t: (0, 0)),          # resident weight
                pl.BlockSpec((1, C), lambda b, t: (0, 0)),              # resident gamma
                pl.BlockSpec((1, C), lambda b, t: (0, 0)),              # resident beta
            ],
            out_specs=pl.BlockSpec((1, TH, 2, W, C),
                                   lambda b, t: (b, t, 0, 0, 0)),
        ),
        compiler_params=pltpu.CompilerParams(
            dimension_semantics=("parallel", "parallel"),
            vmem_limit_bytes=vmem_limit,
        ),
    )(x, w_bf, gamma2, beta2)

    # (B, H, 2, W, 2, c) row-major is exactly token order (2h+p1)*2W + (2w+p2):
    # the remaining rearrange is a pure metadata reshape (no HBM transpose).
    return out5.reshape(B, 4 * H * W, c)


def _reference(x, w_expand, ln_gamma, ln_beta, input_resolution):
    # pure-JAX reference mirroring the PyTorch forward (bf16 matmul like the kernel,
    # f32 LayerNorm, f32 output).
    H, W = input_resolution
    B, L, C = x.shape
    c = C // 2
    y = jnp.einsum("blc,cd->bld",
                   x.astype(jnp.bfloat16), w_expand.astype(jnp.bfloat16),
                   preferred_element_type=jnp.float32)                 # (B, L, 2C)
    y = y.reshape(B, H, W, 2, 2, c)
    y = jnp.transpose(y, (0, 1, 3, 2, 4, 5)).reshape(B, 4 * H * W, c)
    mean = jnp.mean(y, axis=-1, keepdims=True)
    var = jnp.mean(jnp.square(y - mean), axis=-1, keepdims=True)
    y = (y - mean) * jax.lax.rsqrt(var + EPS)
    return y * ln_gamma + ln_beta


if __name__ == "__main__":
    key = jax.random.PRNGKey(0)
    k1, k2, k3, k4 = jax.random.split(key, 4)

    B, H, W, dim = 2, 32, 32, 64                    # x: (B, H*W, dim); grid = (2, 1)
    x = jax.random.normal(k1, (B, H * W, dim), dtype=jnp.float32)
    # nn.Linear(dim, 2*dim, bias=False): torch weight is (2*dim, dim); we keep its
    # transpose so that y = x @ w_expand.
    w_expand = jax.random.normal(k2, (dim, 2 * dim), dtype=jnp.float32) * 0.05
    ln_gamma = 1.0 + 0.1 * jax.random.normal(k3, (dim // 2,), dtype=jnp.float32)
    ln_beta = 0.1 * jax.random.normal(k4, (dim // 2,), dtype=jnp.float32)

    out = patch_expand(x, w_expand, ln_gamma, ln_beta, (H, W))
    out = jax.block_until_ready(out)

    ref = _reference(x, w_expand, ln_gamma, ln_beta, (H, W))
    assert out.shape == (B, 4 * H * W, dim // 2), out.shape
    assert out.dtype == jnp.bfloat16, out.dtype
    # bf16 output vs f32 reference -> tolerance covers the final bf16 rounding.
    err = float(jnp.max(jnp.abs(out.astype(jnp.float32) - ref)))
    assert err < 3e-2, err
    print("KERNEL_OK")
</pallas_src>

<mosaic_0001>
module attributes {stable_mosaic.version = 11 : i64} {
  func.func @_patch_expand_kernel(%arg0: i32, %arg1: i32, %arg2: memref<1x1024x64xf32, #tpu.memory_space<vmem>>, %arg3: memref<64x128xbf16, #tpu.memory_space<vmem>>, %arg4: memref<1x64xf32, #tpu.memory_space<vmem>>, %arg5: memref<1x64xf32, #tpu.memory_space<vmem>>, %arg6: memref<1x32x2x32x64xbf16, #tpu.memory_space<vmem>>) attributes {dimension_semantics = [#tpu.dimension_semantics<parallel>, #tpu.dimension_semantics<parallel>], iteration_bounds = array<i64: 2, 1>, scalar_prefetch = 0 : i64, scratch_operands = 0 : i64, tpu.core_type = #tpu.core_type<tc>, window_params = [{transform_indices = @transform_0, window_bounds = array<i64: 1, 1024, 64>}, {pipeline_mode = #tpu.pipeline_mode<synchronous>, transform_indices = @transform_1, window_bounds = array<i64: 64, 128>}, {pipeline_mode = #tpu.pipeline_mode<synchronous>, transform_indices = @transform_2, window_bounds = array<i64: 1, 64>}, {pipeline_mode = #tpu.pipeline_mode<synchronous>, transform_indices = @transform_3, window_bounds = array<i64: 1, 64>}, {transform_indices = @transform_4, window_bounds = array<i64: 1, 32, 2, 32, 64>}]} {
    %c0 = arith.constant 0 : index
    %c0_0 = arith.constant 0 : index
    %c0_1 = arith.constant 0 : index
    %0 = vector.load %arg2[%c0, %c0_0, %c0_1] : memref<1x1024x64xf32, #tpu.memory_space<vmem>>, vector<1x1024x64xf32>
    %1 = vector.shape_cast %0 : vector<1x1024x64xf32> to vector<1024x64xf32>
    %2 = arith.truncf %1 : vector<1024x64xf32> to vector<1024x64xbf16>
    %c0_2 = arith.constant 0 : index
    %c0_3 = arith.constant 0 : index
    %3 = vector.load %arg4[%c0_2, %c0_3] : memref<1x64xf32, #tpu.memory_space<vmem>>, vector<1x64xf32>
    %c0_4 = arith.constant 0 : index
    %c0_5 = arith.constant 0 : index
    %4 = vector.load %arg5[%c0_4, %c0_5] : memref<1x64xf32, #tpu.memory_space<vmem>>, vector<1x64xf32>
    %c0_6 = arith.constant 0 : index
    %c0_7 = arith.constant 0 : index
    %5 = vector.load %arg3[%c0_6, %c0_7] : memref<64x128xbf16, #tpu.memory_space<vmem>>, vector<64x128xbf16>
    %cst = arith.constant dense<0.000000e+00> : vector<1024x128xf32>
    %6 = tpu.matmul %2, %5, %cst {dimension_numbers = #tpu.dot_dimension_numbers<[1], [0], [0], [1], [0, 0, 1, 1], [], []>} : vector<1024x64xbf16>, vector<64x128xbf16>, vector<1024x128xf32> -> vector<1024x128xf32>
    %7 = tpu.iota {dimensions = array<i32: 1>} : vector<1x64xi32>
    %c32_i32 = arith.constant 32 : i32
    %8 = vector.broadcast %c32_i32 : i32 to vector<1x64xi32>
    %9 = arith.cmpi slt, %7, %8 : vector<1x64xi32>
    %10 = vector.extract_strided_slice %6 {offsets = [0, 0], sizes = [1024, 64], strides = [1, 1]} : vector<1024x128xf32> to vector<1024x64xf32>
    %cst_8 = arith.constant 0.000000e+00 : f32
    %11 = vector.shape_cast %9 : vector<1x64xi1> to vector<1x64xi1>
    %12 = vector.broadcast %11 : vector<1x64xi1> to vector<1024x64xi1>
    %13 = vector.broadcast %cst_8 : f32 to vector<1024x64xf32>
    %14 = arith.select %12, %10, %13 : vector<1024x64xi1>, vector<1024x64xf32>
    %cst_9 = arith.constant dense<0.000000e+00> : vector<1024xf32>
    %15 = vector.multi_reduction <add>, %14, %cst_9 [1] : vector<1024x64xf32> to vector<1024xf32>
    %16 = vector.shape_cast %15 : vector<1024xf32> to vector<1024x1xf32>
    %cst_10 = arith.constant dense<0.000000e+00> : vector<1024xf32>
    %17 = vector.multi_reduction <add>, %10, %cst_10 [1] : vector<1024x64xf32> to vector<1024xf32>
    %18 = vector.shape_cast %17 : vector<1024xf32> to vector<1024x1xf32>
    %19 = arith.subf %18, %16 : vector<1024x1xf32>
    %20 = vector.shape_cast %9 : vector<1x64xi1> to vector<1x64xi1>
    %21 = vector.broadcast %20 : vector<1x64xi1> to vector<1024x64xi1>
    %22 = vector.shape_cast %16 : vector<1024x1xf32> to vector<1024x1xf32>
    %23 = vector.broadcast %22 : vector<1024x1xf32> to vector<1024x64xf32>
    %24 = vector.shape_cast %19 : vector<1024x1xf32> to vector<1024x1xf32>
    %25 = vector.broadcast %24 : vector<1024x1xf32> to vector<1024x64xf32>
    %26 = arith.select %21, %23, %25 : vector<1024x64xi1>, vector<1024x64xf32>
    %cst_11 = arith.constant 3.125000e-02 : f32
    %27 = vector.broadcast %cst_11 : f32 to vector<1024x64xf32>
    %28 = arith.mulf %26, %27 : vector<1024x64xf32>
    %29 = arith.subf %10, %28 : vector<1024x64xf32>
    %30 = arith.mulf %29, %29 : vector<1024x64xf32>
    %cst_12 = arith.constant 0.000000e+00 : f32
    %31 = vector.shape_cast %9 : vector<1x64xi1> to vector<1x64xi1>
    %32 = vector.broadcast %31 : vector<1x64xi1> to vector<1024x64xi1>
    %33 = vector.broadcast %cst_12 : f32 to vector<1024x64xf32>
    %34 = arith.select %32, %30, %33 : vector<1024x64xi1>, vector<1024x64xf32>
    %cst_13 = arith.constant dense<0.000000e+00> : vector<1024xf32>
    %35 = vector.multi_reduction <add>, %34, %cst_13 [1] : vector<1024x64xf32> to vector<1024xf32>
    %36 = vector.shape_cast %35 : vector<1024xf32> to vector<1024x1xf32>
    %cst_14 = arith.constant dense<0.000000e+00> : vector<1024xf32>
    %37 = vector.multi_reduction <add>, %30, %cst_14 [1] : vector<1024x64xf32> to vector<1024xf32>
    %38 = vector.shape_cast %37 : vector<1024xf32> to vector<1024x1xf32>
    %cst_15 = arith.constant 3.125000e-02 : f32
    %39 = vector.broadcast %cst_15 : f32 to vector<1024x1xf32>
    %40 = arith.mulf %36, %39 : vector<1024x1xf32>
    %cst_16 = arith.constant 9.99999974E-6 : f32
    %41 = vector.broadcast %cst_16 : f32 to vector<1024x1xf32>
    %42 = arith.addf %40, %41 : vector<1024x1xf32>
    %43 = math.rsqrt %42 : vector<1024x1xf32>
    %44 = arith.subf %38, %36 : vector<1024x1xf32>
    %cst_17 = arith.constant 3.125000e-02 : f32
    %45 = vector.broadcast %cst_17 : f32 to vector<1024x1xf32>
    %46 = arith.mulf %44, %45 : vector<1024x1xf32>
    %cst_18 = arith.constant 9.99999974E-6 : f32
    %47 = vector.broadcast %cst_18 : f32 to vector<1024x1xf32>
    %48 = arith.addf %46, %47 : vector<1024x1xf32>
    %49 = math.rsqrt %48 : vector<1024x1xf32>
    %50 = vector.shape_cast %9 : vector<1x64xi1> to vector<1x64xi1>
    %51 = vector.broadcast %50 : vector<1x64xi1> to vector<1024x64xi1>
    %52 = vector.shape_cast %43 : vector<1024x1xf32> to vector<1024x1xf32>
    %53 = vector.broadcast %52 : vector<1024x1xf32> to vector<1024x64xf32>
    %54 = vector.shape_cast %49 : vector<1024x1xf32> to vector<1024x1xf32>
    %55 = vector.broadcast %54 : vector<1024x1xf32> to vector<1024x64xf32>
    %56 = arith.select %51, %53, %55 : vector<1024x64xi1>, vector<1024x64xf32>
    %57 = arith.mulf %29, %56 : vector<1024x64xf32>
    %58 = vector.broadcast %3 : vector<1x64xf32> to vector<1024x64xf32>
    %59 = arith.mulf %57, %58 : vector<1024x64xf32>
    %60 = vector.broadcast %4 : vector<1x64xf32> to vector<1024x64xf32>
    %61 = arith.addf %59, %60 : vector<1024x64xf32>
    %62 = vector.shape_cast %61 : vector<1024x64xf32> to vector<32x32x64xf32>
    %63 = arith.truncf %62 : vector<32x32x64xf32> to vector<32x32x64xbf16>
    %c0_19 = arith.constant 0 : index
    %c0_20 = arith.constant 0 : index
    %c0_21 = arith.constant 0 : index
    %c0_22 = arith.constant 0 : index
    %c0_23 = arith.constant 0 : index
    %64 = vector.load %arg6[%c0_19, %c0_20, %c0_21, %c0_22, %c0_23] : memref<1x32x2x32x64xbf16, #tpu.memory_space<vmem>>, vector<1x32x1x32x64xbf16>
    %65 = vector.shape_cast %64 : vector<1x32x1x32x64xbf16> to vector<32x32x64xbf16>
    %66 = vector.shape_cast %63 : vector<32x32x64xbf16> to vector<1x32x1x32x64xbf16>
    tpu.vector_store %arg6[%c0_19, %c0_20, %c0_21, %c0_22, %c0_23], %66 {strides = array<i32>} : memref<1x32x2x32x64xbf16, #tpu.memory_space<vmem>>, vector<1x32x1x32x64xbf16>,
    %67 = vector.extract_strided_slice %6 {offsets = [0, 64], sizes = [1024, 64], strides = [1, 1]} : vector<1024x128xf32> to vector<1024x64xf32>
    %cst_24 = arith.constant 0.000000e+00 : f32
    %68 = vector.shape_cast %9 : vector<1x64xi1> to vector<1x64xi1>
    %69 = vector.broadcast %68 : vector<1x64xi1> to vector<1024x64xi1>
    %70 = vector.broadcast %cst_24 : f32 to vector<1024x64xf32>
    %71 = arith.select %69, %67, %70 : vector<1024x64xi1>, vector<1024x64xf32>
    %cst_25 = arith.constant dense<0.000000e+00> : vector<1024xf32>
    %72 = vector.multi_reduction <add>, %71, %cst_25 [1] : vector<1024x64xf32> to vector<1024xf32>
    %73 = vector.shape_cast %72 : vector<1024xf32> to vector<1024x1xf32>
    %cst_26 = arith.constant dense<0.000000e+00> : vector<1024xf32>
    %74 = vector.multi_reduction <add>, %67, %cst_26 [1] : vector<1024x64xf32> to vector<1024xf32>
    %75 = vector.shape_cast %74 : vector<1024xf32> to vector<1024x1xf32>
    %76 = arith.subf %75, %73 : vector<1024x1xf32>
    %77 = vector.shape_cast %9 : vector<1x64xi1> to vector<1x64xi1>
    %78 = vector.broadcast %77 : vector<1x64xi1> to vector<1024x64xi1>
    %79 = vector.shape_cast %73 : vector<1024x1xf32> to vector<1024x1xf32>
    %80 = vector.broadcast %79 : vector<1024x1xf32> to vector<1024x64xf32>
    %81 = vector.shape_cast %76 : vector<1024x1xf32> to vector<1024x1xf32>
    %82 = vector.broadcast %81 : vector<1024x1xf32> to vector<1024x64xf32>
    %83 = arith.select %78, %80, %82 : vector<1024x64xi1>, vector<1024x64xf32>
    %cst_27 = arith.constant 3.125000e-02 : f32
    %84 = vector.broadcast %cst_27 : f32 to vector<1024x64xf32>
    %85 = arith.mulf %83, %84 : vector<1024x64xf32>
    %86 = arith.subf %67, %85 : vector<1024x64xf32>
    %87 = arith.mulf %86, %86 : vector<1024x64xf32>
    %cst_28 = arith.constant 0.000000e+00 : f32
    %88 = vector.shape_cast %9 : vector<1x64xi1> to vector<1x64xi1>
    %89 = vector.broadcast %88 : vector<1x64xi1> to vector<1024x64xi1>
    %90 = vector.broadcast %cst_28 : f32 to vector<1024x64xf32>
    %91 = arith.select %89, %87, %90 : vector<1024x64xi1>, vector<1024x64xf32>
    %cst_29 = arith.constant dense<0.000000e+00> : vector<1024xf32>
    %92 = vector.multi_reduction <add>, %91, %cst_29 [1] : vector<1024x64xf32> to vector<1024xf32>
    %93 = vector.shape_cast %92 : vector<1024xf32> to vector<1024x1xf32>
    %cst_30 = arith.constant dense<0.000000e+00> : vector<1024xf32>
    %94 = vector.multi_reduction <add>, %87, %cst_30 [1] : vector<1024x64xf32> to vector<1024xf32>
    %95 = vector.shape_cast %94 : vector<1024xf32> to vector<1024x1xf32>
    %cst_31 = arith.constant 3.125000e-02 : f32
    %96 = vector.broadcast %cst_31 : f32 to vector<1024x1xf32>
    %97 = arith.mulf %93, %96 : vector<1024x1xf32>
    %cst_32 = arith.constant 9.99999974E-6 : f32
    %98 = vector.broadcast %cst_32 : f32 to vector<1024x1xf32>
    %99 = arith.addf %97, %98 : vector<1024x1xf32>
    %100 = math.rsqrt %99 : vector<1024x1xf32>
    %101 = arith.subf %95, %93 : vector<1024x1xf32>
    %cst_33 = arith.constant 3.125000e-02 : f32
    %102 = vector.broadcast %cst_33 : f32 to vector<1024x1xf32>
    %103 = arith.mulf %101, %102 : vector<1024x1xf32>
    %cst_34 = arith.constant 9.99999974E-6 : f32
    %104 = vector.broadcast %cst_34 : f32 to vector<1024x1xf32>
    %105 = arith.addf %103, %104 : vector<1024x1xf32>
    %106 = math.rsqrt %105 : vector<1024x1xf32>
    %107 = vector.shape_cast %9 : vector<1x64xi1> to vector<1x64xi1>
    %108 = vector.broadcast %107 : vector<1x64xi1> to vector<1024x64xi1>
    %109 = vector.shape_cast %100 : vector<1024x1xf32> to vector<1024x1xf32>
    %110 = vector.broadcast %109 : vector<1024x1xf32> to vector<1024x64xf32>
    %111 = vector.shape_cast %106 : vector<1024x1xf32> to vector<1024x1xf32>
    %112 = vector.broadcast %111 : vector<1024x1xf32> to vector<1024x64xf32>
    %113 = arith.select %108, %110, %112 : vector<1024x64xi1>, vector<1024x64xf32>
    %114 = arith.mulf %86, %113 : vector<1024x64xf32>
    %115 = vector.broadcast %3 : vector<1x64xf32> to vector<1024x64xf32>
    %116 = arith.mulf %114, %115 : vector<1024x64xf32>
    %117 = vector.broadcast %4 : vector<1x64xf32> to vector<1024x64xf32>
    %118 = arith.addf %116, %117 : vector<1024x64xf32>
    %119 = vector.shape_cast %118 : vector<1024x64xf32> to vector<32x32x64xf32>
    %120 = arith.truncf %119 : vector<32x32x64xf32> to vector<32x32x64xbf16>
    %c0_35 = arith.constant 0 : index
    %c0_36 = arith.constant 0 : index
    %c1 = arith.constant 1 : index
    %c0_37 = arith.constant 0 : index
    %c0_38 = arith.constant 0 : index
    %121 = vector.load %arg6[%c0_35, %c0_36, %c1, %c0_37, %c0_38] : memref<1x32x2x32x64xbf16, #tpu.memory_space<vmem>>, vector<1x32x1x32x64xbf16>
    %122 = vector.shape_cast %121 : vector<1x32x1x32x64xbf16> to vector<32x32x64xbf16>
    %123 = vector.shape_cast %120 : vector<32x32x64xbf16> to vector<1x32x1x32x64xbf16>
    tpu.vector_store %arg6[%c0_35, %c0_36, %c1, %c0_37, %c0_38], %123 {strides = array<i32>} : memref<1x32x2x32x64xbf16, #tpu.memory_space<vmem>>, vector<1x32x1x32x64xbf16>,
    return
  }
  func.func @transform_0(%arg0: i32, %arg1: i32) -> (i32, i32, i32) {
    %c0_i32 = arith.constant 0 : i32
    %c0_i32_0 = arith.constant 0 : i32
    return %arg0, %arg1, %c0_i32 : i32, i32, i32
  }
  func.func @transform_1(%arg0: i32, %arg1: i32) -> (i32, i32) {
    %c0_i32 = arith.constant 0 : i32
    %c0_i32_0 = arith.constant 0 : i32
    %c0_i32_1 = arith.constant 0 : i32
    return %c0_i32, %c0_i32_0 : i32, i32
  }
  func.func @transform_2(%arg0: i32, %arg1: i32) -> (i32, i32) {
    %c0_i32 = arith.constant 0 : i32
    %c0_i32_0 = arith.constant 0 : i32
    %c0_i32_1 = arith.constant 0 : i32
    return %c0_i32, %c0_i32_0 : i32, i32
  }
  func.func @transform_3(%arg0: i32, %arg1: i32) -> (i32, i32) {
    %c0_i32 = arith.constant 0 : i32
    %c0_i32_0 = arith.constant 0 : i32
    %c0_i32_1 = arith.constant 0 : i32
    return %c0_i32, %c0_i32_0 : i32, i32
  }
  func.func @transform_4(%arg0: i32, %arg1: i32) -> (i32, i32, i32, i32, i32) {
    %c0_i32 = arith.constant 0 : i32
    %c0_i32_0 = arith.constant 0 : i32
    %c0_i32_1 = arith.constant 0 : i32
    %c0_i32_2 = arith.constant 0 : i32
    return %arg0, %arg1, %c0_i32, %c0_i32_0, %c0_i32_1 : i32, i32, i32, i32, i32
  }
}

</mosaic_0001>

<llo_original>
// kernel: tpu_custom_call.1
$region0: #{tpu_custom_call.1}
  #allocation0 [shape = 'u32[]', space=smem, size = 0x4, offset = 0x4, fixed_abs, tag = 'smem constant byte address 0x4 - core index']
  #allocation1 [shape = 'u32[144,128]{1,0:T(1,128)}', space=vmem, size = 0x12000, scoped, tag = 'internal scratch']
  %s0 = inlined_call_operand.vmem [shape: f32[2,1024,64], index: 0, kind: input, shape index: {}]
  %s1 = inlined_call_operand.vmem [shape: bf16[64,128], index: 1, kind: input, shape index: {}]
  %s2 = inlined_call_operand.vmem [shape: f32[1,64], index: 2, kind: input, shape index: {}]
  %s3 = inlined_call_operand.vmem [shape: f32[1,64], index: 3, kind: input, shape index: {}]
  %s4 = inlined_call_operand.hbm [shape: bf16[2,32,2,32,64], index: 4, kind: output, shape index: {}]
  %s5 = sld [smem:[#allocation0]]
  $region49: #{tpu_custom_call.1} parent=0
    _
  %s7 = ssub.s32 1, %s5
  %s8 = scalar_select 0, %s7, %s5
  $region1: #{tpu_custom_call.1} parent=0
    #allocation2 [shape = 'u8[1048576]{0}', space=vmem, size = 0x100000, scoped, tag = 'output window, operand 0']
    #allocation3 [shape = 's32[2]{0}', space=sflag, size = 0x8, scoped, tag = 'scoped memory for tpu_custom_call.1']
    %9 = vsyncpa [#allocation3], 0
    %s10 = scalar_lea.sflag [#allocation3], 1
    %11 = vsyncpa %s10, 0
    loop: start=0, step=1, limit=4
    $region2: #{tpu_custom_call.1} parent=1 // loop_pre_header
      _
    $region3: #{tpu_custom_call.1} parent=1 // loop_header
      %s13 = sphi 0, %s17
      %p14 = scmp.ge.s32.totalorder %s13, 4
      %s20 = sphi 0, %s32
      %s21 = sphi 0, %s28
      %s22 = sphi 0, %s20
      %s23 = sphi 0, %s21
      %s24 = sphi 0, %s22
      %s25 = sphi 0, %s23
      %s37 = sphi 0, %s39
      %s40 = sphi 0, %s37
      %s41 = sphi 0, %s40
      %s57 = sphi 0, %s41
      %s61 = sphi 0, %s61
      %s63 = sphi 0, %s61
      %s64 = sphi 0, %s63
      %s78 = sphi 0, %s64
      %s82 = sphi 0, %s82
      %s84 = sphi 0, %s82
      %s85 = sphi 0, %s84
      %s99 = sphi 0, %s85
      %s103 = sphi 0, %s103
      %s105 = sphi 0, %s103
      %s106 = sphi 0, %s105
      %s120 = sphi 0, %s106
      %s128 = sphi 0, %s130
      %s131 = sphi 0, %s128
      %s132 = sphi 0, %s131
      %s148 = sphi 0, %s132
    $region4: #{tpu_custom_call.1} parent=1 // loop_header_branch
      %16 = sbr.rel (%p14) target = $region8
    $region5: #{tpu_custom_call.1} parent=1 // loop_body
      %s18 = ssub.s32 %s13, 1
      %s19 = ssub.s32 %s13, 2
      %s26 = sadd.s32 1, %s21
      %p27 = scmp.ge.s32.totalorder %s26, 1
      %s28 = scalar_select %p27, 0, %s26
      %s29 = sadd.s32 1, %s20
      %s30 = scalar_select %p27, %s29, %s20
      %p31 = scmp.ge.s32.totalorder %s30, 2
      %s32 = scalar_select %p31, 0, %s30
      %s33 = ssub.s32 %s20, %s32
      %s34 = ssub.s32 %s21, %s28
      %s35 = sor.u32 %s33, %s34
      %p36 = scmp.eq.s32.totalorder %s35, 0
      %s38 = sadd.s32 %s37, 1
      %s39 = scalar_select %p36, %s37, %s38
      %p42 = pneg %p36
      %p43 = scmp.eq.s32.totalorder %s13, 1
      %p44 = por %p42, %p43
      %p45 = scmp.ne.s32.totalorder %s37, %s40
      %p46 = scmp.eq.s32.totalorder %s13, 0
      %p47 = por %p45, %p46
      %p48 = scmp.ne.s32.totalorder %s37, %s40
      %p49 = scmp.eq.s32.totalorder %s18, 1
      %p50 = por %p48, %p49
      %p51 = scmp.ne.s32.totalorder %s40, %s41
      %p52 = scmp.eq.s32.totalorder %s18, 0
      %p53 = por %p51, %p52
      %p54 = scmp.ne.s32.totalorder %s40, %s41
      %p55 = scmp.eq.s32.totalorder %s19, 1
      %p56 = por %p54, %p55
      %p58 = scmp.ne.s32.totalorder %s41, %s57
      %p59 = scmp.eq.s32.totalorder %s19, 0
      %p60 = por %p58, %p59
      %s62 = sadd.s32 %s61, 1
      %p65 = scmp.eq.s32.totalorder %s13, 1
      %p66 = scmp.ne.s32.totalorder %s61, %s63
      %p67 = scmp.eq.s32.totalorder %s13, 0
      %p68 = por %p66, %p67
      %p69 = scmp.ne.s32.totalorder %s61, %s63
      %p70 = scmp.eq.s32.totalorder %s18, 1
      %p71 = por %p69, %p70
      %p72 = scmp.ne.s32.totalorder %s63, %s64
      %p73 = scmp.eq.s32.totalorder %s18, 0
      %p74 = por %p72, %p73
      %p75 = scmp.ne.s32.totalorder %s63, %s64
      %p76 = scmp.eq.s32.totalorder %s19, 1
      %p77 = por %p75, %p76
      %p79 = scmp.ne.s32.totalorder %s64, %s78
      %p80 = scmp.eq.s32.totalorder %s19, 0
      %p81 = por %p79, %p80
      %s83 = sadd.s32 %s82, 1
      %p86 = scmp.eq.s32.totalorder %s13, 1
      %p87 = scmp.ne.s32.totalorder %s82, %s84
      %p88 = scmp.eq.s32.totalorder %s13, 0
      %p89 = por %p87, %p88
      %p90 = scmp.ne.s32.totalorder %s82, %s84
      %p91 = scmp.eq.s32.totalorder %s18, 1
      %p92 = por %p90, %p91
      %p93 = scmp.ne.s32.totalorder %s84, %s85
      %p94 = scmp.eq.s32.totalorder %s18, 0
      %p95 = por %p93, %p94
      %p96 = scmp.ne.s32.totalorder %s84, %s85
      %p97 = scmp.eq.s32.totalorder %s19, 1
      %p98 = por %p96, %p97
      %p100 = scmp.ne.s32.totalorder %s85, %s99
      %p101 = scmp.eq.s32.totalorder %s19, 0
      %p102 = por %p100, %p101
      %s104 = sadd.s32 %s103, 1
      %p107 = scmp.eq.s32.totalorder %s13, 1
      %p108 = scmp.ne.s32.totalorder %s103, %s105
      %p109 = scmp.eq.s32.totalorder %s13, 0
      %p110 = por %p108, %p109
      %p111 = scmp.ne.s32.totalorder %s103, %s105
      %p112 = scmp.eq.s32.totalorder %s18, 1
      %p113 = por %p111, %p112
      %p114 = scmp.ne.s32.totalorder %s105, %s106
      %p115 = scmp.eq.s32.totalorder %s18, 0
      %p116 = por %p114, %p115
      %p117 = scmp.ne.s32.totalorder %s105, %s106
      %p118 = scmp.eq.s32.totalorder %s19, 1
      %p119 = por %p117, %p118
      %p121 = scmp.ne.s32.totalorder %s106, %s120
      %p122 = scmp.eq.s32.totalorder %s19, 0
      %p123 = por %p121, %p122
      %s124 = ssub.s32 %s20, %s32
      %s125 = ssub.s32 %s21, %s28
      %s126 = sor.u32 %s124, %s125
      %p127 = scmp.eq.s32.totalorder %s126, 0
      %s129 = sadd.s32 %s128, 1
      %s130 = scalar_select %p127, %s128, %s129
      %p133 = pneg %p127
      %p134 = scmp.eq.s32.totalorder %s13, 1
      %p135 = por %p133, %p134
      %p136 = scmp.ne.s32.totalorder %s128, %s131
      %p137 = scmp.eq.s32.totalorder %s13, 0
      %p138 = por %p136, %p137
      %p139 = scmp.ne.s32.totalorder %s128, %s131
      %p140 = scmp.eq.s32.totalorder %s18, 1
      %p141 = por %p139, %p140
      %p142 = scmp.ne.s32.totalorder %s131, %s132
      %p143 = scmp.eq.s32.totalorder %s18, 0
      %p144 = por %p142, %p143
      %p145 = scmp.ne.s32.totalorder %s131, %s132
      %p146 = scmp.eq.s32.totalorder %s19, 1
      %p147 = por %p145, %p146
      %p149 = scmp.ne.s32.totalorder %s132, %s148
      %p150 = scmp.eq.s32.totalorder %s19, 0
      %p151 = por %p149, %p150
      %p152 = scmp.le.s32.totalorder 1, %s13
      %p153 = scmp.lt.s32.totalorder %s13, 3
      %p154 = pnand %p152, %p153
      %p155 = pneg %p154
      // Predicated region
      $region9: #{tpu_custom_call.1} parent=5 // pred_check
        _
      $region10: #{tpu_custom_call.1} parent=5 // pred_check_branch
        %157 = sbr.rel (%p154) target = $region12
      $region11: #{tpu_custom_call.1} parent=5 // pred_region
        %s158 = ssub.s32 %s13, 1
        // Predicated region
        $region13: #{tpu_custom_call.1} parent=11 // pred_check
          %p159 = pneg %p74
        $region14: #{tpu_custom_call.1} parent=11 // pred_check_branch
          %161 = sbr.rel (%p159) target = $region16
        $region15: #{tpu_custom_call.1} parent=11 // pred_region
          _
        $region16: #{tpu_custom_call.1} parent=11 // pred_fallthru
          _
        // Predicated region
        $region17: #{tpu_custom_call.1} parent=11 // pred_check
          %p162 = pneg %p95
        $region18: #{tpu_custom_call.1} parent=11 // pred_check_branch
          %164 = sbr.rel (%p162) target = $region20
        $region19: #{tpu_custom_call.1} parent=11 // pred_region
          _
        $region20: #{tpu_custom_call.1} parent=11 // pred_fallthru
          _
        // Predicated region
        $region21: #{tpu_custom_call.1} parent=11 // pred_check
          %p165 = pneg %p116
        $region22: #{tpu_custom_call.1} parent=11 // pred_check_branch
          %167 = sbr.rel (%p165) target = $region24
        $region23: #{tpu_custom_call.1} parent=11 // pred_region
          _
        $region24: #{tpu_custom_call.1} parent=11 // pred_fallthru
          _
      $region12: #{tpu_custom_call.1} parent=5 // pred_fallthru
        _
      %p168 = scmp.lt.s32.totalorder %s13, 2
      // Predicated region
      $region25: #{tpu_custom_call.1} parent=5 // pred_check
        %p169 = pneg %p168
      $region26: #{tpu_custom_call.1} parent=5 // pred_check_branch
        %171 = sbr.rel (%p169) target = $region28
      $region27: #{tpu_custom_call.1} parent=5 // pred_region
        // Predicated region
        $region29: #{tpu_custom_call.1} parent=27 // pred_check
          %p172 = pneg %p47
        $region30: #{tpu_custom_call.1} parent=27 // pred_check_branch
          %174 = sbr.rel (%p172) target = $region32
        $region31: #{tpu_custom_call.1} parent=27 // pred_region
          %s175 = smul.u32 128, %s21
          %p176 = scmp.lt.s32.totalorder %s20, 1
          %s177 = scalar_select %p176, %s20, 1
          %p178 = scmp.lt.s32.totalorder %s175, 127
          %s179 = scalar_select %p178, %s175, 127
          %s180 = smul.addr %s177, 128
          %s181 = sadd.s32 %s179, %s180
          %s182 = smul.addr %s181, 8
          %s183 = scalar_lea.vmem %s0, %s182
          %s184 = smul.u32 128, %s21
        $region32: #{tpu_custom_call.1} parent=27 // pred_fallthru
          _
      $region28: #{tpu_custom_call.1} parent=5 // pred_fallthru
        _
      %p185 = scmp.le.s32.totalorder 1, %s13
      %p186 = scmp.lt.s32.totalorder %s13, 3
      %p187 = pnand %p185, %p186
      %p188 = pneg %p187
      // Predicated region
      $region33: #{tpu_custom_call.1} parent=5 // pred_check
        _
      $region34: #{tpu_custom_call.1} parent=5 // pred_check_branch
        %190 = sbr.rel (%p187) target = $region36
      $region35: #{tpu_custom_call.1} parent=5 // pred_region
        %s191 = ssub.s32 %s13, 1
        %s192 = smul.u32 128, %s23
        %p193 = scmp.lt.s32.totalorder %s22, 1
        %s194 = scalar_select %p193, %s22, 1
        %p195 = scmp.lt.s32.totalorder %s192, 127
        %s196 = scalar_select %p195, %s192, 127
        %s197 = smul.addr %s194, 128
        %s198 = sadd.s32 %s196, %s197
        %s199 = smul.addr %s198, 8
        %s200 = scalar_lea.vmem %s0, %s199
        %p201 = pneg %p53
        %p202 = pneg %p50
        %p203 = pneg %p74
        %p204 = pneg %p71
        %p205 = pneg %p95
        %p206 = pneg %p92
        %p207 = pneg %p116
        %p208 = pneg %p113
        %p209 = pneg %p144
        %p210 = pneg %p141
        %s211 = sand.u32 %s131, 1
        %s212 = scalar_lea.sflag [#allocation3], %s211
        %s213 = sand.u32 %s131, 1
        %s214 = smul.addr %s213, 1024
        %s215 = scalar_lea.vmem [#allocation2], %s214
        %s216 = smul.u32 128, %s23
        %p217 = scmp.lt.s32.totalorder %s22, 1
        %s218 = scalar_select %p217, %s22, 1
        %p219 = scmp.lt.s32.totalorder %s216, 127
        %s220 = scalar_select %p219, %s216, 127
        %s221 = smul.addr %s218, 128
        %s222 = sadd.s32 %s220, %s221
        %s223 = smul.addr %s222, 8
        %s224 = scalar_lea.vmem %s0, %s223
        %s225 = smul.u32 128, %s23
        %s226 = smul.u32 32, %s23
        %v228 = vld [vmem:[%s224] sm:$0xff]
        %v229 = vld [vmem:[%s224 + $0x8] sm:$0xff]
        %v230 = vld [vmem:[%s224 + $0x10] sm:$0xff]
        %v231 = vld [vmem:[%s224 + $0x18] sm:$0xff]
        %v232 = vld [vmem:[%s224 + $0x20] sm:$0xff]
        %v233 = vld [vmem:[%s224 + $0x28] sm:$0xff]
        %v234 = vld [vmem:[%s224 + $0x30] sm:$0xff]
        %v235 = vld [vmem:[%s224 + $0x38] sm:$0xff]
        %v236 = vld [vmem:[%s224 + $0x40] sm:$0xff]
        %v237 = vld [vmem:[%s224 + $0x48] sm:$0xff]
        %v238 = vld [vmem:[%s224 + $0x50] sm:$0xff]
        %v239 = vld [vmem:[%s224 + $0x58] sm:$0xff]
        %v240 = vld [vmem:[%s224 + $0x60] sm:$0xff]
        %v241 = vld [vmem:[%s224 + $0x68] sm:$0xff]
        %v242 = vld [vmem:[%s224 + $0x70] sm:$0xff]
        %v243 = vld [vmem:[%s224 + $0x78] sm:$0xff]
        %v244 = vld [vmem:[%s224 + $0x80] sm:$0xff]
        %v245 = vld [vmem:[%s224 + $0x88] sm:$0xff]
        %v246 = vld [vmem:[%s224 + $0x90] sm:$0xff]
        %v247 = vld [vmem:[%s224 + $0x98] sm:$0xff]
        %v248 = vld [vmem:[%s224 + $0xa0] sm:$0xff]
        %v249 = vld [vmem:[%s224 + $0xa8] sm:$0xff]
        %v250 = vld [vmem:[%s224 + $0xb0] sm:$0xff]
        %v251 = vld [vmem:[%s224 + $0xb8] sm:$0xff]
        %v252 = vld [vmem:[%s224 + $0xc0] sm:$0xff]
        %v253 = vld [vmem:[%s224 + $0xc8] sm:$0xff]
        %v254 = vld [vmem:[%s224 + $0xd0] sm:$0xff]
        %v255 = vld [vmem:[%s224 + $0xd8] sm:$0xff]
        %v256 = vld [vmem:[%s224 + $0xe0] sm:$0xff]
        %v257 = vld [vmem:[%s224 + $0xe8] sm:$0xff]
        %v258 = vld [vmem:[%s224 + $0xf0] sm:$0xff]
        %v259 = vld [vmem:[%s224 + $0xf8] sm:$0xff]
        %v260 = vld [vmem:[%s224 + $0x100] sm:$0xff]
        %v261 = vld [vmem:[%s224 + $0x108] sm:$0xff]
        %v262 = vld [vmem:[%s224 + $0x110] sm:$0xff]
        %v263 = vld [vmem:[%s224 + $0x118] sm:$0xff]
        %v264 = vld [vmem:[%s224 + $0x120] sm:$0xff]
        %v265 = vld [vmem:[%s224 + $0x128] sm:$0xff]
        %v266 = vld [vmem:[%s224 + $0x130] sm:$0xff]
        %v267 = vld [vmem:[%s224 + $0x138] sm:$0xff]
        %v268 = vld [vmem:[%s224 + $0x140] sm:$0xff]
        %v269 = vld [vmem:[%s224 + $0x148] sm:$0xff]
        %v270 = vld [vmem:[%s224 + $0x150] sm:$0xff]
        %v271 = vld [vmem:[%s224 + $0x158] sm:$0xff]
        %v272 = vld [vmem:[%s224 + $0x160] sm:$0xff]
        %v273 = vld [vmem:[%s224 + $0x168] sm:$0xff]
        %v274 = vld [vmem:[%s224 + $0x170] sm:$0xff]
        %v275 = vld [vmem:[%s224 + $0x178] sm:$0xff]
        %v276 = vld [vmem:[%s224 + $0x180] sm:$0xff]
        %v277 = vld [vmem:[%s224 + $0x188] sm:$0xff]
        %v278 = vld [vmem:[%s224 + $0x190] sm:$0xff]
        %v279 = vld [vmem:[%s224 + $0x198] sm:$0xff]
        %v280 = vld [vmem:[%s224 + $0x1a0] sm:$0xff]
        %v281 = vld [vmem:[%s224 + $0x1a8] sm:$0xff]
        %v282 = vld [vmem:[%s224 + $0x1b0] sm:$0xff]
        %v283 = vld [vmem:[%s224 + $0x1b8] sm:$0xff]
        %v284 = vld [vmem:[%s224 + $0x1c0] sm:$0xff]
        %v285 = vld [vmem:[%s224 + $0x1c8] sm:$0xff]
        %v286 = vld [vmem:[%s224 + $0x1d0] sm:$0xff]
        %v287 = vld [vmem:[%s224 + $0x1d8] sm:$0xff]
        %v288 = vld [vmem:[%s224 + $0x1e0] sm:$0xff]
        %v289 = vld [vmem:[%s224 + $0x1e8] sm:$0xff]
        %v290 = vld [vmem:[%s224 + $0x1f0] sm:$0xff]
        %v291 = vld [vmem:[%s224 + $0x1f8] sm:$0xff]
        %v292 = vld [vmem:[%s224 + $0x200] sm:$0xff]
        %v293 = vld [vmem:[%s224 + $0x208] sm:$0xff]
        %v294 = vld [vmem:[%s224 + $0x210] sm:$0xff]
        %v295 = vld [vmem:[%s224 + $0x218] sm:$0xff]
        %v296 = vld [vmem:[%s224 + $0x220] sm:$0xff]
        %v297 = vld [vmem:[%s224 + $0x228] sm:$0xff]
        %v298 = vld [vmem:[%s224 + $0x230] sm:$0xff]
        %v299 = vld [vmem:[%s224 + $0x238] sm:$0xff]
        %v300 = vld [vmem:[%s224 + $0x240] sm:$0xff]
        %v301 = vld [vmem:[%s224 + $0x248] sm:$0xff]
        %v302 = vld [vmem:[%s224 + $0x250] sm:$0xff]
        %v303 = vld [vmem:[%s224 + $0x258] sm:$0xff]
        %v304 = vld [vmem:[%s224 + $0x260] sm:$0xff]
        %v305 = vld [vmem:[%s224 + $0x268] sm:$0xff]
        %v306 = vld [vmem:[%s224 + $0x270] sm:$0xff]
        %v307 = vld [vmem:[%s224 + $0x278] sm:$0xff]
        %v308 = vld [vmem:[%s224 + $0x280] sm:$0xff]
        %v309 = vld [vmem:[%s224 + $0x288] sm:$0xff]
        %v310 = vld [vmem:[%s224 + $0x290] sm:$0xff]
        %v311 = vld [vmem:[%s224 + $0x298] sm:$0xff]
        %v312 = vld [vmem:[%s224 + $0x2a0] sm:$0xff]
        %v313 = vld [vmem:[%s224 + $0x2a8] sm:$0xff]
        %v314 = vld [vmem:[%s224 + $0x2b0] sm:$0xff]
        %v315 = vld [vmem:[%s224 + $0x2b8] sm:$0xff]
        %v316 = vld [vmem:[%s224 + $0x2c0] sm:$0xff]
        %v317 = vld [vmem:[%s224 + $0x2c8] sm:$0xff]
        %v318 = vld [vmem:[%s224 + $0x2d0] sm:$0xff]
        %v319 = vld [vmem:[%s224 + $0x2d8] sm:$0xff]
        %v320 = vld [vmem:[%s224 + $0x2e0] sm:$0xff]
        %v321 = vld [vmem:[%s224 + $0x2e8] sm:$0xff]
        %v322 = vld [vmem:[%s224 + $0x2f0] sm:$0xff]
        %v323 = vld [vmem:[%s224 + $0x2f8] sm:$0xff]
        %v324 = vld [vmem:[%s224 + $0x300] sm:$0xff]
        %v325 = vld [vmem:[%s224 + $0x308] sm:$0xff]
        %v326 = vld [vmem:[%s224 + $0x310] sm:$0xff]
        %v327 = vld [vmem:[%s224 + $0x318] sm:$0xff]
        %v328 = vld [vmem:[%s224 + $0x320] sm:$0xff]
        %v329 = vld [vmem:[%s224 + $0x328] sm:$0xff]
        %v330 = vld [vmem:[%s224 + $0x330] sm:$0xff]
        %v331 = vld [vmem:[%s224 + $0x338] sm:$0xff]
        %v332 = vld [vmem:[%s224 + $0x340] sm:$0xff]
        %v333 = vld [vmem:[%s224 + $0x348] sm:$0xff]
        %v334 = vld [vmem:[%s224 + $0x350] sm:$0xff]
        %v335 = vld [vmem:[%s224 + $0x358] sm:$0xff]
        %v336 = vld [vmem:[%s224 + $0x360] sm:$0xff]
        %v337 = vld [vmem:[%s224 + $0x368] sm:$0xff]
        %v338 = vld [vmem:[%s224 + $0x370] sm:$0xff]
        %v339 = vld [vmem:[%s224 + $0x378] sm:$0xff]
        %v340 = vld [vmem:[%s224 + $0x380] sm:$0xff]
        %v341 = vld [vmem:[%s224 + $0x388] sm:$0xff]
        %v342 = vld [vmem:[%s224 + $0x390] sm:$0xff]
        %v343 = vld [vmem:[%s224 + $0x398] sm:$0xff]
        %v344 = vld [vmem:[%s224 + $0x3a0] sm:$0xff]
        %v345 = vld [vmem:[%s224 + $0x3a8] sm:$0xff]
        %v346 = vld [vmem:[%s224 + $0x3b0] sm:$0xff]
        %v347 = vld [vmem:[%s224 + $0x3b8] sm:$0xff]
        %v348 = vld [vmem:[%s224 + $0x3c0] sm:$0xff]
        %v349 = vld [vmem:[%s224 + $0x3c8] sm:$0xff]
        %v350 = vld [vmem:[%s224 + $0x3d0] sm:$0xff]
        %v351 = vld [vmem:[%s224 + $0x3d8] sm:$0xff]
        %v352 = vld [vmem:[%s224 + $0x3e0] sm:$0xff]
        %v353 = vld [vmem:[%s224 + $0x3e8] sm:$0xff]
        %v354 = vld [vmem:[%s224 + $0x3f0] sm:$0xff]
        %v355 = vld [vmem:[%s224 + $0x3f8] sm:$0xff]
        %v356 = vpack.c.bf16 %v229, %v228
        %v357 = vpack.c.bf16 %v231, %v230
        %v358 = vpack.c.bf16 %v233, %v232
        %v359 = vpack.c.bf16 %v235, %v234
        %v360 = vpack.c.bf16 %v237, %v236
        %v361 = vpack.c.bf16 %v239, %v238
        %v362 = vpack.c.bf16 %v241, %v240
        %v363 = vpack.c.bf16 %v243, %v242
        %v364 = vpack.c.bf16 %v245, %v244
        %v365 = vpack.c.bf16 %v247, %v246
        %v366 = vpack.c.bf16 %v249, %v248
        %v367 = vpack.c.bf16 %v251, %v250
        %v368 = vpack.c.bf16 %v253, %v252
        %v369 = vpack.c.bf16 %v255, %v254
        %v370 = vpack.c.bf16 %v257, %v256
        %v371 = vpack.c.bf16 %v259, %v258
        %v372 = vpack.c.bf16 %v261, %v260
        %v373 = vpack.c.bf16 %v263, %v262
        %v374 = vpack.c.bf16 %v265, %v264
        %v375 = vpack.c.bf16 %v267, %v266
        %v376 = vpack.c.bf16 %v269, %v268
        %v377 = vpack.c.bf16 %v271, %v270
        %v378 = vpack.c.bf16 %v273, %v272
        %v379 = vpack.c.bf16 %v275, %v274
        %v380 = vpack.c.bf16 %v277, %v276
        %v381 = vpack.c.bf16 %v279, %v278
        %v382 = vpack.c.bf16 %v281, %v280
        %v383 = vpack.c.bf16 %v283, %v282
        %v384 = vpack.c.bf16 %v285, %v284
        %v385 = vpack.c.bf16 %v287, %v286
        %v386 = vpack.c.bf16 %v289, %v288
        %v387 = vpack.c.bf16 %v291, %v290
        %v388 = vpack.c.bf16 %v293, %v292
        %v389 = vpack.c.bf16 %v295, %v294
        %v390 = vpack.c.bf16 %v297, %v296
        %v391 = vpack.c.bf16 %v299, %v298
        %v392 = vpack.c.bf16 %v301, %v300
        %v393 = vpack.c.bf16 %v303, %v302
        %v394 = vpack.c.bf16 %v305, %v304
        %v395 = vpack.c.bf16 %v307, %v306
        %v396 = vpack.c.bf16 %v309, %v308
        %v397 = vpack.c.bf16 %v311, %v310
        %v398 = vpack.c.bf16 %v313, %v312
        %v399 = vpack.c.bf16 %v315, %v314
        %v400 = vpack.c.bf16 %v317, %v316
        %v401 = vpack.c.bf16 %v319, %v318
        %v402 = vpack.c.bf16 %v321, %v320
        %v403 = vpack.c.bf16 %v323, %v322
        %v404 = vpack.c.bf16 %v325, %v324
        %v405 = vpack.c.bf16 %v327, %v326
        %v406 = vpack.c.bf16 %v329, %v328
        %v407 = vpack.c.bf16 %v331, %v330
        %v408 = vpack.c.bf16 %v333, %v332
        %v409 = vpack.c.bf16 %v335, %v334
        %v410 = vpack.c.bf16 %v337, %v336
        %v411 = vpack.c.bf16 %v339, %v338
        %v412 = vpack.c.bf16 %v341, %v340
        %v413 = vpack.c.bf16 %v343, %v342
        %v414 = vpack.c.bf16 %v345, %v344
        %v415 = vpack.c.bf16 %v347, %v346
        %v416 = vpack.c.bf16 %v349, %v348
        %v417 = vpack.c.bf16 %v351, %v350
        %v418 = vpack.c.bf16 %v353, %v352
        %v419 = vpack.c.bf16 %v355, %v354
        %v420 = vld [vmem:[%s2] sm:$0x1]
        %v421 = vld [vmem:[%s3] sm:$0x1]
        %v422 = vld [vmem:[%s1] sm:$0xf]
        %v423 = vld [vmem:[%s1 + $0x4] sm:$0xf]
        %v424 = vld [vmem:[%s1 + $0x8] sm:$0xf]
        %v425 = vld [vmem:[%s1 + $0xc] sm:$0xf]
        %v426 = vld [vmem:[%s1 + $0x10] sm:$0xf]
        %v427 = vld [vmem:[%s1 + $0x14] sm:$0xf]
        %v428 = vld [vmem:[%s1 + $0x18] sm:$0xf]
        %v429 = vld [vmem:[%s1 + $0x1c] sm:$0xf]
        %v438 = vunpack.c.l.b16 %v422
        %v439 = vunpack.c.l.b16 %v423
        %v440 = vunpack.c.l.b16 %v424
        %v441 = vunpack.c.l.b16 %v425
        %v442 = vunpack.c.l.b16 %v426
        %v443 = vunpack.c.l.b16 %v427
        %v444 = vunpack.c.l.b16 %v428
        %v445 = vunpack.c.l.b16 %v429
        %v446 = vpack.c.b16 %v439, %v438
        %v447 = vpack.c.b16 %v441, %v440
        %v448 = vpack.c.b16 %v443, %v442
        %v449 = vpack.c.b16 %v445, %v444
        %vm454 = vcmask 523264
        %v456 = vsel %vm454, %v356, 0
        %v459 = vsel %vm454, %v357, 0
        %v462 = vsel %vm454, %v358, 0
        %v465 = vsel %vm454, %v359, 0
        %v468 = vsel %vm454, %v360, 0
        %v471 = vsel %vm454, %v361, 0
        %v474 = vsel %vm454, %v362, 0
        %v477 = vsel %vm454, %v363, 0
        %v480 = vsel %vm454, %v364, 0
        %v483 = vsel %vm454, %v365, 0
        %v486 = vsel %vm454, %v366, 0
        %v489 = vsel %vm454, %v367, 0
        %v492 = vsel %vm454, %v368, 0
        %v495 = vsel %vm454, %v369, 0
        %v498 = vsel %vm454, %v370, 0
        %v501 = vsel %vm454, %v371, 0
        %v504 = vsel %vm454, %v372, 0
        %v507 = vsel %vm454, %v373, 0
        %v510 = vsel %vm454, %v374, 0
        %v513 = vsel %vm454, %v375, 0
        %v516 = vsel %vm454, %v376, 0
        %v519 = vsel %vm454, %v377, 0
        %v522 = vsel %vm454, %v378, 0
        %v525 = vsel %vm454, %v379, 0
        %v528 = vsel %vm454, %v380, 0
        %v531 = vsel %vm454, %v381, 0
        %v534 = vsel %vm454, %v382, 0
        %v537 = vsel %vm454, %v383, 0
        %v540 = vsel %vm454, %v384, 0
        %v543 = vsel %vm454, %v385, 0
        %v546 = vsel %vm454, %v386, 0
        %v549 = vsel %vm454, %v387, 0
        %v552 = vsel %vm454, %v388, 0
        %v555 = vsel %vm454, %v389, 0
        %v558 = vsel %vm454, %v390, 0
        %v561 = vsel %vm454, %v391, 0
        %v564 = vsel %vm454, %v392, 0
        %v567 = vsel %vm454, %v393, 0
        %v570 = vsel %vm454, %v394, 0
        %v573 = vsel %vm454, %v395, 0
        %v576 = vsel %vm454, %v396, 0
        %v579 = vsel %vm454, %v397, 0
        %v582 = vsel %vm454, %v398, 0
        %v585 = vsel %vm454, %v399, 0
        %v588 = vsel %vm454, %v400, 0
        %v591 = vsel %vm454, %v401, 0
        %v594 = vsel %vm454, %v402, 0
        %v597 = vsel %vm454, %v403, 0
        %v600 = vsel %vm454, %v404, 0
        %v603 = vsel %vm454, %v405, 0
        %v606 = vsel %vm454, %v406, 0
        %v609 = vsel %vm454, %v407, 0
        %v612 = vsel %vm454, %v408, 0
        %v615 = vsel %vm454, %v409, 0
        %v618 = vsel %vm454, %v410, 0
        %v621 = vsel %vm454, %v411, 0
        %v624 = vsel %vm454, %v412, 0
        %v627 = vsel %vm454, %v413, 0
        %v630 = vsel %vm454, %v414, 0
        %v633 = vsel %vm454, %v415, 0
        %v636 = vsel %vm454, %v416, 0
        %v639 = vsel %vm454, %v417, 0
        %v642 = vsel %vm454, %v418, 0
        %v645 = vsel %vm454, %v419, 0
        %647 = vmatprep.subr.bf16.mxu0 0
        %648 = vmatpush1.bf16.msra.mxu0 0
        %649 = vmatprep.subr.bf16.mxu0 0
        %650 = vmatpush1.bf16.msra.mxu0 0
        %651 = vmatprep.subr.bf16.mxu0 0
        %652 = vmatpush1.bf16.msra.mxu0 0
        %653 = vmatprep.subr.bf16.mxu0 0
        %654 = vmatpush1.bf16.msra.mxu0 0
        %655 = vmatprep.subr.bf16.mxu0 0
        %656 = vmatpush1.bf16.msra.mxu0 %v449
        %657 = vmatprep.subr.bf16.mxu0 0
        %658 = vmatpush1.bf16.msra.mxu0 %v448
        %659 = vmatprep.subr.bf16.mxu0 0
        %660 = vmatpush1.bf16.msra.mxu0 %v447
        %661 = vmatprep.subr.bf16.mxu0 0
        %662 = vmatpush1.bf16.msra.mxu0 %v446
        %663 = vmatprep.subr.bf16.mxu0 0
        %664 = vmatpush2.bf16.msra.mxu0 0
        %665 = vmatprep.subr.bf16.mxu0 0
        %666 = vmatpush2.bf16.msra.mxu0 0
        %667 = vmatprep.subr.bf16.mxu0 0
        %668 = vmatpush2.bf16.msra.mxu0 0
        %669 = vmatprep.subr.bf16.mxu0 0
        %670 = vmatpush2.bf16.msra.mxu0 0
        %671 = vmatprep.subr.bf16.mxu0 0
        %672 = vmatpush2.bf16.msra.mxu0 0
        %673 = vmatprep.subr.bf16.mxu0 0
        %674 = vmatpush2.bf16.msra.mxu0 0
        %675 = vmatprep.subr.bf16.mxu0 0
        %676 = vmatpush2.bf16.msra.mxu0 0
        %677 = vmatprep.subr.bf16.mxu0 0
        %678 = vmatpush2.bf16.msra.mxu0 0
        %679 = vmatprep.mubr.bf16.mxu0 0
        %680 = vmatmul.mubr.bf16.gmra.mxu0 %v456
        %v681 = vpop.f32.mrf.mxu0
        %v682 = vadd.f32 0.0, %v681
        %v683 = vpop.f32.mrf.mxu0
        %v684 = vpop.f32.mrf.mxu0
        %v685 = vadd.f32 0.0, %v684
        %v686 = vpop.f32.mrf.mxu0
        %687 = vmatprep.mubr.bf16.mxu0 0
        %688 = vmatmul.mubr.bf16.gmra.mxu0 %v459
        %v689 = vpop.f32.mrf.mxu0
        %v690 = vadd.f32 0.0, %v689
        %v691 = vpop.f32.mrf.mxu0
        %v692 = vpop.f32.mrf.mxu0
        %v693 = vadd.f32 0.0, %v692
        %v694 = vpop.f32.mrf.mxu0
        %695 = vmatprep.mubr.bf16.mxu0 0
        %696 = vmatmul.mubr.bf16.gmra.mxu0 %v462
        %v697 = vpop.f32.mrf.mxu0
        %v698 = vadd.f32 0.0, %v697
        %v699 = vpop.f32.mrf.mxu0
        %v700 = vpop.f32.mrf.mxu0
        %v701 = vadd.f32 0.0, %v700
        %v702 = vpop.f32.mrf.mxu0
        %703 = vmatprep.mubr.bf16.mxu0 0
        %704 = vmatmul.mubr.bf16.gmra.mxu0 %v465
        %v705 = vpop.f32.mrf.mxu0
        %v706 = vadd.f32 0.0, %v705
        %v707 = vpop.f32.mrf.mxu0
        %v708 = vpop.f32.mrf.mxu0
        %v709 = vadd.f32 0.0, %v708
        %v710 = vpop.f32.mrf.mxu0
        %711 = vmatprep.mubr.bf16.mxu0 0
        %712 = vmatmul.mubr.bf16.gmra.mxu0 %v468
        %v713 = vpop.f32.mrf.mxu0
        %v714 = vadd.f32 0.0, %v713
        %v715 = vpop.f32.mrf.mxu0
        %v716 = vpop.f32.mrf.mxu0
        %v717 = vadd.f32 0.0, %v716
        %v718 = vpop.f32.mrf.mxu0
        %719 = vmatprep.mubr.bf16.mxu0 0
        %720 = vmatmul.mubr.bf16.gmra.mxu0 %v471
        %v721 = vpop.f32.mrf.mxu0
        %v722 = vadd.f32 0.0, %v721
        %v723 = vpop.f32.mrf.mxu0
        %v724 = vpop.f32.mrf.mxu0
        %v725 = vadd.f32 0.0, %v724
        %v726 = vpop.f32.mrf.mxu0
        %727 = vmatprep.mubr.bf16.mxu0 0
        %728 = vmatmul.mubr.bf16.gmra.mxu0 %v474
        %v729 = vpop.f32.mrf.mxu0
        %v730 = vadd.f32 0.0, %v729
        %v731 = vpop.f32.mrf.mxu0
        %v732 = vpop.f32.mrf.mxu0
        %v733 = vadd.f32 0.0, %v732
        %v734 = vpop.f32.mrf.mxu0
        %735 = vmatprep.mubr.bf16.mxu0 0
        %736 = vmatmul.mubr.bf16.gmra.mxu0 %v477
        %v737 = vpop.f32.mrf.mxu0
        %v738 = vadd.f32 0.0, %v737
        %v739 = vpop.f32.mrf.mxu0
        %v740 = vpop.f32.mrf.mxu0
        %v741 = vadd.f32 0.0, %v740
        %v742 = vpop.f32.mrf.mxu0
        %743 = vmatprep.mubr.bf16.mxu0 0
        %744 = vmatmul.mubr.bf16.gmra.mxu0 %v480
        %v745 = vpop.f32.mrf.mxu0
        %v746 = vadd.f32 0.0, %v745
        %v747 = vpop.f32.mrf.mxu0
        %v748 = vpop.f32.mrf.mxu0
        %v749 = vadd.f32 0.0, %v748
        %v750 = vpop.f32.mrf.mxu0
        %751 = vmatprep.mubr.bf16.mxu0 0
        %752 = vmatmul.mubr.bf16.gmra.mxu0 %v483
        %v753 = vpop.f32.mrf.mxu0
        %v754 = vadd.f32 0.0, %v753
        %v755 = vpop.f32.mrf.mxu0
        %v756 = vpop.f32.mrf.mxu0
        %v757 = vadd.f32 0.0, %v756
        %v758 = vpop.f32.mrf.mxu0
        %759 = vmatprep.mubr.bf16.mxu0 0
        %760 = vmatmul.mubr.bf16.gmra.mxu0 %v486
        %v761 = vpop.f32.mrf.mxu0
        %v762 = vadd.f32 0.0, %v761
        %v763 = vpop.f32.mrf.mxu0
        %v764 = vpop.f32.mrf.mxu0
        %v765 = vadd.f32 0.0, %v764
        %v766 = vpop.f32.mrf.mxu0
        %767 = vmatprep.mubr.bf16.mxu0 0
        %768 = vmatmul.mubr.bf16.gmra.mxu0 %v489
        %v769 = vpop.f32.mrf.mxu0
        %v770 = vadd.f32 0.0, %v769
        %v771 = vpop.f32.mrf.mxu0
        %v772 = vpop.f32.mrf.mxu0
        %v773 = vadd.f32 0.0, %v772
        %v774 = vpop.f32.mrf.mxu0
        %775 = vmatprep.mubr.bf16.mxu0 0
        %776 = vmatmul.mubr.bf16.gmra.mxu0 %v492
        %v777 = vpop.f32.mrf.mxu0
        %v778 = vadd.f32 0.0, %v777
        %v779 = vpop.f32.mrf.mxu0
        %v780 = vpop.f32.mrf.mxu0
        %v781 = vadd.f32 0.0, %v780
        %v782 = vpop.f32.mrf.mxu0
        %783 = vmatprep.mubr.bf16.mxu0 0
        %784 = vmatmul.mubr.bf16.gmra.mxu0 %v495
        %v785 = vpop.f32.mrf.mxu0
        %v786 = vadd.f32 0.0, %v785
        %v787 = vpop.f32.mrf.mxu0
        %v788 = vpop.f32.mrf.mxu0
        %v789 = vadd.f32 0.0, %v788
        %v790 = vpop.f32.mrf.mxu0
        %791 = vmatprep.mubr.bf16.mxu0 0
        %792 = vmatmul.mubr.bf16.gmra.mxu0 %v498
        %v793 = vpop.f32.mrf.mxu0
        %v794 = vadd.f32 0.0, %v793
        %v795 = vpop.f32.mrf.mxu0
        %v796 = vpop.f32.mrf.mxu0
        %v797 = vadd.f32 0.0, %v796
        %v798 = vpop.f32.mrf.mxu0
        %799 = vmatprep.mubr.bf16.mxu0 0
        %800 = vmatmul.mubr.bf16.gmra.mxu0 %v501
        %v801 = vpop.f32.mrf.mxu0
        %v802 = vadd.f32 0.0, %v801
        %v803 = vpop.f32.mrf.mxu0
        %v804 = vpop.f32.mrf.mxu0
        %v805 = vadd.f32 0.0, %v804
        %v806 = vpop.f32.mrf.mxu0
        %807 = vmatprep.mubr.bf16.mxu0 0
        %808 = vmatmul.mubr.bf16.gmra.mxu0 %v504
        %v809 = vpop.f32.mrf.mxu0
        %v810 = vadd.f32 0.0, %v809
        %v811 = vpop.f32.mrf.mxu0
        %v812 = vpop.f32.mrf.mxu0
        %v813 = vadd.f32 0.0, %v812
        %v814 = vpop.f32.mrf.mxu0
        %815 = vmatprep.mubr.bf16.mxu0 0
        %816 = vmatmul.mubr.bf16.gmra.mxu0 %v507
        %v817 = vpop.f32.mrf.mxu0
        %v818 = vadd.f32 0.0, %v817
        %v819 = vpop.f32.mrf.mxu0
        %v820 = vpop.f32.mrf.mxu0
        %v821 = vadd.f32 0.0, %v820
        %v822 = vpop.f32.mrf.mxu0
        %823 = vmatprep.mubr.bf16.mxu0 0
        %824 = vmatmul.mubr.bf16.gmra.mxu0 %v510
        %v825 = vpop.f32.mrf.mxu0
        %v826 = vadd.f32 0.0, %v825
        %v827 = vpop.f32.mrf.mxu0
        %v828 = vpop.f32.mrf.mxu0
        %v829 = vadd.f32 0.0, %v828
        %v830 = vpop.f32.mrf.mxu0
        %831 = vmatprep.mubr.bf16.mxu0 0
        %832 = vmatmul.mubr.bf16.gmra.mxu0 %v513
        %v833 = vpop.f32.mrf.mxu0
        %v834 = vadd.f32 0.0, %v833
        %v835 = vpop.f32.mrf.mxu0
        %v836 = vpop.f32.mrf.mxu0
        %v837 = vadd.f32 0.0, %v836
        %v838 = vpop.f32.mrf.mxu0
        %839 = vmatprep.mubr.bf16.mxu0 0
        %840 = vmatmul.mubr.bf16.gmra.mxu0 %v516
        %v841 = vpop.f32.mrf.mxu0
        %v842 = vadd.f32 0.0, %v841
        %v843 = vpop.f32.mrf.mxu0
        %v844 = vpop.f32.mrf.mxu0
        %v845 = vadd.f32 0.0, %v844
        %v846 = vpop.f32.mrf.mxu0
        %847 = vmatprep.mubr.bf16.mxu0 0
        %848 = vmatmul.mubr.bf16.gmra.mxu0 %v519
        %v849 = vpop.f32.mrf.mxu0
        %v850 = vadd.f32 0.0, %v849
        %v851 = vpop.f32.mrf.mxu0
        %v852 = vpop.f32.mrf.mxu0
        %v853 = vadd.f32 0.0, %v852
        %v854 = vpop.f32.mrf.mxu0
        %855 = vmatprep.mubr.bf16.mxu0 0
        %856 = vmatmul.mubr.bf16.gmra.mxu0 %v522
        %v857 = vpop.f32.mrf.mxu0
        %v858 = vadd.f32 0.0, %v857
        %v859 = vpop.f32.mrf.mxu0
        %v860 = vpop.f32.mrf.mxu0
        %v861 = vadd.f32 0.0, %v860
        %v862 = vpop.f32.mrf.mxu0
        %863 = vmatprep.mubr.bf16.mxu0 0
        %864 = vmatmul.mubr.bf16.gmra.mxu0 %v525
        %v865 = vpop.f32.mrf.mxu0
        %v866 = vadd.f32 0.0, %v865
        %v867 = vpop.f32.mrf.mxu0
        %v868 = vpop.f32.mrf.mxu0
        %v869 = vadd.f32 0.0, %v868
        %v870 = vpop.f32.mrf.mxu0
        %871 = vmatprep.mubr.bf16.mxu0 0
        %872 = vmatmul.mubr.bf16.gmra.mxu0 %v528
        %v873 = vpop.f32.mrf.mxu0
        %v874 = vadd.f32 0.0, %v873
        %v875 = vpop.f32.mrf.mxu0
        %v876 = vpop.f32.mrf.mxu0
        %v877 = vadd.f32 0.0, %v876
        %v878 = vpop.f32.mrf.mxu0
        %879 = vmatprep.mubr.bf16.mxu0 0
        %880 = vmatmul.mubr.bf16.gmra.mxu0 %v531
        %v881 = vpop.f32.mrf.mxu0
        %v882 = vadd.f32 0.0, %v881
        %v883 = vpop.f32.mrf.mxu0
        %v884 = vpop.f32.mrf.mxu0
        %v885 = vadd.f32 0.0, %v884
        %v886 = vpop.f32.mrf.mxu0
        %887 = vmatprep.mubr.bf16.mxu0 0
        %888 = vmatmul.mubr.bf16.gmra.mxu0 %v534
        %v889 = vpop.f32.mrf.mxu0
        %v890 = vadd.f32 0.0, %v889
        %v891 = vpop.f32.mrf.mxu0
        %v892 = vpop.f32.mrf.mxu0
        %v893 = vadd.f32 0.0, %v892
        %v894 = vpop.f32.mrf.mxu0
        %895 = vmatprep.mubr.bf16.mxu0 0
        %896 = vmatmul.mubr.bf16.gmra.mxu0 %v537
        %v897 = vpop.f32.mrf.mxu0
        %v898 = vadd.f32 0.0, %v897
        %v899 = vpop.f32.mrf.mxu0
        %v900 = vpop.f32.mrf.mxu0
        %v901 = vadd.f32 0.0, %v900
        %v902 = vpop.f32.mrf.mxu0
        %903 = vmatprep.mubr.bf16.mxu0 0
        %904 = vmatmul.mubr.bf16.gmra.mxu0 %v540
        %v905 = vpop.f32.mrf.mxu0
        %v906 = vadd.f32 0.0, %v905
        %v907 = vpop.f32.mrf.mxu0
        %v908 = vpop.f32.mrf.mxu0
        %v909 = vadd.f32 0.0, %v908
        %v910 = vpop.f32.mrf.mxu0
        %911 = vmatprep.mubr.bf16.mxu0 0
        %912 = vmatmul.mubr.bf16.gmra.mxu0 %v543
        %v913 = vpop.f32.mrf.mxu0
        %v914 = vadd.f32 0.0, %v913
        %v915 = vpop.f32.mrf.mxu0
        %v916 = vpop.f32.mrf.mxu0
        %v917 = vadd.f32 0.0, %v916
        %v918 = vpop.f32.mrf.mxu0
        %919 = vmatprep.mubr.bf16.mxu0 0
        %920 = vmatmul.mubr.bf16.gmra.mxu0 %v546
        %v921 = vpop.f32.mrf.mxu0
        %v922 = vadd.f32 0.0, %v921
        %v923 = vpop.f32.mrf.mxu0
        %v924 = vpop.f32.mrf.mxu0
        %v925 = vadd.f32 0.0, %v924
        %v926 = vpop.f32.mrf.mxu0
        %927 = vmatprep.mubr.bf16.mxu0 0
        %928 = vmatmul.mubr.bf16.gmra.mxu0 %v549
        %v929 = vpop.f32.mrf.mxu0
        %v930 = vadd.f32 0.0, %v929
        %v931 = vpop.f32.mrf.mxu0
        %v932 = vpop.f32.mrf.mxu0
        %v933 = vadd.f32 0.0, %v932
        %v934 = vpop.f32.mrf.mxu0
        %935 = vmatprep.mubr.bf16.mxu0 0
        %936 = vmatmul.mubr.bf16.gmra.mxu0 %v552
        %v937 = vpop.f32.mrf.mxu0
        %v938 = vadd.f32 0.0, %v937
        %v939 = vpop.f32.mrf.mxu0
        %v940 = vpop.f32.mrf.mxu0
        %v941 = vadd.f32 0.0, %v940
        %v942 = vpop.f32.mrf.mxu0
        %943 = vmatprep.mubr.bf16.mxu0 0
        %944 = vmatmul.mubr.bf16.gmra.mxu0 %v555
        %v945 = vpop.f32.mrf.mxu0
        %v946 = vadd.f32 0.0, %v945
        %v947 = vpop.f32.mrf.mxu0
        %v948 = vpop.f32.mrf.mxu0
        %v949 = vadd.f32 0.0, %v948
        %v950 = vpop.f32.mrf.mxu0
        %951 = vmatprep.mubr.bf16.mxu0 0
        %952 = vmatmul.mubr.bf16.gmra.mxu0 %v558
        %v953 = vpop.f32.mrf.mxu0
        %v954 = vadd.f32 0.0, %v953
        %v955 = vpop.f32.mrf.mxu0
        %v956 = vpop.f32.mrf.mxu0
        %v957 = vadd.f32 0.0, %v956
        %v958 = vpop.f32.mrf.mxu0
        %959 = vmatprep.mubr.bf16.mxu0 0
        %960 = vmatmul.mubr.bf16.gmra.mxu0 %v561
        %v961 = vpop.f32.mrf.mxu0
        %v962 = vadd.f32 0.0, %v961
        %v963 = vpop.f32.mrf.mxu0
        %v964 = vpop.f32.mrf.mxu0
        %v965 = vadd.f32 0.0, %v964
        %v966 = vpop.f32.mrf.mxu0
        %967 = vmatprep.mubr.bf16.mxu0 0
        %968 = vmatmul.mubr.bf16.gmra.mxu0 %v564
        %v969 = vpop.f32.mrf.mxu0
        %v970 = vadd.f32 0.0, %v969
        %v971 = vpop.f32.mrf.mxu0
        %v972 = vpop.f32.mrf.mxu0
        %v973 = vadd.f32 0.0, %v972
        %v974 = vpop.f32.mrf.mxu0
        %975 = vmatprep.mubr.bf16.mxu0 0
        %976 = vmatmul.mubr.bf16.gmra.mxu0 %v567
        %v977 = vpop.f32.mrf.mxu0
        %v978 = vadd.f32 0.0, %v977
        %v979 = vpop.f32.mrf.mxu0
        %v980 = vpop.f32.mrf.mxu0
        %v981 = vadd.f32 0.0, %v980
        %v982 = vpop.f32.mrf.mxu0
        %983 = vmatprep.mubr.bf16.mxu0 0
        %984 = vmatmul.mubr.bf16.gmra.mxu0 %v570
        %v985 = vpop.f32.mrf.mxu0
        %v986 = vadd.f32 0.0, %v985
        %v987 = vpop.f32.mrf.mxu0
        %v988 = vpop.f32.mrf.mxu0
        %v989 = vadd.f32 0.0, %v988
        %v990 = vpop.f32.mrf.mxu0
        %991 = vmatprep.mubr.bf16.mxu0 0
        %992 = vmatmul.mubr.bf16.gmra.mxu0 %v573
        %v993 = vpop.f32.mrf.mxu0
        %v994 = vadd.f32 0.0, %v993
        %v995 = vpop.f32.mrf.mxu0
        %v996 = vpop.f32.mrf.mxu0
        %v997 = vadd.f32 0.0, %v996
        %v998 = vpop.f32.mrf.mxu0
        %999 = vmatprep.mubr.bf16.mxu0 0
        %1000 = vmatmul.mubr.bf16.gmra.mxu0 %v576
        %v1001 = vpop.f32.mrf.mxu0
        %v1002 = vadd.f32 0.0, %v1001
        %v1003 = vpop.f32.mrf.mxu0
        %v1004 = vpop.f32.mrf.mxu0
        %v1005 = vadd.f32 0.0, %v1004
        %v1006 = vpop.f32.mrf.mxu0
        %1007 = vmatprep.mubr.bf16.mxu0 0
        %1008 = vmatmul.mubr.bf16.gmra.mxu0 %v579
        %v1009 = vpop.f32.mrf.mxu0
        %v1010 = vadd.f32 0.0, %v1009
        %v1011 = vpop.f32.mrf.mxu0
        %v1012 = vpop.f32.mrf.mxu0
        %v1013 = vadd.f32 0.0, %v1012
        %v1014 = vpop.f32.mrf.mxu0
        %1015 = vmatprep.mubr.bf16.mxu0 0
        %1016 = vmatmul.mubr.bf16.gmra.mxu0 %v582
        %v1017 = vpop.f32.mrf.mxu0
        %v1018 = vadd.f32 0.0, %v1017
        %v1019 = vpop.f32.mrf.mxu0
        %v1020 = vpop.f32.mrf.mxu0
        %v1021 = vadd.f32 0.0, %v1020
        %v1022 = vpop.f32.mrf.mxu0
        %1023 = vmatprep.mubr.bf16.mxu0 0
        %1024 = vmatmul.mubr.bf16.gmra.mxu0 %v585
        %v1025 = vpop.f32.mrf.mxu0
        %v1026 = vadd.f32 0.0, %v1025
        %v1027 = vpop.f32.mrf.mxu0
        %v1028 = vpop.f32.mrf.mxu0
        %v1029 = vadd.f32 0.0, %v1028
        %v1030 = vpop.f32.mrf.mxu0
        %1031 = vmatprep.mubr.bf16.mxu0 0
        %1032 = vmatmul.mubr.bf16.gmra.mxu0 %v588
        %v1033 = vpop.f32.mrf.mxu0
        %v1034 = vadd.f32 0.0, %v1033
        %v1035 = vpop.f32.mrf.mxu0
        %v1036 = vpop.f32.mrf.mxu0
        %v1037 = vadd.f32 0.0, %v1036
        %v1038 = vpop.f32.mrf.mxu0
        %1039 = vmatprep.mubr.bf16.mxu0 0
        %1040 = vmatmul.mubr.bf16.gmra.mxu0 %v591
        %v1041 = vpop.f32.mrf.mxu0
        %v1042 = vadd.f32 0.0, %v1041
        %v1043 = vpop.f32.mrf.mxu0
        %v1044 = vpop.f32.mrf.mxu0
        %v1045 = vadd.f32 0.0, %v1044
        %v1046 = vpop.f32.mrf.mxu0
        %1047 = vmatprep.mubr.bf16.mxu0 0
        %1048 = vmatmul.mubr.bf16.gmra.mxu0 %v594
        %v1049 = vpop.f32.mrf.mxu0
        %v1050 = vadd.f32 0.0, %v1049
        %v1051 = vpop.f32.mrf.mxu0
        %v1052 = vpop.f32.mrf.mxu0
        %v1053 = vadd.f32 0.0, %v1052
        %v1054 = vpop.f32.mrf.mxu0
        %1055 = vmatprep.mubr.bf16.mxu0 0
        %1056 = vmatmul.mubr.bf16.gmra.mxu0 %v597
        %v1057 = vpop.f32.mrf.mxu0
        %v1058 = vadd.f32 0.0, %v1057
        %v1059 = vpop.f32.mrf.mxu0
        %v1060 = vpop.f32.mrf.mxu0
        %v1061 = vadd.f32 0.0, %v1060
        %v1062 = vpop.f32.mrf.mxu0
        %1063 = vmatprep.mubr.bf16.mxu0 0
        %1064 = vmatmul.mubr.bf16.gmra.mxu0 %v600
        %v1065 = vpop.f32.mrf.mxu0
        %v1066 = vadd.f32 0.0, %v1065
        %v1067 = vpop.f32.mrf.mxu0
        %v1068 = vpop.f32.mrf.mxu0
        %v1069 = vadd.f32 0.0, %v1068
        %v1070 = vpop.f32.mrf.mxu0
        %1071 = vmatprep.mubr.bf16.mxu0 0
        %1072 = vmatmul.mubr.bf16.gmra.mxu0 %v603
        %v1073 = vpop.f32.mrf.mxu0
        %v1074 = vadd.f32 0.0, %v1073
        %v1075 = vpop.f32.mrf.mxu0
        %v1076 = vpop.f32.mrf.mxu0
        %v1077 = vadd.f32 0.0, %v1076
        %v1078 = vpop.f32.mrf.mxu0
        %1079 = vmatprep.mubr.bf16.mxu0 0
        %1080 = vmatmul.mubr.bf16.gmra.mxu0 %v606
        %v1081 = vpop.f32.mrf.mxu0
        %v1082 = vadd.f32 0.0, %v1081
        %v1083 = vpop.f32.mrf.mxu0
        %v1084 = vpop.f32.mrf.mxu0
        %v1085 = vadd.f32 0.0, %v1084
        %v1086 = vpop.f32.mrf.mxu0
        %1087 = vmatprep.mubr.bf16.mxu0 0
        %1088 = vmatmul.mubr.bf16.gmra.mxu0 %v609
        %v1089 = vpop.f32.mrf.mxu0
        %v1090 = vadd.f32 0.0, %v1089
        %v1091 = vpop.f32.mrf.mxu0
        %v1092 = vpop.f32.mrf.mxu0
        %v1093 = vadd.f32 0.0, %v1092
        %v1094 = vpop.f32.mrf.mxu0
        %1095 = vmatprep.mubr.bf16.mxu0 0
        %1096 = vmatmul.mubr.bf16.gmra.mxu0 %v612
        %v1097 = vpop.f32.mrf.mxu0
        %v1098 = vadd.f32 0.0, %v1097
        %v1099 = vpop.f32.mrf.mxu0
        %v1100 = vpop.f32.mrf.mxu0
        %v1101 = vadd.f32 0.0, %v1100
        %v1102 = vpop.f32.mrf.mxu0
        %1103 = vmatprep.mubr.bf16.mxu0 0
        %1104 = vmatmul.mubr.bf16.gmra.mxu0 %v615
        %v1105 = vpop.f32.mrf.mxu0
        %v1106 = vadd.f32 0.0, %v1105
        %v1107 = vpop.f32.mrf.mxu0
        %v1108 = vpop.f32.mrf.mxu0
        %v1109 = vadd.f32 0.0, %v1108
        %v1110 = vpop.f32.mrf.mxu0
        %1111 = vmatprep.mubr.bf16.mxu0 0
        %1112 = vmatmul.mubr.bf16.gmra.mxu0 %v618
        %v1113 = vpop.f32.mrf.mxu0
        %v1114 = vadd.f32 0.0, %v1113
        %v1115 = vpop.f32.mrf.mxu0
        %v1116 = vpop.f32.mrf.mxu0
        %v1117 = vadd.f32 0.0, %v1116
        %v1118 = vpop.f32.mrf.mxu0
        %1119 = vmatprep.mubr.bf16.mxu0 0
        %1120 = vmatmul.mubr.bf16.gmra.mxu0 %v621
        %v1121 = vpop.f32.mrf.mxu0
        %v1122 = vadd.f32 0.0, %v1121
        %v1123 = vpop.f32.mrf.mxu0
        %v1124 = vpop.f32.mrf.mxu0
        %v1125 = vadd.f32 0.0, %v1124
        %v1126 = vpop.f32.mrf.mxu0
        %1127 = vmatprep.mubr.bf16.mxu0 0
        %1128 = vmatmul.mubr.bf16.gmra.mxu0 %v624
        %v1129 = vpop.f32.mrf.mxu0
        %v1130 = vadd.f32 0.0, %v1129
        %v1131 = vpop.f32.mrf.mxu0
        %v1132 = vpop.f32.mrf.mxu0
        %v1133 = vadd.f32 0.0, %v1132
        %v1134 = vpop.f32.mrf.mxu0
        %1135 = vmatprep.mubr.bf16.mxu0 0
        %1136 = vmatmul.mubr.bf16.gmra.mxu0 %v627
        %v1137 = vpop.f32.mrf.mxu0
        %v1138 = vadd.f32 0.0, %v1137
        %v1139 = vpop.f32.mrf.mxu0
        %v1140 = vpop.f32.mrf.mxu0
        %v1141 = vadd.f32 0.0, %v1140
        %v1142 = vpop.f32.mrf.mxu0
        %1143 = vmatprep.mubr.bf16.mxu0 0
        %1144 = vmatmul.mubr.bf16.gmra.mxu0 %v630
        %v1145 = vpop.f32.mrf.mxu0
        %v1146 = vadd.f32 0.0, %v1145
        %v1147 = vpop.f32.mrf.mxu0
        %v1148 = vpop.f32.mrf.mxu0
        %v1149 = vadd.f32 0.0, %v1148
        %v1150 = vpop.f32.mrf.mxu0
        %1151 = vmatprep.mubr.bf16.mxu0 0
        %1152 = vmatmul.mubr.bf16.gmra.mxu0 %v633
        %v1153 = vpop.f32.mrf.mxu0
        %v1154 = vadd.f32 0.0, %v1153
        %v1155 = vpop.f32.mrf.mxu0
        %v1156 = vpop.f32.mrf.mxu0
        %v1157 = vadd.f32 0.0, %v1156
        %v1158 = vpop.f32.mrf.mxu0
        %1159 = vmatprep.mubr.bf16.mxu0 0
        %1160 = vmatmul.mubr.bf16.gmra.mxu0 %v636
        %v1161 = vpop.f32.mrf.mxu0
        %v1162 = vadd.f32 0.0, %v1161
        %v1163 = vpop.f32.mrf.mxu0
        %v1164 = vpop.f32.mrf.mxu0
        %v1165 = vadd.f32 0.0, %v1164
        %v1166 = vpop.f32.mrf.mxu0
        %1167 = vmatprep.mubr.bf16.mxu0 0
        %1168 = vmatmul.mubr.bf16.gmra.mxu0 %v639
        %v1169 = vpop.f32.mrf.mxu0
        %v1170 = vadd.f32 0.0, %v1169
        %v1171 = vpop.f32.mrf.mxu0
        %v1172 = vpop.f32.mrf.mxu0
        %v1173 = vadd.f32 0.0, %v1172
        %v1174 = vpop.f32.mrf.mxu0
        %1175 = vmatprep.mubr.bf16.mxu0 0
        %1176 = vmatmul.mubr.bf16.gmra.mxu0 %v642
        %v1177 = vpop.f32.mrf.mxu0
        %v1178 = vadd.f32 0.0, %v1177
        %v1179 = vpop.f32.mrf.mxu0
        %v1180 = vpop.f32.mrf.mxu0
        %v1181 = vadd.f32 0.0, %v1180
        %v1182 = vpop.f32.mrf.mxu0
        %1183 = vmatprep.mubr.bf16.mxu0 0
        %1184 = vmatmul.mubr.bf16.gmra.mxu0 %v645
        %v1185 = vpop.f32.mrf.mxu0
        %v1186 = vadd.f32 0.0, %v1185
        %v1187 = vpop.f32.mrf.mxu0
        %v1188 = vpop.f32.mrf.mxu0
        %v1189 = vadd.f32 0.0, %v1188
        %v1190 = vpop.f32.mrf.mxu0
        %1191 = vdwg.mxu0
        %v1192 = vlaneseq
        %v1193 = vand.u32 %v1192, 127
        %vm1194 = vcmp.lt.s32.totalorder %v1193, 32
        %v1195 = vsel %vm1194, 1, 0
        %vm1196 = vcmp.eq.s32.totalorder %v1195, 1
        %v1197 = vsel %vm1196, %v682, 0.0
        %v1198 = vsel %vm1196, %v685, 0.0
        %v1199 = vsel %vm1196, %v690, 0.0
        %v1200 = vsel %vm1196, %v693, 0.0
        %v1201 = vsel %vm1196, %v698, 0.0
        %v1202 = vsel %vm1196, %v701, 0.0
        %v1203 = vsel %vm1196, %v706, 0.0
        %v1204 = vsel %vm1196, %v709, 0.0
        %v1205 = vsel %vm1196, %v714, 0.0
        %v1206 = vsel %vm1196, %v717, 0.0
        %v1207 = vsel %vm1196, %v722, 0.0
        %v1208 = vsel %vm1196, %v725, 0.0
        %v1209 = vsel %vm1196, %v730, 0.0
        %v1210 = vsel %vm1196, %v733, 0.0
        %v1211 = vsel %vm1196, %v738, 0.0
        %v1212 = vsel %vm1196, %v741, 0.0
        %v1213 = vsel %vm1196, %v746, 0.0
        %v1214 = vsel %vm1196, %v749, 0.0
        %v1215 = vsel %vm1196, %v754, 0.0
        %v1216 = vsel %vm1196, %v757, 0.0
        %v1217 = vsel %vm1196, %v762, 0.0
        %v1218 = vsel %vm1196, %v765, 0.0
        %v1219 = vsel %vm1196, %v770, 0.0
        %v1220 = vsel %vm1196, %v773, 0.0
        %v1221 = vsel %vm1196, %v778, 0.0
        %v1222 = vsel %vm1196, %v781, 0.0
        %v1223 = vsel %vm1196, %v786, 0.0
        %v1224 = vsel %vm1196, %v789, 0.0
        %v1225 = vsel %vm1196, %v794, 0.0
        %v1226 = vsel %vm1196, %v797, 0.0
        %v1227 = vsel %vm1196, %v802, 0.0
        %v1228 = vsel %vm1196, %v805, 0.0
        %v1229 = vsel %vm1196, %v810, 0.0
        %v1230 = vsel %vm1196, %v813, 0.0
        %v1231 = vsel %vm1196, %v818, 0.0
        %v1232 = vsel %vm1196, %v821, 0.0
        %v1233 = vsel %vm1196, %v826, 0.0
        %v1234 = vsel %vm1196, %v829, 0.0
        %v1235 = vsel %vm1196, %v834, 0.0
        %v1236 = vsel %vm1196, %v837, 0.0
        %v1237 = vsel %vm1196, %v842, 0.0
        %v1238 = vsel %vm1196, %v845, 0.0
        %v1239 = vsel %vm1196, %v850, 0.0
        %v1240 = vsel %vm1196, %v853, 0.0
        %v1241 = vsel %vm1196, %v858, 0.0
        %v1242 = vsel %vm1196, %v861, 0.0
        %v1243 = vsel %vm1196, %v866, 0.0
        %v1244 = vsel %vm1196, %v869, 0.0
        %v1245 = vsel %vm1196, %v874, 0.0
        %v1246 = vsel %vm1196, %v877, 0.0
        %v1247 = vsel %vm1196, %v882, 0.0
        %v1248 = vsel %vm1196, %v885, 0.0
        %v1249 = vsel %vm1196, %v890, 0.0
        %v1250 = vsel %vm1196, %v893, 0.0
        %v1251 = vsel %vm1196, %v898, 0.0
        %v1252 = vsel %vm1196, %v901, 0.0
        %v1253 = vsel %vm1196, %v906, 0.0
        %v1254 = vsel %vm1196, %v909, 0.0
        %v1255 = vsel %vm1196, %v914, 0.0
        %v1256 = vsel %vm1196, %v917, 0.0
        %v1257 = vsel %vm1196, %v922, 0.0
        %v1258 = vsel %vm1196, %v925, 0.0
        %v1259 = vsel %vm1196, %v930, 0.0
        %v1260 = vsel %vm1196, %v933, 0.0
        %v1261 = vsel %vm1196, %v938, 0.0
        %v1262 = vsel %vm1196, %v941, 0.0
        %v1263 = vsel %vm1196, %v946, 0.0
        %v1264 = vsel %vm1196, %v949, 0.0
        %v1265 = vsel %vm1196, %v954, 0.0
        %v1266 = vsel %vm1196, %v957, 0.0
        %v1267 = vsel %vm1196, %v962, 0.0
        %v1268 = vsel %vm1196, %v965, 0.0
        %v1269 = vsel %vm1196, %v970, 0.0
        %v1270 = vsel %vm1196, %v973, 0.0
        %v1271 = vsel %vm1196, %v978, 0.0
        %v1272 = vsel %vm1196, %v981, 0.0
        %v1273 = vsel %vm1196, %v986, 0.0
        %v1274 = vsel %vm1196, %v989, 0.0
        %v1275 = vsel %vm1196, %v994, 0.0
        %v1276 = vsel %vm1196, %v997, 0.0
        %v1277 = vsel %vm1196, %v1002, 0.0
        %v1278 = vsel %vm1196, %v1005, 0.0
        %v1279 = vsel %vm1196, %v1010, 0.0
        %v1280 = vsel %vm1196, %v1013, 0.0
        %v1281 = vsel %vm1196, %v1018, 0.0
        %v1282 = vsel %vm1196, %v1021, 0.0
        %v1283 = vsel %vm1196, %v1026, 0.0
        %v1284 = vsel %vm1196, %v1029, 0.0
        %v1285 = vsel %vm1196, %v1034, 0.0
        %v1286 = vsel %vm1196, %v1037, 0.0
        %v1287 = vsel %vm1196, %v1042, 0.0
        %v1288 = vsel %vm1196, %v1045, 0.0
        %v1289 = vsel %vm1196, %v1050, 0.0
        %v1290 = vsel %vm1196, %v1053, 0.0
        %v1291 = vsel %vm1196, %v1058, 0.0
        %v1292 = vsel %vm1196, %v1061, 0.0
        %v1293 = vsel %vm1196, %v1066, 0.0
        %v1294 = vsel %vm1196, %v1069, 0.0
        %v1295 = vsel %vm1196, %v1074, 0.0
        %v1296 = vsel %vm1196, %v1077, 0.0
        %v1297 = vsel %vm1196, %v1082, 0.0
        %v1298 = vsel %vm1196, %v1085, 0.0
        %v1299 = vsel %vm1196, %v1090, 0.0
        %v1300 = vsel %vm1196, %v1093, 0.0
        %v1301 = vsel %vm1196, %v1098, 0.0
        %v1302 = vsel %vm1196, %v1101, 0.0
        %v1303 = vsel %vm1196, %v1106, 0.0
        %v1304 = vsel %vm1196, %v1109, 0.0
        %v1305 = vsel %vm1196, %v1114, 0.0
        %v1306 = vsel %vm1196, %v1117, 0.0
        %v1307 = vsel %vm1196, %v1122, 0.0
        %v1308 = vsel %vm1196, %v1125, 0.0
        %v1309 = vsel %vm1196, %v1130, 0.0
        %v1310 = vsel %vm1196, %v1133, 0.0
        %v1311 = vsel %vm1196, %v1138, 0.0
        %v1312 = vsel %vm1196, %v1141, 0.0
        %v1313 = vsel %vm1196, %v1146, 0.0
        %v1314 = vsel %vm1196, %v1149, 0.0
        %v1315 = vsel %vm1196, %v1154, 0.0
        %v1316 = vsel %vm1196, %v1157, 0.0
        %v1317 = vsel %vm1196, %v1162, 0.0
        %v1318 = vsel %vm1196, %v1165, 0.0
        %v1319 = vsel %vm1196, %v1170, 0.0
        %v1320 = vsel %vm1196, %v1173, 0.0
        %v1321 = vsel %vm1196, %v1178, 0.0
        %v1322 = vsel %vm1196, %v1181, 0.0
        %v1323 = vsel %vm1196, %v1186, 0.0
        %v1324 = vsel %vm1196, %v1189, 0.0
        %v1325 = vsel %vm454, %v1197, 0.0
        %1326 = vadd.xlane.f32.xlu0 %v1325
        %v1327 = vpop.xlane.xlu0 %1326
        %v1328 = vsel %vm454, %v1198, 0.0
        %1329 = vadd.xlane.f32.xlu0 %v1328
        %v1330 = vpop.xlane.xlu0 %1329
        %v1331 = vsel %vm454, %v1199, 0.0
        %1332 = vadd.xlane.f32.xlu0 %v1331
        %v1333 = vpop.xlane.xlu0 %1332
        %v1334 = vsel %vm454, %v1200, 0.0
        %1335 = vadd.xlane.f32.xlu0 %v1334
        %v1336 = vpop.xlane.xlu0 %1335
        %v1337 = vsel %vm454, %v1201, 0.0
        %1338 = vadd.xlane.f32.xlu0 %v1337
        %v1339 = vpop.xlane.xlu0 %1338
        %v1340 = vsel %vm454, %v1202, 0.0
        %1341 = vadd.xlane.f32.xlu0 %v1340
        %v1342 = vpop.xlane.xlu0 %1341
        %v1343 = vsel %vm454, %v1203, 0.0
        %1344 = vadd.xlane.f32.xlu0 %v1343
        %v1345 = vpop.xlane.xlu0 %1344
        %v1346 = vsel %vm454, %v1204, 0.0
        %1347 = vadd.xlane.f32.xlu0 %v1346
        %v1348 = vpop.xlane.xlu0 %1347
        %v1349 = vsel %vm454, %v1205, 0.0
        %1350 = vadd.xlane.f32.xlu0 %v1349
        %v1351 = vpop.xlane.xlu0 %1350
        %v1352 = vsel %vm454, %v1206, 0.0
        %1353 = vadd.xlane.f32.xlu0 %v1352
        %v1354 = vpop.xlane.xlu0 %1353
        %v1355 = vsel %vm454, %v1207, 0.0
        %1356 = vadd.xlane.f32.xlu0 %v1355
        %v1357 = vpop.xlane.xlu0 %1356
        %v1358 = vsel %vm454, %v1208, 0.0
        %1359 = vadd.xlane.f32.xlu0 %v1358
        %v1360 = vpop.xlane.xlu0 %1359
        %v1361 = vsel %vm454, %v1209, 0.0
        %1362 = vadd.xlane.f32.xlu0 %v1361
        %v1363 = vpop.xlane.xlu0 %1362
        %v1364 = vsel %vm454, %v1210, 0.0
        %1365 = vadd.xlane.f32.xlu0 %v1364
        %v1366 = vpop.xlane.xlu0 %1365
        %v1367 = vsel %vm454, %v1211, 0.0
        %1368 = vadd.xlane.f32.xlu0 %v1367
        %v1369 = vpop.xlane.xlu0 %1368
        %v1370 = vsel %vm454, %v1212, 0.0
        %1371 = vadd.xlane.f32.xlu0 %v1370
        %v1372 = vpop.xlane.xlu0 %1371
        %v1373 = vsel %vm454, %v1213, 0.0
        %1374 = vadd.xlane.f32.xlu0 %v1373
        %v1375 = vpop.xlane.xlu0 %1374
        %v1376 = vsel %vm454, %v1214, 0.0
        %1377 = vadd.xlane.f32.xlu0 %v1376
        %v1378 = vpop.xlane.xlu0 %1377
        %v1379 = vsel %vm454, %v1215, 0.0
        %1380 = vadd.xlane.f32.xlu0 %v1379
        %v1381 = vpop.xlane.xlu0 %1380
        %v1382 = vsel %vm454, %v1216, 0.0
        %1383 = vadd.xlane.f32.xlu0 %v1382
        %v1384 = vpop.xlane.xlu0 %1383
        %v1385 = vsel %vm454, %v1217, 0.0
        %1386 = vadd.xlane.f32.xlu0 %v1385
        %v1387 = vpop.xlane.xlu0 %1386
        %v1388 = vsel %vm454, %v1218, 0.0
        %1389 = vadd.xlane.f32.xlu0 %v1388
        %v1390 = vpop.xlane.xlu0 %1389
        %v1391 = vsel %vm454, %v1219, 0.0
        %1392 = vadd.xlane.f32.xlu0 %v1391
        %v1393 = vpop.xlane.xlu0 %1392
        %v1394 = vsel %vm454, %v1220, 0.0
        %1395 = vadd.xlane.f32.xlu0 %v1394
        %v1396 = vpop.xlane.xlu0 %1395
        %v1397 = vsel %vm454, %v1221, 0.0
        %1398 = vadd.xlane.f32.xlu0 %v1397
        %v1399 = vpop.xlane.xlu0 %1398
        %v1400 = vsel %vm454, %v1222, 0.0
        %1401 = vadd.xlane.f32.xlu0 %v1400
        %v1402 = vpop.xlane.xlu0 %1401
        %v1403 = vsel %vm454, %v1223, 0.0
        %1404 = vadd.xlane.f32.xlu0 %v1403
        %v1405 = vpop.xlane.xlu0 %1404
        %v1406 = vsel %vm454, %v1224, 0.0
        %1407 = vadd.xlane.f32.xlu0 %v1406
        %v1408 = vpop.xlane.xlu0 %1407
        %v1409 = vsel %vm454, %v1225, 0.0
        %1410 = vadd.xlane.f32.xlu0 %v1409
        %v1411 = vpop.xlane.xlu0 %1410
        %v1412 = vsel %vm454, %v1226, 0.0
        %1413 = vadd.xlane.f32.xlu0 %v1412
        %v1414 = vpop.xlane.xlu0 %1413
        %v1415 = vsel %vm454, %v1227, 0.0
        %1416 = vadd.xlane.f32.xlu0 %v1415
        %v1417 = vpop.xlane.xlu0 %1416
        %v1418 = vsel %vm454, %v1228, 0.0
        %1419 = vadd.xlane.f32.xlu0 %v1418
        %v1420 = vpop.xlane.xlu0 %1419
        %v1421 = vsel %vm454, %v1229, 0.0
        %1422 = vadd.xlane.f32.xlu0 %v1421
        %v1423 = vpop.xlane.xlu0 %1422
        %v1424 = vsel %vm454, %v1230, 0.0
        %1425 = vadd.xlane.f32.xlu0 %v1424
        %v1426 = vpop.xlane.xlu0 %1425
        %v1427 = vsel %vm454, %v1231, 0.0
        %1428 = vadd.xlane.f32.xlu0 %v1427
        %v1429 = vpop.xlane.xlu0 %1428
        %v1430 = vsel %vm454, %v1232, 0.0
        %1431 = vadd.xlane.f32.xlu0 %v1430
        %v1432 = vpop.xlane.xlu0 %1431
        %v1433 = vsel %vm454, %v1233, 0.0
        %1434 = vadd.xlane.f32.xlu0 %v1433
        %v1435 = vpop.xlane.xlu0 %1434
        %v1436 = vsel %vm454, %v1234, 0.0
        %1437 = vadd.xlane.f32.xlu0 %v1436
        %v1438 = vpop.xlane.xlu0 %1437
        %v1439 = vsel %vm454, %v1235, 0.0
        %1440 = vadd.xlane.f32.xlu0 %v1439
        %v1441 = vpop.xlane.xlu0 %1440
        %v1442 = vsel %vm454, %v1236, 0.0
        %1443 = vadd.xlane.f32.xlu0 %v1442
        %v1444 = vpop.xlane.xlu0 %1443
        %v1445 = vsel %vm454, %v1237, 0.0
        %1446 = vadd.xlane.f32.xlu0 %v1445
        %v1447 = vpop.xlane.xlu0 %1446
        %v1448 = vsel %vm454, %v1238, 0.0
        %1449 = vadd.xlane.f32.xlu0 %v1448
        %v1450 = vpop.xlane.xlu0 %1449
        %v1451 = vsel %vm454, %v1239, 0.0
        %1452 = vadd.xlane.f32.xlu0 %v1451
        %v1453 = vpop.xlane.xlu0 %1452
        %v1454 = vsel %vm454, %v1240, 0.0
        %1455 = vadd.xlane.f32.xlu0 %v1454
        %v1456 = vpop.xlane.xlu0 %1455
        %v1457 = vsel %vm454, %v1241, 0.0
        %1458 = vadd.xlane.f32.xlu0 %v1457
        %v1459 = vpop.xlane.xlu0 %1458
        %v1460 = vsel %vm454, %v1242, 0.0
        %1461 = vadd.xlane.f32.xlu0 %v1460
        %v1462 = vpop.xlane.xlu0 %1461
        %v1463 = vsel %vm454, %v1243, 0.0
        %1464 = vadd.xlane.f32.xlu0 %v1463
        %v1465 = vpop.xlane.xlu0 %1464
        %v1466 = vsel %vm454, %v1244, 0.0
        %1467 = vadd.xlane.f32.xlu0 %v1466
        %v1468 = vpop.xlane.xlu0 %1467
        %v1469 = vsel %vm454, %v1245, 0.0
        %1470 = vadd.xlane.f32.xlu0 %v1469
        %v1471 = vpop.xlane.xlu0 %1470
        %v1472 = vsel %vm454, %v1246, 0.0
        %1473 = vadd.xlane.f32.xlu0 %v1472
        %v1474 = vpop.xlane.xlu0 %1473
        %v1475 = vsel %vm454, %v1247, 0.0
        %1476 = vadd.xlane.f32.xlu0 %v1475
        %v1477 = vpop.xlane.xlu0 %1476
        %v1478 = vsel %vm454, %v1248, 0.0
        %1479 = vadd.xlane.f32.xlu0 %v1478
        %v1480 = vpop.xlane.xlu0 %1479
        %v1481 = vsel %vm454, %v1249, 0.0
        %1482 = vadd.xlane.f32.xlu0 %v1481
        %v1483 = vpop.xlane.xlu0 %1482
        %v1484 = vsel %vm454, %v1250, 0.0
        %1485 = vadd.xlane.f32.xlu0 %v1484
        %v1486 = vpop.xlane.xlu0 %1485
        %v1487 = vsel %vm454, %v1251, 0.0
        %1488 = vadd.xlane.f32.xlu0 %v1487
        %v1489 = vpop.xlane.xlu0 %1488
        %v1490 = vsel %vm454, %v1252, 0.0
        %1491 = vadd.xlane.f32.xlu0 %v1490
        %v1492 = vpop.xlane.xlu0 %1491
        %v1493 = vsel %vm454, %v1253, 0.0
        %1494 = vadd.xlane.f32.xlu0 %v1493
        %v1495 = vpop.xlane.xlu0 %1494
        %v1496 = vsel %vm454, %v1254, 0.0
        %1497 = vadd.xlane.f32.xlu0 %v1496
        %v1498 = vpop.xlane.xlu0 %1497
        %v1499 = vsel %vm454, %v1255, 0.0
        %1500 = vadd.xlane.f32.xlu0 %v1499
        %v1501 = vpop.xlane.xlu0 %1500
        %v1502 = vsel %vm454, %v1256, 0.0
        %1503 = vadd.xlane.f32.xlu0 %v1502
        %v1504 = vpop.xlane.xlu0 %1503
        %v1505 = vsel %vm454, %v1257, 0.0
        %1506 = vadd.xlane.f32.xlu0 %v1505
        %v1507 = vpop.xlane.xlu0 %1506
        %v1508 = vsel %vm454, %v1258, 0.0
        %1509 = vadd.xlane.f32.xlu0 %v1508
        %v1510 = vpop.xlane.xlu0 %1509
        %v1511 = vsel %vm454, %v1259, 0.0
        %1512 = vadd.xlane.f32.xlu0 %v1511
        %v1513 = vpop.xlane.xlu0 %1512
        %v1514 = vsel %vm454, %v1260, 0.0
        %1515 = vadd.xlane.f32.xlu0 %v1514
        %v1516 = vpop.xlane.xlu0 %1515
        %v1517 = vsel %vm454, %v1261, 0.0
        %1518 = vadd.xlane.f32.xlu0 %v1517
        %v1519 = vpop.xlane.xlu0 %1518
        %v1520 = vsel %vm454, %v1262, 0.0
        %1521 = vadd.xlane.f32.xlu0 %v1520
        %v1522 = vpop.xlane.xlu0 %1521
        %v1523 = vsel %vm454, %v1263, 0.0
        %1524 = vadd.xlane.f32.xlu0 %v1523
        %v1525 = vpop.xlane.xlu0 %1524
        %v1526 = vsel %vm454, %v1264, 0.0
        %1527 = vadd.xlane.f32.xlu0 %v1526
        %v1528 = vpop.xlane.xlu0 %1527
        %v1529 = vsel %vm454, %v1265, 0.0
        %1530 = vadd.xlane.f32.xlu0 %v1529
        %v1531 = vpop.xlane.xlu0 %1530
        %v1532 = vsel %vm454, %v1266, 0.0
        %1533 = vadd.xlane.f32.xlu0 %v1532
        %v1534 = vpop.xlane.xlu0 %1533
        %v1535 = vsel %vm454, %v1267, 0.0
        %1536 = vadd.xlane.f32.xlu0 %v1535
        %v1537 = vpop.xlane.xlu0 %1536
        %v1538 = vsel %vm454, %v1268, 0.0
        %1539 = vadd.xlane.f32.xlu0 %v1538
        %v1540 = vpop.xlane.xlu0 %1539
        %v1541 = vsel %vm454, %v1269, 0.0
        %1542 = vadd.xlane.f32.xlu0 %v1541
        %v1543 = vpop.xlane.xlu0 %1542
        %v1544 = vsel %vm454, %v1270, 0.0
        %1545 = vadd.xlane.f32.xlu0 %v1544
        %v1546 = vpop.xlane.xlu0 %1545
        %v1547 = vsel %vm454, %v1271, 0.0
        %1548 = vadd.xlane.f32.xlu0 %v1547
        %v1549 = vpop.xlane.xlu0 %1548
        %v1550 = vsel %vm454, %v1272, 0.0
        %1551 = vadd.xlane.f32.xlu0 %v1550
        %v1552 = vpop.xlane.xlu0 %1551
        %v1553 = vsel %vm454, %v1273, 0.0
        %1554 = vadd.xlane.f32.xlu0 %v1553
        %v1555 = vpop.xlane.xlu0 %1554
        %v1556 = vsel %vm454, %v1274, 0.0
        %1557 = vadd.xlane.f32.xlu0 %v1556
        %v1558 = vpop.xlane.xlu0 %1557
        %v1559 = vsel %vm454, %v1275, 0.0
        %1560 = vadd.xlane.f32.xlu0 %v1559
        %v1561 = vpop.xlane.xlu0 %1560
        %v1562 = vsel %vm454, %v1276, 0.0
        %1563 = vadd.xlane.f32.xlu0 %v1562
        %v1564 = vpop.xlane.xlu0 %1563
        %v1565 = vsel %vm454, %v1277, 0.0
        %1566 = vadd.xlane.f32.xlu0 %v1565
        %v1567 = vpop.xlane.xlu0 %1566
        %v1568 = vsel %vm454, %v1278, 0.0
        %1569 = vadd.xlane.f32.xlu0 %v1568
        %v1570 = vpop.xlane.xlu0 %1569
        %v1571 = vsel %vm454, %v1279, 0.0
        %1572 = vadd.xlane.f32.xlu0 %v1571
        %v1573 = vpop.xlane.xlu0 %1572
        %v1574 = vsel %vm454, %v1280, 0.0
        %1575 = vadd.xlane.f32.xlu0 %v1574
        %v1576 = vpop.xlane.xlu0 %1575
        %v1577 = vsel %vm454, %v1281, 0.0
        %1578 = vadd.xlane.f32.xlu0 %v1577
        %v1579 = vpop.xlane.xlu0 %1578
        %v1580 = vsel %vm454, %v1282, 0.0
        %1581 = vadd.xlane.f32.xlu0 %v1580
        %v1582 = vpop.xlane.xlu0 %1581
        %v1583 = vsel %vm454, %v1283, 0.0
        %1584 = vadd.xlane.f32.xlu0 %v1583
        %v1585 = vpop.xlane.xlu0 %1584
        %v1586 = vsel %vm454, %v1284, 0.0
        %1587 = vadd.xlane.f32.xlu0 %v1586
        %v1588 = vpop.xlane.xlu0 %1587
        %v1589 = vsel %vm454, %v1285, 0.0
        %1590 = vadd.xlane.f32.xlu0 %v1589
        %v1591 = vpop.xlane.xlu0 %1590
        %v1592 = vsel %vm454, %v1286, 0.0
        %1593 = vadd.xlane.f32.xlu0 %v1592
        %v1594 = vpop.xlane.xlu0 %1593
        %v1595 = vsel %vm454, %v1287, 0.0
        %1596 = vadd.xlane.f32.xlu0 %v1595
        %v1597 = vpop.xlane.xlu0 %1596
        %v1598 = vsel %vm454, %v1288, 0.0
        %1599 = vadd.xlane.f32.xlu0 %v1598
        %v1600 = vpop.xlane.xlu0 %1599
        %v1601 = vsel %vm454, %v1289, 0.0
        %1602 = vadd.xlane.f32.xlu0 %v1601
        %v1603 = vpop.xlane.xlu0 %1602
        %v1604 = vsel %vm454, %v1290, 0.0
        %1605 = vadd.xlane.f32.xlu0 %v1604
        %v1606 = vpop.xlane.xlu0 %1605
        %v1607 = vsel %vm454, %v1291, 0.0
        %1608 = vadd.xlane.f32.xlu0 %v1607
        %v1609 = vpop.xlane.xlu0 %1608
        %v1610 = vsel %vm454, %v1292, 0.0
        %1611 = vadd.xlane.f32.xlu0 %v1610
        %v1612 = vpop.xlane.xlu0 %1611
        %v1613 = vsel %vm454, %v1293, 0.0
        %1614 = vadd.xlane.f32.xlu0 %v1613
        %v1615 = vpop.xlane.xlu0 %1614
        %v1616 = vsel %vm454, %v1294, 0.0
        %1617 = vadd.xlane.f32.xlu0 %v1616
        %v1618 = vpop.xlane.xlu0 %1617
        %v1619 = vsel %vm454, %v1295, 0.0
        %1620 = vadd.xlane.f32.xlu0 %v1619
        %v1621 = vpop.xlane.xlu0 %1620
        %v1622 = vsel %vm454, %v1296, 0.0
        %1623 = vadd.xlane.f32.xlu0 %v1622
        %v1624 = vpop.xlane.xlu0 %1623
        %v1625 = vsel %vm454, %v1297, 0.0
        %1626 = vadd.xlane.f32.xlu0 %v1625
        %v1627 = vpop.xlane.xlu0 %1626
        %v1628 = vsel %vm454, %v1298, 0.0
        %1629 = vadd.xlane.f32.xlu0 %v1628
        %v1630 = vpop.xlane.xlu0 %1629
        %v1631 = vsel %vm454, %v1299, 0.0
        %1632 = vadd.xlane.f32.xlu0 %v1631
        %v1633 = vpop.xlane.xlu0 %1632
        %v1634 = vsel %vm454, %v1300, 0.0
        %1635 = vadd.xlane.f32.xlu0 %v1634
        %v1636 = vpop.xlane.xlu0 %1635
        %v1637 = vsel %vm454, %v1301, 0.0
        %1638 = vadd.xlane.f32.xlu0 %v1637
        %v1639 = vpop.xlane.xlu0 %1638
        %v1640 = vsel %vm454, %v1302, 0.0
        %1641 = vadd.xlane.f32.xlu0 %v1640
        %v1642 = vpop.xlane.xlu0 %1641
        %v1643 = vsel %vm454, %v1303, 0.0
        %1644 = vadd.xlane.f32.xlu0 %v1643
        %v1645 = vpop.xlane.xlu0 %1644
        %v1646 = vsel %vm454, %v1304, 0.0
        %1647 = vadd.xlane.f32.xlu0 %v1646
        %v1648 = vpop.xlane.xlu0 %1647
        %v1649 = vsel %vm454, %v1305, 0.0
        %1650 = vadd.xlane.f32.xlu0 %v1649
        %v1651 = vpop.xlane.xlu0 %1650
        %v1652 = vsel %vm454, %v1306, 0.0
        %1653 = vadd.xlane.f32.xlu0 %v1652
        %v1654 = vpop.xlane.xlu0 %1653
        %v1655 = vsel %vm454, %v1307, 0.0
        %1656 = vadd.xlane.f32.xlu0 %v1655
        %v1657 = vpop.xlane.xlu0 %1656
        %v1658 = vsel %vm454, %v1308, 0.0
        %1659 = vadd.xlane.f32.xlu0 %v1658
        %v1660 = vpop.xlane.xlu0 %1659
        %v1661 = vsel %vm454, %v1309, 0.0
        %1662 = vadd.xlane.f32.xlu0 %v1661
        %v1663 = vpop.xlane.xlu0 %1662
        %v1664 = vsel %vm454, %v1310, 0.0
        %1665 = vadd.xlane.f32.xlu0 %v1664
        %v1666 = vpop.xlane.xlu0 %1665
        %v1667 = vsel %vm454, %v1311, 0.0
        %1668 = vadd.xlane.f32.xlu0 %v1667
        %v1669 = vpop.xlane.xlu0 %1668
        %v1670 = vsel %vm454, %v1312, 0.0
        %1671 = vadd.xlane.f32.xlu0 %v1670
        %v1672 = vpop.xlane.xlu0 %1671
        %v1673 = vsel %vm454, %v1313, 0.0
        %1674 = vadd.xlane.f32.xlu0 %v1673
        %v1675 = vpop.xlane.xlu0 %1674
        %v1676 = vsel %vm454, %v1314, 0.0
        %1677 = vadd.xlane.f32.xlu0 %v1676
        %v1678 = vpop.xlane.xlu0 %1677
        %v1679 = vsel %vm454, %v1315, 0.0
        %1680 = vadd.xlane.f32.xlu0 %v1679
        %v1681 = vpop.xlane.xlu0 %1680
        %v1682 = vsel %vm454, %v1316, 0.0
        %1683 = vadd.xlane.f32.xlu0 %v1682
        %v1684 = vpop.xlane.xlu0 %1683
        %v1685 = vsel %vm454, %v1317, 0.0
        %1686 = vadd.xlane.f32.xlu0 %v1685
        %v1687 = vpop.xlane.xlu0 %1686
        %v1688 = vsel %vm454, %v1318, 0.0
        %1689 = vadd.xlane.f32.xlu0 %v1688
        %v1690 = vpop.xlane.xlu0 %1689
        %v1691 = vsel %vm454, %v1319, 0.0
        %1692 = vadd.xlane.f32.xlu0 %v1691
        %v1693 = vpop.xlane.xlu0 %1692
        %v1694 = vsel %vm454, %v1320, 0.0
        %1695 = vadd.xlane.f32.xlu0 %v1694
        %v1696 = vpop.xlane.xlu0 %1695
        %v1697 = vsel %vm454, %v1321, 0.0
        %1698 = vadd.xlane.f32.xlu0 %v1697
        %v1699 = vpop.xlane.xlu0 %1698
        %v1700 = vsel %vm454, %v1322, 0.0
        %1701 = vadd.xlane.f32.xlu0 %v1700
        %v1702 = vpop.xlane.xlu0 %1701
        %v1703 = vsel %vm454, %v1323, 0.0
        %1704 = vadd.xlane.f32.xlu0 %v1703
        %v1705 = vpop.xlane.xlu0 %1704
        %v1706 = vsel %vm454, %v1324, 0.0
        %1707 = vadd.xlane.f32.xlu0 %v1706
        %v1708 = vpop.xlane.xlu0 %1707
        %v1709 = vsel %vm454, %v682, 0.0
        %1710 = vadd.xlane.f32.xlu0 %v1709
        %v1711 = vpop.xlane.xlu0 %1710
        %v1712 = vsel %vm454, %v685, 0.0
        %1713 = vadd.xlane.f32.xlu0 %v1712
        %v1714 = vpop.xlane.xlu0 %1713
        %v1715 = vsel %vm454, %v690, 0.0
        %1716 = vadd.xlane.f32.xlu0 %v1715
        %v1717 = vpop.xlane.xlu0 %1716
        %v1718 = vsel %vm454, %v693, 0.0
        %1719 = vadd.xlane.f32.xlu0 %v1718
        %v1720 = vpop.xlane.xlu0 %1719
        %v1721 = vsel %vm454, %v698, 0.0
        %1722 = vadd.xlane.f32.xlu0 %v1721
        %v1723 = vpop.xlane.xlu0 %1722
        %v1724 = vsel %vm454, %v701, 0.0
        %1725 = vadd.xlane.f32.xlu0 %v1724
        %v1726 = vpop.xlane.xlu0 %1725
        %v1727 = vsel %vm454, %v706, 0.0
        %1728 = vadd.xlane.f32.xlu0 %v1727
        %v1729 = vpop.xlane.xlu0 %1728
        %v1730 = vsel %vm454, %v709, 0.0
        %1731 = vadd.xlane.f32.xlu0 %v1730
        %v1732 = vpop.xlane.xlu0 %1731
        %v1733 = vsel %vm454, %v714, 0.0
        %1734 = vadd.xlane.f32.xlu0 %v1733
        %v1735 = vpop.xlane.xlu0 %1734
        %v1736 = vsel %vm454, %v717, 0.0
        %1737 = vadd.xlane.f32.xlu0 %v1736
        %v1738 = vpop.xlane.xlu0 %1737
        %v1739 = vsel %vm454, %v722, 0.0
        %1740 = vadd.xlane.f32.xlu0 %v1739
        %v1741 = vpop.xlane.xlu0 %1740
        %v1742 = vsel %vm454, %v725, 0.0
        %1743 = vadd.xlane.f32.xlu0 %v1742
        %v1744 = vpop.xlane.xlu0 %1743
        %v1745 = vsel %vm454, %v730, 0.0
        %1746 = vadd.xlane.f32.xlu0 %v1745
        %v1747 = vpop.xlane.xlu0 %1746
        %v1748 = vsel %vm454, %v733, 0.0
        %1749 = vadd.xlane.f32.xlu0 %v1748
        %v1750 = vpop.xlane.xlu0 %1749
        %v1751 = vsel %vm454, %v738, 0.0
        %1752 = vadd.xlane.f32.xlu0 %v1751
        %v1753 = vpop.xlane.xlu0 %1752
        %v1754 = vsel %vm454, %v741, 0.0
        %1755 = vadd.xlane.f32.xlu0 %v1754
        %v1756 = vpop.xlane.xlu0 %1755
        %v1757 = vsel %vm454, %v746, 0.0
        %1758 = vadd.xlane.f32.xlu0 %v1757
        %v1759 = vpop.xlane.xlu0 %1758
        %v1760 = vsel %vm454, %v749, 0.0
        %1761 = vadd.xlane.f32.xlu0 %v1760
        %v1762 = vpop.xlane.xlu0 %1761
        %v1763 = vsel %vm454, %v754, 0.0
        %1764 = vadd.xlane.f32.xlu0 %v1763
        %v1765 = vpop.xlane.xlu0 %1764
        %v1766 = vsel %vm454, %v757, 0.0
        %1767 = vadd.xlane.f32.xlu0 %v1766
        %v1768 = vpop.xlane.xlu0 %1767
        %v1769 = vsel %vm454, %v762, 0.0
        %1770 = vadd.xlane.f32.xlu0 %v1769
        %v1771 = vpop.xlane.xlu0 %1770
        %v1772 = vsel %vm454, %v765, 0.0
        %1773 = vadd.xlane.f32.xlu0 %v1772
        %v1774 = vpop.xlane.xlu0 %1773
        %v1775 = vsel %vm454, %v770, 0.0
        %1776 = vadd.xlane.f32.xlu0 %v1775
        %v1777 = vpop.xlane.xlu0 %1776
        %v1778 = vsel %vm454, %v773, 0.0
        %1779 = vadd.xlane.f32.xlu0 %v1778
        %v1780 = vpop.xlane.xlu0 %1779
        %v1781 = vsel %vm454, %v778, 0.0
        %1782 = vadd.xlane.f32.xlu0 %v1781
        %v1783 = vpop.xlane.xlu0 %1782
        %v1784 = vsel %vm454, %v781, 0.0
        %1785 = vadd.xlane.f32.xlu0 %v1784
        %v1786 = vpop.xlane.xlu0 %1785
        %v1787 = vsel %vm454, %v786, 0.0
        %1788 = vadd.xlane.f32.xlu0 %v1787
        %v1789 = vpop.xlane.xlu0 %1788
        %v1790 = vsel %vm454, %v789, 0.0
        %1791 = vadd.xlane.f32.xlu0 %v1790
        %v1792 = vpop.xlane.xlu0 %1791
        %v1793 = vsel %vm454, %v794, 0.0
        %1794 = vadd.xlane.f32.xlu0 %v1793
        %v1795 = vpop.xlane.xlu0 %1794
        %v1796 = vsel %vm454, %v797, 0.0
        %1797 = vadd.xlane.f32.xlu0 %v1796
        %v1798 = vpop.xlane.xlu0 %1797
        %v1799 = vsel %vm454, %v802, 0.0
        %1800 = vadd.xlane.f32.xlu0 %v1799
        %v1801 = vpop.xlane.xlu0 %1800
        %v1802 = vsel %vm454, %v805, 0.0
        %1803 = vadd.xlane.f32.xlu0 %v1802
        %v1804 = vpop.xlane.xlu0 %1803
        %v1805 = vsel %vm454, %v810, 0.0
        %1806 = vadd.xlane.f32.xlu0 %v1805
        %v1807 = vpop.xlane.xlu0 %1806
        %v1808 = vsel %vm454, %v813, 0.0
        %1809 = vadd.xlane.f32.xlu0 %v1808
        %v1810 = vpop.xlane.xlu0 %1809
        %v1811 = vsel %vm454, %v818, 0.0
        %1812 = vadd.xlane.f32.xlu0 %v1811
        %v1813 = vpop.xlane.xlu0 %1812
        %v1814 = vsel %vm454, %v821, 0.0
        %1815 = vadd.xlane.f32.xlu0 %v1814
        %v1816 = vpop.xlane.xlu0 %1815
        %v1817 = vsel %vm454, %v826, 0.0
        %1818 = vadd.xlane.f32.xlu0 %v1817
        %v1819 = vpop.xlane.xlu0 %1818
        %v1820 = vsel %vm454, %v829, 0.0
        %1821 = vadd.xlane.f32.xlu0 %v1820
        %v1822 = vpop.xlane.xlu0 %1821
        %v1823 = vsel %vm454, %v834, 0.0
        %1824 = vadd.xlane.f32.xlu0 %v1823
        %v1825 = vpop.xlane.xlu0 %1824
        %v1826 = vsel %vm454, %v837, 0.0
        %1827 = vadd.xlane.f32.xlu0 %v1826
        %v1828 = vpop.xlane.xlu0 %1827
        %v1829 = vsel %vm454, %v842, 0.0
        %1830 = vadd.xlane.f32.xlu0 %v1829
        %v1831 = vpop.xlane.xlu0 %1830
        %v1832 = vsel %vm454, %v845, 0.0
        %1833 = vadd.xlane.f32.xlu0 %v1832
        %v1834 = vpop.xlane.xlu0 %1833
        %v1835 = vsel %vm454, %v850, 0.0
        %1836 = vadd.xlane.f32.xlu0 %v1835
        %v1837 = vpop.xlane.xlu0 %1836
        %v1838 = vsel %vm454, %v853, 0.0
        %1839 = vadd.xlane.f32.xlu0 %v1838
        %v1840 = vpop.xlane.xlu0 %1839
        %v1841 = vsel %vm454, %v858, 0.0
        %1842 = vadd.xlane.f32.xlu0 %v1841
        %v1843 = vpop.xlane.xlu0 %1842
        %v1844 = vsel %vm454, %v861, 0.0
        %1845 = vadd.xlane.f32.xlu0 %v1844
        %v1846 = vpop.xlane.xlu0 %1845
        %v1847 = vsel %vm454, %v866, 0.0
        %1848 = vadd.xlane.f32.xlu0 %v1847
        %v1849 = vpop.xlane.xlu0 %1848
        %v1850 = vsel %vm454, %v869, 0.0
        %1851 = vadd.xlane.f32.xlu0 %v1850
        %v1852 = vpop.xlane.xlu0 %1851
        %v1853 = vsel %vm454, %v874, 0.0
        %1854 = vadd.xlane.f32.xlu0 %v1853
        %v1855 = vpop.xlane.xlu0 %1854
        %v1856 = vsel %vm454, %v877, 0.0
        %1857 = vadd.xlane.f32.xlu0 %v1856
        %v1858 = vpop.xlane.xlu0 %1857
        %v1859 = vsel %vm454, %v882, 0.0
        %1860 = vadd.xlane.f32.xlu0 %v1859
        %v1861 = vpop.xlane.xlu0 %1860
        %v1862 = vsel %vm454, %v885, 0.0
        %1863 = vadd.xlane.f32.xlu0 %v1862
        %v1864 = vpop.xlane.xlu0 %1863
        %v1865 = vsel %vm454, %v890, 0.0
        %1866 = vadd.xlane.f32.xlu0 %v1865
        %v1867 = vpop.xlane.xlu0 %1866
        %v1868 = vsel %vm454, %v893, 0.0
        %1869 = vadd.xlane.f32.xlu0 %v1868
        %v1870 = vpop.xlane.xlu0 %1869
        %v1871 = vsel %vm454, %v898, 0.0
        %1872 = vadd.xlane.f32.xlu0 %v1871
        %v1873 = vpop.xlane.xlu0 %1872
        %v1874 = vsel %vm454, %v901, 0.0
        %1875 = vadd.xlane.f32.xlu0 %v1874
        %v1876 = vpop.xlane.xlu0 %1875
        %v1877 = vsel %vm454, %v906, 0.0
        %1878 = vadd.xlane.f32.xlu0 %v1877
        %v1879 = vpop.xlane.xlu0 %1878
        %v1880 = vsel %vm454, %v909, 0.0
        %1881 = vadd.xlane.f32.xlu0 %v1880
        %v1882 = vpop.xlane.xlu0 %1881
        %v1883 = vsel %vm454, %v914, 0.0
        %1884 = vadd.xlane.f32.xlu0 %v1883
        %v1885 = vpop.xlane.xlu0 %1884
        %v1886 = vsel %vm454, %v917, 0.0
        %1887 = vadd.xlane.f32.xlu0 %v1886
        %v1888 = vpop.xlane.xlu0 %1887
        %v1889 = vsel %vm454, %v922, 0.0
        %1890 = vadd.xlane.f32.xlu0 %v1889
        %v1891 = vpop.xlane.xlu0 %1890
        %v1892 = vsel %vm454, %v925, 0.0
        %1893 = vadd.xlane.f32.xlu0 %v1892
        %v1894 = vpop.xlane.xlu0 %1893
        %v1895 = vsel %vm454, %v930, 0.0
        %1896 = vadd.xlane.f32.xlu0 %v1895
        %v1897 = vpop.xlane.xlu0 %1896
        %v1898 = vsel %vm454, %v933, 0.0
        %1899 = vadd.xlane.f32.xlu0 %v1898
        %v1900 = vpop.xlane.xlu0 %1899
        %v1901 = vsel %vm454, %v938, 0.0
        %1902 = vadd.xlane.f32.xlu0 %v1901
        %v1903 = vpop.xlane.xlu0 %1902
        %v1904 = vsel %vm454, %v941, 0.0
        %1905 = vadd.xlane.f32.xlu0 %v1904
        %v1906 = vpop.xlane.xlu0 %1905
        %v1907 = vsel %vm454, %v946, 0.0
        %1908 = vadd.xlane.f32.xlu0 %v1907
        %v1909 = vpop.xlane.xlu0 %1908
        %v1910 = vsel %vm454, %v949, 0.0
        %1911 = vadd.xlane.f32.xlu0 %v1910
        %v1912 = vpop.xlane.xlu0 %1911
        %v1913 = vsel %vm454, %v954, 0.0
        %1914 = vadd.xlane.f32.xlu0 %v1913
        %v1915 = vpop.xlane.xlu0 %1914
        %v1916 = vsel %vm454, %v957, 0.0
        %1917 = vadd.xlane.f32.xlu0 %v1916
        %v1918 = vpop.xlane.xlu0 %1917
        %v1919 = vsel %vm454, %v962, 0.0
        %1920 = vadd.xlane.f32.xlu0 %v1919
        %v1921 = vpop.xlane.xlu0 %1920
        %v1922 = vsel %vm454, %v965, 0.0
        %1923 = vadd.xlane.f32.xlu0 %v1922
        %v1924 = vpop.xlane.xlu0 %1923
        %v1925 = vsel %vm454, %v970, 0.0
        %1926 = vadd.xlane.f32.xlu0 %v1925
        %v1927 = vpop.xlane.xlu0 %1926
        %v1928 = vsel %vm454, %v973, 0.0
        %1929 = vadd.xlane.f32.xlu0 %v1928
        %v1930 = vpop.xlane.xlu0 %1929
        %v1931 = vsel %vm454, %v978, 0.0
        %1932 = vadd.xlane.f32.xlu0 %v1931
        %v1933 = vpop.xlane.xlu0 %1932
        %v1934 = vsel %vm454, %v981, 0.0
        %1935 = vadd.xlane.f32.xlu0 %v1934
        %v1936 = vpop.xlane.xlu0 %1935
        %v1937 = vsel %vm454, %v986, 0.0
        %1938 = vadd.xlane.f32.xlu0 %v1937
        %v1939 = vpop.xlane.xlu0 %1938
        %v1940 = vsel %vm454, %v989, 0.0
        %1941 = vadd.xlane.f32.xlu0 %v1940
        %v1942 = vpop.xlane.xlu0 %1941
        %v1943 = vsel %vm454, %v994, 0.0
        %1944 = vadd.xlane.f32.xlu0 %v1943
        %v1945 = vpop.xlane.xlu0 %1944
        %v1946 = vsel %vm454, %v997, 0.0
        %1947 = vadd.xlane.f32.xlu0 %v1946
        %v1948 = vpop.xlane.xlu0 %1947
        %v1949 = vsel %vm454, %v1002, 0.0
        %1950 = vadd.xlane.f32.xlu0 %v1949
        %v1951 = vpop.xlane.xlu0 %1950
        %v1952 = vsel %vm454, %v1005, 0.0
        %1953 = vadd.xlane.f32.xlu0 %v1952
        %v1954 = vpop.xlane.xlu0 %1953
        %v1955 = vsel %vm454, %v1010, 0.0
        %1956 = vadd.xlane.f32.xlu0 %v1955
        %v1957 = vpop.xlane.xlu0 %1956
        %v1958 = vsel %vm454, %v1013, 0.0
        %1959 = vadd.xlane.f32.xlu0 %v1958
        %v1960 = vpop.xlane.xlu0 %1959
        %v1961 = vsel %vm454, %v1018, 0.0
        %1962 = vadd.xlane.f32.xlu0 %v1961
        %v1963 = vpop.xlane.xlu0 %1962
        %v1964 = vsel %vm454, %v1021, 0.0
        %1965 = vadd.xlane.f32.xlu0 %v1964
        %v1966 = vpop.xlane.xlu0 %1965
        %v1967 = vsel %vm454, %v1026, 0.0
        %1968 = vadd.xlane.f32.xlu0 %v1967
        %v1969 = vpop.xlane.xlu0 %1968
        %v1970 = vsel %vm454, %v1029, 0.0
        %1971 = vadd.xlane.f32.xlu0 %v1970
        %v1972 = vpop.xlane.xlu0 %1971
        %v1973 = vsel %vm454, %v1034, 0.0
        %1974 = vadd.xlane.f32.xlu0 %v1973
        %v1975 = vpop.xlane.xlu0 %1974
        %v1976 = vsel %vm454, %v1037, 0.0
        %1977 = vadd.xlane.f32.xlu0 %v1976
        %v1978 = vpop.xlane.xlu0 %1977
        %v1979 = vsel %vm454, %v1042, 0.0
        %1980 = vadd.xlane.f32.xlu0 %v1979
        %v1981 = vpop.xlane.xlu0 %1980
        %v1982 = vsel %vm454, %v1045, 0.0
        %1983 = vadd.xlane.f32.xlu0 %v1982
        %v1984 = vpop.xlane.xlu0 %1983
        %v1985 = vsel %vm454, %v1050, 0.0
        %1986 = vadd.xlane.f32.xlu0 %v1985
        %v1987 = vpop.xlane.xlu0 %1986
        %v1988 = vsel %vm454, %v1053, 0.0
        %1989 = vadd.xlane.f32.xlu0 %v1988
        %v1990 = vpop.xlane.xlu0 %1989
        %v1991 = vsel %vm454, %v1058, 0.0
        %1992 = vadd.xlane.f32.xlu0 %v1991
        %v1993 = vpop.xlane.xlu0 %1992
        %v1994 = vsel %vm454, %v1061, 0.0
        %1995 = vadd.xlane.f32.xlu0 %v1994
        %v1996 = vpop.xlane.xlu0 %1995
        %v1997 = vsel %vm454, %v1066, 0.0
        %1998 = vadd.xlane.f32.xlu0 %v1997
        %v1999 = vpop.xlane.xlu0 %1998
        %v2000 = vsel %vm454, %v1069, 0.0
        %2001 = vadd.xlane.f32.xlu0 %v2000
        %v2002 = vpop.xlane.xlu0 %2001
        %v2003 = vsel %vm454, %v1074, 0.0
        %2004 = vadd.xlane.f32.xlu0 %v2003
        %v2005 = vpop.xlane.xlu0 %2004
        %v2006 = vsel %vm454, %v1077, 0.0
        %2007 = vadd.xlane.f32.xlu0 %v2006
        %v2008 = vpop.xlane.xlu0 %2007
        %v2009 = vsel %vm454, %v1082, 0.0
        %2010 = vadd.xlane.f32.xlu0 %v2009
        %v2011 = vpop.xlane.xlu0 %2010
        %v2012 = vsel %vm454, %v1085, 0.0
        %2013 = vadd.xlane.f32.xlu0 %v2012
        %v2014 = vpop.xlane.xlu0 %2013
        %v2015 = vsel %vm454, %v1090, 0.0
        %2016 = vadd.xlane.f32.xlu0 %v2015
        %v2017 = vpop.xlane.xlu0 %2016
        %v2018 = vsel %vm454, %v1093, 0.0
        %2019 = vadd.xlane.f32.xlu0 %v2018
        %v2020 = vpop.xlane.xlu0 %2019
        %v2021 = vsel %vm454, %v1098, 0.0
        %2022 = vadd.xlane.f32.xlu0 %v2021
        %v2023 = vpop.xlane.xlu0 %2022
        %v2024 = vsel %vm454, %v1101, 0.0
        %2025 = vadd.xlane.f32.xlu0 %v2024
        %v2026 = vpop.xlane.xlu0 %2025
        %v2027 = vsel %vm454, %v1106, 0.0
        %2028 = vadd.xlane.f32.xlu0 %v2027
        %v2029 = vpop.xlane.xlu0 %2028
        %v2030 = vsel %vm454, %v1109, 0.0
        %2031 = vadd.xlane.f32.xlu0 %v2030
        %v2032 = vpop.xlane.xlu0 %2031
        %v2033 = vsel %vm454, %v1114, 0.0
        %2034 = vadd.xlane.f32.xlu0 %v2033
        %v2035 = vpop.xlane.xlu0 %2034
        %v2036 = vsel %vm454, %v1117, 0.0
        %2037 = vadd.xlane.f32.xlu0 %v2036
        %v2038 = vpop.xlane.xlu0 %2037
        %v2039 = vsel %vm454, %v1122, 0.0
        %2040 = vadd.xlane.f32.xlu0 %v2039
        %v2041 = vpop.xlane.xlu0 %2040
        %v2042 = vsel %vm454, %v1125, 0.0
        %2043 = vadd.xlane.f32.xlu0 %v2042
        %v2044 = vpop.xlane.xlu0 %2043
        %v2045 = vsel %vm454, %v1130, 0.0
        %2046 = vadd.xlane.f32.xlu0 %v2045
        %v2047 = vpop.xlane.xlu0 %2046
        %v2048 = vsel %vm454, %v1133, 0.0
        %2049 = vadd.xlane.f32.xlu0 %v2048
        %v2050 = vpop.xlane.xlu0 %2049
        %v2051 = vsel %vm454, %v1138, 0.0
        %2052 = vadd.xlane.f32.xlu0 %v2051
        %v2053 = vpop.xlane.xlu0 %2052
        %v2054 = vsel %vm454, %v1141, 0.0
        %2055 = vadd.xlane.f32.xlu0 %v2054
        %v2056 = vpop.xlane.xlu0 %2055
        %v2057 = vsel %vm454, %v1146, 0.0
        %2058 = vadd.xlane.f32.xlu0 %v2057
        %v2059 = vpop.xlane.xlu0 %2058
        %v2060 = vsel %vm454, %v1149, 0.0
        %2061 = vadd.xlane.f32.xlu0 %v2060
        %v2062 = vpop.xlane.xlu0 %2061
        %v2063 = vsel %vm454, %v1154, 0.0
        %2064 = vadd.xlane.f32.xlu0 %v2063
        %v2065 = vpop.xlane.xlu0 %2064
        %v2066 = vsel %vm454, %v1157, 0.0
        %2067 = vadd.xlane.f32.xlu0 %v2066
        %v2068 = vpop.xlane.xlu0 %2067
        %v2069 = vsel %vm454, %v1162, 0.0
        %2070 = vadd.xlane.f32.xlu0 %v2069
        %v2071 = vpop.xlane.xlu0 %2070
        %v2072 = vsel %vm454, %v1165, 0.0
        %2073 = vadd.xlane.f32.xlu0 %v2072
        %v2074 = vpop.xlane.xlu0 %2073
        %v2075 = vsel %vm454, %v1170, 0.0
        %2076 = vadd.xlane.f32.xlu0 %v2075
        %v2077 = vpop.xlane.xlu0 %2076
        %v2078 = vsel %vm454, %v1173, 0.0
        %2079 = vadd.xlane.f32.xlu0 %v2078
        %v2080 = vpop.xlane.xlu0 %2079
        %v2081 = vsel %vm454, %v1178, 0.0
        %2082 = vadd.xlane.f32.xlu0 %v2081
        %v2083 = vpop.xlane.xlu0 %2082
        %v2084 = vsel %vm454, %v1181, 0.0
        %2085 = vadd.xlane.f32.xlu0 %v2084
        %v2086 = vpop.xlane.xlu0 %2085
        %v2087 = vsel %vm454, %v1186, 0.0
        %2088 = vadd.xlane.f32.xlu0 %v2087
        %v2089 = vpop.xlane.xlu0 %2088
        %v2090 = vsel %vm454, %v1189, 0.0
        %2091 = vadd.xlane.f32.xlu0 %v2090
        %v2092 = vpop.xlane.xlu0 %2091
        %v2093 = vsub.f32 %v1711, %v1327
        %v2094 = vsub.f32 %v1714, %v1330
        %v2095 = vsub.f32 %v1717, %v1333
        %v2096 = vsub.f32 %v1720, %v1336
        %v2097 = vsub.f32 %v1723, %v1339
        %v2098 = vsub.f32 %v1726, %v1342
        %v2099 = vsub.f32 %v1729, %v1345
        %v2100 = vsub.f32 %v1732, %v1348
        %v2101 = vsub.f32 %v1735, %v1351
        %v2102 = vsub.f32 %v1738, %v1354
        %v2103 = vsub.f32 %v1741, %v1357
        %v2104 = vsub.f32 %v1744, %v1360
        %v2105 = vsub.f32 %v1747, %v1363
        %v2106 = vsub.f32 %v1750, %v1366
        %v2107 = vsub.f32 %v1753, %v1369
        %v2108 = vsub.f32 %v1756, %v1372
        %v2109 = vsub.f32 %v1759, %v1375
        %v2110 = vsub.f32 %v1762, %v1378
        %v2111 = vsub.f32 %v1765, %v1381
        %v2112 = vsub.f32 %v1768, %v1384
        %v2113 = vsub.f32 %v1771, %v1387
        %v2114 = vsub.f32 %v1774, %v1390
        %v2115 = vsub.f32 %v1777, %v1393
        %v2116 = vsub.f32 %v1780, %v1396
        %v2117 = vsub.f32 %v1783, %v1399
        %v2118 = vsub.f32 %v1786, %v1402
        %v2119 = vsub.f32 %v1789, %v1405
        %v2120 = vsub.f32 %v1792, %v1408
        %v2121 = vsub.f32 %v1795, %v1411
        %v2122 = vsub.f32 %v1798, %v1414
        %v2123 = vsub.f32 %v1801, %v1417
        %v2124 = vsub.f32 %v1804, %v1420
        %v2125 = vsub.f32 %v1807, %v1423
        %v2126 = vsub.f32 %v1810, %v1426
        %v2127 = vsub.f32 %v1813, %v1429
        %v2128 = vsub.f32 %v1816, %v1432
        %v2129 = vsub.f32 %v1819, %v1435
        %v2130 = vsub.f32 %v1822, %v1438
        %v2131 = vsub.f32 %v1825, %v1441
        %v2132 = vsub.f32 %v1828, %v1444
        %v2133 = vsub.f32 %v1831, %v1447
        %v2134 = vsub.f32 %v1834, %v1450
        %v2135 = vsub.f32 %v1837, %v1453
        %v2136 = vsub.f32 %v1840, %v1456
        %v2137 = vsub.f32 %v1843, %v1459
        %v2138 = vsub.f32 %v1846, %v1462
        %v2139 = vsub.f32 %v1849, %v1465
        %v2140 = vsub.f32 %v1852, %v1468
        %v2141 = vsub.f32 %v1855, %v1471
        %v2142 = vsub.f32 %v1858, %v1474
        %v2143 = vsub.f32 %v1861, %v1477
        %v2144 = vsub.f32 %v1864, %v1480
        %v2145 = vsub.f32 %v1867, %v1483
        %v2146 = vsub.f32 %v1870, %v1486
        %v2147 = vsub.f32 %v1873, %v1489
        %v2148 = vsub.f32 %v1876, %v1492
        %v2149 = vsub.f32 %v1879, %v1495
        %v2150 = vsub.f32 %v1882, %v1498
        %v2151 = vsub.f32 %v1885, %v1501
        %v2152 = vsub.f32 %v1888, %v1504
        %v2153 = vsub.f32 %v1891, %v1507
        %v2154 = vsub.f32 %v1894, %v1510
        %v2155 = vsub.f32 %v1897, %v1513
        %v2156 = vsub.f32 %v1900, %v1516
        %v2157 = vsub.f32 %v1903, %v1519
        %v2158 = vsub.f32 %v1906, %v1522
        %v2159 = vsub.f32 %v1909, %v1525
        %v2160 = vsub.f32 %v1912, %v1528
        %v2161 = vsub.f32 %v1915, %v1531
        %v2162 = vsub.f32 %v1918, %v1534
        %v2163 = vsub.f32 %v1921, %v1537
        %v2164 = vsub.f32 %v1924, %v1540
        %v2165 = vsub.f32 %v1927, %v1543
        %v2166 = vsub.f32 %v1930, %v1546
        %v2167 = vsub.f32 %v1933, %v1549
        %v2168 = vsub.f32 %v1936, %v1552
        %v2169 = vsub.f32 %v1939, %v1555
        %v2170 = vsub.f32 %v1942, %v1558
        %v2171 = vsub.f32 %v1945, %v1561
        %v2172 = vsub.f32 %v1948, %v1564
        %v2173 = vsub.f32 %v1951, %v1567
        %v2174 = vsub.f32 %v1954, %v1570
        %v2175 = vsub.f32 %v1957, %v1573
        %v2176 = vsub.f32 %v1960, %v1576
        %v2177 = vsub.f32 %v1963, %v1579
        %v2178 = vsub.f32 %v1966, %v1582
        %v2179 = vsub.f32 %v1969, %v1585
        %v2180 = vsub.f32 %v1972, %v1588
        %v2181 = vsub.f32 %v1975, %v1591
        %v2182 = vsub.f32 %v1978, %v1594
        %v2183 = vsub.f32 %v1981, %v1597
        %v2184 = vsub.f32 %v1984, %v1600
        %v2185 = vsub.f32 %v1987, %v1603
        %v2186 = vsub.f32 %v1990, %v1606
        %v2187 = vsub.f32 %v1993, %v1609
        %v2188 = vsub.f32 %v1996, %v1612
        %v2189 = vsub.f32 %v1999, %v1615
        %v2190 = vsub.f32 %v2002, %v1618
        %v2191 = vsub.f32 %v2005, %v1621
        %v2192 = vsub.f32 %v2008, %v1624
        %v2193 = vsub.f32 %v2011, %v1627
        %v2194 = vsub.f32 %v2014, %v1630
        %v2195 = vsub.f32 %v2017, %v1633
        %v2196 = vsub.f32 %v2020, %v1636
        %v2197 = vsub.f32 %v2023, %v1639
        %v2198 = vsub.f32 %v2026, %v1642
        %v2199 = vsub.f32 %v2029, %v1645
        %v2200 = vsub.f32 %v2032, %v1648
        %v2201 = vsub.f32 %v2035, %v1651
        %v2202 = vsub.f32 %v2038, %v1654
        %v2203 = vsub.f32 %v2041, %v1657
        %v2204 = vsub.f32 %v2044, %v1660
        %v2205 = vsub.f32 %v2047, %v1663
        %v2206 = vsub.f32 %v2050, %v1666
        %v2207 = vsub.f32 %v2053, %v1669
        %v2208 = vsub.f32 %v2056, %v1672
        %v2209 = vsub.f32 %v2059, %v1675
        %v2210 = vsub.f32 %v2062, %v1678
        %v2211 = vsub.f32 %v2065, %v1681
        %v2212 = vsub.f32 %v2068, %v1684
        %v2213 = vsub.f32 %v2071, %v1687
        %v2214 = vsub.f32 %v2074, %v1690
        %v2215 = vsub.f32 %v2077, %v1693
        %v2216 = vsub.f32 %v2080, %v1696
        %v2217 = vsub.f32 %v2083, %v1699
        %v2218 = vsub.f32 %v2086, %v1702
        %v2219 = vsub.f32 %v2089, %v1705
        %v2220 = vsub.f32 %v2092, %v1708
        %v2221 = vsel %vm1196, %v1327, %v2093
        %v2222 = vsel %vm1196, %v1330, %v2094
        %v2223 = vsel %vm1196, %v1333, %v2095
        %v2224 = vsel %vm1196, %v1336, %v2096
        %v2225 = vsel %vm1196, %v1339, %v2097
        %v2226 = vsel %vm1196, %v1342, %v2098
        %v2227 = vsel %vm1196, %v1345, %v2099
        %v2228 = vsel %vm1196, %v1348, %v2100
        %v2229 = vsel %vm1196, %v1351, %v2101
        %v2230 = vsel %vm1196, %v1354, %v2102
        %v2231 = vsel %vm1196, %v1357, %v2103
        %v2232 = vsel %vm1196, %v1360, %v2104
        %v2233 = vsel %vm1196, %v1363, %v2105
        %v2234 = vsel %vm1196, %v1366, %v2106
        %v2235 = vsel %vm1196, %v1369, %v2107
        %v2236 = vsel %vm1196, %v1372, %v2108
        %v2237 = vsel %vm1196, %v1375, %v2109
        %v2238 = vsel %vm1196, %v1378, %v2110
        %v2239 = vsel %vm1196, %v1381, %v2111
        %v2240 = vsel %vm1196, %v1384, %v2112
        %v2241 = vsel %vm1196, %v1387, %v2113
        %v2242 = vsel %vm1196, %v1390, %v2114
        %v2243 = vsel %vm1196, %v1393, %v2115
        %v2244 = vsel %vm1196, %v1396, %v2116
        %v2245 = vsel %vm1196, %v1399, %v2117
        %v2246 = vsel %vm1196, %v1402, %v2118
        %v2247 = vsel %vm1196, %v1405, %v2119
        %v2248 = vsel %vm1196, %v1408, %v2120
        %v2249 = vsel %vm1196, %v1411, %v2121
        %v2250 = vsel %vm1196, %v1414, %v2122
        %v2251 = vsel %vm1196, %v1417, %v2123
        %v2252 = vsel %vm1196, %v1420, %v2124
        %v2253 = vsel %vm1196, %v1423, %v2125
        %v2254 = vsel %vm1196, %v1426, %v2126
        %v2255 = vsel %vm1196, %v1429, %v2127
        %v2256 = vsel %vm1196, %v1432, %v2128
        %v2257 = vsel %vm1196, %v1435, %v2129
        %v2258 = vsel %vm1196, %v1438, %v2130
        %v2259 = vsel %vm1196, %v1441, %v2131
        %v2260 = vsel %vm1196, %v1444, %v2132
        %v2261 = vsel %vm1196, %v1447, %v2133
        %v2262 = vsel %vm1196, %v1450, %v2134
        %v2263 = vsel %vm1196, %v1453, %v2135
        %v2264 = vsel %vm1196, %v1456, %v2136
        %v2265 = vsel %vm1196, %v1459, %v2137
        %v2266 = vsel %vm1196, %v1462, %v2138
        %v2267 = vsel %vm1196, %v1465, %v2139
        %v2268 = vsel %vm1196, %v1468, %v2140
        %v2269 = vsel %vm1196, %v1471, %v2141
        %v2270 = vsel %vm1196, %v1474, %v2142
        %v2271 = vsel %vm1196, %v1477, %v2143
        %v2272 = vsel %vm1196, %v1480, %v2144
        %v2273 = vsel %vm1196, %v1483, %v2145
        %v2274 = vsel %vm1196, %v1486, %v2146
        %v2275 = vsel %vm1196, %v1489, %v2147
        %v2276 = vsel %vm1196, %v1492, %v2148
        %v2277 = vsel %vm1196, %v1495, %v2149
        %v2278 = vsel %vm1196, %v1498, %v2150
        %v2279 = vsel %vm1196, %v1501, %v2151
        %v2280 = vsel %vm1196, %v1504, %v2152
        %v2281 = vsel %vm1196, %v1507, %v2153
        %v2282 = vsel %vm1196, %v1510, %v2154
        %v2283 = vsel %vm1196, %v1513, %v2155
        %v2284 = vsel %vm1196, %v1516, %v2156
        %v2285 = vsel %vm1196, %v1519, %v2157
        %v2286 = vsel %vm1196, %v1522, %v2158
        %v2287 = vsel %vm1196, %v1525, %v2159
        %v2288 = vsel %vm1196, %v1528, %v2160
        %v2289 = vsel %vm1196, %v1531, %v2161
        %v2290 = vsel %vm1196, %v1534, %v2162
        %v2291 = vsel %vm1196, %v1537, %v2163
        %v2292 = vsel %vm1196, %v1540, %v2164
        %v2293 = vsel %vm1196, %v1543, %v2165
        %v2294 = vsel %vm1196, %v1546, %v2166
        %v2295 = vsel %vm1196, %v1549, %v2167
        %v2296 = vsel %vm1196, %v1552, %v2168
        %v2297 = vsel %vm1196, %v1555, %v2169
        %v2298 = vsel %vm1196, %v1558, %v2170
        %v2299 = vsel %vm1196, %v1561, %v2171
        %v2300 = vsel %vm1196, %v1564, %v2172
        %v2301 = vsel %vm1196, %v1567, %v2173
        %v2302 = vsel %vm1196, %v1570, %v2174
        %v2303 = vsel %vm1196, %v1573, %v2175
        %v2304 = vsel %vm1196, %v1576, %v2176
        %v2305 = vsel %vm1196, %v1579, %v2177
        %v2306 = vsel %vm1196, %v1582, %v2178
        %v2307 = vsel %vm1196, %v1585, %v2179
        %v2308 = vsel %vm1196, %v1588, %v2180
        %v2309 = vsel %vm1196, %v1591, %v2181
        %v2310 = vsel %vm1196, %v1594, %v2182
        %v2311 = vsel %vm1196, %v1597, %v2183
        %v2312 = vsel %vm1196, %v1600, %v2184
        %v2313 = vsel %vm1196, %v1603, %v2185
        %v2314 = vsel %vm1196, %v1606, %v2186
        %v2315 = vsel %vm1196, %v1609, %v2187
        %v2316 = vsel %vm1196, %v1612, %v2188
        %v2317 = vsel %vm1196, %v1615, %v2189
        %v2318 = vsel %vm1196, %v1618, %v2190
        %v2319 = vsel %vm1196, %v1621, %v2191
        %v2320 = vsel %vm1196, %v1624, %v2192
        %v2321 = vsel %vm1196, %v1627, %v2193
        %v2322 = vsel %vm1196, %v1630, %v2194
        %v2323 = vsel %vm1196, %v1633, %v2195
        %v2324 = vsel %vm1196, %v1636, %v2196
        %v2325 = vsel %vm1196, %v1639, %v2197
        %v2326 = vsel %vm1196, %v1642, %v2198
        %v2327 = vsel %vm1196, %v1645, %v2199
        %v2328 = vsel %vm1196, %v1648, %v2200
        %v2329 = vsel %vm1196, %v1651, %v2201
        %v2330 = vsel %vm1196, %v1654, %v2202
        %v2331 = vsel %vm1196, %v1657, %v2203
        %v2332 = vsel %vm1196, %v1660, %v2204
        %v2333 = vsel %vm1196, %v1663, %v2205
        %v2334 = vsel %vm1196, %v1666, %v2206
        %v2335 = vsel %vm1196, %v1669, %v2207
        %v2336 = vsel %vm1196, %v1672, %v2208
        %v2337 = vsel %vm1196, %v1675, %v2209
        %v2338 = vsel %vm1196, %v1678, %v2210
        %v2339 = vsel %vm1196, %v1681, %v2211
        %v2340 = vsel %vm1196, %v1684, %v2212
        %v2341 = vsel %vm1196, %v1687, %v2213
        %v2342 = vsel %vm1196, %v1690, %v2214
        %v2343 = vsel %vm1196, %v1693, %v2215
        %v2344 = vsel %vm1196, %v1696, %v2216
        %v2345 = vsel %vm1196, %v1699, %v2217
        %v2346 = vsel %vm1196, %v1702, %v2218
        %v2347 = vsel %vm1196, %v1705, %v2219
        %v2348 = vsel %vm1196, %v1708, %v2220
        %v2349 = vmul.f32 %v2221, 0.03125
        %v2350 = vmul.f32 %v2222, 0.03125
        %v2351 = vmul.f32 %v2223, 0.03125
        %v2352 = vmul.f32 %v2224, 0.03125
        %v2353 = vmul.f32 %v2225, 0.03125
        %v2354 = vmul.f32 %v2226, 0.03125
        %v2355 = vmul.f32 %v2227, 0.03125
        %v2356 = vmul.f32 %v2228, 0.03125
        %v2357 = vmul.f32 %v2229, 0.03125
        %v2358 = vmul.f32 %v2230, 0.03125
        %v2359 = vmul.f32 %v2231, 0.03125
        %v2360 = vmul.f32 %v2232, 0.03125
        %v2361 = vmul.f32 %v2233, 0.03125
        %v2362 = vmul.f32 %v2234, 0.03125
        %v2363 = vmul.f32 %v2235, 0.03125
        %v2364 = vmul.f32 %v2236, 0.03125
        %v2365 = vmul.f32 %v2237, 0.03125
        %v2366 = vmul.f32 %v2238, 0.03125
        %v2367 = vmul.f32 %v2239, 0.03125
        %v2368 = vmul.f32 %v2240, 0.03125
        %v2369 = vmul.f32 %v2241, 0.03125
        %v2370 = vmul.f32 %v2242, 0.03125
        %v2371 = vmul.f32 %v2243, 0.03125
        %v2372 = vmul.f32 %v2244, 0.03125
        %v2373 = vmul.f32 %v2245, 0.03125
        %v2374 = vmul.f32 %v2246, 0.03125
        %v2375 = vmul.f32 %v2247, 0.03125
        %v2376 = vmul.f32 %v2248, 0.03125
        %v2377 = vmul.f32 %v2249, 0.03125
        %v2378 = vmul.f32 %v2250, 0.03125
        %v2379 = vmul.f32 %v2251, 0.03125
        %v2380 = vmul.f32 %v2252, 0.03125
        %v2381 = vmul.f32 %v2253, 0.03125
        %v2382 = vmul.f32 %v2254, 0.03125
        %v2383 = vmul.f32 %v2255, 0.03125
        %v2384 = vmul.f32 %v2256, 0.03125
        %v2385 = vmul.f32 %v2257, 0.03125
        %v2386 = vmul.f32 %v2258, 0.03125
        %v2387 = vmul.f32 %v2259, 0.03125
        %v2388 = vmul.f32 %v2260, 0.03125
        %v2389 = vmul.f32 %v2261, 0.03125
        %v2390 = vmul.f32 %v2262, 0.03125
        %v2391 = vmul.f32 %v2263, 0.03125
        %v2392 = vmul.f32 %v2264, 0.03125
        %v2393 = vmul.f32 %v2265, 0.03125
        %v2394 = vmul.f32 %v2266, 0.03125
        %v2395 = vmul.f32 %v2267, 0.03125
        %v2396 = vmul.f32 %v2268, 0.03125
        %v2397 = vmul.f32 %v2269, 0.03125
        %v2398 = vmul.f32 %v2270, 0.03125
        %v2399 = vmul.f32 %v2271, 0.03125
        %v2400 = vmul.f32 %v2272, 0.03125
        %v2401 = vmul.f32 %v2273, 0.03125
        %v2402 = vmul.f32 %v2274, 0.03125
        %v2403 = vmul.f32 %v2275, 0.03125
        %v2404 = vmul.f32 %v2276, 0.03125
        %v2405 = vmul.f32 %v2277, 0.03125
        %v2406 = vmul.f32 %v2278, 0.03125
        %v2407 = vmul.f32 %v2279, 0.03125
        %v2408 = vmul.f32 %v2280, 0.03125
        %v2409 = vmul.f32 %v2281, 0.03125
        %v2410 = vmul.f32 %v2282, 0.03125
        %v2411 = vmul.f32 %v2283, 0.03125
        %v2412 = vmul.f32 %v2284, 0.03125
        %v2413 = vmul.f32 %v2285, 0.03125
        %v2414 = vmul.f32 %v2286, 0.03125
        %v2415 = vmul.f32 %v2287, 0.03125
        %v2416 = vmul.f32 %v2288, 0.03125
        %v2417 = vmul.f32 %v2289, 0.03125
        %v2418 = vmul.f32 %v2290, 0.03125
        %v2419 = vmul.f32 %v2291, 0.03125
        %v2420 = vmul.f32 %v2292, 0.03125
        %v2421 = vmul.f32 %v2293, 0.03125
        %v2422 = vmul.f32 %v2294, 0.03125
        %v2423 = vmul.f32 %v2295, 0.03125
        %v2424 = vmul.f32 %v2296, 0.03125
        %v2425 = vmul.f32 %v2297, 0.03125
        %v2426 = vmul.f32 %v2298, 0.03125
        %v2427 = vmul.f32 %v2299, 0.03125
        %v2428 = vmul.f32 %v2300, 0.03125
        %v2429 = vmul.f32 %v2301, 0.03125
        %v2430 = vmul.f32 %v2302, 0.03125
        %v2431 = vmul.f32 %v2303, 0.03125
        %v2432 = vmul.f32 %v2304, 0.03125
        %v2433 = vmul.f32 %v2305, 0.03125
        %v2434 = vmul.f32 %v2306, 0.03125
        %v2435 = vmul.f32 %v2307, 0.03125
        %v2436 = vmul.f32 %v2308, 0.03125
        %v2437 = vmul.f32 %v2309, 0.03125
        %v2438 = vmul.f32 %v2310, 0.03125
        %v2439 = vmul.f32 %v2311, 0.03125
        %v2440 = vmul.f32 %v2312, 0.03125
        %v2441 = vmul.f32 %v2313, 0.03125
        %v2442 = vmul.f32 %v2314, 0.03125
        %v2443 = vmul.f32 %v2315, 0.03125
        %v2444 = vmul.f32 %v2316, 0.03125
        %v2445 = vmul.f32 %v2317, 0.03125
        %v2446 = vmul.f32 %v2318, 0.03125
        %v2447 = vmul.f32 %v2319, 0.03125
        %v2448 = vmul.f32 %v2320, 0.03125
        %v2449 = vmul.f32 %v2321, 0.03125
        %v2450 = vmul.f32 %v2322, 0.03125
        %v2451 = vmul.f32 %v2323, 0.03125
        %v2452 = vmul.f32 %v2324, 0.03125
        %v2453 = vmul.f32 %v2325, 0.03125
        %v2454 = vmul.f32 %v2326, 0.03125
        %v2455 = vmul.f32 %v2327, 0.03125
        %v2456 = vmul.f32 %v2328, 0.03125
        %v2457 = vmul.f32 %v2329, 0.03125
        %v2458 = vmul.f32 %v2330, 0.03125
        %v2459 = vmul.f32 %v2331, 0.03125
        %v2460 = vmul.f32 %v2332, 0.03125
        %v2461 = vmul.f32 %v2333, 0.03125
        %v2462 = vmul.f32 %v2334, 0.03125
        %v2463 = vmul.f32 %v2335, 0.03125
        %v2464 = vmul.f32 %v2336, 0.03125
        %v2465 = vmul.f32 %v2337, 0.03125
        %v2466 = vmul.f32 %v2338, 0.03125
        %v2467 = vmul.f32 %v2339, 0.03125
        %v2468 = vmul.f32 %v2340, 0.03125
        %v2469 = vmul.f32 %v2341, 0.03125
        %v2470 = vmul.f32 %v2342, 0.03125
        %v2471 = vmul.f32 %v2343, 0.03125
        %v2472 = vmul.f32 %v2344, 0.03125
        %v2473 = vmul.f32 %v2345, 0.03125
        %v2474 = vmul.f32 %v2346, 0.03125
        %v2475 = vmul.f32 %v2347, 0.03125
        %v2476 = vmul.f32 %v2348, 0.03125
        %v2477 = vsub.f32 %v682, %v2349
        %v2478 = vsub.f32 %v685, %v2350
        %v2479 = vsub.f32 %v690, %v2351
        %v2480 = vsub.f32 %v693, %v2352
        %v2481 = vsub.f32 %v698, %v2353
        %v2482 = vsub.f32 %v701, %v2354
        %v2483 = vsub.f32 %v706, %v2355
        %v2484 = vsub.f32 %v709, %v2356
        %v2485 = vsub.f32 %v714, %v2357
        %v2486 = vsub.f32 %v717, %v2358
        %v2487 = vsub.f32 %v722, %v2359
        %v2488 = vsub.f32 %v725, %v2360
        %v2489 = vsub.f32 %v730, %v2361
        %v2490 = vsub.f32 %v733, %v2362
        %v2491 = vsub.f32 %v738, %v2363
        %v2492 = vsub.f32 %v741, %v2364
        %v2493 = vsub.f32 %v746, %v2365
        %v2494 = vsub.f32 %v749, %v2366
        %v2495 = vsub.f32 %v754, %v2367
        %v2496 = vsub.f32 %v757, %v2368
        %v2497 = vsub.f32 %v762, %v2369
        %v2498 = vsub.f32 %v765, %v2370
        %v2499 = vsub.f32 %v770, %v2371
        %v2500 = vsub.f32 %v773, %v2372
        %v2501 = vsub.f32 %v778, %v2373
        %v2502 = vsub.f32 %v781, %v2374
        %v2503 = vsub.f32 %v786, %v2375
        %v2504 = vsub.f32 %v789, %v2376
        %v2505 = vsub.f32 %v794, %v2377
        %v2506 = vsub.f32 %v797, %v2378
        %v2507 = vsub.f32 %v802, %v2379
        %v2508 = vsub.f32 %v805, %v2380
        %v2509 = vsub.f32 %v810, %v2381
        %v2510 = vsub.f32 %v813, %v2382
        %v2511 = vsub.f32 %v818, %v2383
        %v2512 = vsub.f32 %v821, %v2384
        %v2513 = vsub.f32 %v826, %v2385
        %v2514 = vsub.f32 %v829, %v2386
        %v2515 = vsub.f32 %v834, %v2387
        %v2516 = vsub.f32 %v837, %v2388
        %v2517 = vsub.f32 %v842, %v2389
        %v2518 = vsub.f32 %v845, %v2390
        %v2519 = vsub.f32 %v850, %v2391
        %v2520 = vsub.f32 %v853, %v2392
        %v2521 = vsub.f32 %v858, %v2393
        %v2522 = vsub.f32 %v861, %v2394
        %v2523 = vsub.f32 %v866, %v2395
        %v2524 = vsub.f32 %v869, %v2396
        %v2525 = vsub.f32 %v874, %v2397
        %v2526 = vsub.f32 %v877, %v2398
        %v2527 = vsub.f32 %v882, %v2399
        %v2528 = vsub.f32 %v885, %v2400
        %v2529 = vsub.f32 %v890, %v2401
        %v2530 = vsub.f32 %v893, %v2402
        %v2531 = vsub.f32 %v898, %v2403
        %v2532 = vsub.f32 %v901, %v2404
        %v2533 = vsub.f32 %v906, %v2405
        %v2534 = vsub.f32 %v909, %v2406
        %v2535 = vsub.f32 %v914, %v2407
        %v2536 = vsub.f32 %v917, %v2408
        %v2537 = vsub.f32 %v922, %v2409
        %v2538 = vsub.f32 %v925, %v2410
        %v2539 = vsub.f32 %v930, %v2411
        %v2540 = vsub.f32 %v933, %v2412
        %v2541 = vsub.f32 %v938, %v2413
        %v2542 = vsub.f32 %v941, %v2414
        %v2543 = vsub.f32 %v946, %v2415
        %v2544 = vsub.f32 %v949, %v2416
        %v2545 = vsub.f32 %v954, %v2417
        %v2546 = vsub.f32 %v957, %v2418
        %v2547 = vsub.f32 %v962, %v2419
        %v2548 = vsub.f32 %v965, %v2420
        %v2549 = vsub.f32 %v970, %v2421
        %v2550 = vsub.f32 %v973, %v2422
        %v2551 = vsub.f32 %v978, %v2423
        %v2552 = vsub.f32 %v981, %v2424
        %v2553 = vsub.f32 %v986, %v2425
        %v2554 = vsub.f32 %v989, %v2426
        %v2555 = vsub.f32 %v994, %v2427
        %v2556 = vsub.f32 %v997, %v2428
        %v2557 = vsub.f32 %v1002, %v2429
        %v2558 = vsub.f32 %v1005, %v2430
        %v2559 = vsub.f32 %v1010, %v2431
        %v2560 = vsub.f32 %v1013, %v2432
        %v2561 = vsub.f32 %v1018, %v2433
        %v2562 = vsub.f32 %v1021, %v2434
        %v2563 = vsub.f32 %v1026, %v2435
        %v2564 = vsub.f32 %v1029, %v2436
        %v2565 = vsub.f32 %v1034, %v2437
        %v2566 = vsub.f32 %v1037, %v2438
        %v2567 = vsub.f32 %v1042, %v2439
        %v2568 = vsub.f32 %v1045, %v2440
        %v2569 = vsub.f32 %v1050, %v2441
        %v2570 = vsub.f32 %v1053, %v2442
        %v2571 = vsub.f32 %v1058, %v2443
        %v2572 = vsub.f32 %v1061, %v2444
        %v2573 = vsub.f32 %v1066, %v2445
        %v2574 = vsub.f32 %v1069, %v2446
        %v2575 = vsub.f32 %v1074, %v2447
        %v2576 = vsub.f32 %v1077, %v2448
        %v2577 = vsub.f32 %v1082, %v2449
        %v2578 = vsub.f32 %v1085, %v2450
        %v2579 = vsub.f32 %v1090, %v2451
        %v2580 = vsub.f32 %v1093, %v2452
        %v2581 = vsub.f32 %v1098, %v2453
        %v2582 = vsub.f32 %v1101, %v2454
        %v2583 = vsub.f32 %v1106, %v2455
        %v2584 = vsub.f32 %v1109, %v2456
        %v2585 = vsub.f32 %v1114, %v2457
        %v2586 = vsub.f32 %v1117, %v2458
        %v2587 = vsub.f32 %v1122, %v2459
        %v2588 = vsub.f32 %v1125, %v2460
        %v2589 = vsub.f32 %v1130, %v2461
        %v2590 = vsub.f32 %v1133, %v2462
        %v2591 = vsub.f32 %v1138, %v2463
        %v2592 = vsub.f32 %v1141, %v2464
        %v2593 = vsub.f32 %v1146, %v2465
        %v2594 = vsub.f32 %v1149, %v2466
        %v2595 = vsub.f32 %v1154, %v2467
        %v2596 = vsub.f32 %v1157, %v2468
        %v2597 = vsub.f32 %v1162, %v2469
        %v2598 = vsub.f32 %v1165, %v2470
        %v2599 = vsub.f32 %v1170, %v2471
        %v2600 = vsub.f32 %v1173, %v2472
        %v2601 = vsub.f32 %v1178, %v2473
        %v2602 = vsub.f32 %v1181, %v2474
        %v2603 = vsub.f32 %v1186, %v2475
        %v2604 = vsub.f32 %v1189, %v2476
        %v2605 = vmul.f32 %v2477, %v2477
        %v2606 = vmul.f32 %v2478, %v2478
        %v2607 = vmul.f32 %v2479, %v2479
        %v2608 = vmul.f32 %v2480, %v2480
        %v2609 = vmul.f32 %v2481, %v2481
        %v2610 = vmul.f32 %v2482, %v2482
        %v2611 = vmul.f32 %v2483, %v2483
        %v2612 = vmul.f32 %v2484, %v2484
        %v2613 = vmul.f32 %v2485, %v2485
        %v2614 = vmul.f32 %v2486, %v2486
        %v2615 = vmul.f32 %v2487, %v2487
        %v2616 = vmul.f32 %v2488, %v2488
        %v2617 = vmul.f32 %v2489, %v2489
        %v2618 = vmul.f32 %v2490, %v2490
        %v2619 = vmul.f32 %v2491, %v2491
        %v2620 = vmul.f32 %v2492, %v2492
        %v2621 = vmul.f32 %v2493, %v2493
        %v2622 = vmul.f32 %v2494, %v2494
        %v2623 = vmul.f32 %v2495, %v2495
        %v2624 = vmul.f32 %v2496, %v2496
        %v2625 = vmul.f32 %v2497, %v2497
        %v2626 = vmul.f32 %v2498, %v2498
        %v2627 = vmul.f32 %v2499, %v2499
        %v2628 = vmul.f32 %v2500, %v2500
        %v2629 = vmul.f32 %v2501, %v2501
        %v2630 = vmul.f32 %v2502, %v2502
        %v2631 = vmul.f32 %v2503, %v2503
        %v2632 = vmul.f32 %v2504, %v2504
        %v2633 = vmul.f32 %v2505, %v2505
        %v2634 = vmul.f32 %v2506, %v2506
        %v2635 = vmul.f32 %v2507, %v2507
        %v2636 = vmul.f32 %v2508, %v2508
        %v2637 = vmul.f32 %v2509, %v2509
        %v2638 = vmul.f32 %v2510, %v2510
        %v2639 = vmul.f32 %v2511, %v2511
        %v2640 = vmul.f32 %v2512, %v2512
        %v2641 = vmul.f32 %v2513, %v2513
        %v2642 = vmul.f32 %v2514, %v2514
        %v2643 = vmul.f32 %v2515, %v2515
        %v2644 = vmul.f32 %v2516, %v2516
        %v2645 = vmul.f32 %v2517, %v2517
        %v2646 = vmul.f32 %v2518, %v2518
        %v2647 = vmul.f32 %v2519, %v2519
        %v2648 = vmul.f32 %v2520, %v2520
        %v2649 = vmul.f32 %v2521, %v2521
        %v2650 = vmul.f32 %v2522, %v2522
        %v2651 = vmul.f32 %v2523, %v2523
        %v2652 = vmul.f32 %v2524, %v2524
        %v2653 = vmul.f32 %v2525, %v2525
        %v2654 = vmul.f32 %v2526, %v2526
        %v2655 = vmul.f32 %v2527, %v2527
        %v2656 = vmul.f32 %v2528, %v2528
        %v2657 = vmul.f32 %v2529, %v2529
        %v2658 = vmul.f32 %v2530, %v2530
        %v2659 = vmul.f32 %v2531, %v2531
        %v2660 = vmul.f32 %v2532, %v2532
        %v2661 = vmul.f32 %v2533, %v2533
        %v2662 = vmul.f32 %v2534, %v2534
        %v2663 = vmul.f32 %v2535, %v2535
        %v2664 = vmul.f32 %v2536, %v2536
        %v2665 = vmul.f32 %v2537, %v2537
        %v2666 = vmul.f32 %v2538, %v2538
        %v2667 = vmul.f32 %v2539, %v2539
        %v2668 = vmul.f32 %v2540, %v2540
        %v2669 = vmul.f32 %v2541, %v2541
        %v2670 = vmul.f32 %v2542, %v2542
        %v2671 = vmul.f32 %v2543, %v2543
        %v2672 = vmul.f32 %v2544, %v2544
        %v2673 = vmul.f32 %v2545, %v2545
        %v2674 = vmul.f32 %v2546, %v2546
        %v2675 = vmul.f32 %v2547, %v2547
        %v2676 = vmul.f32 %v2548, %v2548
        %v2677 = vmul.f32 %v2549, %v2549
        %v2678 = vmul.f32 %v2550, %v2550
        %v2679 = vmul.f32 %v2551, %v2551
        %v2680 = vmul.f32 %v2552, %v2552
        %v2681 = vmul.f32 %v2553, %v2553
        %v2682 = vmul.f32 %v2554, %v2554
        %v2683 = vmul.f32 %v2555, %v2555
        %v2684 = vmul.f32 %v2556, %v2556
        %v2685 = vmul.f32 %v2557, %v2557
        %v2686 = vmul.f32 %v2558, %v2558
        %v2687 = vmul.f32 %v2559, %v2559
        %v2688 = vmul.f32 %v2560, %v2560
        %v2689 = vmul.f32 %v2561, %v2561
        %v2690 = vmul.f32 %v2562, %v2562
        %v2691 = vmul.f32 %v2563, %v2563
        %v2692 = vmul.f32 %v2564, %v2564
        %v2693 = vmul.f32 %v2565, %v2565
        %v2694 = vmul.f32 %v2566, %v2566
        %v2695 = vmul.f32 %v2567, %v2567
        %v2696 = vmul.f32 %v2568, %v2568
        %v2697 = vmul.f32 %v2569, %v2569
        %v2698 = vmul.f32 %v2570, %v2570
        %v2699 = vmul.f32 %v2571, %v2571
        %v2700 = vmul.f32 %v2572, %v2572
        %v2701 = vmul.f32 %v2573, %v2573
        %v2702 = vmul.f32 %v2574, %v2574
        %v2703 = vmul.f32 %v2575, %v2575
        %v2704 = vmul.f32 %v2576, %v2576
        %v2705 = vmul.f32 %v2577, %v2577
        %v2706 = vmul.f32 %v2578, %v2578
        %v2707 = vmul.f32 %v2579, %v2579
        %v2708 = vmul.f32 %v2580, %v2580
        %v2709 = vmul.f32 %v2581, %v2581
        %v2710 = vmul.f32 %v2582, %v2582
        %v2711 = vmul.f32 %v2583, %v2583
        %v2712 = vmul.f32 %v2584, %v2584
        %v2713 = vmul.f32 %v2585, %v2585
        %v2714 = vmul.f32 %v2586, %v2586
        %v2715 = vmul.f32 %v2587, %v2587
        %v2716 = vmul.f32 %v2588, %v2588
        %v2717 = vmul.f32 %v2589, %v2589
        %v2718 = vmul.f32 %v2590, %v2590
        %v2719 = vmul.f32 %v2591, %v2591
        %v2720 = vmul.f32 %v2592, %v2592
        %v2721 = vmul.f32 %v2593, %v2593
        %v2722 = vmul.f32 %v2594, %v2594
        %v2723 = vmul.f32 %v2595, %v2595
        %v2724 = vmul.f32 %v2596, %v2596
        %v2725 = vmul.f32 %v2597, %v2597
        %v2726 = vmul.f32 %v2598, %v2598
        %v2727 = vmul.f32 %v2599, %v2599
        %v2728 = vmul.f32 %v2600, %v2600
        %v2729 = vmul.f32 %v2601, %v2601
        %v2730 = vmul.f32 %v2602, %v2602
        %v2731 = vmul.f32 %v2603, %v2603
        %v2732 = vmul.f32 %v2604, %v2604
        %v2733 = vsel %vm1196, %v2605, 0.0
        %v2734 = vsel %vm1196, %v2606, 0.0
        %v2735 = vsel %vm1196, %v2607, 0.0
        %v2736 = vsel %vm1196, %v2608, 0.0
        %v2737 = vsel %vm1196, %v2609, 0.0
        %v2738 = vsel %vm1196, %v2610, 0.0
        %v2739 = vsel %vm1196, %v2611, 0.0
        %v2740 = vsel %vm1196, %v2612, 0.0
        %v2741 = vsel %vm1196, %v2613, 0.0
        %v2742 = vsel %vm1196, %v2614, 0.0
        %v2743 = vsel %vm1196, %v2615, 0.0
        %v2744 = vsel %vm1196, %v2616, 0.0
        %v2745 = vsel %vm1196, %v2617, 0.0
        %v2746 = vsel %vm1196, %v2618, 0.0
        %v2747 = vsel %vm1196, %v2619, 0.0
        %v2748 = vsel %vm1196, %v2620, 0.0
        %v2749 = vsel %vm1196, %v2621, 0.0
        %v2750 = vsel %vm1196, %v2622, 0.0
        %v2751 = vsel %vm1196, %v2623, 0.0
        %v2752 = vsel %vm1196, %v2624, 0.0
        %v2753 = vsel %vm1196, %v2625, 0.0
        %v2754 = vsel %vm1196, %v2626, 0.0
        %v2755 = vsel %vm1196, %v2627, 0.0
        %v2756 = vsel %vm1196, %v2628, 0.0
        %v2757 = vsel %vm1196, %v2629, 0.0
        %v2758 = vsel %vm1196, %v2630, 0.0
        %v2759 = vsel %vm1196, %v2631, 0.0
        %v2760 = vsel %vm1196, %v2632, 0.0
        %v2761 = vsel %vm1196, %v2633, 0.0
        %v2762 = vsel %vm1196, %v2634, 0.0
        %v2763 = vsel %vm1196, %v2635, 0.0
        %v2764 = vsel %vm1196, %v2636, 0.0
        %v2765 = vsel %vm1196, %v2637, 0.0
        %v2766 = vsel %vm1196, %v2638, 0.0
        %v2767 = vsel %vm1196, %v2639, 0.0
        %v2768 = vsel %vm1196, %v2640, 0.0
        %v2769 = vsel %vm1196, %v2641, 0.0
        %v2770 = vsel %vm1196, %v2642, 0.0
        %v2771 = vsel %vm1196, %v2643, 0.0
        %v2772 = vsel %vm1196, %v2644, 0.0
        %v2773 = vsel %vm1196, %v2645, 0.0
        %v2774 = vsel %vm1196, %v2646, 0.0
        %v2775 = vsel %vm1196, %v2647, 0.0
        %v2776 = vsel %vm1196, %v2648, 0.0
        %v2777 = vsel %vm1196, %v2649, 0.0
        %v2778 = vsel %vm1196, %v2650, 0.0
        %v2779 = vsel %vm1196, %v2651, 0.0
        %v2780 = vsel %vm1196, %v2652, 0.0
        %v2781 = vsel %vm1196, %v2653, 0.0
        %v2782 = vsel %vm1196, %v2654, 0.0
        %v2783 = vsel %vm1196, %v2655, 0.0
        %v2784 = vsel %vm1196, %v2656, 0.0
        %v2785 = vsel %vm1196, %v2657, 0.0
        %v2786 = vsel %vm1196, %v2658, 0.0
        %v2787 = vsel %vm1196, %v2659, 0.0
        %v2788 = vsel %vm1196, %v2660, 0.0
        %v2789 = vsel %vm1196, %v2661, 0.0
        %v2790 = vsel %vm1196, %v2662, 0.0
        %v2791 = vsel %vm1196, %v2663, 0.0
        %v2792 = vsel %vm1196, %v2664, 0.0
        %v2793 = vsel %vm1196, %v2665, 0.0
        %v2794 = vsel %vm1196, %v2666, 0.0
        %v2795 = vsel %vm1196, %v2667, 0.0
        %v2796 = vsel %vm1196, %v2668, 0.0
        %v2797 = vsel %vm1196, %v2669, 0.0
        %v2798 = vsel %vm1196, %v2670, 0.0
        %v2799 = vsel %vm1196, %v2671, 0.0
        %v2800 = vsel %vm1196, %v2672, 0.0
        %v2801 = vsel %vm1196, %v2673, 0.0
        %v2802 = vsel %vm1196, %v2674, 0.0
        %v2803 = vsel %vm1196, %v2675, 0.0
        %v2804 = vsel %vm1196, %v2676, 0.0
        %v2805 = vsel %vm1196, %v2677, 0.0
        %v2806 = vsel %vm1196, %v2678, 0.0
        %v2807 = vsel %vm1196, %v2679, 0.0
        %v2808 = vsel %vm1196, %v2680, 0.0
        %v2809 = vsel %vm1196, %v2681, 0.0
        %v2810 = vsel %vm1196, %v2682, 0.0
        %v2811 = vsel %vm1196, %v2683, 0.0
        %v2812 = vsel %vm1196, %v2684, 0.0
        %v2813 = vsel %vm1196, %v2685, 0.0
        %v2814 = vsel %vm1196, %v2686, 0.0
        %v2815 = vsel %vm1196, %v2687, 0.0
        %v2816 = vsel %vm1196, %v2688, 0.0
        %v2817 = vsel %vm1196, %v2689, 0.0
        %v2818 = vsel %vm1196, %v2690, 0.0
        %v2819 = vsel %vm1196, %v2691, 0.0
        %v2820 = vsel %vm1196, %v2692, 0.0
        %v2821 = vsel %vm1196, %v2693, 0.0
        %v2822 = vsel %vm1196, %v2694, 0.0
        %v2823 = vsel %vm1196, %v2695, 0.0
        %v2824 = vsel %vm1196, %v2696, 0.0
        %v2825 = vsel %vm1196, %v2697, 0.0
        %v2826 = vsel %vm1196, %v2698, 0.0
        %v2827 = vsel %vm1196, %v2699, 0.0
        %v2828 = vsel %vm1196, %v2700, 0.0
        %v2829 = vsel %vm1196, %v2701, 0.0
        %v2830 = vsel %vm1196, %v2702, 0.0
        %v2831 = vsel %vm1196, %v2703, 0.0
        %v2832 = vsel %vm1196, %v2704, 0.0
        %v2833 = vsel %vm1196, %v2705, 0.0
        %v2834 = vsel %vm1196, %v2706, 0.0
        %v2835 = vsel %vm1196, %v2707, 0.0
        %v2836 = vsel %vm1196, %v2708, 0.0
        %v2837 = vsel %vm1196, %v2709, 0.0
        %v2838 = vsel %vm1196, %v2710, 0.0
        %v2839 = vsel %vm1196, %v2711, 0.0
        %v2840 = vsel %vm1196, %v2712, 0.0
        %v2841 = vsel %vm1196, %v2713, 0.0
        %v2842 = vsel %vm1196, %v2714, 0.0
        %v2843 = vsel %vm1196, %v2715, 0.0
        %v2844 = vsel %vm1196, %v2716, 0.0
        %v2845 = vsel %vm1196, %v2717, 0.0
        %v2846 = vsel %vm1196, %v2718, 0.0
        %v2847 = vsel %vm1196, %v2719, 0.0
        %v2848 = vsel %vm1196, %v2720, 0.0
        %v2849 = vsel %vm1196, %v2721, 0.0
        %v2850 = vsel %vm1196, %v2722, 0.0
        %v2851 = vsel %vm1196, %v2723, 0.0
        %v2852 = vsel %vm1196, %v2724, 0.0
        %v2853 = vsel %vm1196, %v2725, 0.0
        %v2854 = vsel %vm1196, %v2726, 0.0
        %v2855 = vsel %vm1196, %v2727, 0.0
        %v2856 = vsel %vm1196, %v2728, 0.0
        %v2857 = vsel %vm1196, %v2729, 0.0
        %v2858 = vsel %vm1196, %v2730, 0.0
        %v2859 = vsel %vm1196, %v2731, 0.0
        %v2860 = vsel %vm1196, %v2732, 0.0
        %v2861 = vsel %vm454, %v2733, 0.0
        %2862 = vadd.xlane.f32.xlu0 %v2861
        %v2863 = vpop.xlane.xlu0 %2862
        %v2864 = vsel %vm454, %v2734, 0.0
        %2865 = vadd.xlane.f32.xlu0 %v2864
        %v2866 = vpop.xlane.xlu0 %2865
        %v2867 = vsel %vm454, %v2735, 0.0
        %2868 = vadd.xlane.f32.xlu0 %v2867
        %v2869 = vpop.xlane.xlu0 %2868
        %v2870 = vsel %vm454, %v2736, 0.0
        %2871 = vadd.xlane.f32.xlu0 %v2870
        %v2872 = vpop.xlane.xlu0 %2871
        %v2873 = vsel %vm454, %v2737, 0.0
        %2874 = vadd.xlane.f32.xlu0 %v2873
        %v2875 = vpop.xlane.xlu0 %2874
        %v2876 = vsel %vm454, %v2738, 0.0
        %2877 = vadd.xlane.f32.xlu0 %v2876
        %v2878 = vpop.xlane.xlu0 %2877
        %v2879 = vsel %vm454, %v2739, 0.0
        %2880 = vadd.xlane.f32.xlu0 %v2879
        %v2881 = vpop.xlane.xlu0 %2880
        %v2882 = vsel %vm454, %v2740, 0.0
        %2883 = vadd.xlane.f32.xlu0 %v2882
        %v2884 = vpop.xlane.xlu0 %2883
        %v2885 = vsel %vm454, %v2741, 0.0
        %2886 = vadd.xlane.f32.xlu0 %v2885
        %v2887 = vpop.xlane.xlu0 %2886
        %v2888 = vsel %vm454, %v2742, 0.0
        %2889 = vadd.xlane.f32.xlu0 %v2888
        %v2890 = vpop.xlane.xlu0 %2889
        %v2891 = vsel %vm454, %v2743, 0.0
        %2892 = vadd.xlane.f32.xlu0 %v2891
        %v2893 = vpop.xlane.xlu0 %2892
        %v2894 = vsel %vm454, %v2744, 0.0
        %2895 = vadd.xlane.f32.xlu0 %v2894
        %v2896 = vpop.xlane.xlu0 %2895
        %v2897 = vsel %vm454, %v2745, 0.0
        %2898 = vadd.xlane.f32.xlu0 %v2897
        %v2899 = vpop.xlane.xlu0 %2898
        %v2900 = vsel %vm454, %v2746, 0.0
        %2901 = vadd.xlane.f32.xlu0 %v2900
        %v2902 = vpop.xlane.xlu0 %2901
        %v2903 = vsel %vm454, %v2747, 0.0
        %2904 = vadd.xlane.f32.xlu0 %v2903
        %v2905 = vpop.xlane.xlu0 %2904
        %v2906 = vsel %vm454, %v2748, 0.0
        %2907 = vadd.xlane.f32.xlu0 %v2906
        %v2908 = vpop.xlane.xlu0 %2907
        %v2909 = vsel %vm454, %v2749, 0.0
        %2910 = vadd.xlane.f32.xlu0 %v2909
        %v2911 = vpop.xlane.xlu0 %2910
        %v2912 = vsel %vm454, %v2750, 0.0
        %2913 = vadd.xlane.f32.xlu0 %v2912
        %v2914 = vpop.xlane.xlu0 %2913
        %v2915 = vsel %vm454, %v2751, 0.0
        %2916 = vadd.xlane.f32.xlu0 %v2915
        %v2917 = vpop.xlane.xlu0 %2916
        %v2918 = vsel %vm454, %v2752, 0.0
        %2919 = vadd.xlane.f32.xlu0 %v2918
        %v2920 = vpop.xlane.xlu0 %2919
        %v2921 = vsel %vm454, %v2753, 0.0
        %2922 = vadd.xlane.f32.xlu0 %v2921
        %v2923 = vpop.xlane.xlu0 %2922
        %v2924 = vsel %vm454, %v2754, 0.0
        %2925 = vadd.xlane.f32.xlu0 %v2924
        %v2926 = vpop.xlane.xlu0 %2925
        %v2927 = vsel %vm454, %v2755, 0.0
        %2928 = vadd.xlane.f32.xlu0 %v2927
        %v2929 = vpop.xlane.xlu0 %2928
        %v2930 = vsel %vm454, %v2756, 0.0
        %2931 = vadd.xlane.f32.xlu0 %v2930
        %v2932 = vpop.xlane.xlu0 %2931
        %v2933 = vsel %vm454, %v2757, 0.0
        %2934 = vadd.xlane.f32.xlu0 %v2933
        %v2935 = vpop.xlane.xlu0 %2934
        %v2936 = vsel %vm454, %v2758, 0.0
        %2937 = vadd.xlane.f32.xlu0 %v2936
        %v2938 = vpop.xlane.xlu0 %2937
        %v2939 = vsel %vm454, %v2759, 0.0
        %2940 = vadd.xlane.f32.xlu0 %v2939
        %v2941 = vpop.xlane.xlu0 %2940
        %v2942 = vsel %vm454, %v2760, 0.0
        %2943 = vadd.xlane.f32.xlu0 %v2942
        %v2944 = vpop.xlane.xlu0 %2943
        %v2945 = vsel %vm454, %v2761, 0.0
        %2946 = vadd.xlane.f32.xlu0 %v2945
        %v2947 = vpop.xlane.xlu0 %2946
        %v2948 = vsel %vm454, %v2762, 0.0
        %2949 = vadd.xlane.f32.xlu0 %v2948
        %v2950 = vpop.xlane.xlu0 %2949
        %v2951 = vsel %vm454, %v2763, 0.0
        %2952 = vadd.xlane.f32.xlu0 %v2951
        %v2953 = vpop.xlane.xlu0 %2952
        %v2954 = vsel %vm454, %v2764, 0.0
        %2955 = vadd.xlane.f32.xlu0 %v2954
        %v2956 = vpop.xlane.xlu0 %2955
        %v2957 = vsel %vm454, %v2765, 0.0
        %2958 = vadd.xlane.f32.xlu0 %v2957
        %v2959 = vpop.xlane.xlu0 %2958
        %v2960 = vsel %vm454, %v2766, 0.0
        %2961 = vadd.xlane.f32.xlu0 %v2960
        %v2962 = vpop.xlane.xlu0 %2961
        %v2963 = vsel %vm454, %v2767, 0.0
        %2964 = vadd.xlane.f32.xlu0 %v2963
        %v2965 = vpop.xlane.xlu0 %2964
        %v2966 = vsel %vm454, %v2768, 0.0
        %2967 = vadd.xlane.f32.xlu0 %v2966
        %v2968 = vpop.xlane.xlu0 %2967
        %v2969 = vsel %vm454, %v2769, 0.0
        %2970 = vadd.xlane.f32.xlu0 %v2969
        %v2971 = vpop.xlane.xlu0 %2970
        %v2972 = vsel %vm454, %v2770, 0.0
        %2973 = vadd.xlane.f32.xlu0 %v2972
        %v2974 = vpop.xlane.xlu0 %2973
        %v2975 = vsel %vm454, %v2771, 0.0
        %2976 = vadd.xlane.f32.xlu0 %v2975
        %v2977 = vpop.xlane.xlu0 %2976
        %v2978 = vsel %vm454, %v2772, 0.0
        %2979 = vadd.xlane.f32.xlu0 %v2978
        %v2980 = vpop.xlane.xlu0 %2979
        %v2981 = vsel %vm454, %v2773, 0.0
        %2982 = vadd.xlane.f32.xlu0 %v2981
        %v2983 = vpop.xlane.xlu0 %2982
        %v2984 = vsel %vm454, %v2774, 0.0
        %2985 = vadd.xlane.f32.xlu0 %v2984
        %v2986 = vpop.xlane.xlu0 %2985
        %v2987 = vsel %vm454, %v2775, 0.0
        %2988 = vadd.xlane.f32.xlu0 %v2987
        %v2989 = vpop.xlane.xlu0 %2988
        %v2990 = vsel %vm454, %v2776, 0.0
        %2991 = vadd.xlane.f32.xlu0 %v2990
        %v2992 = vpop.xlane.xlu0 %2991
        %v2993 = vsel %vm454, %v2777, 0.0
        %2994 = vadd.xlane.f32.xlu0 %v2993
        %v2995 = vpop.xlane.xlu0 %2994
        %v2996 = vsel %vm454, %v2778, 0.0
        %2997 = vadd.xlane.f32.xlu0 %v2996
        %v2998 = vpop.xlane.xlu0 %2997
        %v2999 = vsel %vm454, %v2779, 0.0
        %3000 = vadd.xlane.f32.xlu0 %v2999
        %v3001 = vpop.xlane.xlu0 %3000
        %v3002 = vsel %vm454, %v2780, 0.0
        %3003 = vadd.xlane.f32.xlu0 %v3002
        %v3004 = vpop.xlane.xlu0 %3003
        %v3005 = vsel %vm454, %v2781, 0.0
        %3006 = vadd.xlane.f32.xlu0 %v3005
        %v3007 = vpop.xlane.xlu0 %3006
        %v3008 = vsel %vm454, %v2782, 0.0
        %3009 = vadd.xlane.f32.xlu0 %v3008
        %v3010 = vpop.xlane.xlu0 %3009
        %v3011 = vsel %vm454, %v2783, 0.0
        %3012 = vadd.xlane.f32.xlu0 %v3011
        %v3013 = vpop.xlane.xlu0 %3012
        %v3014 = vsel %vm454, %v2784, 0.0
        %3015 = vadd.xlane.f32.xlu0 %v3014
        %v3016 = vpop.xlane.xlu0 %3015
        %v3017 = vsel %vm454, %v2785, 0.0
        %3018 = vadd.xlane.f32.xlu0 %v3017
        %v3019 = vpop.xlane.xlu0 %3018
        %v3020 = vsel %vm454, %v2786, 0.0
        %3021 = vadd.xlane.f32.xlu0 %v3020
        %v3022 = vpop.xlane.xlu0 %3021
        %v3023 = vsel %vm454, %v2787, 0.0
        %3024 = vadd.xlane.f32.xlu0 %v3023
        %v3025 = vpop.xlane.xlu0 %3024
        %v3026 = vsel %vm454, %v2788, 0.0
        %3027 = vadd.xlane.f32.xlu0 %v3026
        %v3028 = vpop.xlane.xlu0 %3027
        %v3029 = vsel %vm454, %v2789, 0.0
        %3030 = vadd.xlane.f32.xlu0 %v3029
        %v3031 = vpop.xlane.xlu0 %3030
        %v3032 = vsel %vm454, %v2790, 0.0
        %3033 = vadd.xlane.f32.xlu0 %v3032
        %v3034 = vpop.xlane.xlu0 %3033
        %v3035 = vsel %vm454, %v2791, 0.0
        %3036 = vadd.xlane.f32.xlu0 %v3035
        %v3037 = vpop.xlane.xlu0 %3036
        %v3038 = vsel %vm454, %v2792, 0.0
        %3039 = vadd.xlane.f32.xlu0 %v3038
        %v3040 = vpop.xlane.xlu0 %3039
        %v3041 = vsel %vm454, %v2793, 0.0
        %3042 = vadd.xlane.f32.xlu0 %v3041
        %v3043 = vpop.xlane.xlu0 %3042
        %v3044 = vsel %vm454, %v2794, 0.0
        %3045 = vadd.xlane.f32.xlu0 %v3044
        %v3046 = vpop.xlane.xlu0 %3045
        %v3047 = vsel %vm454, %v2795, 0.0
        %3048 = vadd.xlane.f32.xlu0 %v3047
        %v3049 = vpop.xlane.xlu0 %3048
        %v3050 = vsel %vm454, %v2796, 0.0
        %3051 = vadd.xlane.f32.xlu0 %v3050
        %v3052 = vpop.xlane.xlu0 %3051
        %v3053 = vsel %vm454, %v2797, 0.0
        %3054 = vadd.xlane.f32.xlu0 %v3053
        %v3055 = vpop.xlane.xlu0 %3054
        %v3056 = vsel %vm454, %v2798, 0.0
        %3057 = vadd.xlane.f32.xlu0 %v3056
        %v3058 = vpop.xlane.xlu0 %3057
        %v3059 = vsel %vm454, %v2799, 0.0
        %3060 = vadd.xlane.f32.xlu0 %v3059
        %v3061 = vpop.xlane.xlu0 %3060
        %v3062 = vsel %vm454, %v2800, 0.0
        %3063 = vadd.xlane.f32.xlu0 %v3062
        %v3064 = vpop.xlane.xlu0 %3063
        %v3065 = vsel %vm454, %v2801, 0.0
        %3066 = vadd.xlane.f32.xlu0 %v3065
        %v3067 = vpop.xlane.xlu0 %3066
        %v3068 = vsel %vm454, %v2802, 0.0
        %3069 = vadd.xlane.f32.xlu0 %v3068
        %v3070 = vpop.xlane.xlu0 %3069
        %v3071 = vsel %vm454, %v2803, 0.0
        %3072 = vadd.xlane.f32.xlu0 %v3071
        %v3073 = vpop.xlane.xlu0 %3072
        %v3074 = vsel %vm454, %v2804, 0.0
        %3075 = vadd.xlane.f32.xlu0 %v3074
        %v3076 = vpop.xlane.xlu0 %3075
        %v3077 = vsel %vm454, %v2805, 0.0
        %3078 = vadd.xlane.f32.xlu0 %v3077
        %v3079 = vpop.xlane.xlu0 %3078
        %v3080 = vsel %vm454, %v2806, 0.0
        %3081 = vadd.xlane.f32.xlu0 %v3080
        %v3082 = vpop.xlane.xlu0 %3081
        %v3083 = vsel %vm454, %v2807, 0.0
        %3084 = vadd.xlane.f32.xlu0 %v3083
        %v3085 = vpop.xlane.xlu0 %3084
        %v3086 = vsel %vm454, %v2808, 0.0
        %3087 = vadd.xlane.f32.xlu0 %v3086
        %v3088 = vpop.xlane.xlu0 %3087
        %v3089 = vsel %vm454, %v2809, 0.0
        %3090 = vadd.xlane.f32.xlu0 %v3089
        %v3091 = vpop.xlane.xlu0 %3090
        %v3092 = vsel %vm454, %v2810, 0.0
        %3093 = vadd.xlane.f32.xlu0 %v3092
        %v3094 = vpop.xlane.xlu0 %3093
        %v3095 = vsel %vm454, %v2811, 0.0
        %3096 = vadd.xlane.f32.xlu0 %v3095
        %v3097 = vpop.xlane.xlu0 %3096
        %v3098 = vsel %vm454, %v2812, 0.0
        %3099 = vadd.xlane.f32.xlu0 %v3098
        %v3100 = vpop.xlane.xlu0 %3099
        %v3101 = vsel %vm454, %v2813, 0.0
        %3102 = vadd.xlane.f32.xlu0 %v3101
        %v3103 = vpop.xlane.xlu0 %3102
        %v3104 = vsel %vm454, %v2814, 0.0
        %3105 = vadd.xlane.f32.xlu0 %v3104
        %v3106 = vpop.xlane.xlu0 %3105
        %v3107 = vsel %vm454, %v2815, 0.0
        %3108 = vadd.xlane.f32.xlu0 %v3107
        %v3109 = vpop.xlane.xlu0 %3108
        %v3110 = vsel %vm454, %v2816, 0.0
        %3111 = vadd.xlane.f32.xlu0 %v3110
        %v3112 = vpop.xlane.xlu0 %3111
        %v3113 = vsel %vm454, %v2817, 0.0
        %3114 = vadd.xlane.f32.xlu0 %v3113
        %v3115 = vpop.xlane.xlu0 %3114
        %v3116 = vsel %vm454, %v2818, 0.0
        %3117 = vadd.xlane.f32.xlu0 %v3116
        %v3118 = vpop.xlane.xlu0 %3117
        %v3119 = vsel %vm454, %v2819, 0.0
        %3120 = vadd.xlane.f32.xlu0 %v3119
        %v3121 = vpop.xlane.xlu0 %3120
        %v3122 = vsel %vm454, %v2820, 0.0
        %3123 = vadd.xlane.f32.xlu0 %v3122
        %v3124 = vpop.xlane.xlu0 %3123
        %v3125 = vsel %vm454, %v2821, 0.0
        %3126 = vadd.xlane.f32.xlu0 %v3125
        %v3127 = vpop.xlane.xlu0 %3126
        %v3128 = vsel %vm454, %v2822, 0.0
        %3129 = vadd.xlane.f32.xlu0 %v3128
        %v3130 = vpop.xlane.xlu0 %3129
        %v3131 = vsel %vm454, %v2823, 0.0
        %3132 = vadd.xlane.f32.xlu0 %v3131
        %v3133 = vpop.xlane.xlu0 %3132
        %v3134 = vsel %vm454, %v2824, 0.0
        %3135 = vadd.xlane.f32.xlu0 %v3134
        %v3136 = vpop.xlane.xlu0 %3135
        %v3137 = vsel %vm454, %v2825, 0.0
        %3138 = vadd.xlane.f32.xlu0 %v3137
        %v3139 = vpop.xlane.xlu0 %3138
        %v3140 = vsel %vm454, %v2826, 0.0
        %3141 = vadd.xlane.f32.xlu0 %v3140
        %v3142 = vpop.xlane.xlu0 %3141
        %v3143 = vsel %vm454, %v2827, 0.0
        %3144 = vadd.xlane.f32.xlu0 %v3143
        %v3145 = vpop.xlane.xlu0 %3144
        %v3146 = vsel %vm454, %v2828, 0.0
        %3147 = vadd.xlane.f32.xlu0 %v3146
        %v3148 = vpop.xlane.xlu0 %3147
        %v3149 = vsel %vm454, %v2829, 0.0
        %3150 = vadd.xlane.f32.xlu0 %v3149
        %v3151 = vpop.xlane.xlu0 %3150
        %v3152 = vsel %vm454, %v2830, 0.0
        %3153 = vadd.xlane.f32.xlu0 %v3152
        %v3154 = vpop.xlane.xlu0 %3153
        %v3155 = vsel %vm454, %v2831, 0.0
        %3156 = vadd.xlane.f32.xlu0 %v3155
        %v3157 = vpop.xlane.xlu0 %3156
        %v3158 = vsel %vm454, %v2832, 0.0
        %3159 = vadd.xlane.f32.xlu0 %v3158
        %v3160 = vpop.xlane.xlu0 %3159
        %v3161 = vsel %vm454, %v2833, 0.0
        %3162 = vadd.xlane.f32.xlu0 %v3161
        %v3163 = vpop.xlane.xlu0 %3162
        %v3164 = vsel %vm454, %v2834, 0.0
        %3165 = vadd.xlane.f32.xlu0 %v3164
        %v3166 = vpop.xlane.xlu0 %3165
        %v3167 = vsel %vm454, %v2835, 0.0
        %3168 = vadd.xlane.f32.xlu0 %v3167
        %v3169 = vpop.xlane.xlu0 %3168
        %v3170 = vsel %vm454, %v2836, 0.0
        %3171 = vadd.xlane.f32.xlu0 %v3170
        %v3172 = vpop.xlane.xlu0 %3171
        %v3173 = vsel %vm454, %v2837, 0.0
        %3174 = vadd.xlane.f32.xlu0 %v3173
        %v3175 = vpop.xlane.xlu0 %3174
        %v3176 = vsel %vm454, %v2838, 0.0
        %3177 = vadd.xlane.f32.xlu0 %v3176
        %v3178 = vpop.xlane.xlu0 %3177
        %v3179 = vsel %vm454, %v2839, 0.0
        %3180 = vadd.xlane.f32.xlu0 %v3179
        %v3181 = vpop.xlane.xlu0 %3180
        %v3182 = vsel %vm454, %v2840, 0.0
        %3183 = vadd.xlane.f32.xlu0 %v3182
        %v3184 = vpop.xlane.xlu0 %3183
        %v3185 = vsel %vm454, %v2841, 0.0
        %3186 = vadd.xlane.f32.xlu0 %v3185
        %v3187 = vpop.xlane.xlu0 %3186
        %v3188 = vsel %vm454, %v2842, 0.0
        %3189 = vadd.xlane.f32.xlu0 %v3188
        %v3190 = vpop.xlane.xlu0 %3189
        %v3191 = vsel %vm454, %v2843, 0.0
        %3192 = vadd.xlane.f32.xlu0 %v3191
        %v3193 = vpop.xlane.xlu0 %3192
        %v3194 = vsel %vm454, %v2844, 0.0
        %3195 = vadd.xlane.f32.xlu0 %v3194
        %v3196 = vpop.xlane.xlu0 %3195
        %v3197 = vsel %vm454, %v2845, 0.0
        %3198 = vadd.xlane.f32.xlu0 %v3197
        %v3199 = vpop.xlane.xlu0 %3198
        %v3200 = vsel %vm454, %v2846, 0.0
        %3201 = vadd.xlane.f32.xlu0 %v3200
        %v3202 = vpop.xlane.xlu0 %3201
        %v3203 = vsel %vm454, %v2847, 0.0
        %3204 = vadd.xlane.f32.xlu0 %v3203
        %v3205 = vpop.xlane.xlu0 %3204
        %v3206 = vsel %vm454, %v2848, 0.0
        %3207 = vadd.xlane.f32.xlu0 %v3206
        %v3208 = vpop.xlane.xlu0 %3207
        %v3209 = vsel %vm454, %v2849, 0.0
        %3210 = vadd.xlane.f32.xlu0 %v3209
        %v3211 = vpop.xlane.xlu0 %3210
        %v3212 = vsel %vm454, %v2850, 0.0
        %3213 = vadd.xlane.f32.xlu0 %v3212
        %v3214 = vpop.xlane.xlu0 %3213
        %v3215 = vsel %vm454, %v2851, 0.0
        %3216 = vadd.xlane.f32.xlu0 %v3215
        %v3217 = vpop.xlane.xlu0 %3216
        %v3218 = vsel %vm454, %v2852, 0.0
        %3219 = vadd.xlane.f32.xlu0 %v3218
        %v3220 = vpop.xlane.xlu0 %3219
        %v3221 = vsel %vm454, %v2853, 0.0
        %3222 = vadd.xlane.f32.xlu0 %v3221
        %v3223 = vpop.xlane.xlu0 %3222
        %v3224 = vsel %vm454, %v2854, 0.0
        %3225 = vadd.xlane.f32.xlu0 %v3224
        %v3226 = vpop.xlane.xlu0 %3225
        %v3227 = vsel %vm454, %v2855, 0.0
        %3228 = vadd.xlane.f32.xlu0 %v3227
        %v3229 = vpop.xlane.xlu0 %3228
        %v3230 = vsel %vm454, %v2856, 0.0
        %3231 = vadd.xlane.f32.xlu0 %v3230
        %v3232 = vpop.xlane.xlu0 %3231
        %v3233 = vsel %vm454, %v2857, 0.0
        %3234 = vadd.xlane.f32.xlu0 %v3233
        %v3235 = vpop.xlane.xlu0 %3234
        %v3236 = vsel %vm454, %v2858, 0.0
        %3237 = vadd.xlane.f32.xlu0 %v3236
        %v3238 = vpop.xlane.xlu0 %3237
        %v3239 = vsel %vm454, %v2859, 0.0
        %3240 = vadd.xlane.f32.xlu0 %v3239
        %v3241 = vpop.xlane.xlu0 %3240
        %v3242 = vsel %vm454, %v2860, 0.0
        %3243 = vadd.xlane.f32.xlu0 %v3242
        %v3244 = vpop.xlane.xlu0 %3243
        %v3245 = vsel %vm454, %v2605, 0.0
        %3246 = vadd.xlane.f32.xlu0 %v3245
        %v3247 = vpop.xlane.xlu0 %3246
        %v3248 = vsel %vm454, %v2606, 0.0
        %3249 = vadd.xlane.f32.xlu0 %v3248
        %v3250 = vpop.xlane.xlu0 %3249
        %v3251 = vsel %vm454, %v2607, 0.0
        %3252 = vadd.xlane.f32.xlu0 %v3251
        %v3253 = vpop.xlane.xlu0 %3252
        %v3254 = vsel %vm454, %v2608, 0.0
        %3255 = vadd.xlane.f32.xlu0 %v3254
        %v3256 = vpop.xlane.xlu0 %3255
        %v3257 = vsel %vm454, %v2609, 0.0
        %3258 = vadd.xlane.f32.xlu0 %v3257
        %v3259 = vpop.xlane.xlu0 %3258
        %v3260 = vsel %vm454, %v2610, 0.0
        %3261 = vadd.xlane.f32.xlu0 %v3260
        %v3262 = vpop.xlane.xlu0 %3261
        %v3263 = vsel %vm454, %v2611, 0.0
        %3264 = vadd.xlane.f32.xlu0 %v3263
        %v3265 = vpop.xlane.xlu0 %3264
        %v3266 = vsel %vm454, %v2612, 0.0
        %3267 = vadd.xlane.f32.xlu0 %v3266
        %v3268 = vpop.xlane.xlu0 %3267
        %v3269 = vsel %vm454, %v2613, 0.0
        %3270 = vadd.xlane.f32.xlu0 %v3269
        %v3271 = vpop.xlane.xlu0 %3270
        %v3272 = vsel %vm454, %v2614, 0.0
        %3273 = vadd.xlane.f32.xlu0 %v3272
        %v3274 = vpop.xlane.xlu0 %3273
        %v3275 = vsel %vm454, %v2615, 0.0
        %3276 = vadd.xlane.f32.xlu0 %v3275
        %v3277 = vpop.xlane.xlu0 %3276
        %v3278 = vsel %vm454, %v2616, 0.0
        %3279 = vadd.xlane.f32.xlu0 %v3278
        %v3280 = vpop.xlane.xlu0 %3279
        %v3281 = vsel %vm454, %v2617, 0.0
        %3282 = vadd.xlane.f32.xlu0 %v3281
        %v3283 = vpop.xlane.xlu0 %3282
        %v3284 = vsel %vm454, %v2618, 0.0
        %3285 = vadd.xlane.f32.xlu0 %v3284
        %v3286 = vpop.xlane.xlu0 %3285
        %v3287 = vsel %vm454, %v2619, 0.0
        %3288 = vadd.xlane.f32.xlu0 %v3287
        %v3289 = vpop.xlane.xlu0 %3288
        %v3290 = vsel %vm454, %v2620, 0.0
        %3291 = vadd.xlane.f32.xlu0 %v3290
        %v3292 = vpop.xlane.xlu0 %3291
        %v3293 = vsel %vm454, %v2621, 0.0
        %3294 = vadd.xlane.f32.xlu0 %v3293
        %v3295 = vpop.xlane.xlu0 %3294
        %v3296 = vsel %vm454, %v2622, 0.0
        %3297 = vadd.xlane.f32.xlu0 %v3296
        %v3298 = vpop.xlane.xlu0 %3297
        %v3299 = vsel %vm454, %v2623, 0.0
        %3300 = vadd.xlane.f32.xlu0 %v3299
        %v3301 = vpop.xlane.xlu0 %3300
        %v3302 = vsel %vm454, %v2624, 0.0
        %3303 = vadd.xlane.f32.xlu0 %v3302
        %v3304 = vpop.xlane.xlu0 %3303
        %v3305 = vsel %vm454, %v2625, 0.0
        %3306 = vadd.xlane.f32.xlu0 %v3305
        %v3307 = vpop.xlane.xlu0 %3306
        %v3308 = vsel %vm454, %v2626, 0.0
        %3309 = vadd.xlane.f32.xlu0 %v3308
        %v3310 = vpop.xlane.xlu0 %3309
        %v3311 = vsel %vm454, %v2627, 0.0
        %3312 = vadd.xlane.f32.xlu0 %v3311
        %v3313 = vpop.xlane.xlu0 %3312
        %v3314 = vsel %vm454, %v2628, 0.0
        %3315 = vadd.xlane.f32.xlu0 %v3314
        %v3316 = vpop.xlane.xlu0 %3315
        %v3317 = vsel %vm454, %v2629, 0.0
        %3318 = vadd.xlane.f32.xlu0 %v3317
        %v3319 = vpop.xlane.xlu0 %3318
        %v3320 = vsel %vm454, %v2630, 0.0
        %3321 = vadd.xlane.f32.xlu0 %v3320
        %v3322 = vpop.xlane.xlu0 %3321
        %v3323 = vsel %vm454, %v2631, 0.0
        %3324 = vadd.xlane.f32.xlu0 %v3323
        %v3325 = vpop.xlane.xlu0 %3324
        %v3326 = vsel %vm454, %v2632, 0.0
        %3327 = vadd.xlane.f32.xlu0 %v3326
        %v3328 = vpop.xlane.xlu0 %3327
        %v3329 = vsel %vm454, %v2633, 0.0
        %3330 = vadd.xlane.f32.xlu0 %v3329
        %v3331 = vpop.xlane.xlu0 %3330
        %v3332 = vsel %vm454, %v2634, 0.0
        %3333 = vadd.xlane.f32.xlu0 %v3332
        %v3334 = vpop.xlane.xlu0 %3333
        %v3335 = vsel %vm454, %v2635, 0.0
        %3336 = vadd.xlane.f32.xlu0 %v3335
        %v3337 = vpop.xlane.xlu0 %3336
        %v3338 = vsel %vm454, %v2636, 0.0
        %3339 = vadd.xlane.f32.xlu0 %v3338
        %v3340 = vpop.xlane.xlu0 %3339
        %v3341 = vsel %vm454, %v2637, 0.0
        %3342 = vadd.xlane.f32.xlu0 %v3341
        %v3343 = vpop.xlane.xlu0 %3342
        %v3344 = vsel %vm454, %v2638, 0.0
        %3345 = vadd.xlane.f32.xlu0 %v3344
        %v3346 = vpop.xlane.xlu0 %3345
        %v3347 = vsel %vm454, %v2639, 0.0
        %3348 = vadd.xlane.f32.xlu0 %v3347
        %v3349 = vpop.xlane.xlu0 %3348
        %v3350 = vsel %vm454, %v2640, 0.0
        %3351 = vadd.xlane.f32.xlu0 %v3350
        %v3352 = vpop.xlane.xlu0 %3351
        %v3353 = vsel %vm454, %v2641, 0.0
        %3354 = vadd.xlane.f32.xlu0 %v3353
        %v3355 = vpop.xlane.xlu0 %3354
        %v3356 = vsel %vm454, %v2642, 0.0
        %3357 = vadd.xlane.f32.xlu0 %v3356
        %v3358 = vpop.xlane.xlu0 %3357
        %v3359 = vsel %vm454, %v2643, 0.0
        %3360 = vadd.xlane.f32.xlu0 %v3359
        %v3361 = vpop.xlane.xlu0 %3360
        %v3362 = vsel %vm454, %v2644, 0.0
        %3363 = vadd.xlane.f32.xlu0 %v3362
        %v3364 = vpop.xlane.xlu0 %3363
        %v3365 = vsel %vm454, %v2645, 0.0
        %3366 = vadd.xlane.f32.xlu0 %v3365
        %v3367 = vpop.xlane.xlu0 %3366
        %v3368 = vsel %vm454, %v2646, 0.0
        %3369 = vadd.xlane.f32.xlu0 %v3368
        %v3370 = vpop.xlane.xlu0 %3369
        %v3371 = vsel %vm454, %v2647, 0.0
        %3372 = vadd.xlane.f32.xlu0 %v3371
        %v3373 = vpop.xlane.xlu0 %3372
        %v3374 = vsel %vm454, %v2648, 0.0
        %3375 = vadd.xlane.f32.xlu0 %v3374
        %v3376 = vpop.xlane.xlu0 %3375
        %v3377 = vsel %vm454, %v2649, 0.0
        %3378 = vadd.xlane.f32.xlu0 %v3377
        %v3379 = vpop.xlane.xlu0 %3378
        %v3380 = vsel %vm454, %v2650, 0.0
        %3381 = vadd.xlane.f32.xlu0 %v3380
        %v3382 = vpop.xlane.xlu0 %3381
        %v3383 = vsel %vm454, %v2651, 0.0
        %3384 = vadd.xlane.f32.xlu0 %v3383
        %v3385 = vpop.xlane.xlu0 %3384
        %v3386 = vsel %vm454, %v2652, 0.0
        %3387 = vadd.xlane.f32.xlu0 %v3386
        %v3388 = vpop.xlane.xlu0 %3387
        %v3389 = vsel %vm454, %v2653, 0.0
        %3390 = vadd.xlane.f32.xlu0 %v3389
        %v3391 = vpop.xlane.xlu0 %3390
        %v3392 = vsel %vm454, %v2654, 0.0
        %3393 = vadd.xlane.f32.xlu0 %v3392
        %v3394 = vpop.xlane.xlu0 %3393
        %v3395 = vsel %vm454, %v2655, 0.0
        %3396 = vadd.xlane.f32.xlu0 %v3395
        %v3397 = vpop.xlane.xlu0 %3396
        %v3398 = vsel %vm454, %v2656, 0.0
        %3399 = vadd.xlane.f32.xlu0 %v3398
        %v3400 = vpop.xlane.xlu0 %3399
        %v3401 = vsel %vm454, %v2657, 0.0
        %3402 = vadd.xlane.f32.xlu0 %v3401
        %v3403 = vpop.xlane.xlu0 %3402
        %v3404 = vsel %vm454, %v2658, 0.0
        %3405 = vadd.xlane.f32.xlu0 %v3404
        %v3406 = vpop.xlane.xlu0 %3405
        %v3407 = vsel %vm454, %v2659, 0.0
        %3408 = vadd.xlane.f32.xlu0 %v3407
        %v3409 = vpop.xlane.xlu0 %3408
        %v3410 = vsel %vm454, %v2660, 0.0
        %3411 = vadd.xlane.f32.xlu0 %v3410
        %v3412 = vpop.xlane.xlu0 %3411
        %v3413 = vsel %vm454, %v2661, 0.0
        %3414 = vadd.xlane.f32.xlu0 %v3413
        %v3415 = vpop.xlane.xlu0 %3414
        %v3416 = vsel %vm454, %v2662, 0.0
        %3417 = vadd.xlane.f32.xlu0 %v3416
        %v3418 = vpop.xlane.xlu0 %3417
        %v3419 = vsel %vm454, %v2663, 0.0
        %3420 = vadd.xlane.f32.xlu0 %v3419
        %v3421 = vpop.xlane.xlu0 %3420
        %v3422 = vsel %vm454, %v2664, 0.0
        %3423 = vadd.xlane.f32.xlu0 %v3422
        %v3424 = vpop.xlane.xlu0 %3423
        %v3425 = vsel %vm454, %v2665, 0.0
        %3426 = vadd.xlane.f32.xlu0 %v3425
        %v3427 = vpop.xlane.xlu0 %3426
        %v3428 = vsel %vm454, %v2666, 0.0
        %3429 = vadd.xlane.f32.xlu0 %v3428
        %v3430 = vpop.xlane.xlu0 %3429
        %v3431 = vsel %vm454, %v2667, 0.0
        %3432 = vadd.xlane.f32.xlu0 %v3431
        %v3433 = vpop.xlane.xlu0 %3432
        %v3434 = vsel %vm454, %v2668, 0.0
        %3435 = vadd.xlane.f32.xlu0 %v3434
        %v3436 = vpop.xlane.xlu0 %3435
        %v3437 = vsel %vm454, %v2669, 0.0
        %3438 = vadd.xlane.f32.xlu0 %v3437
        %v3439 = vpop.xlane.xlu0 %3438
        %v3440 = vsel %vm454, %v2670, 0.0
        %3441 = vadd.xlane.f32.xlu0 %v3440
        %v3442 = vpop.xlane.xlu0 %3441
        %v3443 = vsel %vm454, %v2671, 0.0
        %3444 = vadd.xlane.f32.xlu0 %v3443
        %v3445 = vpop.xlane.xlu0 %3444
        %v3446 = vsel %vm454, %v2672, 0.0
        %3447 = vadd.xlane.f32.xlu0 %v3446
        %v3448 = vpop.xlane.xlu0 %3447
        %v3449 = vsel %vm454, %v2673, 0.0
        %3450 = vadd.xlane.f32.xlu0 %v3449
        %v3451 = vpop.xlane.xlu0 %3450
        %v3452 = vsel %vm454, %v2674, 0.0
        %3453 = vadd.xlane.f32.xlu0 %v3452
        %v3454 = vpop.xlane.xlu0 %3453
        %v3455 = vsel %vm454, %v2675, 0.0
        %3456 = vadd.xlane.f32.xlu0 %v3455
        %v3457 = vpop.xlane.xlu0 %3456
        %v3458 = vsel %vm454, %v2676, 0.0
        %3459 = vadd.xlane.f32.xlu0 %v3458
        %v3460 = vpop.xlane.xlu0 %3459
        %v3461 = vsel %vm454, %v2677, 0.0
        %3462 = vadd.xlane.f32.xlu0 %v3461
        %v3463 = vpop.xlane.xlu0 %3462
        %v3464 = vsel %vm454, %v2678, 0.0
        %3465 = vadd.xlane.f32.xlu0 %v3464
        %v3466 = vpop.xlane.xlu0 %3465
        %v3467 = vsel %vm454, %v2679, 0.0
        %3468 = vadd.xlane.f32.xlu0 %v3467
        %v3469 = vpop.xlane.xlu0 %3468
        %v3470 = vsel %vm454, %v2680, 0.0
        %3471 = vadd.xlane.f32.xlu0 %v3470
        %v3472 = vpop.xlane.xlu0 %3471
        %v3473 = vsel %vm454, %v2681, 0.0
        %3474 = vadd.xlane.f32.xlu0 %v3473
        %v3475 = vpop.xlane.xlu0 %3474
        %v3476 = vsel %vm454, %v2682, 0.0
        %3477 = vadd.xlane.f32.xlu0 %v3476
        %v3478 = vpop.xlane.xlu0 %3477
        %v3479 = vsel %vm454, %v2683, 0.0
        %3480 = vadd.xlane.f32.xlu0 %v3479
        %v3481 = vpop.xlane.xlu0 %3480
        %v3482 = vsel %vm454, %v2684, 0.0
        %3483 = vadd.xlane.f32.xlu0 %v3482
        %v3484 = vpop.xlane.xlu0 %3483
        %v3485 = vsel %vm454, %v2685, 0.0
        %3486 = vadd.xlane.f32.xlu0 %v3485
        %v3487 = vpop.xlane.xlu0 %3486
        %v3488 = vsel %vm454, %v2686, 0.0
        %3489 = vadd.xlane.f32.xlu0 %v3488
        %v3490 = vpop.xlane.xlu0 %3489
        %v3491 = vsel %vm454, %v2687, 0.0
        %3492 = vadd.xlane.f32.xlu0 %v3491
        %v3493 = vpop.xlane.xlu0 %3492
        %v3494 = vsel %vm454, %v2688, 0.0
        %3495 = vadd.xlane.f32.xlu0 %v3494
        %v3496 = vpop.xlane.xlu0 %3495
        %v3497 = vsel %vm454, %v2689, 0.0
        %3498 = vadd.xlane.f32.xlu0 %v3497
        %v3499 = vpop.xlane.xlu0 %3498
        %v3500 = vsel %vm454, %v2690, 0.0
        %3501 = vadd.xlane.f32.xlu0 %v3500
        %v3502 = vpop.xlane.xlu0 %3501
        %v3503 = vsel %vm454, %v2691, 0.0
        %3504 = vadd.xlane.f32.xlu0 %v3503
        %v3505 = vpop.xlane.xlu0 %3504
        %v3506 = vsel %vm454, %v2692, 0.0
        %3507 = vadd.xlane.f32.xlu0 %v3506
        %v3508 = vpop.xlane.xlu0 %3507
        %v3509 = vsel %vm454, %v2693, 0.0
        %3510 = vadd.xlane.f32.xlu0 %v3509
        %v3511 = vpop.xlane.xlu0 %3510
        %v3512 = vsel %vm454, %v2694, 0.0
        %3513 = vadd.xlane.f32.xlu0 %v3512
        %v3514 = vpop.xlane.xlu0 %3513
        %v3515 = vsel %vm454, %v2695, 0.0
        %3516 = vadd.xlane.f32.xlu0 %v3515
        %v3517 = vpop.xlane.xlu0 %3516
        %v3518 = vsel %vm454, %v2696, 0.0
        %3519 = vadd.xlane.f32.xlu0 %v3518
        %v3520 = vpop.xlane.xlu0 %3519
        %v3521 = vsel %vm454, %v2697, 0.0
        %3522 = vadd.xlane.f32.xlu0 %v3521
        %v3523 = vpop.xlane.xlu0 %3522
        %v3524 = vsel %vm454, %v2698, 0.0
        %3525 = vadd.xlane.f32.xlu0 %v3524
        %v3526 = vpop.xlane.xlu0 %3525
        %v3527 = vsel %vm454, %v2699, 0.0
        %3528 = vadd.xlane.f32.xlu0 %v3527
        %v3529 = vpop.xlane.xlu0 %3528
        %v3530 = vsel %vm454, %v2700, 0.0
        %3531 = vadd.xlane.f32.xlu0 %v3530
        %v3532 = vpop.xlane.xlu0 %3531
        %v3533 = vsel %vm454, %v2701, 0.0
        %3534 = vadd.xlane.f32.xlu0 %v3533
        %v3535 = vpop.xlane.xlu0 %3534
        %v3536 = vsel %vm454, %v2702, 0.0
        %3537 = vadd.xlane.f32.xlu0 %v3536
        %v3538 = vpop.xlane.xlu0 %3537
        %v3539 = vsel %vm454, %v2703, 0.0
        %3540 = vadd.xlane.f32.xlu0 %v3539
        %v3541 = vpop.xlane.xlu0 %3540
        %v3542 = vsel %vm454, %v2704, 0.0
        %3543 = vadd.xlane.f32.xlu0 %v3542
        %v3544 = vpop.xlane.xlu0 %3543
        %v3545 = vsel %vm454, %v2705, 0.0
        %3546 = vadd.xlane.f32.xlu0 %v3545
        %v3547 = vpop.xlane.xlu0 %3546
        %v3548 = vsel %vm454, %v2706, 0.0
        %3549 = vadd.xlane.f32.xlu0 %v3548
        %v3550 = vpop.xlane.xlu0 %3549
        %v3551 = vsel %vm454, %v2707, 0.0
        %3552 = vadd.xlane.f32.xlu0 %v3551
        %v3553 = vpop.xlane.xlu0 %3552
        %v3554 = vsel %vm454, %v2708, 0.0
        %3555 = vadd.xlane.f32.xlu0 %v3554
        %v3556 = vpop.xlane.xlu0 %3555
        %v3557 = vsel %vm454, %v2709, 0.0
        %3558 = vadd.xlane.f32.xlu0 %v3557
        %v3559 = vpop.xlane.xlu0 %3558
        %v3560 = vsel %vm454, %v2710, 0.0
        %3561 = vadd.xlane.f32.xlu0 %v3560
        %v3562 = vpop.xlane.xlu0 %3561
        %v3563 = vsel %vm454, %v2711, 0.0
        %3564 = vadd.xlane.f32.xlu0 %v3563
        %v3565 = vpop.xlane.xlu0 %3564
        %v3566 = vsel %vm454, %v2712, 0.0
        %3567 = vadd.xlane.f32.xlu0 %v3566
        %v3568 = vpop.xlane.xlu0 %3567
        %v3569 = vsel %vm454, %v2713, 0.0
        %3570 = vadd.xlane.f32.xlu0 %v3569
        %v3571 = vpop.xlane.xlu0 %3570
        %v3572 = vsel %vm454, %v2714, 0.0
        %3573 = vadd.xlane.f32.xlu0 %v3572
        %v3574 = vpop.xlane.xlu0 %3573
        %v3575 = vsel %vm454, %v2715, 0.0
        %3576 = vadd.xlane.f32.xlu0 %v3575
        %v3577 = vpop.xlane.xlu0 %3576
        %v3578 = vsel %vm454, %v2716, 0.0
        %3579 = vadd.xlane.f32.xlu0 %v3578
        %v3580 = vpop.xlane.xlu0 %3579
        %v3581 = vsel %vm454, %v2717, 0.0
        %3582 = vadd.xlane.f32.xlu0 %v3581
        %v3583 = vpop.xlane.xlu0 %3582
        %v3584 = vsel %vm454, %v2718, 0.0
        %3585 = vadd.xlane.f32.xlu0 %v3584
        %v3586 = vpop.xlane.xlu0 %3585
        %v3587 = vsel %vm454, %v2719, 0.0
        %3588 = vadd.xlane.f32.xlu0 %v3587
        %v3589 = vpop.xlane.xlu0 %3588
        %v3590 = vsel %vm454, %v2720, 0.0
        %3591 = vadd.xlane.f32.xlu0 %v3590
        %v3592 = vpop.xlane.xlu0 %3591
        %v3593 = vsel %vm454, %v2721, 0.0
        %3594 = vadd.xlane.f32.xlu0 %v3593
        %v3595 = vpop.xlane.xlu0 %3594
        %v3596 = vsel %vm454, %v2722, 0.0
        %3597 = vadd.xlane.f32.xlu0 %v3596
        %v3598 = vpop.xlane.xlu0 %3597
        %v3599 = vsel %vm454, %v2723, 0.0
        %3600 = vadd.xlane.f32.xlu0 %v3599
        %v3601 = vpop.xlane.xlu0 %3600
        %v3602 = vsel %vm454, %v2724, 0.0
        %3603 = vadd.xlane.f32.xlu0 %v3602
        %v3604 = vpop.xlane.xlu0 %3603
        %v3605 = vsel %vm454, %v2725, 0.0
        %3606 = vadd.xlane.f32.xlu0 %v3605
        %v3607 = vpop.xlane.xlu0 %3606
        %v3608 = vsel %vm454, %v2726, 0.0
        %3609 = vadd.xlane.f32.xlu0 %v3608
        %v3610 = vpop.xlane.xlu0 %3609
        %v3611 = vsel %vm454, %v2727, 0.0
        %3612 = vadd.xlane.f32.xlu0 %v3611
        %v3613 = vpop.xlane.xlu0 %3612
        %v3614 = vsel %vm454, %v2728, 0.0
        %3615 = vadd.xlane.f32.xlu0 %v3614
        %v3616 = vpop.xlane.xlu0 %3615
        %v3617 = vsel %vm454, %v2729, 0.0
        %3618 = vadd.xlane.f32.xlu0 %v3617
        %v3619 = vpop.xlane.xlu0 %3618
        %v3620 = vsel %vm454, %v2730, 0.0
        %3621 = vadd.xlane.f32.xlu0 %v3620
        %v3622 = vpop.xlane.xlu0 %3621
        %v3623 = vsel %vm454, %v2731, 0.0
        %3624 = vadd.xlane.f32.xlu0 %v3623
        %v3625 = vpop.xlane.xlu0 %3624
        %v3626 = vsel %vm454, %v2732, 0.0
        %3627 = vadd.xlane.f32.xlu0 %v3626
        %v3628 = vpop.xlane.xlu0 %3627
        %v3629 = vmul.f32 %v2863, 0.03125
        %v3630 = vmul.f32 %v2866, 0.03125
        %v3631 = vmul.f32 %v2869, 0.03125
        %v3632 = vmul.f32 %v2872, 0.03125
        %v3633 = vmul.f32 %v2875, 0.03125
        %v3634 = vmul.f32 %v2878, 0.03125
        %v3635 = vmul.f32 %v2881, 0.03125
        %v3636 = vmul.f32 %v2884, 0.03125
        %v3637 = vmul.f32 %v2887, 0.03125
        %v3638 = vmul.f32 %v2890, 0.03125
        %v3639 = vmul.f32 %v2893, 0.03125
        %v3640 = vmul.f32 %v2896, 0.03125
        %v3641 = vmul.f32 %v2899, 0.03125
        %v3642 = vmul.f32 %v2902, 0.03125
        %v3643 = vmul.f32 %v2905, 0.03125
        %v3644 = vmul.f32 %v2908, 0.03125
        %v3645 = vmul.f32 %v2911, 0.03125
        %v3646 = vmul.f32 %v2914, 0.03125
        %v3647 = vmul.f32 %v2917, 0.03125
        %v3648 = vmul.f32 %v2920, 0.03125
        %v3649 = vmul.f32 %v2923, 0.03125
        %v3650 = vmul.f32 %v2926, 0.03125
        %v3651 = vmul.f32 %v2929, 0.03125
        %v3652 = vmul.f32 %v2932, 0.03125
        %v3653 = vmul.f32 %v2935, 0.03125
        %v3654 = vmul.f32 %v2938, 0.03125
        %v3655 = vmul.f32 %v2941, 0.03125
        %v3656 = vmul.f32 %v2944, 0.03125
        %v3657 = vmul.f32 %v2947, 0.03125
        %v3658 = vmul.f32 %v2950, 0.03125
        %v3659 = vmul.f32 %v2953, 0.03125
        %v3660 = vmul.f32 %v2956, 0.03125
        %v3661 = vmul.f32 %v2959, 0.03125
        %v3662 = vmul.f32 %v2962, 0.03125
        %v3663 = vmul.f32 %v2965, 0.03125
        %v3664 = vmul.f32 %v2968, 0.03125
        %v3665 = vmul.f32 %v2971, 0.03125
        %v3666 = vmul.f32 %v2974, 0.03125
        %v3667 = vmul.f32 %v2977, 0.03125
        %v3668 = vmul.f32 %v2980, 0.03125
        %v3669 = vmul.f32 %v2983, 0.03125
        %v3670 = vmul.f32 %v2986, 0.03125
        %v3671 = vmul.f32 %v2989, 0.03125
        %v3672 = vmul.f32 %v2992, 0.03125
        %v3673 = vmul.f32 %v2995, 0.03125
        %v3674 = vmul.f32 %v2998, 0.03125
        %v3675 = vmul.f32 %v3001, 0.03125
        %v3676 = vmul.f32 %v3004, 0.03125
        %v3677 = vmul.f32 %v3007, 0.03125
        %v3678 = vmul.f32 %v3010, 0.03125
        %v3679 = vmul.f32 %v3013, 0.03125
        %v3680 = vmul.f32 %v3016, 0.03125
        %v3681 = vmul.f32 %v3019, 0.03125
        %v3682 = vmul.f32 %v3022, 0.03125
        %v3683 = vmul.f32 %v3025, 0.03125
        %v3684 = vmul.f32 %v3028, 0.03125
        %v3685 = vmul.f32 %v3031, 0.03125
        %v3686 = vmul.f32 %v3034, 0.03125
        %v3687 = vmul.f32 %v3037, 0.03125
        %v3688 = vmul.f32 %v3040, 0.03125
        %v3689 = vmul.f32 %v3043, 0.03125
        %v3690 = vmul.f32 %v3046, 0.03125
        %v3691 = vmul.f32 %v3049, 0.03125
        %v3692 = vmul.f32 %v3052, 0.03125
        %v3693 = vmul.f32 %v3055, 0.03125
        %v3694 = vmul.f32 %v3058, 0.03125
        %v3695 = vmul.f32 %v3061, 0.03125
        %v3696 = vmul.f32 %v3064, 0.03125
        %v3697 = vmul.f32 %v3067, 0.03125
        %v3698 = vmul.f32 %v3070, 0.03125
        %v3699 = vmul.f32 %v3073, 0.03125
        %v3700 = vmul.f32 %v3076, 0.03125
        %v3701 = vmul.f32 %v3079, 0.03125
        %v3702 = vmul.f32 %v3082, 0.03125
        %v3703 = vmul.f32 %v3085, 0.03125
        %v3704 = vmul.f32 %v3088, 0.03125
        %v3705 = vmul.f32 %v3091, 0.03125
        %v3706 = vmul.f32 %v3094, 0.03125
        %v3707 = vmul.f32 %v3097, 0.03125
        %v3708 = vmul.f32 %v3100, 0.03125
        %v3709 = vmul.f32 %v3103, 0.03125
        %v3710 = vmul.f32 %v3106, 0.03125
        %v3711 = vmul.f32 %v3109, 0.03125
        %v3712 = vmul.f32 %v3112, 0.03125
        %v3713 = vmul.f32 %v3115, 0.03125
        %v3714 = vmul.f32 %v3118, 0.03125
        %v3715 = vmul.f32 %v3121, 0.03125
        %v3716 = vmul.f32 %v3124, 0.03125
        %v3717 = vmul.f32 %v3127, 0.03125
        %v3718 = vmul.f32 %v3130, 0.03125
        %v3719 = vmul.f32 %v3133, 0.03125
        %v3720 = vmul.f32 %v3136, 0.03125
        %v3721 = vmul.f32 %v3139, 0.03125
        %v3722 = vmul.f32 %v3142, 0.03125
        %v3723 = vmul.f32 %v3145, 0.03125
        %v3724 = vmul.f32 %v3148, 0.03125
        %v3725 = vmul.f32 %v3151, 0.03125
        %v3726 = vmul.f32 %v3154, 0.03125
        %v3727 = vmul.f32 %v3157, 0.03125
        %v3728 = vmul.f32 %v3160, 0.03125
        %v3729 = vmul.f32 %v3163, 0.03125
        %v3730 = vmul.f32 %v3166, 0.03125
        %v3731 = vmul.f32 %v3169, 0.03125
        %v3732 = vmul.f32 %v3172, 0.03125
        %v3733 = vmul.f32 %v3175, 0.03125
        %v3734 = vmul.f32 %v3178, 0.03125
        %v3735 = vmul.f32 %v3181, 0.03125
        %v3736 = vmul.f32 %v3184, 0.03125
        %v3737 = vmul.f32 %v3187, 0.03125
        %v3738 = vmul.f32 %v3190, 0.03125
        %v3739 = vmul.f32 %v3193, 0.03125
        %v3740 = vmul.f32 %v3196, 0.03125
        %v3741 = vmul.f32 %v3199, 0.03125
        %v3742 = vmul.f32 %v3202, 0.03125
        %v3743 = vmul.f32 %v3205, 0.03125
        %v3744 = vmul.f32 %v3208, 0.03125
        %v3745 = vmul.f32 %v3211, 0.03125
        %v3746 = vmul.f32 %v3214, 0.03125
        %v3747 = vmul.f32 %v3217, 0.03125
        %v3748 = vmul.f32 %v3220, 0.03125
        %v3749 = vmul.f32 %v3223, 0.03125
        %v3750 = vmul.f32 %v3226, 0.03125
        %v3751 = vmul.f32 %v3229, 0.03125
        %v3752 = vmul.f32 %v3232, 0.03125
        %v3753 = vmul.f32 %v3235, 0.03125
        %v3754 = vmul.f32 %v3238, 0.03125
        %v3755 = vmul.f32 %v3241, 0.03125
        %v3756 = vmul.f32 %v3244, 0.03125
        %v3757 = vadd.f32 %v3629, 1e-05
        %v3758 = vadd.f32 %v3630, 1e-05
        %v3759 = vadd.f32 %v3631, 1e-05
        %v3760 = vadd.f32 %v3632, 1e-05
        %v3761 = vadd.f32 %v3633, 1e-05
        %v3762 = vadd.f32 %v3634, 1e-05
        %v3763 = vadd.f32 %v3635, 1e-05
        %v3764 = vadd.f32 %v3636, 1e-05
        %v3765 = vadd.f32 %v3637, 1e-05
        %v3766 = vadd.f32 %v3638, 1e-05
        %v3767 = vadd.f32 %v3639, 1e-05
        %v3768 = vadd.f32 %v3640, 1e-05
        %v3769 = vadd.f32 %v3641, 1e-05
        %v3770 = vadd.f32 %v3642, 1e-05
        %v3771 = vadd.f32 %v3643, 1e-05
        %v3772 = vadd.f32 %v3644, 1e-05
        %v3773 = vadd.f32 %v3645, 1e-05
        %v3774 = vadd.f32 %v3646, 1e-05
        %v3775 = vadd.f32 %v3647, 1e-05
        %v3776 = vadd.f32 %v3648, 1e-05
        %v3777 = vadd.f32 %v3649, 1e-05
        %v3778 = vadd.f32 %v3650, 1e-05
        %v3779 = vadd.f32 %v3651, 1e-05
        %v3780 = vadd.f32 %v3652, 1e-05
        %v3781 = vadd.f32 %v3653, 1e-05
        %v3782 = vadd.f32 %v3654, 1e-05
        %v3783 = vadd.f32 %v3655, 1e-05
        %v3784 = vadd.f32 %v3656, 1e-05
        %v3785 = vadd.f32 %v3657, 1e-05
        %v3786 = vadd.f32 %v3658, 1e-05
        %v3787 = vadd.f32 %v3659, 1e-05
        %v3788 = vadd.f32 %v3660, 1e-05
        %v3789 = vadd.f32 %v3661, 1e-05
        %v3790 = vadd.f32 %v3662, 1e-05
        %v3791 = vadd.f32 %v3663, 1e-05
        %v3792 = vadd.f32 %v3664, 1e-05
        %v3793 = vadd.f32 %v3665, 1e-05
        %v3794 = vadd.f32 %v3666, 1e-05
        %v3795 = vadd.f32 %v3667, 1e-05
        %v3796 = vadd.f32 %v3668, 1e-05
        %v3797 = vadd.f32 %v3669, 1e-05
        %v3798 = vadd.f32 %v3670, 1e-05
        %v3799 = vadd.f32 %v3671, 1e-05
        %v3800 = vadd.f32 %v3672, 1e-05
        %v3801 = vadd.f32 %v3673, 1e-05
        %v3802 = vadd.f32 %v3674, 1e-05
        %v3803 = vadd.f32 %v3675, 1e-05
        %v3804 = vadd.f32 %v3676, 1e-05
        %v3805 = vadd.f32 %v3677, 1e-05
        %v3806 = vadd.f32 %v3678, 1e-05
        %v3807 = vadd.f32 %v3679, 1e-05
        %v3808 = vadd.f32 %v3680, 1e-05
        %v3809 = vadd.f32 %v3681, 1e-05
        %v3810 = vadd.f32 %v3682, 1e-05
        %v3811 = vadd.f32 %v3683, 1e-05
        %v3812 = vadd.f32 %v3684, 1e-05
        %v3813 = vadd.f32 %v3685, 1e-05
        %v3814 = vadd.f32 %v3686, 1e-05
        %v3815 = vadd.f32 %v3687, 1e-05
        %v3816 = vadd.f32 %v3688, 1e-05
        %v3817 = vadd.f32 %v3689, 1e-05
        %v3818 = vadd.f32 %v3690, 1e-05
        %v3819 = vadd.f32 %v3691, 1e-05
        %v3820 = vadd.f32 %v3692, 1e-05
        %v3821 = vadd.f32 %v3693, 1e-05
        %v3822 = vadd.f32 %v3694, 1e-05
        %v3823 = vadd.f32 %v3695, 1e-05
        %v3824 = vadd.f32 %v3696, 1e-05
        %v3825 = vadd.f32 %v3697, 1e-05
        %v3826 = vadd.f32 %v3698, 1e-05
        %v3827 = vadd.f32 %v3699, 1e-05
        %v3828 = vadd.f32 %v3700, 1e-05
        %v3829 = vadd.f32 %v3701, 1e-05
        %v3830 = vadd.f32 %v3702, 1e-05
        %v3831 = vadd.f32 %v3703, 1e-05
        %v3832 = vadd.f32 %v3704, 1e-05
        %v3833 = vadd.f32 %v3705, 1e-05
        %v3834 = vadd.f32 %v3706, 1e-05
        %v3835 = vadd.f32 %v3707, 1e-05
        %v3836 = vadd.f32 %v3708, 1e-05
        %v3837 = vadd.f32 %v3709, 1e-05
        %v3838 = vadd.f32 %v3710, 1e-05
        %v3839 = vadd.f32 %v3711, 1e-05
        %v3840 = vadd.f32 %v3712, 1e-05
        %v3841 = vadd.f32 %v3713, 1e-05
        %v3842 = vadd.f32 %v3714, 1e-05
        %v3843 = vadd.f32 %v3715, 1e-05
        %v3844 = vadd.f32 %v3716, 1e-05
        %v3845 = vadd.f32 %v3717, 1e-05
        %v3846 = vadd.f32 %v3718, 1e-05
        %v3847 = vadd.f32 %v3719, 1e-05
        %v3848 = vadd.f32 %v3720, 1e-05
        %v3849 = vadd.f32 %v3721, 1e-05
        %v3850 = vadd.f32 %v3722, 1e-05
        %v3851 = vadd.f32 %v3723, 1e-05
        %v3852 = vadd.f32 %v3724, 1e-05
        %v3853 = vadd.f32 %v3725, 1e-05
        %v3854 = vadd.f32 %v3726, 1e-05
        %v3855 = vadd.f32 %v3727, 1e-05
        %v3856 = vadd.f32 %v3728, 1e-05
        %v3857 = vadd.f32 %v3729, 1e-05
        %v3858 = vadd.f32 %v3730, 1e-05
        %v3859 = vadd.f32 %v3731, 1e-05
        %v3860 = vadd.f32 %v3732, 1e-05
        %v3861 = vadd.f32 %v3733, 1e-05
        %v3862 = vadd.f32 %v3734, 1e-05
        %v3863 = vadd.f32 %v3735, 1e-05
        %v3864 = vadd.f32 %v3736, 1e-05
        %v3865 = vadd.f32 %v3737, 1e-05
        %v3866 = vadd.f32 %v3738, 1e-05
        %v3867 = vadd.f32 %v3739, 1e-05
        %v3868 = vadd.f32 %v3740, 1e-05
        %v3869 = vadd.f32 %v3741, 1e-05
        %v3870 = vadd.f32 %v3742, 1e-05
        %v3871 = vadd.f32 %v3743, 1e-05
        %v3872 = vadd.f32 %v3744, 1e-05
        %v3873 = vadd.f32 %v3745, 1e-05
        %v3874 = vadd.f32 %v3746, 1e-05
        %v3875 = vadd.f32 %v3747, 1e-05
        %v3876 = vadd.f32 %v3748, 1e-05
        %v3877 = vadd.f32 %v3749, 1e-05
        %v3878 = vadd.f32 %v3750, 1e-05
        %v3879 = vadd.f32 %v3751, 1e-05
        %v3880 = vadd.f32 %v3752, 1e-05
        %v3881 = vadd.f32 %v3753, 1e-05
        %v3882 = vadd.f32 %v3754, 1e-05
        %v3883 = vadd.f32 %v3755, 1e-05
        %v3884 = vadd.f32 %v3756, 1e-05
        %v3885 = vrsqrt.pop %v3757
        %v3886 = vrsqrt.pop %v3758
        %v3887 = vrsqrt.pop %v3759
        %v3888 = vrsqrt.pop %v3760
        %v3889 = vrsqrt.pop %v3761
        %v3890 = vrsqrt.pop %v3762
        %v3891 = vrsqrt.pop %v3763
        %v3892 = vrsqrt.pop %v3764
        %v3893 = vrsqrt.pop %v3765
        %v3894 = vrsqrt.pop %v3766
        %v3895 = vrsqrt.pop %v3767
        %v3896 = vrsqrt.pop %v3768
        %v3897 = vrsqrt.pop %v3769
        %v3898 = vrsqrt.pop %v3770
        %v3899 = vrsqrt.pop %v3771
        %v3900 = vrsqrt.pop %v3772
        %v3901 = vrsqrt.pop %v3773
        %v3902 = vrsqrt.pop %v3774
        %v3903 = vrsqrt.pop %v3775
        %v3904 = vrsqrt.pop %v3776
        %v3905 = vrsqrt.pop %v3777
        %v3906 = vrsqrt.pop %v3778
        %v3907 = vrsqrt.pop %v3779
        %v3908 = vrsqrt.pop %v3780
        %v3909 = vrsqrt.pop %v3781
        %v3910 = vrsqrt.pop %v3782
        %v3911 = vrsqrt.pop %v3783
        %v3912 = vrsqrt.pop %v3784
        %v3913 = vrsqrt.pop %v3785
        %v3914 = vrsqrt.pop %v3786
        %v3915 = vrsqrt.pop %v3787
        %v3916 = vrsqrt.pop %v3788
        %v3917 = vrsqrt.pop %v3789
        %v3918 = vrsqrt.pop %v3790
        %v3919 = vrsqrt.pop %v3791
        %v3920 = vrsqrt.pop %v3792
        %v3921 = vrsqrt.pop %v3793
        %v3922 = vrsqrt.pop %v3794
        %v3923 = vrsqrt.pop %v3795
        %v3924 = vrsqrt.pop %v3796
        %v3925 = vrsqrt.pop %v3797
        %v3926 = vrsqrt.pop %v3798
        %v3927 = vrsqrt.pop %v3799
        %v3928 = vrsqrt.pop %v3800
        %v3929 = vrsqrt.pop %v3801
        %v3930 = vrsqrt.pop %v3802
        %v3931 = vrsqrt.pop %v3803
        %v3932 = vrsqrt.pop %v3804
        %v3933 = vrsqrt.pop %v3805
        %v3934 = vrsqrt.pop %v3806
        %v3935 = vrsqrt.pop %v3807
        %v3936 = vrsqrt.pop %v3808
        %v3937 = vrsqrt.pop %v3809
        %v3938 = vrsqrt.pop %v3810
        %v3939 = vrsqrt.pop %v3811
        %v3940 = vrsqrt.pop %v3812
        %v3941 = vrsqrt.pop %v3813
        %v3942 = vrsqrt.pop %v3814
        %v3943 = vrsqrt.pop %v3815
        %v3944 = vrsqrt.pop %v3816
        %v3945 = vrsqrt.pop %v3817
        %v3946 = vrsqrt.pop %v3818
        %v3947 = vrsqrt.pop %v3819
        %v3948 = vrsqrt.pop %v3820
        %v3949 = vrsqrt.pop %v3821
        %v3950 = vrsqrt.pop %v3822
        %v3951 = vrsqrt.pop %v3823
        %v3952 = vrsqrt.pop %v3824
        %v3953 = vrsqrt.pop %v3825
        %v3954 = vrsqrt.pop %v3826
        %v3955 = vrsqrt.pop %v3827
        %v3956 = vrsqrt.pop %v3828
        %v3957 = vrsqrt.pop %v3829
        %v3958 = vrsqrt.pop %v3830
        %v3959 = vrsqrt.pop %v3831
        %v3960 = vrsqrt.pop %v3832
        %v3961 = vrsqrt.pop %v3833
        %v3962 = vrsqrt.pop %v3834
        %v3963 = vrsqrt.pop %v3835
        %v3964 = vrsqrt.pop %v3836
        %v3965 = vrsqrt.pop %v3837
        %v3966 = vrsqrt.pop %v3838
        %v3967 = vrsqrt.pop %v3839
        %v3968 = vrsqrt.pop %v3840
        %v3969 = vrsqrt.pop %v3841
        %v3970 = vrsqrt.pop %v3842
        %v3971 = vrsqrt.pop %v3843
        %v3972 = vrsqrt.pop %v3844
        %v3973 = vrsqrt.pop %v3845
        %v3974 = vrsqrt.pop %v3846
        %v3975 = vrsqrt.pop %v3847
        %v3976 = vrsqrt.pop %v3848
        %v3977 = vrsqrt.pop %v3849
        %v3978 = vrsqrt.pop %v3850
        %v3979 = vrsqrt.pop %v3851
        %v3980 = vrsqrt.pop %v3852
        %v3981 = vrsqrt.pop %v3853
        %v3982 = vrsqrt.pop %v3854
        %v3983 = vrsqrt.pop %v3855
        %v3984 = vrsqrt.pop %v3856
        %v3985 = vrsqrt.pop %v3857
        %v3986 = vrsqrt.pop %v3858
        %v3987 = vrsqrt.pop %v3859
        %v3988 = vrsqrt.pop %v3860
        %v3989 = vrsqrt.pop %v3861
        %v3990 = vrsqrt.pop %v3862
        %v3991 = vrsqrt.pop %v3863
        %v3992 = vrsqrt.pop %v3864
        %v3993 = vrsqrt.pop %v3865
        %v3994 = vrsqrt.pop %v3866
        %v3995 = vrsqrt.pop %v3867
        %v3996 = vrsqrt.pop %v3868
        %v3997 = vrsqrt.pop %v3869
        %v3998 = vrsqrt.pop %v3870
        %v3999 = vrsqrt.pop %v3871
        %v4000 = vrsqrt.pop %v3872
        %v4001 = vrsqrt.pop %v3873
        %v4002 = vrsqrt.pop %v3874
        %v4003 = vrsqrt.pop %v3875
        %v4004 = vrsqrt.pop %v3876
        %v4005 = vrsqrt.pop %v3877
        %v4006 = vrsqrt.pop %v3878
        %v4007 = vrsqrt.pop %v3879
        %v4008 = vrsqrt.pop %v3880
        %v4009 = vrsqrt.pop %v3881
        %v4010 = vrsqrt.pop %v3882
        %v4011 = vrsqrt.pop %v3883
        %v4012 = vrsqrt.pop %v3884
        %v4013 = vsub.f32 %v3247, %v2863
        %v4014 = vsub.f32 %v3250, %v2866
        %v4015 = vsub.f32 %v3253, %v2869
        %v4016 = vsub.f32 %v3256, %v2872
        %v4017 = vsub.f32 %v3259, %v2875
        %v4018 = vsub.f32 %v3262, %v2878
        %v4019 = vsub.f32 %v3265, %v2881
        %v4020 = vsub.f32 %v3268, %v2884
        %v4021 = vsub.f32 %v3271, %v2887
        %v4022 = vsub.f32 %v3274, %v2890
        %v4023 = vsub.f32 %v3277, %v2893
        %v4024 = vsub.f32 %v3280, %v2896
        %v4025 = vsub.f32 %v3283, %v2899
        %v4026 = vsub.f32 %v3286, %v2902
        %v4027 = vsub.f32 %v3289, %v2905
        %v4028 = vsub.f32 %v3292, %v2908
        %v4029 = vsub.f32 %v3295, %v2911
        %v4030 = vsub.f32 %v3298, %v2914
        %v4031 = vsub.f32 %v3301, %v2917
        %v4032 = vsub.f32 %v3304, %v2920
        %v4033 = vsub.f32 %v3307, %v2923
        %v4034 = vsub.f32 %v3310, %v2926
        %v4035 = vsub.f32 %v3313, %v2929
        %v4036 = vsub.f32 %v3316, %v2932
        %v4037 = vsub.f32 %v3319, %v2935
        %v4038 = vsub.f32 %v3322, %v2938
        %v4039 = vsub.f32 %v3325, %v2941
        %v4040 = vsub.f32 %v3328, %v2944
        %v4041 = vsub.f32 %v3331, %v2947
        %v4042 = vsub.f32 %v3334, %v2950
        %v4043 = vsub.f32 %v3337, %v2953
        %v4044 = vsub.f32 %v3340, %v2956
        %v4045 = vsub.f32 %v3343, %v2959
        %v4046 = vsub.f32 %v3346, %v2962
        %v4047 = vsub.f32 %v3349, %v2965
        %v4048 = vsub.f32 %v3352, %v2968
        %v4049 = vsub.f32 %v3355, %v2971
        %v4050 = vsub.f32 %v3358, %v2974
        %v4051 = vsub.f32 %v3361, %v2977
        %v4052 = vsub.f32 %v3364, %v2980
        %v4053 = vsub.f32 %v3367, %v2983
        %v4054 = vsub.f32 %v3370, %v2986
        %v4055 = vsub.f32 %v3373, %v2989
        %v4056 = vsub.f32 %v3376, %v2992
        %v4057 = vsub.f32 %v3379, %v2995
        %v4058 = vsub.f32 %v3382, %v2998
        %v4059 = vsub.f32 %v3385, %v3001
        %v4060 = vsub.f32 %v3388, %v3004
        %v4061 = vsub.f32 %v3391, %v3007
        %v4062 = vsub.f32 %v3394, %v3010
        %v4063 = vsub.f32 %v3397, %v3013
        %v4064 = vsub.f32 %v3400, %v3016
        %v4065 = vsub.f32 %v3403, %v3019
        %v4066 = vsub.f32 %v3406, %v3022
        %v4067 = vsub.f32 %v3409, %v3025
        %v4068 = vsub.f32 %v3412, %v3028
        %v4069 = vsub.f32 %v3415, %v3031
        %v4070 = vsub.f32 %v3418, %v3034
        %v4071 = vsub.f32 %v3421, %v3037
        %v4072 = vsub.f32 %v3424, %v3040
        %v4073 = vsub.f32 %v3427, %v3043
        %v4074 = vsub.f32 %v3430, %v3046
        %v4075 = vsub.f32 %v3433, %v3049
        %v4076 = vsub.f32 %v3436, %v3052
        %v4077 = vsub.f32 %v3439, %v3055
        %v4078 = vsub.f32 %v3442, %v3058
        %v4079 = vsub.f32 %v3445, %v3061
        %v4080 = vsub.f32 %v3448, %v3064
        %v4081 = vsub.f32 %v3451, %v3067
        %v4082 = vsub.f32 %v3454, %v3070
        %v4083 = vsub.f32 %v3457, %v3073
        %v4084 = vsub.f32 %v3460, %v3076
        %v4085 = vsub.f32 %v3463, %v3079
        %v4086 = vsub.f32 %v3466, %v3082
        %v4087 = vsub.f32 %v3469, %v3085
        %v4088 = vsub.f32 %v3472, %v3088
        %v4089 = vsub.f32 %v3475, %v3091
        %v4090 = vsub.f32 %v3478, %v3094
        %v4091 = vsub.f32 %v3481, %v3097
        %v4092 = vsub.f32 %v3484, %v3100
        %v4093 = vsub.f32 %v3487, %v3103
        %v4094 = vsub.f32 %v3490, %v3106
        %v4095 = vsub.f32 %v3493, %v3109
        %v4096 = vsub.f32 %v3496, %v3112
        %v4097 = vsub.f32 %v3499, %v3115
        %v4098 = vsub.f32 %v3502, %v3118
        %v4099 = vsub.f32 %v3505, %v3121
        %v4100 = vsub.f32 %v3508, %v3124
        %v4101 = vsub.f32 %v3511, %v3127
        %v4102 = vsub.f32 %v3514, %v3130
        %v4103 = vsub.f32 %v3517, %v3133
        %v4104 = vsub.f32 %v3520, %v3136
        %v4105 = vsub.f32 %v3523, %v3139
        %v4106 = vsub.f32 %v3526, %v3142
        %v4107 = vsub.f32 %v3529, %v3145
        %v4108 = vsub.f32 %v3532, %v3148
        %v4109 = vsub.f32 %v3535, %v3151
        %v4110 = vsub.f32 %v3538, %v3154
        %v4111 = vsub.f32 %v3541, %v3157
        %v4112 = vsub.f32 %v3544, %v3160
        %v4113 = vsub.f32 %v3547, %v3163
        %v4114 = vsub.f32 %v3550, %v3166
        %v4115 = vsub.f32 %v3553, %v3169
        %v4116 = vsub.f32 %v3556, %v3172
        %v4117 = vsub.f32 %v3559, %v3175
        %v4118 = vsub.f32 %v3562, %v3178
        %v4119 = vsub.f32 %v3565, %v3181
        %v4120 = vsub.f32 %v3568, %v3184
        %v4121 = vsub.f32 %v3571, %v3187
        %v4122 = vsub.f32 %v3574, %v3190
        %v4123 = vsub.f32 %v3577, %v3193
        %v4124 = vsub.f32 %v3580, %v3196
        %v4125 = vsub.f32 %v3583, %v3199
        %v4126 = vsub.f32 %v3586, %v3202
        %v4127 = vsub.f32 %v3589, %v3205
        %v4128 = vsub.f32 %v3592, %v3208
        %v4129 = vsub.f32 %v3595, %v3211
        %v4130 = vsub.f32 %v3598, %v3214
        %v4131 = vsub.f32 %v3601, %v3217
        %v4132 = vsub.f32 %v3604, %v3220
        %v4133 = vsub.f32 %v3607, %v3223
        %v4134 = vsub.f32 %v3610, %v3226
        %v4135 = vsub.f32 %v3613, %v3229
        %v4136 = vsub.f32 %v3616, %v3232
        %v4137 = vsub.f32 %v3619, %v3235
        %v4138 = vsub.f32 %v3622, %v3238
        %v4139 = vsub.f32 %v3625, %v3241
        %v4140 = vsub.f32 %v3628, %v3244
        %v4141 = vmul.f32 %v4013, 0.03125
        %v4142 = vmul.f32 %v4014, 0.03125
        %v4143 = vmul.f32 %v4015, 0.03125
        %v4144 = vmul.f32 %v4016, 0.03125
        %v4145 = vmul.f32 %v4017, 0.03125
        %v4146 = vmul.f32 %v4018, 0.03125
        %v4147 = vmul.f32 %v4019, 0.03125
        %v4148 = vmul.f32 %v4020, 0.03125
        %v4149 = vmul.f32 %v4021, 0.03125
        %v4150 = vmul.f32 %v4022, 0.03125
        %v4151 = vmul.f32 %v4023, 0.03125
        %v4152 = vmul.f32 %v4024, 0.03125
        %v4153 = vmul.f32 %v4025, 0.03125
        %v4154 = vmul.f32 %v4026, 0.03125
        %v4155 = vmul.f32 %v4027, 0.03125
        %v4156 = vmul.f32 %v4028, 0.03125
        %v4157 = vmul.f32 %v4029, 0.03125
        %v4158 = vmul.f32 %v4030, 0.03125
        %v4159 = vmul.f32 %v4031, 0.03125
        %v4160 = vmul.f32 %v4032, 0.03125
        %v4161 = vmul.f32 %v4033, 0.03125
        %v4162 = vmul.f32 %v4034, 0.03125
        %v4163 = vmul.f32 %v4035, 0.03125
        %v4164 = vmul.f32 %v4036, 0.03125
        %v4165 = vmul.f32 %v4037, 0.03125
        %v4166 = vmul.f32 %v4038, 0.03125
        %v4167 = vmul.f32 %v4039, 0.03125
        %v4168 = vmul.f32 %v4040, 0.03125
        %v4169 = vmul.f32 %v4041, 0.03125
        %v4170 = vmul.f32 %v4042, 0.03125
        %v4171 = vmul.f32 %v4043, 0.03125
        %v4172 = vmul.f32 %v4044, 0.03125
        %v4173 = vmul.f32 %v4045, 0.03125
        %v4174 = vmul.f32 %v4046, 0.03125
        %v4175 = vmul.f32 %v4047, 0.03125
        %v4176 = vmul.f32 %v4048, 0.03125
        %v4177 = vmul.f32 %v4049, 0.03125
        %v4178 = vmul.f32 %v4050, 0.03125
        %v4179 = vmul.f32 %v4051, 0.03125
        %v4180 = vmul.f32 %v4052, 0.03125
        %v4181 = vmul.f32 %v4053, 0.03125
        %v4182 = vmul.f32 %v4054, 0.03125
        %v4183 = vmul.f32 %v4055, 0.03125
        %v4184 = vmul.f32 %v4056, 0.03125
        %v4185 = vmul.f32 %v4057, 0.03125
        %v4186 = vmul.f32 %v4058, 0.03125
        %v4187 = vmul.f32 %v4059, 0.03125
        %v4188 = vmul.f32 %v4060, 0.03125
        %v4189 = vmul.f32 %v4061, 0.03125
        %v4190 = vmul.f32 %v4062, 0.03125
        %v4191 = vmul.f32 %v4063, 0.03125
        %v4192 = vmul.f32 %v4064, 0.03125
        %v4193 = vmul.f32 %v4065, 0.03125
        %v4194 = vmul.f32 %v4066, 0.03125
        %v4195 = vmul.f32 %v4067, 0.03125
        %v4196 = vmul.f32 %v4068, 0.03125
        %v4197 = vmul.f32 %v4069, 0.03125
        %v4198 = vmul.f32 %v4070, 0.03125
        %v4199 = vmul.f32 %v4071, 0.03125
        %v4200 = vmul.f32 %v4072, 0.03125
        %v4201 = vmul.f32 %v4073, 0.03125
        %v4202 = vmul.f32 %v4074, 0.03125
        %v4203 = vmul.f32 %v4075, 0.03125
        %v4204 = vmul.f32 %v4076, 0.03125
        %v4205 = vmul.f32 %v4077, 0.03125
        %v4206 = vmul.f32 %v4078, 0.03125
        %v4207 = vmul.f32 %v4079, 0.03125
        %v4208 = vmul.f32 %v4080, 0.03125
        %v4209 = vmul.f32 %v4081, 0.03125
        %v4210 = vmul.f32 %v4082, 0.03125
        %v4211 = vmul.f32 %v4083, 0.03125
        %v4212 = vmul.f32 %v4084, 0.03125
        %v4213 = vmul.f32 %v4085, 0.03125
        %v4214 = vmul.f32 %v4086, 0.03125
        %v4215 = vmul.f32 %v4087, 0.03125
        %v4216 = vmul.f32 %v4088, 0.03125
        %v4217 = vmul.f32 %v4089, 0.03125
        %v4218 = vmul.f32 %v4090, 0.03125
        %v4219 = vmul.f32 %v4091, 0.03125
        %v4220 = vmul.f32 %v4092, 0.03125
        %v4221 = vmul.f32 %v4093, 0.03125
        %v4222 = vmul.f32 %v4094, 0.03125
        %v4223 = vmul.f32 %v4095, 0.03125
        %v4224 = vmul.f32 %v4096, 0.03125
        %v4225 = vmul.f32 %v4097, 0.03125
        %v4226 = vmul.f32 %v4098, 0.03125
        %v4227 = vmul.f32 %v4099, 0.03125
        %v4228 = vmul.f32 %v4100, 0.03125
        %v4229 = vmul.f32 %v4101, 0.03125
        %v4230 = vmul.f32 %v4102, 0.03125
        %v4231 = vmul.f32 %v4103, 0.03125
        %v4232 = vmul.f32 %v4104, 0.03125
        %v4233 = vmul.f32 %v4105, 0.03125
        %v4234 = vmul.f32 %v4106, 0.03125
        %v4235 = vmul.f32 %v4107, 0.03125
        %v4236 = vmul.f32 %v4108, 0.03125
        %v4237 = vmul.f32 %v4109, 0.03125
        %v4238 = vmul.f32 %v4110, 0.03125
        %v4239 = vmul.f32 %v4111, 0.03125
        %v4240 = vmul.f32 %v4112, 0.03125
        %v4241 = vmul.f32 %v4113, 0.03125
        %v4242 = vmul.f32 %v4114, 0.03125
        %v4243 = vmul.f32 %v4115, 0.03125
        %v4244 = vmul.f32 %v4116, 0.03125
        %v4245 = vmul.f32 %v4117, 0.03125
        %v4246 = vmul.f32 %v4118, 0.03125
        %v4247 = vmul.f32 %v4119, 0.03125
        %v4248 = vmul.f32 %v4120, 0.03125
        %v4249 = vmul.f32 %v4121, 0.03125
        %v4250 = vmul.f32 %v4122, 0.03125
        %v4251 = vmul.f32 %v4123, 0.03125
        %v4252 = vmul.f32 %v4124, 0.03125
        %v4253 = vmul.f32 %v4125, 0.03125
        %v4254 = vmul.f32 %v4126, 0.03125
        %v4255 = vmul.f32 %v4127, 0.03125
        %v4256 = vmul.f32 %v4128, 0.03125
        %v4257 = vmul.f32 %v4129, 0.03125
        %v4258 = vmul.f32 %v4130, 0.03125
        %v4259 = vmul.f32 %v4131, 0.03125
        %v4260 = vmul.f32 %v4132, 0.03125
        %v4261 = vmul.f32 %v4133, 0.03125
        %v4262 = vmul.f32 %v4134, 0.03125
        %v4263 = vmul.f32 %v4135, 0.03125
        %v4264 = vmul.f32 %v4136, 0.03125
        %v4265 = vmul.f32 %v4137, 0.03125
        %v4266 = vmul.f32 %v4138, 0.03125
        %v4267 = vmul.f32 %v4139, 0.03125
        %v4268 = vmul.f32 %v4140, 0.03125
        %v4269 = vadd.f32 %v4141, 1e-05
        %v4270 = vadd.f32 %v4142, 1e-05
        %v4271 = vadd.f32 %v4143, 1e-05
        %v4272 = vadd.f32 %v4144, 1e-05
        %v4273 = vadd.f32 %v4145, 1e-05
        %v4274 = vadd.f32 %v4146, 1e-05
        %v4275 = vadd.f32 %v4147, 1e-05
        %v4276 = vadd.f32 %v4148, 1e-05
        %v4277 = vadd.f32 %v4149, 1e-05
        %v4278 = vadd.f32 %v4150, 1e-05
        %v4279 = vadd.f32 %v4151, 1e-05
        %v4280 = vadd.f32 %v4152, 1e-05
        %v4281 = vadd.f32 %v4153, 1e-05
        %v4282 = vadd.f32 %v4154, 1e-05
        %v4283 = vadd.f32 %v4155, 1e-05
        %v4284 = vadd.f32 %v4156, 1e-05
        %v4285 = vadd.f32 %v4157, 1e-05
        %v4286 = vadd.f32 %v4158, 1e-05
        %v4287 = vadd.f32 %v4159, 1e-05
        %v4288 = vadd.f32 %v4160, 1e-05
        %v4289 = vadd.f32 %v4161, 1e-05
        %v4290 = vadd.f32 %v4162, 1e-05
        %v4291 = vadd.f32 %v4163, 1e-05
        %v4292 = vadd.f32 %v4164, 1e-05
        %v4293 = vadd.f32 %v4165, 1e-05
        %v4294 = vadd.f32 %v4166, 1e-05
        %v4295 = vadd.f32 %v4167, 1e-05
        %v4296 = vadd.f32 %v4168, 1e-05
        %v4297 = vadd.f32 %v4169, 1e-05
        %v4298 = vadd.f32 %v4170, 1e-05
        %v4299 = vadd.f32 %v4171, 1e-05
        %v4300 = vadd.f32 %v4172, 1e-05
        %v4301 = vadd.f32 %v4173, 1e-05
        %v4302 = vadd.f32 %v4174, 1e-05
        %v4303 = vadd.f32 %v4175, 1e-05
        %v4304 = vadd.f32 %v4176, 1e-05
        %v4305 = vadd.f32 %v4177, 1e-05
        %v4306 = vadd.f32 %v4178, 1e-05
        %v4307 = vadd.f32 %v4179, 1e-05
        %v4308 = vadd.f32 %v4180, 1e-05
        %v4309 = vadd.f32 %v4181, 1e-05
        %v4310 = vadd.f32 %v4182, 1e-05
        %v4311 = vadd.f32 %v4183, 1e-05
        %v4312 = vadd.f32 %v4184, 1e-05
        %v4313 = vadd.f32 %v4185, 1e-05
        %v4314 = vadd.f32 %v4186, 1e-05
        %v4315 = vadd.f32 %v4187, 1e-05
        %v4316 = vadd.f32 %v4188, 1e-05
        %v4317 = vadd.f32 %v4189, 1e-05
        %v4318 = vadd.f32 %v4190, 1e-05
        %v4319 = vadd.f32 %v4191, 1e-05
        %v4320 = vadd.f32 %v4192, 1e-05
        %v4321 = vadd.f32 %v4193, 1e-05
        %v4322 = vadd.f32 %v4194, 1e-05
        %v4323 = vadd.f32 %v4195, 1e-05
        %v4324 = vadd.f32 %v4196, 1e-05
        %v4325 = vadd.f32 %v4197, 1e-05
        %v4326 = vadd.f32 %v4198, 1e-05
        %v4327 = vadd.f32 %v4199, 1e-05
        %v4328 = vadd.f32 %v4200, 1e-05
        %v4329 = vadd.f32 %v4201, 1e-05
        %v4330 = vadd.f32 %v4202, 1e-05
        %v4331 = vadd.f32 %v4203, 1e-05
        %v4332 = vadd.f32 %v4204, 1e-05
        %v4333 = vadd.f32 %v4205, 1e-05
        %v4334 = vadd.f32 %v4206, 1e-05
        %v4335 = vadd.f32 %v4207, 1e-05
        %v4336 = vadd.f32 %v4208, 1e-05
        %v4337 = vadd.f32 %v4209, 1e-05
        %v4338 = vadd.f32 %v4210, 1e-05
        %v4339 = vadd.f32 %v4211, 1e-05
        %v4340 = vadd.f32 %v4212, 1e-05
        %v4341 = vadd.f32 %v4213, 1e-05
        %v4342 = vadd.f32 %v4214, 1e-05
        %v4343 = vadd.f32 %v4215, 1e-05
        %v4344 = vadd.f32 %v4216, 1e-05
        %v4345 = vadd.f32 %v4217, 1e-05
        %v4346 = vadd.f32 %v4218, 1e-05
        %v4347 = vadd.f32 %v4219, 1e-05
        %v4348 = vadd.f32 %v4220, 1e-05
        %v4349 = vadd.f32 %v4221, 1e-05
        %v4350 = vadd.f32 %v4222, 1e-05
        %v4351 = vadd.f32 %v4223, 1e-05
        %v4352 = vadd.f32 %v4224, 1e-05
        %v4353 = vadd.f32 %v4225, 1e-05
        %v4354 = vadd.f32 %v4226, 1e-05
        %v4355 = vadd.f32 %v4227, 1e-05
        %v4356 = vadd.f32 %v4228, 1e-05
        %v4357 = vadd.f32 %v4229, 1e-05
        %v4358 = vadd.f32 %v4230, 1e-05
        %v4359 = vadd.f32 %v4231, 1e-05
        %v4360 = vadd.f32 %v4232, 1e-05
        %v4361 = vadd.f32 %v4233, 1e-05
        %v4362 = vadd.f32 %v4234, 1e-05
        %v4363 = vadd.f32 %v4235, 1e-05
        %v4364 = vadd.f32 %v4236, 1e-05
        %v4365 = vadd.f32 %v4237, 1e-05
        %v4366 = vadd.f32 %v4238, 1e-05
        %v4367 = vadd.f32 %v4239, 1e-05
        %v4368 = vadd.f32 %v4240, 1e-05
        %v4369 = vadd.f32 %v4241, 1e-05
        %v4370 = vadd.f32 %v4242, 1e-05
        %v4371 = vadd.f32 %v4243, 1e-05
        %v4372 = vadd.f32 %v4244, 1e-05
        %v4373 = vadd.f32 %v4245, 1e-05
        %v4374 = vadd.f32 %v4246, 1e-05
        %v4375 = vadd.f32 %v4247, 1e-05
        %v4376 = vadd.f32 %v4248, 1e-05
        %v4377 = vadd.f32 %v4249, 1e-05
        %v4378 = vadd.f32 %v4250, 1e-05
        %v4379 = vadd.f32 %v4251, 1e-05
        %v4380 = vadd.f32 %v4252, 1e-05
        %v4381 = vadd.f32 %v4253, 1e-05
        %v4382 = vadd.f32 %v4254, 1e-05
        %v4383 = vadd.f32 %v4255, 1e-05
        %v4384 = vadd.f32 %v4256, 1e-05
        %v4385 = vadd.f32 %v4257, 1e-05
        %v4386 = vadd.f32 %v4258, 1e-05
        %v4387 = vadd.f32 %v4259, 1e-05
        %v4388 = vadd.f32 %v4260, 1e-05
        %v4389 = vadd.f32 %v4261, 1e-05
        %v4390 = vadd.f32 %v4262, 1e-05
        %v4391 = vadd.f32 %v4263, 1e-05
        %v4392 = vadd.f32 %v4264, 1e-05
        %v4393 = vadd.f32 %v4265, 1e-05
        %v4394 = vadd.f32 %v4266, 1e-05
        %v4395 = vadd.f32 %v4267, 1e-05
        %v4396 = vadd.f32 %v4268, 1e-05
        %v4397 = vrsqrt.pop %v4269
        %v4398 = vrsqrt.pop %v4270
        %v4399 = vrsqrt.pop %v4271
        %v4400 = vrsqrt.pop %v4272
        %v4401 = vrsqrt.pop %v4273
        %v4402 = vrsqrt.pop %v4274
        %v4403 = vrsqrt.pop %v4275
        %v4404 = vrsqrt.pop %v4276
        %v4405 = vrsqrt.pop %v4277
        %v4406 = vrsqrt.pop %v4278
        %v4407 = vrsqrt.pop %v4279
        %v4408 = vrsqrt.pop %v4280
        %v4409 = vrsqrt.pop %v4281
        %v4410 = vrsqrt.pop %v4282
        %v4411 = vrsqrt.pop %v4283
        %v4412 = vrsqrt.pop %v4284
        %v4413 = vrsqrt.pop %v4285
        %v4414 = vrsqrt.pop %v4286
        %v4415 = vrsqrt.pop %v4287
        %v4416 = vrsqrt.pop %v4288
        %v4417 = vrsqrt.pop %v4289
        %v4418 = vrsqrt.pop %v4290
        %v4419 = vrsqrt.pop %v4291
        %v4420 = vrsqrt.pop %v4292
        %v4421 = vrsqrt.pop %v4293
        %v4422 = vrsqrt.pop %v4294
        %v4423 = vrsqrt.pop %v4295
        %v4424 = vrsqrt.pop %v4296
        %v4425 = vrsqrt.pop %v4297
        %v4426 = vrsqrt.pop %v4298
        %v4427 = vrsqrt.pop %v4299
        %v4428 = vrsqrt.pop %v4300
        %v4429 = vrsqrt.pop %v4301
        %v4430 = vrsqrt.pop %v4302
        %v4431 = vrsqrt.pop %v4303
        %v4432 = vrsqrt.pop %v4304
        %v4433 = vrsqrt.pop %v4305
        %v4434 = vrsqrt.pop %v4306
        %v4435 = vrsqrt.pop %v4307
        %v4436 = vrsqrt.pop %v4308
        %v4437 = vrsqrt.pop %v4309
        %v4438 = vrsqrt.pop %v4310
        %v4439 = vrsqrt.pop %v4311
        %v4440 = vrsqrt.pop %v4312
        %v4441 = vrsqrt.pop %v4313
        %v4442 = vrsqrt.pop %v4314
        %v4443 = vrsqrt.pop %v4315
        %v4444 = vrsqrt.pop %v4316
        %v4445 = vrsqrt.pop %v4317
        %v4446 = vrsqrt.pop %v4318
        %v4447 = vrsqrt.pop %v4319
        %v4448 = vrsqrt.pop %v4320
        %v4449 = vrsqrt.pop %v4321
        %v4450 = vrsqrt.pop %v4322
        %v4451 = vrsqrt.pop %v4323
        %v4452 = vrsqrt.pop %v4324
        %v4453 = vrsqrt.pop %v4325
        %v4454 = vrsqrt.pop %v4326
        %v4455 = vrsqrt.pop %v4327
        %v4456 = vrsqrt.pop %v4328
        %v4457 = vrsqrt.pop %v4329
        %v4458 = vrsqrt.pop %v4330
        %v4459 = vrsqrt.pop %v4331
        %v4460 = vrsqrt.pop %v4332
        %v4461 = vrsqrt.pop %v4333
        %v4462 = vrsqrt.pop %v4334
        %v4463 = vrsqrt.pop %v4335
        %v4464 = vrsqrt.pop %v4336
        %v4465 = vrsqrt.pop %v4337
        %v4466 = vrsqrt.pop %v4338
        %v4467 = vrsqrt.pop %v4339
        %v4468 = vrsqrt.pop %v4340
        %v4469 = vrsqrt.pop %v4341
        %v4470 = vrsqrt.pop %v4342
        %v4471 = vrsqrt.pop %v4343
        %v4472 = vrsqrt.pop %v4344
        %v4473 = vrsqrt.pop %v4345
        %v4474 = vrsqrt.pop %v4346
        %v4475 = vrsqrt.pop %v4347
        %v4476 = vrsqrt.pop %v4348
        %v4477 = vrsqrt.pop %v4349
        %v4478 = vrsqrt.pop %v4350
        %v4479 = vrsqrt.pop %v4351
        %v4480 = vrsqrt.pop %v4352
        %v4481 = vrsqrt.pop %v4353
        %v4482 = vrsqrt.pop %v4354
        %v4483 = vrsqrt.pop %v4355
        %v4484 = vrsqrt.pop %v4356
        %v4485 = vrsqrt.pop %v4357
        %v4486 = vrsqrt.pop %v4358
        %v4487 = vrsqrt.pop %v4359
        %v4488 = vrsqrt.pop %v4360
        %v4489 = vrsqrt.pop %v4361
        %v4490 = vrsqrt.pop %v4362
        %v4491 = vrsqrt.pop %v4363
        %v4492 = vrsqrt.pop %v4364
        %v4493 = vrsqrt.pop %v4365
        %v4494 = vrsqrt.pop %v4366
        %v4495 = vrsqrt.pop %v4367
        %v4496 = vrsqrt.pop %v4368
        %v4497 = vrsqrt.pop %v4369
        %v4498 = vrsqrt.pop %v4370
        %v4499 = vrsqrt.pop %v4371
        %v4500 = vrsqrt.pop %v4372
        %v4501 = vrsqrt.pop %v4373
        %v4502 = vrsqrt.pop %v4374
        %v4503 = vrsqrt.pop %v4375
        %v4504 = vrsqrt.pop %v4376
        %v4505 = vrsqrt.pop %v4377
        %v4506 = vrsqrt.pop %v4378
        %v4507 = vrsqrt.pop %v4379
        %v4508 = vrsqrt.pop %v4380
        %v4509 = vrsqrt.pop %v4381
        %v4510 = vrsqrt.pop %v4382
        %v4511 = vrsqrt.pop %v4383
        %v4512 = vrsqrt.pop %v4384
        %v4513 = vrsqrt.pop %v4385
        %v4514 = vrsqrt.pop %v4386
        %v4515 = vrsqrt.pop %v4387
        %v4516 = vrsqrt.pop %v4388
        %v4517 = vrsqrt.pop %v4389
        %v4518 = vrsqrt.pop %v4390
        %v4519 = vrsqrt.pop %v4391
        %v4520 = vrsqrt.pop %v4392
        %v4521 = vrsqrt.pop %v4393
        %v4522 = vrsqrt.pop %v4394
        %v4523 = vrsqrt.pop %v4395
        %v4524 = vrsqrt.pop %v4396
        %v4525 = vsel %vm1196, %v3885, %v4397
        %v4526 = vsel %vm1196, %v3886, %v4398
        %v4527 = vsel %vm1196, %v3887, %v4399
        %v4528 = vsel %vm1196, %v3888, %v4400
        %v4529 = vsel %vm1196, %v3889, %v4401
        %v4530 = vsel %vm1196, %v3890, %v4402
        %v4531 = vsel %vm1196, %v3891, %v4403
        %v4532 = vsel %vm1196, %v3892, %v4404
        %v4533 = vsel %vm1196, %v3893, %v4405
        %v4534 = vsel %vm1196, %v3894, %v4406
        %v4535 = vsel %vm1196, %v3895, %v4407
        %v4536 = vsel %vm1196, %v3896, %v4408
        %v4537 = vsel %vm1196, %v3897, %v4409
        %v4538 = vsel %vm1196, %v3898, %v4410
        %v4539 = vsel %vm1196, %v3899, %v4411
        %v4540 = vsel %vm1196, %v3900, %v4412
        %v4541 = vsel %vm1196, %v3901, %v4413
        %v4542 = vsel %vm1196, %v3902, %v4414
        %v4543 = vsel %vm1196, %v3903, %v4415
        %v4544 = vsel %vm1196, %v3904, %v4416
        %v4545 = vsel %vm1196, %v3905, %v4417
        %v4546 = vsel %vm1196, %v3906, %v4418
        %v4547 = vsel %vm1196, %v3907, %v4419
        %v4548 = vsel %vm1196, %v3908, %v4420
        %v4549 = vsel %vm1196, %v3909, %v4421
        %v4550 = vsel %vm1196, %v3910, %v4422
        %v4551 = vsel %vm1196, %v3911, %v4423
        %v4552 = vsel %vm1196, %v3912, %v4424
        %v4553 = vsel %vm1196, %v3913, %v4425
        %v4554 = vsel %vm1196, %v3914, %v4426
        %v4555 = vsel %vm1196, %v3915, %v4427
        %v4556 = vsel %vm1196, %v3916, %v4428
        %v4557 = vsel %vm1196, %v3917, %v4429
        %v4558 = vsel %vm1196, %v3918, %v4430
        %v4559 = vsel %vm1196, %v3919, %v4431
        %v4560 = vsel %vm1196, %v3920, %v4432
        %v4561 = vsel %vm1196, %v3921, %v4433
        %v4562 = vsel %vm1196, %v3922, %v4434
        %v4563 = vsel %vm1196, %v3923, %v4435
        %v4564 = vsel %vm1196, %v3924, %v4436
        %v4565 = vsel %vm1196, %v3925, %v4437
        %v4566 = vsel %vm1196, %v3926, %v4438
        %v4567 = vsel %vm1196, %v3927, %v4439
        %v4568 = vsel %vm1196, %v3928, %v4440
        %v4569 = vsel %vm1196, %v3929, %v4441
        %v4570 = vsel %vm1196, %v3930, %v4442
        %v4571 = vsel %vm1196, %v3931, %v4443
        %v4572 = vsel %vm1196, %v3932, %v4444
        %v4573 = vsel %vm1196, %v3933, %v4445
        %v4574 = vsel %vm1196, %v3934, %v4446
        %v4575 = vsel %vm1196, %v3935, %v4447
        %v4576 = vsel %vm1196, %v3936, %v4448
        %v4577 = vsel %vm1196, %v3937, %v4449
        %v4578 = vsel %vm1196, %v3938, %v4450
        %v4579 = vsel %vm1196, %v3939, %v4451
        %v4580 = vsel %vm1196, %v3940, %v4452
        %v4581 = vsel %vm1196, %v3941, %v4453
        %v4582 = vsel %vm1196, %v3942, %v4454
        %v4583 = vsel %vm1196, %v3943, %v4455
        %v4584 = vsel %vm1196, %v3944, %v4456
        %v4585 = vsel %vm1196, %v3945, %v4457
        %v4586 = vsel %vm1196, %v3946, %v4458
        %v4587 = vsel %vm1196, %v3947, %v4459
        %v4588 = vsel %vm1196, %v3948, %v4460
        %v4589 = vsel %vm1196, %v3949, %v4461
        %v4590 = vsel %vm1196, %v3950, %v4462
        %v4591 = vsel %vm1196, %v3951, %v4463
        %v4592 = vsel %vm1196, %v3952, %v4464
        %v4593 = vsel %vm1196, %v3953, %v4465
        %v4594 = vsel %vm1196, %v3954, %v4466
        %v4595 = vsel %vm1196, %v3955, %v4467
        %v4596 = vsel %vm1196, %v3956, %v4468
        %v4597 = vsel %vm1196, %v3957, %v4469
        %v4598 = vsel %vm1196, %v3958, %v4470
        %v4599 = vsel %vm1196, %v3959, %v4471
        %v4600 = vsel %vm1196, %v3960, %v4472
        %v4601 = vsel %vm1196, %v3961, %v4473
        %v4602 = vsel %vm1196, %v3962, %v4474
        %v4603 = vsel %vm1196, %v3963, %v4475
        %v4604 = vsel %vm1196, %v3964, %v4476
        %v4605 = vsel %vm1196, %v3965, %v4477
        %v4606 = vsel %vm1196, %v3966, %v4478
        %v4607 = vsel %vm1196, %v3967, %v4479
        %v4608 = vsel %vm1196, %v3968, %v4480
        %v4609 = vsel %vm1196, %v3969, %v4481
        %v4610 = vsel %vm1196, %v3970, %v4482
        %v4611 = vsel %vm1196, %v3971, %v4483
        %v4612 = vsel %vm1196, %v3972, %v4484
        %v4613 = vsel %vm1196, %v3973, %v4485
        %v4614 = vsel %vm1196, %v3974, %v4486
        %v4615 = vsel %vm1196, %v3975, %v4487
        %v4616 = vsel %vm1196, %v3976, %v4488
        %v4617 = vsel %vm1196, %v3977, %v4489
        %v4618 = vsel %vm1196, %v3978, %v4490
        %v4619 = vsel %vm1196, %v3979, %v4491
        %v4620 = vsel %vm1196, %v3980, %v4492
        %v4621 = vsel %vm1196, %v3981, %v4493
        %v4622 = vsel %vm1196, %v3982, %v4494
        %v4623 = vsel %vm1196, %v3983, %v4495
        %v4624 = vsel %vm1196, %v3984, %v4496
        %v4625 = vsel %vm1196, %v3985, %v4497
        %v4626 = vsel %vm1196, %v3986, %v4498
        %v4627 = vsel %vm1196, %v3987, %v4499
        %v4628 = vsel %vm1196, %v3988, %v4500
        %v4629 = vsel %vm1196, %v3989, %v4501
        %v4630 = vsel %vm1196, %v3990, %v4502
        %v4631 = vsel %vm1196, %v3991, %v4503
        %v4632 = vsel %vm1196, %v3992, %v4504
        %v4633 = vsel %vm1196, %v3993, %v4505
        %v4634 = vsel %vm1196, %v3994, %v4506
        %v4635 = vsel %vm1196, %v3995, %v4507
        %v4636 = vsel %vm1196, %v3996, %v4508
        %v4637 = vsel %vm1196, %v3997, %v4509
        %v4638 = vsel %vm1196, %v3998, %v4510
        %v4639 = vsel %vm1196, %v3999, %v4511
        %v4640 = vsel %vm1196, %v4000, %v4512
        %v4641 = vsel %vm1196, %v4001, %v4513
        %v4642 = vsel %vm1196, %v4002, %v4514
        %v4643 = vsel %vm1196, %v4003, %v4515
        %v4644 = vsel %vm1196, %v4004, %v4516
        %v4645 = vsel %vm1196, %v4005, %v4517
        %v4646 = vsel %vm1196, %v4006, %v4518
        %v4647 = vsel %vm1196, %v4007, %v4519
        %v4648 = vsel %vm1196, %v4008, %v4520
        %v4649 = vsel %vm1196, %v4009, %v4521
        %v4650 = vsel %vm1196, %v4010, %v4522
        %v4651 = vsel %vm1196, %v4011, %v4523
        %v4652 = vsel %vm1196, %v4012, %v4524
        %v4653 = vmul.f32 %v2477, %v4525
        %v4654 = vmul.f32 %v2478, %v4526
        %v4655 = vmul.f32 %v2479, %v4527
        %v4656 = vmul.f32 %v2480, %v4528
        %v4657 = vmul.f32 %v2481, %v4529
        %v4658 = vmul.f32 %v2482, %v4530
        %v4659 = vmul.f32 %v2483, %v4531
        %v4660 = vmul.f32 %v2484, %v4532
        %v4661 = vmul.f32 %v2485, %v4533
        %v4662 = vmul.f32 %v2486, %v4534
        %v4663 = vmul.f32 %v2487, %v4535
        %v4664 = vmul.f32 %v2488, %v4536
        %v4665 = vmul.f32 %v2489, %v4537
        %v4666 = vmul.f32 %v2490, %v4538
        %v4667 = vmul.f32 %v2491, %v4539
        %v4668 = vmul.f32 %v2492, %v4540
        %v4669 = vmul.f32 %v2493, %v4541
        %v4670 = vmul.f32 %v2494, %v4542
        %v4671 = vmul.f32 %v2495, %v4543
        %v4672 = vmul.f32 %v2496, %v4544
        %v4673 = vmul.f32 %v2497, %v4545
        %v4674 = vmul.f32 %v2498, %v4546
        %v4675 = vmul.f32 %v2499, %v4547
        %v4676 = vmul.f32 %v2500, %v4548
        %v4677 = vmul.f32 %v2501, %v4549
        %v4678 = vmul.f32 %v2502, %v4550
        %v4679 = vmul.f32 %v2503, %v4551
        %v4680 = vmul.f32 %v2504, %v4552
        %v4681 = vmul.f32 %v2505, %v4553
        %v4682 = vmul.f32 %v2506, %v4554
        %v4683 = vmul.f32 %v2507, %v4555
        %v4684 = vmul.f32 %v2508, %v4556
        %v4685 = vmul.f32 %v2509, %v4557
        %v4686 = vmul.f32 %v2510, %v4558
        %v4687 = vmul.f32 %v2511, %v4559
        %v4688 = vmul.f32 %v2512, %v4560
        %v4689 = vmul.f32 %v2513, %v4561
        %v4690 = vmul.f32 %v2514, %v4562
        %v4691 = vmul.f32 %v2515, %v4563
        %v4692 = vmul.f32 %v2516, %v4564
        %v4693 = vmul.f32 %v2517, %v4565
        %v4694 = vmul.f32 %v2518, %v4566
        %v4695 = vmul.f32 %v2519, %v4567
        %v4696 = vmul.f32 %v2520, %v4568
        %v4697 = vmul.f32 %v2521, %v4569
        %v4698 = vmul.f32 %v2522, %v4570
        %v4699 = vmul.f32 %v2523, %v4571
        %v4700 = vmul.f32 %v2524, %v4572
        %v4701 = vmul.f32 %v2525, %v4573
        %v4702 = vmul.f32 %v2526, %v4574
        %v4703 = vmul.f32 %v2527, %v4575
        %v4704 = vmul.f32 %v2528, %v4576
        %v4705 = vmul.f32 %v2529, %v4577
        %v4706 = vmul.f32 %v2530, %v4578
        %v4707 = vmul.f32 %v2531, %v4579
        %v4708 = vmul.f32 %v2532, %v4580
        %v4709 = vmul.f32 %v2533, %v4581
        %v4710 = vmul.f32 %v2534, %v4582
        %v4711 = vmul.f32 %v2535, %v4583
        %v4712 = vmul.f32 %v2536, %v4584
        %v4713 = vmul.f32 %v2537, %v4585
        %v4714 = vmul.f32 %v2538, %v4586
        %v4715 = vmul.f32 %v2539, %v4587
        %v4716 = vmul.f32 %v2540, %v4588
        %v4717 = vmul.f32 %v2541, %v4589
        %v4718 = vmul.f32 %v2542, %v4590
        %v4719 = vmul.f32 %v2543, %v4591
        %v4720 = vmul.f32 %v2544, %v4592
        %v4721 = vmul.f32 %v2545, %v4593
        %v4722 = vmul.f32 %v2546, %v4594
        %v4723 = vmul.f32 %v2547, %v4595
        %v4724 = vmul.f32 %v2548, %v4596
        %v4725 = vmul.f32 %v2549, %v4597
        %v4726 = vmul.f32 %v2550, %v4598
        %v4727 = vmul.f32 %v2551, %v4599
        %v4728 = vmul.f32 %v2552, %v4600
        %v4729 = vmul.f32 %v2553, %v4601
        %v4730 = vmul.f32 %v2554, %v4602
        %v4731 = vmul.f32 %v2555, %v4603
        %v4732 = vmul.f32 %v2556, %v4604
        %v4733 = vmul.f32 %v2557, %v4605
        %v4734 = vmul.f32 %v2558, %v4606
        %v4735 = vmul.f32 %v2559, %v4607
        %v4736 = vmul.f32 %v2560, %v4608
        %v4737 = vmul.f32 %v2561, %v4609
        %v4738 = vmul.f32 %v2562, %v4610
        %v4739 = vmul.f32 %v2563, %v4611
        %v4740 = vmul.f32 %v2564, %v4612
        %v4741 = vmul.f32 %v2565, %v4613
        %v4742 = vmul.f32 %v2566, %v4614
        %v4743 = vmul.f32 %v2567, %v4615
        %v4744 = vmul.f32 %v2568, %v4616
        %v4745 = vmul.f32 %v2569, %v4617
        %v4746 = vmul.f32 %v2570, %v4618
        %v4747 = vmul.f32 %v2571, %v4619
        %v4748 = vmul.f32 %v2572, %v4620
        %v4749 = vmul.f32 %v2573, %v4621
        %v4750 = vmul.f32 %v2574, %v4622
        %v4751 = vmul.f32 %v2575, %v4623
        %v4752 = vmul.f32 %v2576, %v4624
        %v4753 = vmul.f32 %v2577, %v4625
        %v4754 = vmul.f32 %v2578, %v4626
        %v4755 = vmul.f32 %v2579, %v4627
        %v4756 = vmul.f32 %v2580, %v4628
        %v4757 = vmul.f32 %v2581, %v4629
        %v4758 = vmul.f32 %v2582, %v4630
        %v4759 = vmul.f32 %v2583, %v4631
        %v4760 = vmul.f32 %v2584, %v4632
        %v4761 = vmul.f32 %v2585, %v4633
        %v4762 = vmul.f32 %v2586, %v4634
        %v4763 = vmul.f32 %v2587, %v4635
        %v4764 = vmul.f32 %v2588, %v4636
        %v4765 = vmul.f32 %v2589, %v4637
        %v4766 = vmul.f32 %v2590, %v4638
        %v4767 = vmul.f32 %v2591, %v4639
        %v4768 = vmul.f32 %v2592, %v4640
        %v4769 = vmul.f32 %v2593, %v4641
        %v4770 = vmul.f32 %v2594, %v4642
        %v4771 = vmul.f32 %v2595, %v4643
        %v4772 = vmul.f32 %v2596, %v4644
        %v4773 = vmul.f32 %v2597, %v4645
        %v4774 = vmul.f32 %v2598, %v4646
        %v4775 = vmul.f32 %v2599, %v4647
        %v4776 = vmul.f32 %v2600, %v4648
        %v4777 = vmul.f32 %v2601, %v4649
        %v4778 = vmul.f32 %v2602, %v4650
        %v4779 = vmul.f32 %v2603, %v4651
        %v4780 = vmul.f32 %v2604, %v4652
        %v4782 = vlaneseq
        %v4783 = vshrl.u32 %v4782, 7
        %v4784 = vsub.s32 0, %v4783
        %v4785 = vrot.slane %v420, %v4784
        %v4787 = vmul.f32 %v4653, %v4785
        %v4788 = vmul.f32 %v4654, %v4785
        %v4789 = vmul.f32 %v4655, %v4785
        %v4790 = vmul.f32 %v4656, %v4785
        %v4791 = vmul.f32 %v4657, %v4785
        %v4792 = vmul.f32 %v4658, %v4785
        %v4793 = vmul.f32 %v4659, %v4785
        %v4794 = vmul.f32 %v4660, %v4785
        %v4795 = vmul.f32 %v4661, %v4785
        %v4796 = vmul.f32 %v4662, %v4785
        %v4797 = vmul.f32 %v4663, %v4785
        %v4798 = vmul.f32 %v4664, %v4785
        %v4799 = vmul.f32 %v4665, %v4785
        %v4800 = vmul.f32 %v4666, %v4785
        %v4801 = vmul.f32 %v4667, %v4785
        %v4802 = vmul.f32 %v4668, %v4785
        %v4803 = vmul.f32 %v4669, %v4785
        %v4804 = vmul.f32 %v4670, %v4785
        %v4805 = vmul.f32 %v4671, %v4785
        %v4806 = vmul.f32 %v4672, %v4785
        %v4807 = vmul.f32 %v4673, %v4785
        %v4808 = vmul.f32 %v4674, %v4785
        %v4809 = vmul.f32 %v4675, %v4785
        %v4810 = vmul.f32 %v4676, %v4785
        %v4811 = vmul.f32 %v4677, %v4785
        %v4812 = vmul.f32 %v4678, %v4785
        %v4813 = vmul.f32 %v4679, %v4785
        %v4814 = vmul.f32 %v4680, %v4785
        %v4815 = vmul.f32 %v4681, %v4785
        %v4816 = vmul.f32 %v4682, %v4785
        %v4817 = vmul.f32 %v4683, %v4785
        %v4818 = vmul.f32 %v4684, %v4785
        %v4819 = vmul.f32 %v4685, %v4785
        %v4820 = vmul.f32 %v4686, %v4785
        %v4821 = vmul.f32 %v4687, %v4785
        %v4822 = vmul.f32 %v4688, %v4785
        %v4823 = vmul.f32 %v4689, %v4785
        %v4824 = vmul.f32 %v4690, %v4785
        %v4825 = vmul.f32 %v4691, %v4785
        %v4826 = vmul.f32 %v4692, %v4785
        %v4827 = vmul.f32 %v4693, %v4785
        %v4828 = vmul.f32 %v4694, %v4785
        %v4829 = vmul.f32 %v4695, %v4785
        %v4830 = vmul.f32 %v4696, %v4785
        %v4831 = vmul.f32 %v4697, %v4785
        %v4832 = vmul.f32 %v4698, %v4785
        %v4833 = vmul.f32 %v4699, %v4785
        %v4834 = vmul.f32 %v4700, %v4785
        %v4835 = vmul.f32 %v4701, %v4785
        %v4836 = vmul.f32 %v4702, %v4785
        %v4837 = vmul.f32 %v4703, %v4785
        %v4838 = vmul.f32 %v4704, %v4785
        %v4839 = vmul.f32 %v4705, %v4785
        %v4840 = vmul.f32 %v4706, %v4785
        %v4841 = vmul.f32 %v4707, %v4785
        %v4842 = vmul.f32 %v4708, %v4785
        %v4843 = vmul.f32 %v4709, %v4785
        %v4844 = vmul.f32 %v4710, %v4785
        %v4845 = vmul.f32 %v4711, %v4785
        %v4846 = vmul.f32 %v4712, %v4785
        %v4847 = vmul.f32 %v4713, %v4785
        %v4848 = vmul.f32 %v4714, %v4785
        %v4849 = vmul.f32 %v4715, %v4785
        %v4850 = vmul.f32 %v4716, %v4785
        %v4851 = vmul.f32 %v4717, %v4785
        %v4852 = vmul.f32 %v4718, %v4785
        %v4853 = vmul.f32 %v4719, %v4785
        %v4854 = vmul.f32 %v4720, %v4785
        %v4855 = vmul.f32 %v4721, %v4785
        %v4856 = vmul.f32 %v4722, %v4785
        %v4857 = vmul.f32 %v4723, %v4785
        %v4858 = vmul.f32 %v4724, %v4785
        %v4859 = vmul.f32 %v4725, %v4785
        %v4860 = vmul.f32 %v4726, %v4785
        %v4861 = vmul.f32 %v4727, %v4785
        %v4862 = vmul.f32 %v4728, %v4785
        %v4863 = vmul.f32 %v4729, %v4785
        %v4864 = vmul.f32 %v4730, %v4785
        %v4865 = vmul.f32 %v4731, %v4785
        %v4866 = vmul.f32 %v4732, %v4785
        %v4867 = vmul.f32 %v4733, %v4785
        %v4868 = vmul.f32 %v4734, %v4785
        %v4869 = vmul.f32 %v4735, %v4785
        %v4870 = vmul.f32 %v4736, %v4785
        %v4871 = vmul.f32 %v4737, %v4785
        %v4872 = vmul.f32 %v4738, %v4785
        %v4873 = vmul.f32 %v4739, %v4785
        %v4874 = vmul.f32 %v4740, %v4785
        %v4875 = vmul.f32 %v4741, %v4785
        %v4876 = vmul.f32 %v4742, %v4785
        %v4877 = vmul.f32 %v4743, %v4785
        %v4878 = vmul.f32 %v4744, %v4785
        %v4879 = vmul.f32 %v4745, %v4785
        %v4880 = vmul.f32 %v4746, %v4785
        %v4881 = vmul.f32 %v4747, %v4785
        %v4882 = vmul.f32 %v4748, %v4785
        %v4883 = vmul.f32 %v4749, %v4785
        %v4884 = vmul.f32 %v4750, %v4785
        %v4885 = vmul.f32 %v4751, %v4785
        %v4886 = vmul.f32 %v4752, %v4785
        %v4887 = vmul.f32 %v4753, %v4785
        %v4888 = vmul.f32 %v4754, %v4785
        %v4889 = vmul.f32 %v4755, %v4785
        %v4890 = vmul.f32 %v4756, %v4785
        %v4891 = vmul.f32 %v4757, %v4785
        %v4892 = vmul.f32 %v4758, %v4785
        %v4893 = vmul.f32 %v4759, %v4785
        %v4894 = vmul.f32 %v4760, %v4785
        %v4895 = vmul.f32 %v4761, %v4785
        %v4896 = vmul.f32 %v4762, %v4785
        %v4897 = vmul.f32 %v4763, %v4785
        %v4898 = vmul.f32 %v4764, %v4785
        %v4899 = vmul.f32 %v4765, %v4785
        %v4900 = vmul.f32 %v4766, %v4785
        %v4901 = vmul.f32 %v4767, %v4785
        %v4902 = vmul.f32 %v4768, %v4785
        %v4903 = vmul.f32 %v4769, %v4785
        %v4904 = vmul.f32 %v4770, %v4785
        %v4905 = vmul.f32 %v4771, %v4785
        %v4906 = vmul.f32 %v4772, %v4785
        %v4907 = vmul.f32 %v4773, %v4785
        %v4908 = vmul.f32 %v4774, %v4785
        %v4909 = vmul.f32 %v4775, %v4785
        %v4910 = vmul.f32 %v4776, %v4785
        %v4911 = vmul.f32 %v4777, %v4785
        %v4912 = vmul.f32 %v4778, %v4785
        %v4913 = vmul.f32 %v4779, %v4785
        %v4914 = vmul.f32 %v4780, %v4785
        %v4916 = vlaneseq
        %v4917 = vshrl.u32 %v4916, 7
        %v4918 = vsub.s32 0, %v4917
        %v4919 = vrot.slane %v421, %v4918
        %v4921 = vadd.f32 %v4787, %v4919
        %v4922 = vadd.f32 %v4788, %v4919
        %v4923 = vadd.f32 %v4789, %v4919
        %v4924 = vadd.f32 %v4790, %v4919
        %v4925 = vadd.f32 %v4791, %v4919
        %v4926 = vadd.f32 %v4792, %v4919
        %v4927 = vadd.f32 %v4793, %v4919
        %v4928 = vadd.f32 %v4794, %v4919
        %v4929 = vadd.f32 %v4795, %v4919
        %v4930 = vadd.f32 %v4796, %v4919
        %v4931 = vadd.f32 %v4797, %v4919
        %v4932 = vadd.f32 %v4798, %v4919
        %v4933 = vadd.f32 %v4799, %v4919
        %v4934 = vadd.f32 %v4800, %v4919
        %v4935 = vadd.f32 %v4801, %v4919
        %v4936 = vadd.f32 %v4802, %v4919
        %v4937 = vadd.f32 %v4803, %v4919
        %v4938 = vadd.f32 %v4804, %v4919
        %v4939 = vadd.f32 %v4805, %v4919
        %v4940 = vadd.f32 %v4806, %v4919
        %v4941 = vadd.f32 %v4807, %v4919
        %v4942 = vadd.f32 %v4808, %v4919
        %v4943 = vadd.f32 %v4809, %v4919
        %v4944 = vadd.f32 %v4810, %v4919
        %v4945 = vadd.f32 %v4811, %v4919
        %v4946 = vadd.f32 %v4812, %v4919
        %v4947 = vadd.f32 %v4813, %v4919
        %v4948 = vadd.f32 %v4814, %v4919
        %v4949 = vadd.f32 %v4815, %v4919
        %v4950 = vadd.f32 %v4816, %v4919
        %v4951 = vadd.f32 %v4817, %v4919
        %v4952 = vadd.f32 %v4818, %v4919
        %v4953 = vadd.f32 %v4819, %v4919
        %v4954 = vadd.f32 %v4820, %v4919
        %v4955 = vadd.f32 %v4821, %v4919
        %v4956 = vadd.f32 %v4822, %v4919
        %v4957 = vadd.f32 %v4823, %v4919
        %v4958 = vadd.f32 %v4824, %v4919
        %v4959 = vadd.f32 %v4825, %v4919
        %v4960 = vadd.f32 %v4826, %v4919
        %v4961 = vadd.f32 %v4827, %v4919
        %v4962 = vadd.f32 %v4828, %v4919
        %v4963 = vadd.f32 %v4829, %v4919
        %v4964 = vadd.f32 %v4830, %v4919
        %v4965 = vadd.f32 %v4831, %v4919
        %v4966 = vadd.f32 %v4832, %v4919
        %v4967 = vadd.f32 %v4833, %v4919
        %v4968 = vadd.f32 %v4834, %v4919
        %v4969 = vadd.f32 %v4835, %v4919
        %v4970 = vadd.f32 %v4836, %v4919
        %v4971 = vadd.f32 %v4837, %v4919
        %v4972 = vadd.f32 %v4838, %v4919
        %v4973 = vadd.f32 %v4839, %v4919
        %v4974 = vadd.f32 %v4840, %v4919
        %v4975 = vadd.f32 %v4841, %v4919
        %v4976 = vadd.f32 %v4842, %v4919
        %v4977 = vadd.f32 %v4843, %v4919
        %v4978 = vadd.f32 %v4844, %v4919
        %v4979 = vadd.f32 %v4845, %v4919
        %v4980 = vadd.f32 %v4846, %v4919
        %v4981 = vadd.f32 %v4847, %v4919
        %v4982 = vadd.f32 %v4848, %v4919
        %v4983 = vadd.f32 %v4849, %v4919
        %v4984 = vadd.f32 %v4850, %v4919
        %v4985 = vadd.f32 %v4851, %v4919
        %v4986 = vadd.f32 %v4852, %v4919
        %v4987 = vadd.f32 %v4853, %v4919
        %v4988 = vadd.f32 %v4854, %v4919
        %v4989 = vadd.f32 %v4855, %v4919
        %v4990 = vadd.f32 %v4856, %v4919
        %v4991 = vadd.f32 %v4857, %v4919
        %v4992 = vadd.f32 %v4858, %v4919
        %v4993 = vadd.f32 %v4859, %v4919
        %v4994 = vadd.f32 %v4860, %v4919
        %v4995 = vadd.f32 %v4861, %v4919
        %v4996 = vadd.f32 %v4862, %v4919
        %v4997 = vadd.f32 %v4863, %v4919
        %v4998 = vadd.f32 %v4864, %v4919
        %v4999 = vadd.f32 %v4865, %v4919
        %v5000 = vadd.f32 %v4866, %v4919
        %v5001 = vadd.f32 %v4867, %v4919
        %v5002 = vadd.f32 %v4868, %v4919
        %v5003 = vadd.f32 %v4869, %v4919
        %v5004 = vadd.f32 %v4870, %v4919
        %v5005 = vadd.f32 %v4871, %v4919
        %v5006 = vadd.f32 %v4872, %v4919
        %v5007 = vadd.f32 %v4873, %v4919
        %v5008 = vadd.f32 %v4874, %v4919
        %v5009 = vadd.f32 %v4875, %v4919
        %v5010 = vadd.f32 %v4876, %v4919
        %v5011 = vadd.f32 %v4877, %v4919
        %v5012 = vadd.f32 %v4878, %v4919
        %v5013 = vadd.f32 %v4879, %v4919
        %v5014 = vadd.f32 %v4880, %v4919
        %v5015 = vadd.f32 %v4881, %v4919
        %v5016 = vadd.f32 %v4882, %v4919
        %v5017 = vadd.f32 %v4883, %v4919
        %v5018 = vadd.f32 %v4884, %v4919
        %v5019 = vadd.f32 %v4885, %v4919
        %v5020 = vadd.f32 %v4886, %v4919
        %v5021 = vadd.f32 %v4887, %v4919
        %v5022 = vadd.f32 %v4888, %v4919
        %v5023 = vadd.f32 %v4889, %v4919
        %v5024 = vadd.f32 %v4890, %v4919
        %v5025 = vadd.f32 %v4891, %v4919
        %v5026 = vadd.f32 %v4892, %v4919
        %v5027 = vadd.f32 %v4893, %v4919
        %v5028 = vadd.f32 %v4894, %v4919
        %v5029 = vadd.f32 %v4895, %v4919
        %v5030 = vadd.f32 %v4896, %v4919
        %v5031 = vadd.f32 %v4897, %v4919
        %v5032 = vadd.f32 %v4898, %v4919
        %v5033 = vadd.f32 %v4899, %v4919
        %v5034 = vadd.f32 %v4900, %v4919
        %v5035 = vadd.f32 %v4901, %v4919
        %v5036 = vadd.f32 %v4902, %v4919
        %v5037 = vadd.f32 %v4903, %v4919
        %v5038 = vadd.f32 %v4904, %v4919
        %v5039 = vadd.f32 %v4905, %v4919
        %v5040 = vadd.f32 %v4906, %v4919
        %v5041 = vadd.f32 %v4907, %v4919
        %v5042 = vadd.f32 %v4908, %v4919
        %v5043 = vadd.f32 %v4909, %v4919
        %v5044 = vadd.f32 %v4910, %v4919
        %v5045 = vadd.f32 %v4911, %v4919
        %v5046 = vadd.f32 %v4912, %v4919
        %v5047 = vadd.f32 %v4913, %v4919
        %v5048 = vadd.f32 %v4914, %v4919
        %v5049 = vpack.c.bf16 %v4922, %v4921
        %v5050 = vpack.c.bf16 %v4924, %v4923
        %v5051 = vpack.c.bf16 %v4926, %v4925
        %v5052 = vpack.c.bf16 %v4928, %v4927
        %v5053 = vpack.c.bf16 %v4930, %v4929
        %v5054 = vpack.c.bf16 %v4932, %v4931
        %v5055 = vpack.c.bf16 %v4934, %v4933
        %v5056 = vpack.c.bf16 %v4936, %v4935
        %v5057 = vpack.c.bf16 %v4938, %v4937
        %v5058 = vpack.c.bf16 %v4940, %v4939
        %v5059 = vpack.c.bf16 %v4942, %v4941
        %v5060 = vpack.c.bf16 %v4944, %v4943
        %v5061 = vpack.c.bf16 %v4946, %v4945
        %v5062 = vpack.c.bf16 %v4948, %v4947
        %v5063 = vpack.c.bf16 %v4950, %v4949
        %v5064 = vpack.c.bf16 %v4952, %v4951
        %v5065 = vpack.c.bf16 %v4954, %v4953
        %v5066 = vpack.c.bf16 %v4956, %v4955
        %v5067 = vpack.c.bf16 %v4958, %v4957
        %v5068 = vpack.c.bf16 %v4960, %v4959
        %v5069 = vpack.c.bf16 %v4962, %v4961
        %v5070 = vpack.c.bf16 %v4964, %v4963
        %v5071 = vpack.c.bf16 %v4966, %v4965
        %v5072 = vpack.c.bf16 %v4968, %v4967
        %v5073 = vpack.c.bf16 %v4970, %v4969
        %v5074 = vpack.c.bf16 %v4972, %v4971
        %v5075 = vpack.c.bf16 %v4974, %v4973
        %v5076 = vpack.c.bf16 %v4976, %v4975
        %v5077 = vpack.c.bf16 %v4978, %v4977
        %v5078 = vpack.c.bf16 %v4980, %v4979
        %v5079 = vpack.c.bf16 %v4982, %v4981
        %v5080 = vpack.c.bf16 %v4984, %v4983
        %v5081 = vpack.c.bf16 %v4986, %v4985
        %v5082 = vpack.c.bf16 %v4988, %v4987
        %v5083 = vpack.c.bf16 %v4990, %v4989
        %v5084 = vpack.c.bf16 %v4992, %v4991
        %v5085 = vpack.c.bf16 %v4994, %v4993
        %v5086 = vpack.c.bf16 %v4996, %v4995
        %v5087 = vpack.c.bf16 %v4998, %v4997
        %v5088 = vpack.c.bf16 %v5000, %v4999
        %v5089 = vpack.c.bf16 %v5002, %v5001
        %v5090 = vpack.c.bf16 %v5004, %v5003
        %v5091 = vpack.c.bf16 %v5006, %v5005
        %v5092 = vpack.c.bf16 %v5008, %v5007
        %v5093 = vpack.c.bf16 %v5010, %v5009
        %v5094 = vpack.c.bf16 %v5012, %v5011
        %v5095 = vpack.c.bf16 %v5014, %v5013
        %v5096 = vpack.c.bf16 %v5016, %v5015
        %v5097 = vpack.c.bf16 %v5018, %v5017
        %v5098 = vpack.c.bf16 %v5020, %v5019
        %v5099 = vpack.c.bf16 %v5022, %v5021
        %v5100 = vpack.c.bf16 %v5024, %v5023
        %v5101 = vpack.c.bf16 %v5026, %v5025
        %v5102 = vpack.c.bf16 %v5028, %v5027
        %v5103 = vpack.c.bf16 %v5030, %v5029
        %v5104 = vpack.c.bf16 %v5032, %v5031
        %v5105 = vpack.c.bf16 %v5034, %v5033
        %v5106 = vpack.c.bf16 %v5036, %v5035
        %v5107 = vpack.c.bf16 %v5038, %v5037
        %v5108 = vpack.c.bf16 %v5040, %v5039
        %v5109 = vpack.c.bf16 %v5042, %v5041
        %v5110 = vpack.c.bf16 %v5044, %v5043
        %v5111 = vpack.c.bf16 %v5046, %v5045
        %v5112 = vpack.c.bf16 %v5048, %v5047
        %v5177 = vunpack.c.l.b16 %v5049
        %v5178 = vunpack.c.h.b16 %v5049
        %v5179 = vunpack.c.l.b16 %v5050
        %v5180 = vunpack.c.h.b16 %v5050
        %v5181 = vunpack.c.l.b16 %v5051
        %v5182 = vunpack.c.h.b16 %v5051
        %v5183 = vunpack.c.l.b16 %v5052
        %v5184 = vunpack.c.h.b16 %v5052
        %v5185 = vunpack.c.l.b16 %v5053
        %v5186 = vunpack.c.h.b16 %v5053
        %v5187 = vunpack.c.l.b16 %v5054
        %v5188 = vunpack.c.h.b16 %v5054
        %v5189 = vunpack.c.l.b16 %v5055
        %v5190 = vunpack.c.h.b16 %v5055
        %v5191 = vunpack.c.l.b16 %v5056
        %v5192 = vunpack.c.h.b16 %v5056
        %v5193 = vunpack.c.l.b16 %v5057
        %v5194 = vunpack.c.h.b16 %v5057
        %v5195 = vunpack.c.l.b16 %v5058
        %v5196 = vunpack.c.h.b16 %v5058
        %v5197 = vunpack.c.l.b16 %v5059
        %v5198 = vunpack.c.h.b16 %v5059
        %v5199 = vunpack.c.l.b16 %v5060
        %v5200 = vunpack.c.h.b16 %v5060
        %v5201 = vunpack.c.l.b16 %v5061
        %v5202 = vunpack.c.h.b16 %v5061
        %v5203 = vunpack.c.l.b16 %v5062
        %v5204 = vunpack.c.h.b16 %v5062
        %v5205 = vunpack.c.l.b16 %v5063
        %v5206 = vunpack.c.h.b16 %v5063
        %v5207 = vunpack.c.l.b16 %v5064
        %v5208 = vunpack.c.h.b16 %v5064
        %v5209 = vunpack.c.l.b16 %v5065
        %v5210 = vunpack.c.h.b16 %v5065
        %v5211 = vunpack.c.l.b16 %v5066
        %v5212 = vunpack.c.h.b16 %v5066
        %v5213 = vunpack.c.l.b16 %v5067
        %v5214 = vunpack.c.h.b16 %v5067
        %v5215 = vunpack.c.l.b16 %v5068
        %v5216 = vunpack.c.h.b16 %v5068
        %v5217 = vunpack.c.l.b16 %v5069
        %v5218 = vunpack.c.h.b16 %v5069
        %v5219 = vunpack.c.l.b16 %v5070
        %v5220 = vunpack.c.h.b16 %v5070
        %v5221 = vunpack.c.l.b16 %v5071
        %v5222 = vunpack.c.h.b16 %v5071
        %v5223 = vunpack.c.l.b16 %v5072
        %v5224 = vunpack.c.h.b16 %v5072
        %v5225 = vunpack.c.l.b16 %v5073
        %v5226 = vunpack.c.h.b16 %v5073
        %v5227 = vunpack.c.l.b16 %v5074
        %v5228 = vunpack.c.h.b16 %v5074
        %v5229 = vunpack.c.l.b16 %v5075
        %v5230 = vunpack.c.h.b16 %v5075
        %v5231 = vunpack.c.l.b16 %v5076
        %v5232 = vunpack.c.h.b16 %v5076
        %v5233 = vunpack.c.l.b16 %v5077
        %v5234 = vunpack.c.h.b16 %v5077
        %v5235 = vunpack.c.l.b16 %v5078
        %v5236 = vunpack.c.h.b16 %v5078
        %v5237 = vunpack.c.l.b16 %v5079
        %v5238 = vunpack.c.h.b16 %v5079
        %v5239 = vunpack.c.l.b16 %v5080
        %v5240 = vunpack.c.h.b16 %v5080
        %v5241 = vunpack.c.l.b16 %v5081
        %v5242 = vunpack.c.h.b16 %v5081
        %v5243 = vunpack.c.l.b16 %v5082
        %v5244 = vunpack.c.h.b16 %v5082
        %v5245 = vunpack.c.l.b16 %v5083
        %v5246 = vunpack.c.h.b16 %v5083
        %v5247 = vunpack.c.l.b16 %v5084
        %v5248 = vunpack.c.h.b16 %v5084
        %v5249 = vunpack.c.l.b16 %v5085
        %v5250 = vunpack.c.h.b16 %v5085
        %v5251 = vunpack.c.l.b16 %v5086
        %v5252 = vunpack.c.h.b16 %v5086
        %v5253 = vunpack.c.l.b16 %v5087
        %v5254 = vunpack.c.h.b16 %v5087
        %v5255 = vunpack.c.l.b16 %v5088
        %v5256 = vunpack.c.h.b16 %v5088
        %v5257 = vunpack.c.l.b16 %v5089
        %v5258 = vunpack.c.h.b16 %v5089
        %v5259 = vunpack.c.l.b16 %v5090
        %v5260 = vunpack.c.h.b16 %v5090
        %v5261 = vunpack.c.l.b16 %v5091
        %v5262 = vunpack.c.h.b16 %v5091
        %v5263 = vunpack.c.l.b16 %v5092
        %v5264 = vunpack.c.h.b16 %v5092
        %v5265 = vunpack.c.l.b16 %v5093
        %v5266 = vunpack.c.h.b16 %v5093
        %v5267 = vunpack.c.l.b16 %v5094
        %v5268 = vunpack.c.h.b16 %v5094
        %v5269 = vunpack.c.l.b16 %v5095
        %v5270 = vunpack.c.h.b16 %v5095
        %v5271 = vunpack.c.l.b16 %v5096
        %v5272 = vunpack.c.h.b16 %v5096
        %v5273 = vunpack.c.l.b16 %v5097
        %v5274 = vunpack.c.h.b16 %v5097
        %v5275 = vunpack.c.l.b16 %v5098
        %v5276 = vunpack.c.h.b16 %v5098
        %v5277 = vunpack.c.l.b16 %v5099
        %v5278 = vunpack.c.h.b16 %v5099
        %v5279 = vunpack.c.l.b16 %v5100
        %v5280 = vunpack.c.h.b16 %v5100
        %v5281 = vunpack.c.l.b16 %v5101
        %v5282 = vunpack.c.h.b16 %v5101
        %v5283 = vunpack.c.l.b16 %v5102
        %v5284 = vunpack.c.h.b16 %v5102
        %v5285 = vunpack.c.l.b16 %v5103
        %v5286 = vunpack.c.h.b16 %v5103
        %v5287 = vunpack.c.l.b16 %v5104
        %v5288 = vunpack.c.h.b16 %v5104
        %v5289 = vunpack.c.l.b16 %v5105
        %v5290 = vunpack.c.h.b16 %v5105
        %v5291 = vunpack.c.l.b16 %v5106
        %v5292 = vunpack.c.h.b16 %v5106
        %v5293 = vunpack.c.l.b16 %v5107
        %v5294 = vunpack.c.h.b16 %v5107
        %v5295 = vunpack.c.l.b16 %v5108
        %v5296 = vunpack.c.h.b16 %v5108
        %v5297 = vunpack.c.l.b16 %v5109
        %v5298 = vunpack.c.h.b16 %v5109
        %v5299 = vunpack.c.l.b16 %v5110
        %v5300 = vunpack.c.h.b16 %v5110
        %v5301 = vunpack.c.l.b16 %v5111
        %v5302 = vunpack.c.h.b16 %v5111
        %v5303 = vunpack.c.l.b16 %v5112
        %v5304 = vunpack.c.h.b16 %v5112
        %v5305 = vpack.c.b16 %v5177, %v5177
        %v5306 = vpack.c.b16 %v5178, %v5178
        %v5307 = vpack.c.b16 %v5179, %v5179
        %v5308 = vpack.c.b16 %v5180, %v5180
        %v5309 = vpack.c.b16 %v5181, %v5181
        %v5310 = vpack.c.b16 %v5182, %v5182
        %v5311 = vpack.c.b16 %v5183, %v5183
        %v5312 = vpack.c.b16 %v5184, %v5184
        %v5313 = vpack.c.b16 %v5185, %v5185
        %v5314 = vpack.c.b16 %v5186, %v5186
        %v5315 = vpack.c.b16 %v5187, %v5187
        %v5316 = vpack.c.b16 %v5188, %v5188
        %v5317 = vpack.c.b16 %v5189, %v5189
        %v5318 = vpack.c.b16 %v5190, %v5190
        %v5319 = vpack.c.b16 %v5191, %v5191
        %v5320 = vpack.c.b16 %v5192, %v5192
        %v5321 = vpack.c.b16 %v5193, %v5193
        %v5322 = vpack.c.b16 %v5194, %v5194
        %v5323 = vpack.c.b16 %v5195, %v5195
        %v5324 = vpack.c.b16 %v5196, %v5196
        %v5325 = vpack.c.b16 %v5197, %v5197
        %v5326 = vpack.c.b16 %v5198, %v5198
        %v5327 = vpack.c.b16 %v5199, %v5199
        %v5328 = vpack.c.b16 %v5200, %v5200
        %v5329 = vpack.c.b16 %v5201, %v5201
        %v5330 = vpack.c.b16 %v5202, %v5202
        %v5331 = vpack.c.b16 %v5203, %v5203
        %v5332 = vpack.c.b16 %v5204, %v5204
        %v5333 = vpack.c.b16 %v5205, %v5205
        %v5334 = vpack.c.b16 %v5206, %v5206
        %v5335 = vpack.c.b16 %v5207, %v5207
        %v5336 = vpack.c.b16 %v5208, %v5208
        %v5337 = vpack.c.b16 %v5209, %v5209
        %v5338 = vpack.c.b16 %v5210, %v5210
        %v5339 = vpack.c.b16 %v5211, %v5211
        %v5340 = vpack.c.b16 %v5212, %v5212
        %v5341 = vpack.c.b16 %v5213, %v5213
        %v5342 = vpack.c.b16 %v5214, %v5214
        %v5343 = vpack.c.b16 %v5215, %v5215
        %v5344 = vpack.c.b16 %v5216, %v5216
        %v5345 = vpack.c.b16 %v5217, %v5217
        %v5346 = vpack.c.b16 %v5218, %v5218
        %v5347 = vpack.c.b16 %v5219, %v5219
        %v5348 = vpack.c.b16 %v5220, %v5220
        %v5349 = vpack.c.b16 %v5221, %v5221
        %v5350 = vpack.c.b16 %v5222, %v5222
        %v5351 = vpack.c.b16 %v5223, %v5223
        %v5352 = vpack.c.b16 %v5224, %v5224
        %v5353 = vpack.c.b16 %v5225, %v5225
        %v5354 = vpack.c.b16 %v5226, %v5226
        %v5355 = vpack.c.b16 %v5227, %v5227
        %v5356 = vpack.c.b16 %v5228, %v5228
        %v5357 = vpack.c.b16 %v5229, %v5229
        %v5358 = vpack.c.b16 %v5230, %v5230
        %v5359 = vpack.c.b16 %v5231, %v5231
        %v5360 = vpack.c.b16 %v5232, %v5232
        %v5361 = vpack.c.b16 %v5233, %v5233
        %v5362 = vpack.c.b16 %v5234, %v5234
        %v5363 = vpack.c.b16 %v5235, %v5235
        %v5364 = vpack.c.b16 %v5236, %v5236
        %v5365 = vpack.c.b16 %v5237, %v5237
        %v5366 = vpack.c.b16 %v5238, %v5238
        %v5367 = vpack.c.b16 %v5239, %v5239
        %v5368 = vpack.c.b16 %v5240, %v5240
        %v5369 = vpack.c.b16 %v5241, %v5241
        %v5370 = vpack.c.b16 %v5242, %v5242
        %v5371 = vpack.c.b16 %v5243, %v5243
        %v5372 = vpack.c.b16 %v5244, %v5244
        %v5373 = vpack.c.b16 %v5245, %v5245
        %v5374 = vpack.c.b16 %v5246, %v5246
        %v5375 = vpack.c.b16 %v5247, %v5247
        %v5376 = vpack.c.b16 %v5248, %v5248
        %v5377 = vpack.c.b16 %v5249, %v5249
        %v5378 = vpack.c.b16 %v5250, %v5250
        %v5379 = vpack.c.b16 %v5251, %v5251
        %v5380 = vpack.c.b16 %v5252, %v5252
        %v5381 = vpack.c.b16 %v5253, %v5253
        %v5382 = vpack.c.b16 %v5254, %v5254
        %v5383 = vpack.c.b16 %v5255, %v5255
        %v5384 = vpack.c.b16 %v5256, %v5256
        %v5385 = vpack.c.b16 %v5257, %v5257
        %v5386 = vpack.c.b16 %v5258, %v5258
        %v5387 = vpack.c.b16 %v5259, %v5259
        %v5388 = vpack.c.b16 %v5260, %v5260
        %v5389 = vpack.c.b16 %v5261, %v5261
        %v5390 = vpack.c.b16 %v5262, %v5262
        %v5391 = vpack.c.b16 %v5263, %v5263
        %v5392 = vpack.c.b16 %v5264, %v5264
        %v5393 = vpack.c.b16 %v5265, %v5265
        %v5394 = vpack.c.b16 %v5266, %v5266
        %v5395 = vpack.c.b16 %v5267, %v5267
        %v5396 = vpack.c.b16 %v5268, %v5268
        %v5397 = vpack.c.b16 %v5269, %v5269
        %v5398 = vpack.c.b16 %v5270, %v5270
        %v5399 = vpack.c.b16 %v5271, %v5271
        %v5400 = vpack.c.b16 %v5272, %v5272
        %v5401 = vpack.c.b16 %v5273, %v5273
        %v5402 = vpack.c.b16 %v5274, %v5274
        %v5403 = vpack.c.b16 %v5275, %v5275
        %v5404 = vpack.c.b16 %v5276, %v5276
        %v5405 = vpack.c.b16 %v5277, %v5277
        %v5406 = vpack.c.b16 %v5278, %v5278
        %v5407 = vpack.c.b16 %v5279, %v5279
        %v5408 = vpack.c.b16 %v5280, %v5280
        %v5409 = vpack.c.b16 %v5281, %v5281
        %v5410 = vpack.c.b16 %v5282, %v5282
        %v5411 = vpack.c.b16 %v5283, %v5283
        %v5412 = vpack.c.b16 %v5284, %v5284
        %v5413 = vpack.c.b16 %v5285, %v5285
        %v5414 = vpack.c.b16 %v5286, %v5286
        %v5415 = vpack.c.b16 %v5287, %v5287
        %v5416 = vpack.c.b16 %v5288, %v5288
        %v5417 = vpack.c.b16 %v5289, %v5289
        %v5418 = vpack.c.b16 %v5290, %v5290
        %v5419 = vpack.c.b16 %v5291, %v5291
        %v5420 = vpack.c.b16 %v5292, %v5292
        %v5421 = vpack.c.b16 %v5293, %v5293
        %v5422 = vpack.c.b16 %v5294, %v5294
        %v5423 = vpack.c.b16 %v5295, %v5295
        %v5424 = vpack.c.b16 %v5296, %v5296
        %v5425 = vpack.c.b16 %v5297, %v5297
        %v5426 = vpack.c.b16 %v5298, %v5298
        %v5427 = vpack.c.b16 %v5299, %v5299
        %v5428 = vpack.c.b16 %v5300, %v5300
        %v5429 = vpack.c.b16 %v5301, %v5301
        %v5430 = vpack.c.b16 %v5302, %v5302
        %v5431 = vpack.c.b16 %v5303, %v5303
        %v5432 = vpack.c.b16 %v5304, %v5304
        %vm5561 = vcmask 519168
        %5562 = vst.msk [vmem:[%s215] sm:$0xf] %vm5561, %v5305
        %5563 = vst.msk [vmem:[%s215 + $0x4] sm:$0xf] %vm5561, %v5306
        %5564 = vst.msk [vmem:[%s215 + $0x8] sm:$0xf] %vm5561, %v5307
        %5565 = vst.msk [vmem:[%s215 + $0xc] sm:$0xf] %vm5561, %v5308
        %5566 = vst.msk [vmem:[%s215 + $0x20] sm:$0xf] %vm5561, %v5309
        %5567 = vst.msk [vmem:[%s215 + $0x24] sm:$0xf] %vm5561, %v5310
        %5568 = vst.msk [vmem:[%s215 + $0x28] sm:$0xf] %vm5561, %v5311
        %5569 = vst.msk [vmem:[%s215 + $0x2c] sm:$0xf] %vm5561, %v5312
        %5570 = vst.msk [vmem:[%s215 + $0x40] sm:$0xf] %vm5561, %v5313
        %5571 = vst.msk [vmem:[%s215 + $0x44] sm:$0xf] %vm5561, %v5314
        %5572 = vst.msk [vmem:[%s215 + $0x48] sm:$0xf] %vm5561, %v5315
        %5573 = vst.msk [vmem:[%s215 + $0x4c] sm:$0xf] %vm5561, %v5316
        %5574 = vst.msk [vmem:[%s215 + $0x60] sm:$0xf] %vm5561, %v5317
        %5575 = vst.msk [vmem:[%s215 + $0x64] sm:$0xf] %vm5561, %v5318
        %5576 = vst.msk [vmem:[%s215 + $0x68] sm:$0xf] %vm5561, %v5319
        %5577 = vst.msk [vmem:[%s215 + $0x6c] sm:$0xf] %vm5561, %v5320
        %5578 = vst.msk [vmem:[%s215 + $0x80] sm:$0xf] %vm5561, %v5321
        %5579 = vst.msk [vmem:[%s215 + $0x84] sm:$0xf] %vm5561, %v5322
        %5580 = vst.msk [vmem:[%s215 + $0x88] sm:$0xf] %vm5561, %v5323
        %5581 = vst.msk [vmem:[%s215 + $0x8c] sm:$0xf] %vm5561, %v5324
        %5582 = vst.msk [vmem:[%s215 + $0xa0] sm:$0xf] %vm5561, %v5325
        %5583 = vst.msk [vmem:[%s215 + $0xa4] sm:$0xf] %vm5561, %v5326
        %5584 = vst.msk [vmem:[%s215 + $0xa8] sm:$0xf] %vm5561, %v5327
        %5585 = vst.msk [vmem:[%s215 + $0xac] sm:$0xf] %vm5561, %v5328
        %5586 = vst.msk [vmem:[%s215 + $0xc0] sm:$0xf] %vm5561, %v5329
        %5587 = vst.msk [vmem:[%s215 + $0xc4] sm:$0xf] %vm5561, %v5330
        %5588 = vst.msk [vmem:[%s215 + $0xc8] sm:$0xf] %vm5561, %v5331
        %5589 = vst.msk [vmem:[%s215 + $0xcc] sm:$0xf] %vm5561, %v5332
        %5590 = vst.msk [vmem:[%s215 + $0xe0] sm:$0xf] %vm5561, %v5333
        %5591 = vst.msk [vmem:[%s215 + $0xe4] sm:$0xf] %vm5561, %v5334
        %5592 = vst.msk [vmem:[%s215 + $0xe8] sm:$0xf] %vm5561, %v5335
        %5593 = vst.msk [vmem:[%s215 + $0xec] sm:$0xf] %vm5561, %v5336
        %5594 = vst.msk [vmem:[%s215 + $0x100] sm:$0xf] %vm5561, %v5337
        %5595 = vst.msk [vmem:[%s215 + $0x104] sm:$0xf] %vm5561, %v5338
        %5596 = vst.msk [vmem:[%s215 + $0x108] sm:$0xf] %vm5561, %v5339
        %5597 = vst.msk [vmem:[%s215 + $0x10c] sm:$0xf] %vm5561, %v5340
        %5598 = vst.msk [vmem:[%s215 + $0x120] sm:$0xf] %vm5561, %v5341
        %5599 = vst.msk [vmem:[%s215 + $0x124] sm:$0xf] %vm5561, %v5342
        %5600 = vst.msk [vmem:[%s215 + $0x128] sm:$0xf] %vm5561, %v5343
        %5601 = vst.msk [vmem:[%s215 + $0x12c] sm:$0xf] %vm5561, %v5344
        %5602 = vst.msk [vmem:[%s215 + $0x140] sm:$0xf] %vm5561, %v5345
        %5603 = vst.msk [vmem:[%s215 + $0x144] sm:$0xf] %vm5561, %v5346
        %5604 = vst.msk [vmem:[%s215 + $0x148] sm:$0xf] %vm5561, %v5347
        %5605 = vst.msk [vmem:[%s215 + $0x14c] sm:$0xf] %vm5561, %v5348
        %5606 = vst.msk [vmem:[%s215 + $0x160] sm:$0xf] %vm5561, %v5349
        %5607 = vst.msk [vmem:[%s215 + $0x164] sm:$0xf] %vm5561, %v5350
        %5608 = vst.msk [vmem:[%s215 + $0x168] sm:$0xf] %vm5561, %v5351
        %5609 = vst.msk [vmem:[%s215 + $0x16c] sm:$0xf] %vm5561, %v5352
        %5610 = vst.msk [vmem:[%s215 + $0x180] sm:$0xf] %vm5561, %v5353
        %5611 = vst.msk [vmem:[%s215 + $0x184] sm:$0xf] %vm5561, %v5354
        %5612 = vst.msk [vmem:[%s215 + $0x188] sm:$0xf] %vm5561, %v5355
        %5613 = vst.msk [vmem:[%s215 + $0x18c] sm:$0xf] %vm5561, %v5356
        %5614 = vst.msk [vmem:[%s215 + $0x1a0] sm:$0xf] %vm5561, %v5357
        %5615 = vst.msk [vmem:[%s215 + $0x1a4] sm:$0xf] %vm5561, %v5358
        %5616 = vst.msk [vmem:[%s215 + $0x1a8] sm:$0xf] %vm5561, %v5359
        %5617 = vst.msk [vmem:[%s215 + $0x1ac] sm:$0xf] %vm5561, %v5360
        %5618 = vst.msk [vmem:[%s215 + $0x1c0] sm:$0xf] %vm5561, %v5361
        %5619 = vst.msk [vmem:[%s215 + $0x1c4] sm:$0xf] %vm5561, %v5362
        %5620 = vst.msk [vmem:[%s215 + $0x1c8] sm:$0xf] %vm5561, %v5363
        %5621 = vst.msk [vmem:[%s215 + $0x1cc] sm:$0xf] %vm5561, %v5364
        %5622 = vst.msk [vmem:[%s215 + $0x1e0] sm:$0xf] %vm5561, %v5365
        %5623 = vst.msk [vmem:[%s215 + $0x1e4] sm:$0xf] %vm5561, %v5366
        %5624 = vst.msk [vmem:[%s215 + $0x1e8] sm:$0xf] %vm5561, %v5367
        %5625 = vst.msk [vmem:[%s215 + $0x1ec] sm:$0xf] %vm5561, %v5368
        %5626 = vst.msk [vmem:[%s215 + $0x200] sm:$0xf] %vm5561, %v5369
        %5627 = vst.msk [vmem:[%s215 + $0x204] sm:$0xf] %vm5561, %v5370
        %5628 = vst.msk [vmem:[%s215 + $0x208] sm:$0xf] %vm5561, %v5371
        %5629 = vst.msk [vmem:[%s215 + $0x20c] sm:$0xf] %vm5561, %v5372
        %5630 = vst.msk [vmem:[%s215 + $0x220] sm:$0xf] %vm5561, %v5373
        %5631 = vst.msk [vmem:[%s215 + $0x224] sm:$0xf] %vm5561, %v5374
        %5632 = vst.msk [vmem:[%s215 + $0x228] sm:$0xf] %vm5561, %v5375
        %5633 = vst.msk [vmem:[%s215 + $0x22c] sm:$0xf] %vm5561, %v5376
        %5634 = vst.msk [vmem:[%s215 + $0x240] sm:$0xf] %vm5561, %v5377
        %5635 = vst.msk [vmem:[%s215 + $0x244] sm:$0xf] %vm5561, %v5378
        %5636 = vst.msk [vmem:[%s215 + $0x248] sm:$0xf] %vm5561, %v5379
        %5637 = vst.msk [vmem:[%s215 + $0x24c] sm:$0xf] %vm5561, %v5380
        %5638 = vst.msk [vmem:[%s215 + $0x260] sm:$0xf] %vm5561, %v5381
        %5639 = vst.msk [vmem:[%s215 + $0x264] sm:$0xf] %vm5561, %v5382
        %5640 = vst.msk [vmem:[%s215 + $0x268] sm:$0xf] %vm5561, %v5383
        %5641 = vst.msk [vmem:[%s215 + $0x26c] sm:$0xf] %vm5561, %v5384
        %5642 = vst.msk [vmem:[%s215 + $0x280] sm:$0xf] %vm5561, %v5385
        %5643 = vst.msk [vmem:[%s215 + $0x284] sm:$0xf] %vm5561, %v5386
        %5644 = vst.msk [vmem:[%s215 + $0x288] sm:$0xf] %vm5561, %v5387
        %5645 = vst.msk [vmem:[%s215 + $0x28c] sm:$0xf] %vm5561, %v5388
        %5646 = vst.msk [vmem:[%s215 + $0x2a0] sm:$0xf] %vm5561, %v5389
        %5647 = vst.msk [vmem:[%s215 + $0x2a4] sm:$0xf] %vm5561, %v5390
        %5648 = vst.msk [vmem:[%s215 + $0x2a8] sm:$0xf] %vm5561, %v5391
        %5649 = vst.msk [vmem:[%s215 + $0x2ac] sm:$0xf] %vm5561, %v5392
        %5650 = vst.msk [vmem:[%s215 + $0x2c0] sm:$0xf] %vm5561, %v5393
        %5651 = vst.msk [vmem:[%s215 + $0x2c4] sm:$0xf] %vm5561, %v5394
        %5652 = vst.msk [vmem:[%s215 + $0x2c8] sm:$0xf] %vm5561, %v5395
        %5653 = vst.msk [vmem:[%s215 + $0x2cc] sm:$0xf] %vm5561, %v5396
        %5654 = vst.msk [vmem:[%s215 + $0x2e0] sm:$0xf] %vm5561, %v5397
        %5655 = vst.msk [vmem:[%s215 + $0x2e4] sm:$0xf] %vm5561, %v5398
        %5656 = vst.msk [vmem:[%s215 + $0x2e8] sm:$0xf] %vm5561, %v5399
        %5657 = vst.msk [vmem:[%s215 + $0x2ec] sm:$0xf] %vm5561, %v5400
        %5658 = vst.msk [vmem:[%s215 + $0x300] sm:$0xf] %vm5561, %v5401
        %5659 = vst.msk [vmem:[%s215 + $0x304] sm:$0xf] %vm5561, %v5402
        %5660 = vst.msk [vmem:[%s215 + $0x308] sm:$0xf] %vm5561, %v5403
        %5661 = vst.msk [vmem:[%s215 + $0x30c] sm:$0xf] %vm5561, %v5404
        %5662 = vst.msk [vmem:[%s215 + $0x320] sm:$0xf] %vm5561, %v5405
        %5663 = vst.msk [vmem:[%s215 + $0x324] sm:$0xf] %vm5561, %v5406
        %5664 = vst.msk [vmem:[%s215 + $0x328] sm:$0xf] %vm5561, %v5407
        %5665 = vst.msk [vmem:[%s215 + $0x32c] sm:$0xf] %vm5561, %v5408
        %5666 = vst.msk [vmem:[%s215 + $0x340] sm:$0xf] %vm5561, %v5409
        %5667 = vst.msk [vmem:[%s215 + $0x344] sm:$0xf] %vm5561, %v5410
        %5668 = vst.msk [vmem:[%s215 + $0x348] sm:$0xf] %vm5561, %v5411
        %5669 = vst.msk [vmem:[%s215 + $0x34c] sm:$0xf] %vm5561, %v5412
        %5670 = vst.msk [vmem:[%s215 + $0x360] sm:$0xf] %vm5561, %v5413
        %5671 = vst.msk [vmem:[%s215 + $0x364] sm:$0xf] %vm5561, %v5414
        %5672 = vst.msk [vmem:[%s215 + $0x368] sm:$0xf] %vm5561, %v5415
        %5673 = vst.msk [vmem:[%s215 + $0x36c] sm:$0xf] %vm5561, %v5416
        %5674 = vst.msk [vmem:[%s215 + $0x380] sm:$0xf] %vm5561, %v5417
        %5675 = vst.msk [vmem:[%s215 + $0x384] sm:$0xf] %vm5561, %v5418
        %5676 = vst.msk [vmem:[%s215 + $0x388] sm:$0xf] %vm5561, %v5419
        %5677 = vst.msk [vmem:[%s215 + $0x38c] sm:$0xf] %vm5561, %v5420
        %5678 = vst.msk [vmem:[%s215 + $0x3a0] sm:$0xf] %vm5561, %v5421
        %5679 = vst.msk [vmem:[%s215 + $0x3a4] sm:$0xf] %vm5561, %v5422
        %5680 = vst.msk [vmem:[%s215 + $0x3a8] sm:$0xf] %vm5561, %v5423
        %5681 = vst.msk [vmem:[%s215 + $0x3ac] sm:$0xf] %vm5561, %v5424
        %5682 = vst.msk [vmem:[%s215 + $0x3c0] sm:$0xf] %vm5561, %v5425
        %5683 = vst.msk [vmem:[%s215 + $0x3c4] sm:$0xf] %vm5561, %v5426
        %5684 = vst.msk [vmem:[%s215 + $0x3c8] sm:$0xf] %vm5561, %v5427
        %5685 = vst.msk [vmem:[%s215 + $0x3cc] sm:$0xf] %vm5561, %v5428
        %5686 = vst.msk [vmem:[%s215 + $0x3e0] sm:$0xf] %vm5561, %v5429
        %5687 = vst.msk [vmem:[%s215 + $0x3e4] sm:$0xf] %vm5561, %v5430
        %5688 = vst.msk [vmem:[%s215 + $0x3e8] sm:$0xf] %vm5561, %v5431
        %5689 = vst.msk [vmem:[%s215 + $0x3ec] sm:$0xf] %vm5561, %v5432
        %5818 = vrot.lane.b32.xlu0 %v682, 64
        %v5819 = vpop.permute.xlu0 %5818
        %5820 = vrot.lane.b32.xlu0 %v685, 64
        %v5821 = vpop.permute.xlu0 %5820
        %5822 = vrot.lane.b32.xlu0 %v690, 64
        %v5823 = vpop.permute.xlu0 %5822
        %5824 = vrot.lane.b32.xlu0 %v693, 64
        %v5825 = vpop.permute.xlu0 %5824
        %5826 = vrot.lane.b32.xlu0 %v698, 64
        %v5827 = vpop.permute.xlu0 %5826
        %5828 = vrot.lane.b32.xlu0 %v701, 64
        %v5829 = vpop.permute.xlu0 %5828
        %5830 = vrot.lane.b32.xlu0 %v706, 64
        %v5831 = vpop.permute.xlu0 %5830
        %5832 = vrot.lane.b32.xlu0 %v709, 64
        %v5833 = vpop.permute.xlu0 %5832
        %5834 = vrot.lane.b32.xlu0 %v714, 64
        %v5835 = vpop.permute.xlu0 %5834
        %5836 = vrot.lane.b32.xlu0 %v717, 64
        %v5837 = vpop.permute.xlu0 %5836
        %5838 = vrot.lane.b32.xlu0 %v722, 64
        %v5839 = vpop.permute.xlu0 %5838
        %5840 = vrot.lane.b32.xlu0 %v725, 64
        %v5841 = vpop.permute.xlu0 %5840
        %5842 = vrot.lane.b32.xlu0 %v730, 64
        %v5843 = vpop.permute.xlu0 %5842
        %5844 = vrot.lane.b32.xlu0 %v733, 64
        %v5845 = vpop.permute.xlu0 %5844
        %5846 = vrot.lane.b32.xlu0 %v738, 64
        %v5847 = vpop.permute.xlu0 %5846
        %5848 = vrot.lane.b32.xlu0 %v741, 64
        %v5849 = vpop.permute.xlu0 %5848
        %5850 = vrot.lane.b32.xlu0 %v746, 64
        %v5851 = vpop.permute.xlu0 %5850
        %5852 = vrot.lane.b32.xlu0 %v749, 64
        %v5853 = vpop.permute.xlu0 %5852
        %5854 = vrot.lane.b32.xlu0 %v754, 64
        %v5855 = vpop.permute.xlu0 %5854
        %5856 = vrot.lane.b32.xlu0 %v757, 64
        %v5857 = vpop.permute.xlu0 %5856
        %5858 = vrot.lane.b32.xlu0 %v762, 64
        %v5859 = vpop.permute.xlu0 %5858
        %5860 = vrot.lane.b32.xlu0 %v765, 64
        %v5861 = vpop.permute.xlu0 %5860
        %5862 = vrot.lane.b32.xlu0 %v770, 64
        %v5863 = vpop.permute.xlu0 %5862
        %5864 = vrot.lane.b32.xlu0 %v773, 64
        %v5865 = vpop.permute.xlu0 %5864
        %5866 = vrot.lane.b32.xlu0 %v778, 64
        %v5867 = vpop.permute.xlu0 %5866
        %5868 = vrot.lane.b32.xlu0 %v781, 64
        %v5869 = vpop.permute.xlu0 %5868
        %5870 = vrot.lane.b32.xlu0 %v786, 64
        %v5871 = vpop.permute.xlu0 %5870
        %5872 = vrot.lane.b32.xlu0 %v789, 64
        %v5873 = vpop.permute.xlu0 %5872
        %5874 = vrot.lane.b32.xlu0 %v794, 64
        %v5875 = vpop.permute.xlu0 %5874
        %5876 = vrot.lane.b32.xlu0 %v797, 64
        %v5877 = vpop.permute.xlu0 %5876
        %5878 = vrot.lane.b32.xlu0 %v802, 64
        %v5879 = vpop.permute.xlu0 %5878
        %5880 = vrot.lane.b32.xlu0 %v805, 64
        %v5881 = vpop.permute.xlu0 %5880
        %5882 = vrot.lane.b32.xlu0 %v810, 64
        %v5883 = vpop.permute.xlu0 %5882
        %5884 = vrot.lane.b32.xlu0 %v813, 64
        %v5885 = vpop.permute.xlu0 %5884
        %5886 = vrot.lane.b32.xlu0 %v818, 64
        %v5887 = vpop.permute.xlu0 %5886
        %5888 = vrot.lane.b32.xlu0 %v821, 64
        %v5889 = vpop.permute.xlu0 %5888
        %5890 = vrot.lane.b32.xlu0 %v826, 64
        %v5891 = vpop.permute.xlu0 %5890
        %5892 = vrot.lane.b32.xlu0 %v829, 64
        %v5893 = vpop.permute.xlu0 %5892
        %5894 = vrot.lane.b32.xlu0 %v834, 64
        %v5895 = vpop.permute.xlu0 %5894
        %5896 = vrot.lane.b32.xlu0 %v837, 64
        %v5897 = vpop.permute.xlu0 %5896
        %5898 = vrot.lane.b32.xlu0 %v842, 64
        %v5899 = vpop.permute.xlu0 %5898
        %5900 = vrot.lane.b32.xlu0 %v845, 64
        %v5901 = vpop.permute.xlu0 %5900
        %5902 = vrot.lane.b32.xlu0 %v850, 64
        %v5903 = vpop.permute.xlu0 %5902
        %5904 = vrot.lane.b32.xlu0 %v853, 64
        %v5905 = vpop.permute.xlu0 %5904
        %5906 = vrot.lane.b32.xlu0 %v858, 64
        %v5907 = vpop.permute.xlu0 %5906
        %5908 = vrot.lane.b32.xlu0 %v861, 64
        %v5909 = vpop.permute.xlu0 %5908
        %5910 = vrot.lane.b32.xlu0 %v866, 64
        %v5911 = vpop.permute.xlu0 %5910
        %5912 = vrot.lane.b32.xlu0 %v869, 64
        %v5913 = vpop.permute.xlu0 %5912
        %5914 = vrot.lane.b32.xlu0 %v874, 64
        %v5915 = vpop.permute.xlu0 %5914
        %5916 = vrot.lane.b32.xlu0 %v877, 64
        %v5917 = vpop.permute.xlu0 %5916
        %5918 = vrot.lane.b32.xlu0 %v882, 64
        %v5919 = vpop.permute.xlu0 %5918
        %5920 = vrot.lane.b32.xlu0 %v885, 64
        %v5921 = vpop.permute.xlu0 %5920
        %5922 = vrot.lane.b32.xlu0 %v890, 64
        %v5923 = vpop.permute.xlu0 %5922
        %5924 = vrot.lane.b32.xlu0 %v893, 64
        %v5925 = vpop.permute.xlu0 %5924
        %5926 = vrot.lane.b32.xlu0 %v898, 64
        %v5927 = vpop.permute.xlu0 %5926
        %5928 = vrot.lane.b32.xlu0 %v901, 64
        %v5929 = vpop.permute.xlu0 %5928
        %5930 = vrot.lane.b32.xlu0 %v906, 64
        %v5931 = vpop.permute.xlu0 %5930
        %5932 = vrot.lane.b32.xlu0 %v909, 64
        %v5933 = vpop.permute.xlu0 %5932
        %5934 = vrot.lane.b32.xlu0 %v914, 64
        %v5935 = vpop.permute.xlu0 %5934
        %5936 = vrot.lane.b32.xlu0 %v917, 64
        %v5937 = vpop.permute.xlu0 %5936
        %5938 = vrot.lane.b32.xlu0 %v922, 64
        %v5939 = vpop.permute.xlu0 %5938
        %5940 = vrot.lane.b32.xlu0 %v925, 64
        %v5941 = vpop.permute.xlu0 %5940
        %5942 = vrot.lane.b32.xlu0 %v930, 64
        %v5943 = vpop.permute.xlu0 %5942
        %5944 = vrot.lane.b32.xlu0 %v933, 64
        %v5945 = vpop.permute.xlu0 %5944
        %5946 = vrot.lane.b32.xlu0 %v938, 64
        %v5947 = vpop.permute.xlu0 %5946
        %5948 = vrot.lane.b32.xlu0 %v941, 64
        %v5949 = vpop.permute.xlu0 %5948
        %5950 = vrot.lane.b32.xlu0 %v946, 64
        %v5951 = vpop.permute.xlu0 %5950
        %5952 = vrot.lane.b32.xlu0 %v949, 64
        %v5953 = vpop.permute.xlu0 %5952
        %5954 = vrot.lane.b32.xlu0 %v954, 64
        %v5955 = vpop.permute.xlu0 %5954
        %5956 = vrot.lane.b32.xlu0 %v957, 64
        %v5957 = vpop.permute.xlu0 %5956
        %5958 = vrot.lane.b32.xlu0 %v962, 64
        %v5959 = vpop.permute.xlu0 %5958
        %5960 = vrot.lane.b32.xlu0 %v965, 64
        %v5961 = vpop.permute.xlu0 %5960
        %5962 = vrot.lane.b32.xlu0 %v970, 64
        %v5963 = vpop.permute.xlu0 %5962
        %5964 = vrot.lane.b32.xlu0 %v973, 64
        %v5965 = vpop.permute.xlu0 %5964
        %5966 = vrot.lane.b32.xlu0 %v978, 64
        %v5967 = vpop.permute.xlu0 %5966
        %5968 = vrot.lane.b32.xlu0 %v981, 64
        %v5969 = vpop.permute.xlu0 %5968
        %5970 = vrot.lane.b32.xlu0 %v986, 64
        %v5971 = vpop.permute.xlu0 %5970
        %5972 = vrot.lane.b32.xlu0 %v989, 64
        %v5973 = vpop.permute.xlu0 %5972
        %5974 = vrot.lane.b32.xlu0 %v994, 64
        %v5975 = vpop.permute.xlu0 %5974
        %5976 = vrot.lane.b32.xlu0 %v997, 64
        %v5977 = vpop.permute.xlu0 %5976
        %5978 = vrot.lane.b32.xlu0 %v1002, 64
        %v5979 = vpop.permute.xlu0 %5978
        %5980 = vrot.lane.b32.xlu0 %v1005, 64
        %v5981 = vpop.permute.xlu0 %5980
        %5982 = vrot.lane.b32.xlu0 %v1010, 64
        %v5983 = vpop.permute.xlu0 %5982
        %5984 = vrot.lane.b32.xlu0 %v1013, 64
        %v5985 = vpop.permute.xlu0 %5984
        %5986 = vrot.lane.b32.xlu0 %v1018, 64
        %v5987 = vpop.permute.xlu0 %5986
        %5988 = vrot.lane.b32.xlu0 %v1021, 64
        %v5989 = vpop.permute.xlu0 %5988
        %5990 = vrot.lane.b32.xlu0 %v1026, 64
        %v5991 = vpop.permute.xlu0 %5990
        %5992 = vrot.lane.b32.xlu0 %v1029, 64
        %v5993 = vpop.permute.xlu0 %5992
        %5994 = vrot.lane.b32.xlu0 %v1034, 64
        %v5995 = vpop.permute.xlu0 %5994
        %5996 = vrot.lane.b32.xlu0 %v1037, 64
        %v5997 = vpop.permute.xlu0 %5996
        %5998 = vrot.lane.b32.xlu0 %v1042, 64
        %v5999 = vpop.permute.xlu0 %5998
        %6000 = vrot.lane.b32.xlu0 %v1045, 64
        %v6001 = vpop.permute.xlu0 %6000
        %6002 = vrot.lane.b32.xlu0 %v1050, 64
        %v6003 = vpop.permute.xlu0 %6002
        %6004 = vrot.lane.b32.xlu0 %v1053, 64
        %v6005 = vpop.permute.xlu0 %6004
        %6006 = vrot.lane.b32.xlu0 %v1058, 64
        %v6007 = vpop.permute.xlu0 %6006
        %6008 = vrot.lane.b32.xlu0 %v1061, 64
        %v6009 = vpop.permute.xlu0 %6008
        %6010 = vrot.lane.b32.xlu0 %v1066, 64
        %v6011 = vpop.permute.xlu0 %6010
        %6012 = vrot.lane.b32.xlu0 %v1069, 64
        %v6013 = vpop.permute.xlu0 %6012
        %6014 = vrot.lane.b32.xlu0 %v1074, 64
        %v6015 = vpop.permute.xlu0 %6014
        %6016 = vrot.lane.b32.xlu0 %v1077, 64
        %v6017 = vpop.permute.xlu0 %6016
        %6018 = vrot.lane.b32.xlu0 %v1082, 64
        %v6019 = vpop.permute.xlu0 %6018
        %6020 = vrot.lane.b32.xlu0 %v1085, 64
        %v6021 = vpop.permute.xlu0 %6020
        %6022 = vrot.lane.b32.xlu0 %v1090, 64
        %v6023 = vpop.permute.xlu0 %6022
        %6024 = vrot.lane.b32.xlu0 %v1093, 64
        %v6025 = vpop.permute.xlu0 %6024
        %6026 = vrot.lane.b32.xlu0 %v1098, 64
        %v6027 = vpop.permute.xlu0 %6026
        %6028 = vrot.lane.b32.xlu0 %v1101, 64
        %v6029 = vpop.permute.xlu0 %6028
        %6030 = vrot.lane.b32.xlu0 %v1106, 64
        %v6031 = vpop.permute.xlu0 %6030
        %6032 = vrot.lane.b32.xlu0 %v1109, 64
        %v6033 = vpop.permute.xlu0 %6032
        %6034 = vrot.lane.b32.xlu0 %v1114, 64
        %v6035 = vpop.permute.xlu0 %6034
        %6036 = vrot.lane.b32.xlu0 %v1117, 64
        %v6037 = vpop.permute.xlu0 %6036
        %6038 = vrot.lane.b32.xlu0 %v1122, 64
        %v6039 = vpop.permute.xlu0 %6038
        %6040 = vrot.lane.b32.xlu0 %v1125, 64
        %v6041 = vpop.permute.xlu0 %6040
        %6042 = vrot.lane.b32.xlu0 %v1130, 64
        %v6043 = vpop.permute.xlu0 %6042
        %6044 = vrot.lane.b32.xlu0 %v1133, 64
        %v6045 = vpop.permute.xlu0 %6044
        %6046 = vrot.lane.b32.xlu0 %v1138, 64
        %v6047 = vpop.permute.xlu0 %6046
        %6048 = vrot.lane.b32.xlu0 %v1141, 64
        %v6049 = vpop.permute.xlu0 %6048
        %6050 = vrot.lane.b32.xlu0 %v1146, 64
        %v6051 = vpop.permute.xlu0 %6050
        %6052 = vrot.lane.b32.xlu0 %v1149, 64
        %v6053 = vpop.permute.xlu0 %6052
        %6054 = vrot.lane.b32.xlu0 %v1154, 64
        %v6055 = vpop.permute.xlu0 %6054
        %6056 = vrot.lane.b32.xlu0 %v1157, 64
        %v6057 = vpop.permute.xlu0 %6056
        %6058 = vrot.lane.b32.xlu0 %v1162, 64
        %v6059 = vpop.permute.xlu0 %6058
        %6060 = vrot.lane.b32.xlu0 %v1165, 64
        %v6061 = vpop.permute.xlu0 %6060
        %6062 = vrot.lane.b32.xlu0 %v1170, 64
        %v6063 = vpop.permute.xlu0 %6062
        %6064 = vrot.lane.b32.xlu0 %v1173, 64
        %v6065 = vpop.permute.xlu0 %6064
        %6066 = vrot.lane.b32.xlu0 %v1178, 64
        %v6067 = vpop.permute.xlu0 %6066
        %6068 = vrot.lane.b32.xlu0 %v1181, 64
        %v6069 = vpop.permute.xlu0 %6068
        %6070 = vrot.lane.b32.xlu0 %v1186, 64
        %v6071 = vpop.permute.xlu0 %6070
        %6072 = vrot.lane.b32.xlu0 %v1189, 64
        %v6073 = vpop.permute.xlu0 %6072
        %v6202 = vsel %vm1196, %v5819, 0.0
        %v6203 = vsel %vm1196, %v5821, 0.0
        %v6204 = vsel %vm1196, %v5823, 0.0
        %v6205 = vsel %vm1196, %v5825, 0.0
        %v6206 = vsel %vm1196, %v5827, 0.0
        %v6207 = vsel %vm1196, %v5829, 0.0
        %v6208 = vsel %vm1196, %v5831, 0.0
        %v6209 = vsel %vm1196, %v5833, 0.0
        %v6210 = vsel %vm1196, %v5835, 0.0
        %v6211 = vsel %vm1196, %v5837, 0.0
        %v6212 = vsel %vm1196, %v5839, 0.0
        %v6213 = vsel %vm1196, %v5841, 0.0
        %v6214 = vsel %vm1196, %v5843, 0.0
        %v6215 = vsel %vm1196, %v5845, 0.0
        %v6216 = vsel %vm1196, %v5847, 0.0
        %v6217 = vsel %vm1196, %v5849, 0.0
        %v6218 = vsel %vm1196, %v5851, 0.0
        %v6219 = vsel %vm1196, %v5853, 0.0
        %v6220 = vsel %vm1196, %v5855, 0.0
        %v6221 = vsel %vm1196, %v5857, 0.0
        %v6222 = vsel %vm1196, %v5859, 0.0
        %v6223 = vsel %vm1196, %v5861, 0.0
        %v6224 = vsel %vm1196, %v5863, 0.0
        %v6225 = vsel %vm1196, %v5865, 0.0
        %v6226 = vsel %vm1196, %v5867, 0.0
        %v6227 = vsel %vm1196, %v5869, 0.0
        %v6228 = vsel %vm1196, %v5871, 0.0
        %v6229 = vsel %vm1196, %v5873, 0.0
        %v6230 = vsel %vm1196, %v5875, 0.0
        %v6231 = vsel %vm1196, %v5877, 0.0
        %v6232 = vsel %vm1196, %v5879, 0.0
        %v6233 = vsel %vm1196, %v5881, 0.0
        %v6234 = vsel %vm1196, %v5883, 0.0
        %v6235 = vsel %vm1196, %v5885, 0.0
        %v6236 = vsel %vm1196, %v5887, 0.0
        %v6237 = vsel %vm1196, %v5889, 0.0
        %v6238 = vsel %vm1196, %v5891, 0.0
        %v6239 = vsel %vm1196, %v5893, 0.0
        %v6240 = vsel %vm1196, %v5895, 0.0
        %v6241 = vsel %vm1196, %v5897, 0.0
        %v6242 = vsel %vm1196, %v5899, 0.0
        %v6243 = vsel %vm1196, %v5901, 0.0
        %v6244 = vsel %vm1196, %v5903, 0.0
        %v6245 = vsel %vm1196, %v5905, 0.0
        %v6246 = vsel %vm1196, %v5907, 0.0
        %v6247 = vsel %vm1196, %v5909, 0.0
        %v6248 = vsel %vm1196, %v5911, 0.0
        %v6249 = vsel %vm1196, %v5913, 0.0
        %v6250 = vsel %vm1196, %v5915, 0.0
        %v6251 = vsel %vm1196, %v5917, 0.0
        %v6252 = vsel %vm1196, %v5919, 0.0
        %v6253 = vsel %vm1196, %v5921, 0.0
        %v6254 = vsel %vm1196, %v5923, 0.0
        %v6255 = vsel %vm1196, %v5925, 0.0
        %v6256 = vsel %vm1196, %v5927, 0.0
        %v6257 = vsel %vm1196, %v5929, 0.0
        %v6258 = vsel %vm1196, %v5931, 0.0
        %v6259 = vsel %vm1196, %v5933, 0.0
        %v6260 = vsel %vm1196, %v5935, 0.0
        %v6261 = vsel %vm1196, %v5937, 0.0
        %v6262 = vsel %vm1196, %v5939, 0.0
        %v6263 = vsel %vm1196, %v5941, 0.0
        %v6264 = vsel %vm1196, %v5943, 0.0
        %v6265 = vsel %vm1196, %v5945, 0.0
        %v6266 = vsel %vm1196, %v5947, 0.0
        %v6267 = vsel %vm1196, %v5949, 0.0
        %v6268 = vsel %vm1196, %v5951, 0.0
        %v6269 = vsel %vm1196, %v5953, 0.0
        %v6270 = vsel %vm1196, %v5955, 0.0
        %v6271 = vsel %vm1196, %v5957, 0.0
        %v6272 = vsel %vm1196, %v5959, 0.0
        %v6273 = vsel %vm1196, %v5961, 0.0
        %v6274 = vsel %vm1196, %v5963, 0.0
        %v6275 = vsel %vm1196, %v5965, 0.0
        %v6276 = vsel %vm1196, %v5967, 0.0
        %v6277 = vsel %vm1196, %v5969, 0.0
        %v6278 = vsel %vm1196, %v5971, 0.0
        %v6279 = vsel %vm1196, %v5973, 0.0
        %v6280 = vsel %vm1196, %v5975, 0.0
        %v6281 = vsel %vm1196, %v5977, 0.0
        %v6282 = vsel %vm1196, %v5979, 0.0
        %v6283 = vsel %vm1196, %v5981, 0.0
        %v6284 = vsel %vm1196, %v5983, 0.0
        %v6285 = vsel %vm1196, %v5985, 0.0
        %v6286 = vsel %vm1196, %v5987, 0.0
        %v6287 = vsel %vm1196, %v5989, 0.0
        %v6288 = vsel %vm1196, %v5991, 0.0
        %v6289 = vsel %vm1196, %v5993, 0.0
        %v6290 = vsel %vm1196, %v5995, 0.0
        %v6291 = vsel %vm1196, %v5997, 0.0
        %v6292 = vsel %vm1196, %v5999, 0.0
        %v6293 = vsel %vm1196, %v6001, 0.0
        %v6294 = vsel %vm1196, %v6003, 0.0
        %v6295 = vsel %vm1196, %v6005, 0.0
        %v6296 = vsel %vm1196, %v6007, 0.0
        %v6297 = vsel %vm1196, %v6009, 0.0
        %v6298 = vsel %vm1196, %v6011, 0.0
        %v6299 = vsel %vm1196, %v6013, 0.0
        %v6300 = vsel %vm1196, %v6015, 0.0
        %v6301 = vsel %vm1196, %v6017, 0.0
        %v6302 = vsel %vm1196, %v6019, 0.0
        %v6303 = vsel %vm1196, %v6021, 0.0
        %v6304 = vsel %vm1196, %v6023, 0.0
        %v6305 = vsel %vm1196, %v6025, 0.0
        %v6306 = vsel %vm1196, %v6027, 0.0
        %v6307 = vsel %vm1196, %v6029, 0.0
        %v6308 = vsel %vm1196, %v6031, 0.0
        %v6309 = vsel %vm1196, %v6033, 0.0
        %v6310 = vsel %vm1196, %v6035, 0.0
        %v6311 = vsel %vm1196, %v6037, 0.0
        %v6312 = vsel %vm1196, %v6039, 0.0
        %v6313 = vsel %vm1196, %v6041, 0.0
        %v6314 = vsel %vm1196, %v6043, 0.0
        %v6315 = vsel %vm1196, %v6045, 0.0
        %v6316 = vsel %vm1196, %v6047, 0.0
        %v6317 = vsel %vm1196, %v6049, 0.0
        %v6318 = vsel %vm1196, %v6051, 0.0
        %v6319 = vsel %vm1196, %v6053, 0.0
        %v6320 = vsel %vm1196, %v6055, 0.0
        %v6321 = vsel %vm1196, %v6057, 0.0
        %v6322 = vsel %vm1196, %v6059, 0.0
        %v6323 = vsel %vm1196, %v6061, 0.0
        %v6324 = vsel %vm1196, %v6063, 0.0
        %v6325 = vsel %vm1196, %v6065, 0.0
        %v6326 = vsel %vm1196, %v6067, 0.0
        %v6327 = vsel %vm1196, %v6069, 0.0
        %v6328 = vsel %vm1196, %v6071, 0.0
        %v6329 = vsel %vm1196, %v6073, 0.0
        %v6330 = vsel %vm454, %v6202, 0.0
        %6331 = vadd.xlane.f32.xlu0 %v6330
        %v6332 = vpop.xlane.xlu0 %6331
        %v6333 = vsel %vm454, %v6203, 0.0
        %6334 = vadd.xlane.f32.xlu0 %v6333
        %v6335 = vpop.xlane.xlu0 %6334
        %v6336 = vsel %vm454, %v6204, 0.0
        %6337 = vadd.xlane.f32.xlu0 %v6336
        %v6338 = vpop.xlane.xlu0 %6337
        %v6339 = vsel %vm454, %v6205, 0.0
        %6340 = vadd.xlane.f32.xlu0 %v6339
        %v6341 = vpop.xlane.xlu0 %6340
        %v6342 = vsel %vm454, %v6206, 0.0
        %6343 = vadd.xlane.f32.xlu0 %v6342
        %v6344 = vpop.xlane.xlu0 %6343
        %v6345 = vsel %vm454, %v6207, 0.0
        %6346 = vadd.xlane.f32.xlu0 %v6345
        %v6347 = vpop.xlane.xlu0 %6346
        %v6348 = vsel %vm454, %v6208, 0.0
        %6349 = vadd.xlane.f32.xlu0 %v6348
        %v6350 = vpop.xlane.xlu0 %6349
        %v6351 = vsel %vm454, %v6209, 0.0
        %6352 = vadd.xlane.f32.xlu0 %v6351
        %v6353 = vpop.xlane.xlu0 %6352
        %v6354 = vsel %vm454, %v6210, 0.0
        %6355 = vadd.xlane.f32.xlu0 %v6354
        %v6356 = vpop.xlane.xlu0 %6355
        %v6357 = vsel %vm454, %v6211, 0.0
        %6358 = vadd.xlane.f32.xlu0 %v6357
        %v6359 = vpop.xlane.xlu0 %6358
        %v6360 = vsel %vm454, %v6212, 0.0
        %6361 = vadd.xlane.f32.xlu0 %v6360
        %v6362 = vpop.xlane.xlu0 %6361
        %v6363 = vsel %vm454, %v6213, 0.0
        %6364 = vadd.xlane.f32.xlu0 %v6363
        %v6365 = vpop.xlane.xlu0 %6364
        %v6366 = vsel %vm454, %v6214, 0.0
        %6367 = vadd.xlane.f32.xlu0 %v6366
        %v6368 = vpop.xlane.xlu0 %6367
        %v6369 = vsel %vm454, %v6215, 0.0
        %6370 = vadd.xlane.f32.xlu0 %v6369
        %v6371 = vpop.xlane.xlu0 %6370
        %v6372 = vsel %vm454, %v6216, 0.0
        %6373 = vadd.xlane.f32.xlu0 %v6372
        %v6374 = vpop.xlane.xlu0 %6373
        %v6375 = vsel %vm454, %v6217, 0.0
        %6376 = vadd.xlane.f32.xlu0 %v6375
        %v6377 = vpop.xlane.xlu0 %6376
        %v6378 = vsel %vm454, %v6218, 0.0
        %6379 = vadd.xlane.f32.xlu0 %v6378
        %v6380 = vpop.xlane.xlu0 %6379
        %v6381 = vsel %vm454, %v6219, 0.0
        %6382 = vadd.xlane.f32.xlu0 %v6381
        %v6383 = vpop.xlane.xlu0 %6382
        %v6384 = vsel %vm454, %v6220, 0.0
        %6385 = vadd.xlane.f32.xlu0 %v6384
        %v6386 = vpop.xlane.xlu0 %6385
        %v6387 = vsel %vm454, %v6221, 0.0
        %6388 = vadd.xlane.f32.xlu0 %v6387
        %v6389 = vpop.xlane.xlu0 %6388
        %v6390 = vsel %vm454, %v6222, 0.0
        %6391 = vadd.xlane.f32.xlu0 %v6390
        %v6392 = vpop.xlane.xlu0 %6391
        %v6393 = vsel %vm454, %v6223, 0.0
        %6394 = vadd.xlane.f32.xlu0 %v6393
        %v6395 = vpop.xlane.xlu0 %6394
        %v6396 = vsel %vm454, %v6224, 0.0
        %6397 = vadd.xlane.f32.xlu0 %v6396
        %v6398 = vpop.xlane.xlu0 %6397
        %v6399 = vsel %vm454, %v6225, 0.0
        %6400 = vadd.xlane.f32.xlu0 %v6399
        %v6401 = vpop.xlane.xlu0 %6400
        %v6402 = vsel %vm454, %v6226, 0.0
        %6403 = vadd.xlane.f32.xlu0 %v6402
        %v6404 = vpop.xlane.xlu0 %6403
        %v6405 = vsel %vm454, %v6227, 0.0
        %6406 = vadd.xlane.f32.xlu0 %v6405
        %v6407 = vpop.xlane.xlu0 %6406
        %v6408 = vsel %vm454, %v6228, 0.0
        %6409 = vadd.xlane.f32.xlu0 %v6408
        %v6410 = vpop.xlane.xlu0 %6409
        %v6411 = vsel %vm454, %v6229, 0.0
        %6412 = vadd.xlane.f32.xlu0 %v6411
        %v6413 = vpop.xlane.xlu0 %6412
        %v6414 = vsel %vm454, %v6230, 0.0
        %6415 = vadd.xlane.f32.xlu0 %v6414
        %v6416 = vpop.xlane.xlu0 %6415
        %v6417 = vsel %vm454, %v6231, 0.0
        %6418 = vadd.xlane.f32.xlu0 %v6417
        %v6419 = vpop.xlane.xlu0 %6418
        %v6420 = vsel %vm454, %v6232, 0.0
        %6421 = vadd.xlane.f32.xlu0 %v6420
        %v6422 = vpop.xlane.xlu0 %6421
        %v6423 = vsel %vm454, %v6233, 0.0
        %6424 = vadd.xlane.f32.xlu0 %v6423
        %v6425 = vpop.xlane.xlu0 %6424
        %v6426 = vsel %vm454, %v6234, 0.0
        %6427 = vadd.xlane.f32.xlu0 %v6426
        %v6428 = vpop.xlane.xlu0 %6427
        %v6429 = vsel %vm454, %v6235, 0.0
        %6430 = vadd.xlane.f32.xlu0 %v6429
        %v6431 = vpop.xlane.xlu0 %6430
        %v6432 = vsel %vm454, %v6236, 0.0
        %6433 = vadd.xlane.f32.xlu0 %v6432
        %v6434 = vpop.xlane.xlu0 %6433
        %v6435 = vsel %vm454, %v6237, 0.0
        %6436 = vadd.xlane.f32.xlu0 %v6435
        %v6437 = vpop.xlane.xlu0 %6436
        %v6438 = vsel %vm454, %v6238, 0.0
        %6439 = vadd.xlane.f32.xlu0 %v6438
        %v6440 = vpop.xlane.xlu0 %6439
        %v6441 = vsel %vm454, %v6239, 0.0
        %6442 = vadd.xlane.f32.xlu0 %v6441
        %v6443 = vpop.xlane.xlu0 %6442
        %v6444 = vsel %vm454, %v6240, 0.0
        %6445 = vadd.xlane.f32.xlu0 %v6444
        %v6446 = vpop.xlane.xlu0 %6445
        %v6447 = vsel %vm454, %v6241, 0.0
        %6448 = vadd.xlane.f32.xlu0 %v6447
        %v6449 = vpop.xlane.xlu0 %6448
        %v6450 = vsel %vm454, %v6242, 0.0
        %6451 = vadd.xlane.f32.xlu0 %v6450
        %v6452 = vpop.xlane.xlu0 %6451
        %v6453 = vsel %vm454, %v6243, 0.0
        %6454 = vadd.xlane.f32.xlu0 %v6453
        %v6455 = vpop.xlane.xlu0 %6454
        %v6456 = vsel %vm454, %v6244, 0.0
        %6457 = vadd.xlane.f32.xlu0 %v6456
        %v6458 = vpop.xlane.xlu0 %6457
        %v6459 = vsel %vm454, %v6245, 0.0
        %6460 = vadd.xlane.f32.xlu0 %v6459
        %v6461 = vpop.xlane.xlu0 %6460
        %v6462 = vsel %vm454, %v6246, 0.0
        %6463 = vadd.xlane.f32.xlu0 %v6462
        %v6464 = vpop.xlane.xlu0 %6463
        %v6465 = vsel %vm454, %v6247, 0.0
        %6466 = vadd.xlane.f32.xlu0 %v6465
        %v6467 = vpop.xlane.xlu0 %6466
        %v6468 = vsel %vm454, %v6248, 0.0
        %6469 = vadd.xlane.f32.xlu0 %v6468
        %v6470 = vpop.xlane.xlu0 %6469
        %v6471 = vsel %vm454, %v6249, 0.0
        %6472 = vadd.xlane.f32.xlu0 %v6471
        %v6473 = vpop.xlane.xlu0 %6472
        %v6474 = vsel %vm454, %v6250, 0.0
        %6475 = vadd.xlane.f32.xlu0 %v6474
        %v6476 = vpop.xlane.xlu0 %6475
        %v6477 = vsel %vm454, %v6251, 0.0
        %6478 = vadd.xlane.f32.xlu0 %v6477
        %v6479 = vpop.xlane.xlu0 %6478
        %v6480 = vsel %vm454, %v6252, 0.0
        %6481 = vadd.xlane.f32.xlu0 %v6480
        %v6482 = vpop.xlane.xlu0 %6481
        %v6483 = vsel %vm454, %v6253, 0.0
        %6484 = vadd.xlane.f32.xlu0 %v6483
        %v6485 = vpop.xlane.xlu0 %6484
        %v6486 = vsel %vm454, %v6254, 0.0
        %6487 = vadd.xlane.f32.xlu0 %v6486
        %v6488 = vpop.xlane.xlu0 %6487
        %v6489 = vsel %vm454, %v6255, 0.0
        %6490 = vadd.xlane.f32.xlu0 %v6489
        %v6491 = vpop.xlane.xlu0 %6490
        %v6492 = vsel %vm454, %v6256, 0.0
        %6493 = vadd.xlane.f32.xlu0 %v6492
        %v6494 = vpop.xlane.xlu0 %6493
        %v6495 = vsel %vm454, %v6257, 0.0
        %6496 = vadd.xlane.f32.xlu0 %v6495
        %v6497 = vpop.xlane.xlu0 %6496
        %v6498 = vsel %vm454, %v6258, 0.0
        %6499 = vadd.xlane.f32.xlu0 %v6498
        %v6500 = vpop.xlane.xlu0 %6499
        %v6501 = vsel %vm454, %v6259, 0.0
        %6502 = vadd.xlane.f32.xlu0 %v6501
        %v6503 = vpop.xlane.xlu0 %6502
        %v6504 = vsel %vm454, %v6260, 0.0
        %6505 = vadd.xlane.f32.xlu0 %v6504
        %v6506 = vpop.xlane.xlu0 %6505
        %v6507 = vsel %vm454, %v6261, 0.0
        %6508 = vadd.xlane.f32.xlu0 %v6507
        %v6509 = vpop.xlane.xlu0 %6508
        %v6510 = vsel %vm454, %v6262, 0.0
        %6511 = vadd.xlane.f32.xlu0 %v6510
        %v6512 = vpop.xlane.xlu0 %6511
        %v6513 = vsel %vm454, %v6263, 0.0
        %6514 = vadd.xlane.f32.xlu0 %v6513
        %v6515 = vpop.xlane.xlu0 %6514
        %v6516 = vsel %vm454, %v6264, 0.0
        %6517 = vadd.xlane.f32.xlu0 %v6516
        %v6518 = vpop.xlane.xlu0 %6517
        %v6519 = vsel %vm454, %v6265, 0.0
        %6520 = vadd.xlane.f32.xlu0 %v6519
        %v6521 = vpop.xlane.xlu0 %6520
        %v6522 = vsel %vm454, %v6266, 0.0
        %6523 = vadd.xlane.f32.xlu0 %v6522
        %v6524 = vpop.xlane.xlu0 %6523
        %v6525 = vsel %vm454, %v6267, 0.0
        %6526 = vadd.xlane.f32.xlu0 %v6525
        %v6527 = vpop.xlane.xlu0 %6526
        %v6528 = vsel %vm454, %v6268, 0.0
        %6529 = vadd.xlane.f32.xlu0 %v6528
        %v6530 = vpop.xlane.xlu0 %6529
        %v6531 = vsel %vm454, %v6269, 0.0
        %6532 = vadd.xlane.f32.xlu0 %v6531
        %v6533 = vpop.xlane.xlu0 %6532
        %v6534 = vsel %vm454, %v6270, 0.0
        %6535 = vadd.xlane.f32.xlu0 %v6534
        %v6536 = vpop.xlane.xlu0 %6535
        %v6537 = vsel %vm454, %v6271, 0.0
        %6538 = vadd.xlane.f32.xlu0 %v6537
        %v6539 = vpop.xlane.xlu0 %6538
        %v6540 = vsel %vm454, %v6272, 0.0
        %6541 = vadd.xlane.f32.xlu0 %v6540
        %v6542 = vpop.xlane.xlu0 %6541
        %v6543 = vsel %vm454, %v6273, 0.0
        %6544 = vadd.xlane.f32.xlu0 %v6543
        %v6545 = vpop.xlane.xlu0 %6544
        %v6546 = vsel %vm454, %v6274, 0.0
        %6547 = vadd.xlane.f32.xlu0 %v6546
        %v6548 = vpop.xlane.xlu0 %6547
        %v6549 = vsel %vm454, %v6275, 0.0
        %6550 = vadd.xlane.f32.xlu0 %v6549
        %v6551 = vpop.xlane.xlu0 %6550
        %v6552 = vsel %vm454, %v6276, 0.0
        %6553 = vadd.xlane.f32.xlu0 %v6552
        %v6554 = vpop.xlane.xlu0 %6553
        %v6555 = vsel %vm454, %v6277, 0.0
        %6556 = vadd.xlane.f32.xlu0 %v6555
        %v6557 = vpop.xlane.xlu0 %6556
        %v6558 = vsel %vm454, %v6278, 0.0
        %6559 = vadd.xlane.f32.xlu0 %v6558
        %v6560 = vpop.xlane.xlu0 %6559
        %v6561 = vsel %vm454, %v6279, 0.0
        %6562 = vadd.xlane.f32.xlu0 %v6561
        %v6563 = vpop.xlane.xlu0 %6562
        %v6564 = vsel %vm454, %v6280, 0.0
        %6565 = vadd.xlane.f32.xlu0 %v6564
        %v6566 = vpop.xlane.xlu0 %6565
        %v6567 = vsel %vm454, %v6281, 0.0
        %6568 = vadd.xlane.f32.xlu0 %v6567
        %v6569 = vpop.xlane.xlu0 %6568
        %v6570 = vsel %vm454, %v6282, 0.0
        %6571 = vadd.xlane.f32.xlu0 %v6570
        %v6572 = vpop.xlane.xlu0 %6571
        %v6573 = vsel %vm454, %v6283, 0.0
        %6574 = vadd.xlane.f32.xlu0 %v6573
        %v6575 = vpop.xlane.xlu0 %6574
        %v6576 = vsel %vm454, %v6284, 0.0
        %6577 = vadd.xlane.f32.xlu0 %v6576
        %v6578 = vpop.xlane.xlu0 %6577
        %v6579 = vsel %vm454, %v6285, 0.0
        %6580 = vadd.xlane.f32.xlu0 %v6579
        %v6581 = vpop.xlane.xlu0 %6580
        %v6582 = vsel %vm454, %v6286, 0.0
        %6583 = vadd.xlane.f32.xlu0 %v6582
        %v6584 = vpop.xlane.xlu0 %6583
        %v6585 = vsel %vm454, %v6287, 0.0
        %6586 = vadd.xlane.f32.xlu0 %v6585
        %v6587 = vpop.xlane.xlu0 %6586
        %v6588 = vsel %vm454, %v6288, 0.0
        %6589 = vadd.xlane.f32.xlu0 %v6588
        %v6590 = vpop.xlane.xlu0 %6589
        %v6591 = vsel %vm454, %v6289, 0.0
        %6592 = vadd.xlane.f32.xlu0 %v6591
        %v6593 = vpop.xlane.xlu0 %6592
        %v6594 = vsel %vm454, %v6290, 0.0
        %6595 = vadd.xlane.f32.xlu0 %v6594
        %v6596 = vpop.xlane.xlu0 %6595
        %v6597 = vsel %vm454, %v6291, 0.0
        %6598 = vadd.xlane.f32.xlu0 %v6597
        %v6599 = vpop.xlane.xlu0 %6598
        %v6600 = vsel %vm454, %v6292, 0.0
        %6601 = vadd.xlane.f32.xlu0 %v6600
        %v6602 = vpop.xlane.xlu0 %6601
        %v6603 = vsel %vm454, %v6293, 0.0
        %6604 = vadd.xlane.f32.xlu0 %v6603
        %v6605 = vpop.xlane.xlu0 %6604
        %v6606 = vsel %vm454, %v6294, 0.0
        %6607 = vadd.xlane.f32.xlu0 %v6606
        %v6608 = vpop.xlane.xlu0 %6607
        %v6609 = vsel %vm454, %v6295, 0.0
        %6610 = vadd.xlane.f32.xlu0 %v6609
        %v6611 = vpop.xlane.xlu0 %6610
        %v6612 = vsel %vm454, %v6296, 0.0
        %6613 = vadd.xlane.f32.xlu0 %v6612
        %v6614 = vpop.xlane.xlu0 %6613
        %v6615 = vsel %vm454, %v6297, 0.0
        %6616 = vadd.xlane.f32.xlu0 %v6615
        %v6617 = vpop.xlane.xlu0 %6616
        %v6618 = vsel %vm454, %v6298, 0.0
        %6619 = vadd.xlane.f32.xlu0 %v6618
        %v6620 = vpop.xlane.xlu0 %6619
        %v6621 = vsel %vm454, %v6299, 0.0
        %6622 = vadd.xlane.f32.xlu0 %v6621
        %v6623 = vpop.xlane.xlu0 %6622
        %v6624 = vsel %vm454, %v6300, 0.0
        %6625 = vadd.xlane.f32.xlu0 %v6624
        %v6626 = vpop.xlane.xlu0 %6625
        %v6627 = vsel %vm454, %v6301, 0.0
        %6628 = vadd.xlane.f32.xlu0 %v6627
        %v6629 = vpop.xlane.xlu0 %6628
        %v6630 = vsel %vm454, %v6302, 0.0
        %6631 = vadd.xlane.f32.xlu0 %v6630
        %v6632 = vpop.xlane.xlu0 %6631
        %v6633 = vsel %vm454, %v6303, 0.0
        %6634 = vadd.xlane.f32.xlu0 %v6633
        %v6635 = vpop.xlane.xlu0 %6634
        %v6636 = vsel %vm454, %v6304, 0.0
        %6637 = vadd.xlane.f32.xlu0 %v6636
        %v6638 = vpop.xlane.xlu0 %6637
        %v6639 = vsel %vm454, %v6305, 0.0
        %6640 = vadd.xlane.f32.xlu0 %v6639
        %v6641 = vpop.xlane.xlu0 %6640
        %v6642 = vsel %vm454, %v6306, 0.0
        %6643 = vadd.xlane.f32.xlu0 %v6642
        %v6644 = vpop.xlane.xlu0 %6643
        %v6645 = vsel %vm454, %v6307, 0.0
        %6646 = vadd.xlane.f32.xlu0 %v6645
        %v6647 = vpop.xlane.xlu0 %6646
        %v6648 = vsel %vm454, %v6308, 0.0
        %6649 = vadd.xlane.f32.xlu0 %v6648
        %v6650 = vpop.xlane.xlu0 %6649
        %v6651 = vsel %vm454, %v6309, 0.0
        %6652 = vadd.xlane.f32.xlu0 %v6651
        %v6653 = vpop.xlane.xlu0 %6652
        %v6654 = vsel %vm454, %v6310, 0.0
        %6655 = vadd.xlane.f32.xlu0 %v6654
        %v6656 = vpop.xlane.xlu0 %6655
        %v6657 = vsel %vm454, %v6311, 0.0
        %6658 = vadd.xlane.f32.xlu0 %v6657
        %v6659 = vpop.xlane.xlu0 %6658
        %v6660 = vsel %vm454, %v6312, 0.0
        %6661 = vadd.xlane.f32.xlu0 %v6660
        %v6662 = vpop.xlane.xlu0 %6661
        %v6663 = vsel %vm454, %v6313, 0.0
        %6664 = vadd.xlane.f32.xlu0 %v6663
        %v6665 = vpop.xlane.xlu0 %6664
        %v6666 = vsel %vm454, %v6314, 0.0
        %6667 = vadd.xlane.f32.xlu0 %v6666
        %v6668 = vpop.xlane.xlu0 %6667
        %v6669 = vsel %vm454, %v6315, 0.0
        %6670 = vadd.xlane.f32.xlu0 %v6669
        %v6671 = vpop.xlane.xlu0 %6670
        %v6672 = vsel %vm454, %v6316, 0.0
        %6673 = vadd.xlane.f32.xlu0 %v6672
        %v6674 = vpop.xlane.xlu0 %6673
        %v6675 = vsel %vm454, %v6317, 0.0
        %6676 = vadd.xlane.f32.xlu0 %v6675
        %v6677 = vpop.xlane.xlu0 %6676
        %v6678 = vsel %vm454, %v6318, 0.0
        %6679 = vadd.xlane.f32.xlu0 %v6678
        %v6680 = vpop.xlane.xlu0 %6679
        %v6681 = vsel %vm454, %v6319, 0.0
        %6682 = vadd.xlane.f32.xlu0 %v6681
        %v6683 = vpop.xlane.xlu0 %6682
        %v6684 = vsel %vm454, %v6320, 0.0
        %6685 = vadd.xlane.f32.xlu0 %v6684
        %v6686 = vpop.xlane.xlu0 %6685
        %v6687 = vsel %vm454, %v6321, 0.0
        %6688 = vadd.xlane.f32.xlu0 %v6687
        %v6689 = vpop.xlane.xlu0 %6688
        %v6690 = vsel %vm454, %v6322, 0.0
        %6691 = vadd.xlane.f32.xlu0 %v6690
        %v6692 = vpop.xlane.xlu0 %6691
        %v6693 = vsel %vm454, %v6323, 0.0
        %6694 = vadd.xlane.f32.xlu0 %v6693
        %v6695 = vpop.xlane.xlu0 %6694
        %v6696 = vsel %vm454, %v6324, 0.0
        %6697 = vadd.xlane.f32.xlu0 %v6696
        %v6698 = vpop.xlane.xlu0 %6697
        %v6699 = vsel %vm454, %v6325, 0.0
        %6700 = vadd.xlane.f32.xlu0 %v6699
        %v6701 = vpop.xlane.xlu0 %6700
        %v6702 = vsel %vm454, %v6326, 0.0
        %6703 = vadd.xlane.f32.xlu0 %v6702
        %v6704 = vpop.xlane.xlu0 %6703
        %v6705 = vsel %vm454, %v6327, 0.0
        %6706 = vadd.xlane.f32.xlu0 %v6705
        %v6707 = vpop.xlane.xlu0 %6706
        %v6708 = vsel %vm454, %v6328, 0.0
        %6709 = vadd.xlane.f32.xlu0 %v6708
        %v6710 = vpop.xlane.xlu0 %6709
        %v6711 = vsel %vm454, %v6329, 0.0
        %6712 = vadd.xlane.f32.xlu0 %v6711
        %v6713 = vpop.xlane.xlu0 %6712
        %v6714 = vsel %vm454, %v5819, 0.0
        %6715 = vadd.xlane.f32.xlu0 %v6714
        %v6716 = vpop.xlane.xlu0 %6715
        %v6717 = vsel %vm454, %v5821, 0.0
        %6718 = vadd.xlane.f32.xlu0 %v6717
        %v6719 = vpop.xlane.xlu0 %6718
        %v6720 = vsel %vm454, %v5823, 0.0
        %6721 = vadd.xlane.f32.xlu0 %v6720
        %v6722 = vpop.xlane.xlu0 %6721
        %v6723 = vsel %vm454, %v5825, 0.0
        %6724 = vadd.xlane.f32.xlu0 %v6723
        %v6725 = vpop.xlane.xlu0 %6724
        %v6726 = vsel %vm454, %v5827, 0.0
        %6727 = vadd.xlane.f32.xlu0 %v6726
        %v6728 = vpop.xlane.xlu0 %6727
        %v6729 = vsel %vm454, %v5829, 0.0
        %6730 = vadd.xlane.f32.xlu0 %v6729
        %v6731 = vpop.xlane.xlu0 %6730
        %v6732 = vsel %vm454, %v5831, 0.0
        %6733 = vadd.xlane.f32.xlu0 %v6732
        %v6734 = vpop.xlane.xlu0 %6733
        %v6735 = vsel %vm454, %v5833, 0.0
        %6736 = vadd.xlane.f32.xlu0 %v6735
        %v6737 = vpop.xlane.xlu0 %6736
        %v6738 = vsel %vm454, %v5835, 0.0
        %6739 = vadd.xlane.f32.xlu0 %v6738
        %v6740 = vpop.xlane.xlu0 %6739
        %v6741 = vsel %vm454, %v5837, 0.0
        %6742 = vadd.xlane.f32.xlu0 %v6741
        %v6743 = vpop.xlane.xlu0 %6742
        %v6744 = vsel %vm454, %v5839, 0.0
        %6745 = vadd.xlane.f32.xlu0 %v6744
        %v6746 = vpop.xlane.xlu0 %6745
        %v6747 = vsel %vm454, %v5841, 0.0
        %6748 = vadd.xlane.f32.xlu0 %v6747
        %v6749 = vpop.xlane.xlu0 %6748
        %v6750 = vsel %vm454, %v5843, 0.0
        %6751 = vadd.xlane.f32.xlu0 %v6750
        %v6752 = vpop.xlane.xlu0 %6751
        %v6753 = vsel %vm454, %v5845, 0.0
        %6754 = vadd.xlane.f32.xlu0 %v6753
        %v6755 = vpop.xlane.xlu0 %6754
        %v6756 = vsel %vm454, %v5847, 0.0
        %6757 = vadd.xlane.f32.xlu0 %v6756
        %v6758 = vpop.xlane.xlu0 %6757
        %v6759 = vsel %vm454, %v5849, 0.0
        %6760 = vadd.xlane.f32.xlu0 %v6759
        %v6761 = vpop.xlane.xlu0 %6760
        %v6762 = vsel %vm454, %v5851, 0.0
        %6763 = vadd.xlane.f32.xlu0 %v6762
        %v6764 = vpop.xlane.xlu0 %6763
        %v6765 = vsel %vm454, %v5853, 0.0
        %6766 = vadd.xlane.f32.xlu0 %v6765
        %v6767 = vpop.xlane.xlu0 %6766
        %v6768 = vsel %vm454, %v5855, 0.0
        %6769 = vadd.xlane.f32.xlu0 %v6768
        %v6770 = vpop.xlane.xlu0 %6769
        %v6771 = vsel %vm454, %v5857, 0.0
        %6772 = vadd.xlane.f32.xlu0 %v6771
        %v6773 = vpop.xlane.xlu0 %6772
        %v6774 = vsel %vm454, %v5859, 0.0
        %6775 = vadd.xlane.f32.xlu0 %v6774
        %v6776 = vpop.xlane.xlu0 %6775
        %v6777 = vsel %vm454, %v5861, 0.0
        %6778 = vadd.xlane.f32.xlu0 %v6777
        %v6779 = vpop.xlane.xlu0 %6778
        %v6780 = vsel %vm454, %v5863, 0.0
        %6781 = vadd.xlane.f32.xlu0 %v6780
        %v6782 = vpop.xlane.xlu0 %6781
        %v6783 = vsel %vm454, %v5865, 0.0
        %6784 = vadd.xlane.f32.xlu0 %v6783
        %v6785 = vpop.xlane.xlu0 %6784
        %v6786 = vsel %vm454, %v5867, 0.0
        %6787 = vadd.xlane.f32.xlu0 %v6786
        %v6788 = vpop.xlane.xlu0 %6787
        %v6789 = vsel %vm454, %v5869, 0.0
        %6790 = vadd.xlane.f32.xlu0 %v6789
        %v6791 = vpop.xlane.xlu0 %6790
        %v6792 = vsel %vm454, %v5871, 0.0
        %6793 = vadd.xlane.f32.xlu0 %v6792
        %v6794 = vpop.xlane.xlu0 %6793
        %v6795 = vsel %vm454, %v5873, 0.0
        %6796 = vadd.xlane.f32.xlu0 %v6795
        %v6797 = vpop.xlane.xlu0 %6796
        %v6798 = vsel %vm454, %v5875, 0.0
        %6799 = vadd.xlane.f32.xlu0 %v6798
        %v6800 = vpop.xlane.xlu0 %6799
        %v6801 = vsel %vm454, %v5877, 0.0
        %6802 = vadd.xlane.f32.xlu0 %v6801
        %v6803 = vpop.xlane.xlu0 %6802
        %v6804 = vsel %vm454, %v5879, 0.0
        %6805 = vadd.xlane.f32.xlu0 %v6804
        %v6806 = vpop.xlane.xlu0 %6805
        %v6807 = vsel %vm454, %v5881, 0.0
        %6808 = vadd.xlane.f32.xlu0 %v6807
        %v6809 = vpop.xlane.xlu0 %6808
        %v6810 = vsel %vm454, %v5883, 0.0
        %6811 = vadd.xlane.f32.xlu0 %v6810
        %v6812 = vpop.xlane.xlu0 %6811
        %v6813 = vsel %vm454, %v5885, 0.0
        %6814 = vadd.xlane.f32.xlu0 %v6813
        %v6815 = vpop.xlane.xlu0 %6814
        %v6816 = vsel %vm454, %v5887, 0.0
        %6817 = vadd.xlane.f32.xlu0 %v6816
        %v6818 = vpop.xlane.xlu0 %6817
        %v6819 = vsel %vm454, %v5889, 0.0
        %6820 = vadd.xlane.f32.xlu0 %v6819
        %v6821 = vpop.xlane.xlu0 %6820
        %v6822 = vsel %vm454, %v5891, 0.0
        %6823 = vadd.xlane.f32.xlu0 %v6822
        %v6824 = vpop.xlane.xlu0 %6823
        %v6825 = vsel %vm454, %v5893, 0.0
        %6826 = vadd.xlane.f32.xlu0 %v6825
        %v6827 = vpop.xlane.xlu0 %6826
        %v6828 = vsel %vm454, %v5895, 0.0
        %6829 = vadd.xlane.f32.xlu0 %v6828
        %v6830 = vpop.xlane.xlu0 %6829
        %v6831 = vsel %vm454, %v5897, 0.0
        %6832 = vadd.xlane.f32.xlu0 %v6831
        %v6833 = vpop.xlane.xlu0 %6832
        %v6834 = vsel %vm454, %v5899, 0.0
        %6835 = vadd.xlane.f32.xlu0 %v6834
        %v6836 = vpop.xlane.xlu0 %6835
        %v6837 = vsel %vm454, %v5901, 0.0
        %6838 = vadd.xlane.f32.xlu0 %v6837
        %v6839 = vpop.xlane.xlu0 %6838
        %v6840 = vsel %vm454, %v5903, 0.0
        %6841 = vadd.xlane.f32.xlu0 %v6840
        %v6842 = vpop.xlane.xlu0 %6841
        %v6843 = vsel %vm454, %v5905, 0.0
        %6844 = vadd.xlane.f32.xlu0 %v6843
        %v6845 = vpop.xlane.xlu0 %6844
        %v6846 = vsel %vm454, %v5907, 0.0
        %6847 = vadd.xlane.f32.xlu0 %v6846
        %v6848 = vpop.xlane.xlu0 %6847
        %v6849 = vsel %vm454, %v5909, 0.0
        %6850 = vadd.xlane.f32.xlu0 %v6849
        %v6851 = vpop.xlane.xlu0 %6850
        %v6852 = vsel %vm454, %v5911, 0.0
        %6853 = vadd.xlane.f32.xlu0 %v6852
        %v6854 = vpop.xlane.xlu0 %6853
        %v6855 = vsel %vm454, %v5913, 0.0
        %6856 = vadd.xlane.f32.xlu0 %v6855
        %v6857 = vpop.xlane.xlu0 %6856
        %v6858 = vsel %vm454, %v5915, 0.0
        %6859 = vadd.xlane.f32.xlu0 %v6858
        %v6860 = vpop.xlane.xlu0 %6859
        %v6861 = vsel %vm454, %v5917, 0.0
        %6862 = vadd.xlane.f32.xlu0 %v6861
        %v6863 = vpop.xlane.xlu0 %6862
        %v6864 = vsel %vm454, %v5919, 0.0
        %6865 = vadd.xlane.f32.xlu0 %v6864
        %v6866 = vpop.xlane.xlu0 %6865
        %v6867 = vsel %vm454, %v5921, 0.0
        %6868 = vadd.xlane.f32.xlu0 %v6867
        %v6869 = vpop.xlane.xlu0 %6868
        %v6870 = vsel %vm454, %v5923, 0.0
        %6871 = vadd.xlane.f32.xlu0 %v6870
        %v6872 = vpop.xlane.xlu0 %6871
        %v6873 = vsel %vm454, %v5925, 0.0
        %6874 = vadd.xlane.f32.xlu0 %v6873
        %v6875 = vpop.xlane.xlu0 %6874
        %v6876 = vsel %vm454, %v5927, 0.0
        %6877 = vadd.xlane.f32.xlu0 %v6876
        %v6878 = vpop.xlane.xlu0 %6877
        %v6879 = vsel %vm454, %v5929, 0.0
        %6880 = vadd.xlane.f32.xlu0 %v6879
        %v6881 = vpop.xlane.xlu0 %6880
        %v6882 = vsel %vm454, %v5931, 0.0
        %6883 = vadd.xlane.f32.xlu0 %v6882
        %v6884 = vpop.xlane.xlu0 %6883
        %v6885 = vsel %vm454, %v5933, 0.0
        %6886 = vadd.xlane.f32.xlu0 %v6885
        %v6887 = vpop.xlane.xlu0 %6886
        %v6888 = vsel %vm454, %v5935, 0.0
        %6889 = vadd.xlane.f32.xlu0 %v6888
        %v6890 = vpop.xlane.xlu0 %6889
        %v6891 = vsel %vm454, %v5937, 0.0
        %6892 = vadd.xlane.f32.xlu0 %v6891
        %v6893 = vpop.xlane.xlu0 %6892
        %v6894 = vsel %vm454, %v5939, 0.0
        %6895 = vadd.xlane.f32.xlu0 %v6894
        %v6896 = vpop.xlane.xlu0 %6895
        %v6897 = vsel %vm454, %v5941, 0.0
        %6898 = vadd.xlane.f32.xlu0 %v6897
        %v6899 = vpop.xlane.xlu0 %6898
        %v6900 = vsel %vm454, %v5943, 0.0
        %6901 = vadd.xlane.f32.xlu0 %v6900
        %v6902 = vpop.xlane.xlu0 %6901
        %v6903 = vsel %vm454, %v5945, 0.0
        %6904 = vadd.xlane.f32.xlu0 %v6903
        %v6905 = vpop.xlane.xlu0 %6904
        %v6906 = vsel %vm454, %v5947, 0.0
        %6907 = vadd.xlane.f32.xlu0 %v6906
        %v6908 = vpop.xlane.xlu0 %6907
        %v6909 = vsel %vm454, %v5949, 0.0
        %6910 = vadd.xlane.f32.xlu0 %v6909
        %v6911 = vpop.xlane.xlu0 %6910
        %v6912 = vsel %vm454, %v5951, 0.0
        %6913 = vadd.xlane.f32.xlu0 %v6912
        %v6914 = vpop.xlane.xlu0 %6913
        %v6915 = vsel %vm454, %v5953, 0.0
        %6916 = vadd.xlane.f32.xlu0 %v6915
        %v6917 = vpop.xlane.xlu0 %6916
        %v6918 = vsel %vm454, %v5955, 0.0
        %6919 = vadd.xlane.f32.xlu0 %v6918
        %v6920 = vpop.xlane.xlu0 %6919
        %v6921 = vsel %vm454, %v5957, 0.0
        %6922 = vadd.xlane.f32.xlu0 %v6921
        %v6923 = vpop.xlane.xlu0 %6922
        %v6924 = vsel %vm454, %v5959, 0.0
        %6925 = vadd.xlane.f32.xlu0 %v6924
        %v6926 = vpop.xlane.xlu0 %6925
        %v6927 = vsel %vm454, %v5961, 0.0
        %6928 = vadd.xlane.f32.xlu0 %v6927
        %v6929 = vpop.xlane.xlu0 %6928
        %v6930 = vsel %vm454, %v5963, 0.0
        %6931 = vadd.xlane.f32.xlu0 %v6930
        %v6932 = vpop.xlane.xlu0 %6931
        %v6933 = vsel %vm454, %v5965, 0.0
        %6934 = vadd.xlane.f32.xlu0 %v6933
        %v6935 = vpop.xlane.xlu0 %6934
        %v6936 = vsel %vm454, %v5967, 0.0
        %6937 = vadd.xlane.f32.xlu0 %v6936
        %v6938 = vpop.xlane.xlu0 %6937
        %v6939 = vsel %vm454, %v5969, 0.0
        %6940 = vadd.xlane.f32.xlu0 %v6939
        %v6941 = vpop.xlane.xlu0 %6940
        %v6942 = vsel %vm454, %v5971, 0.0
        %6943 = vadd.xlane.f32.xlu0 %v6942
        %v6944 = vpop.xlane.xlu0 %6943
        %v6945 = vsel %vm454, %v5973, 0.0
        %6946 = vadd.xlane.f32.xlu0 %v6945
        %v6947 = vpop.xlane.xlu0 %6946
        %v6948 = vsel %vm454, %v5975, 0.0
        %6949 = vadd.xlane.f32.xlu0 %v6948
        %v6950 = vpop.xlane.xlu0 %6949
        %v6951 = vsel %vm454, %v5977, 0.0
        %6952 = vadd.xlane.f32.xlu0 %v6951
        %v6953 = vpop.xlane.xlu0 %6952
        %v6954 = vsel %vm454, %v5979, 0.0
        %6955 = vadd.xlane.f32.xlu0 %v6954
        %v6956 = vpop.xlane.xlu0 %6955
        %v6957 = vsel %vm454, %v5981, 0.0
        %6958 = vadd.xlane.f32.xlu0 %v6957
        %v6959 = vpop.xlane.xlu0 %6958
        %v6960 = vsel %vm454, %v5983, 0.0
        %6961 = vadd.xlane.f32.xlu0 %v6960
        %v6962 = vpop.xlane.xlu0 %6961
        %v6963 = vsel %vm454, %v5985, 0.0
        %6964 = vadd.xlane.f32.xlu0 %v6963
        %v6965 = vpop.xlane.xlu0 %6964
        %v6966 = vsel %vm454, %v5987, 0.0
        %6967 = vadd.xlane.f32.xlu0 %v6966
        %v6968 = vpop.xlane.xlu0 %6967
        %v6969 = vsel %vm454, %v5989, 0.0
        %6970 = vadd.xlane.f32.xlu0 %v6969
        %v6971 = vpop.xlane.xlu0 %6970
        %v6972 = vsel %vm454, %v5991, 0.0
        %6973 = vadd.xlane.f32.xlu0 %v6972
        %v6974 = vpop.xlane.xlu0 %6973
        %v6975 = vsel %vm454, %v5993, 0.0
        %6976 = vadd.xlane.f32.xlu0 %v6975
        %v6977 = vpop.xlane.xlu0 %6976
        %v6978 = vsel %vm454, %v5995, 0.0
        %6979 = vadd.xlane.f32.xlu0 %v6978
        %v6980 = vpop.xlane.xlu0 %6979
        %v6981 = vsel %vm454, %v5997, 0.0
        %6982 = vadd.xlane.f32.xlu0 %v6981
        %v6983 = vpop.xlane.xlu0 %6982
        %v6984 = vsel %vm454, %v5999, 0.0
        %6985 = vadd.xlane.f32.xlu0 %v6984
        %v6986 = vpop.xlane.xlu0 %6985
        %v6987 = vsel %vm454, %v6001, 0.0
        %6988 = vadd.xlane.f32.xlu0 %v6987
        %v6989 = vpop.xlane.xlu0 %6988
        %v6990 = vsel %vm454, %v6003, 0.0
        %6991 = vadd.xlane.f32.xlu0 %v6990
        %v6992 = vpop.xlane.xlu0 %6991
        %v6993 = vsel %vm454, %v6005, 0.0
        %6994 = vadd.xlane.f32.xlu0 %v6993
        %v6995 = vpop.xlane.xlu0 %6994
        %v6996 = vsel %vm454, %v6007, 0.0
        %6997 = vadd.xlane.f32.xlu0 %v6996
        %v6998 = vpop.xlane.xlu0 %6997
        %v6999 = vsel %vm454, %v6009, 0.0
        %7000 = vadd.xlane.f32.xlu0 %v6999
        %v7001 = vpop.xlane.xlu0 %7000
        %v7002 = vsel %vm454, %v6011, 0.0
        %7003 = vadd.xlane.f32.xlu0 %v7002
        %v7004 = vpop.xlane.xlu0 %7003
        %v7005 = vsel %vm454, %v6013, 0.0
        %7006 = vadd.xlane.f32.xlu0 %v7005
        %v7007 = vpop.xlane.xlu0 %7006
        %v7008 = vsel %vm454, %v6015, 0.0
        %7009 = vadd.xlane.f32.xlu0 %v7008
        %v7010 = vpop.xlane.xlu0 %7009
        %v7011 = vsel %vm454, %v6017, 0.0
        %7012 = vadd.xlane.f32.xlu0 %v7011
        %v7013 = vpop.xlane.xlu0 %7012
        %v7014 = vsel %vm454, %v6019, 0.0
        %7015 = vadd.xlane.f32.xlu0 %v7014
        %v7016 = vpop.xlane.xlu0 %7015
        %v7017 = vsel %vm454, %v6021, 0.0
        %7018 = vadd.xlane.f32.xlu0 %v7017
        %v7019 = vpop.xlane.xlu0 %7018
        %v7020 = vsel %vm454, %v6023, 0.0
        %7021 = vadd.xlane.f32.xlu0 %v7020
        %v7022 = vpop.xlane.xlu0 %7021
        %v7023 = vsel %vm454, %v6025, 0.0
        %7024 = vadd.xlane.f32.xlu0 %v7023
        %v7025 = vpop.xlane.xlu0 %7024
        %v7026 = vsel %vm454, %v6027, 0.0
        %7027 = vadd.xlane.f32.xlu0 %v7026
        %v7028 = vpop.xlane.xlu0 %7027
        %v7029 = vsel %vm454, %v6029, 0.0
        %7030 = vadd.xlane.f32.xlu0 %v7029
        %v7031 = vpop.xlane.xlu0 %7030
        %v7032 = vsel %vm454, %v6031, 0.0
        %7033 = vadd.xlane.f32.xlu0 %v7032
        %v7034 = vpop.xlane.xlu0 %7033
        %v7035 = vsel %vm454, %v6033, 0.0
        %7036 = vadd.xlane.f32.xlu0 %v7035
        %v7037 = vpop.xlane.xlu0 %7036
        %v7038 = vsel %vm454, %v6035, 0.0
        %7039 = vadd.xlane.f32.xlu0 %v7038
        %v7040 = vpop.xlane.xlu0 %7039
        %v7041 = vsel %vm454, %v6037, 0.0
        %7042 = vadd.xlane.f32.xlu0 %v7041
        %v7043 = vpop.xlane.xlu0 %7042
        %v7044 = vsel %vm454, %v6039, 0.0
        %7045 = vadd.xlane.f32.xlu0 %v7044
        %v7046 = vpop.xlane.xlu0 %7045
        %v7047 = vsel %vm454, %v6041, 0.0
        %7048 = vadd.xlane.f32.xlu0 %v7047
        %v7049 = vpop.xlane.xlu0 %7048
        %v7050 = vsel %vm454, %v6043, 0.0
        %7051 = vadd.xlane.f32.xlu0 %v7050
        %v7052 = vpop.xlane.xlu0 %7051
        %v7053 = vsel %vm454, %v6045, 0.0
        %7054 = vadd.xlane.f32.xlu0 %v7053
        %v7055 = vpop.xlane.xlu0 %7054
        %v7056 = vsel %vm454, %v6047, 0.0
        %7057 = vadd.xlane.f32.xlu0 %v7056
        %v7058 = vpop.xlane.xlu0 %7057
        %v7059 = vsel %vm454, %v6049, 0.0
        %7060 = vadd.xlane.f32.xlu0 %v7059
        %v7061 = vpop.xlane.xlu0 %7060
        %v7062 = vsel %vm454, %v6051, 0.0
        %7063 = vadd.xlane.f32.xlu0 %v7062
        %v7064 = vpop.xlane.xlu0 %7063
        %v7065 = vsel %vm454, %v6053, 0.0
        %7066 = vadd.xlane.f32.xlu0 %v7065
        %v7067 = vpop.xlane.xlu0 %7066
        %v7068 = vsel %vm454, %v6055, 0.0
        %7069 = vadd.xlane.f32.xlu0 %v7068
        %v7070 = vpop.xlane.xlu0 %7069
        %v7071 = vsel %vm454, %v6057, 0.0
        %7072 = vadd.xlane.f32.xlu0 %v7071
        %v7073 = vpop.xlane.xlu0 %7072
        %v7074 = vsel %vm454, %v6059, 0.0
        %7075 = vadd.xlane.f32.xlu0 %v7074
        %v7076 = vpop.xlane.xlu0 %7075
        %v7077 = vsel %vm454, %v6061, 0.0
        %7078 = vadd.xlane.f32.xlu0 %v7077
        %v7079 = vpop.xlane.xlu0 %7078
        %v7080 = vsel %vm454, %v6063, 0.0
        %7081 = vadd.xlane.f32.xlu0 %v7080
        %v7082 = vpop.xlane.xlu0 %7081
        %v7083 = vsel %vm454, %v6065, 0.0
        %7084 = vadd.xlane.f32.xlu0 %v7083
        %v7085 = vpop.xlane.xlu0 %7084
        %v7086 = vsel %vm454, %v6067, 0.0
        %7087 = vadd.xlane.f32.xlu0 %v7086
        %v7088 = vpop.xlane.xlu0 %7087
        %v7089 = vsel %vm454, %v6069, 0.0
        %7090 = vadd.xlane.f32.xlu0 %v7089
        %v7091 = vpop.xlane.xlu0 %7090
        %v7092 = vsel %vm454, %v6071, 0.0
        %7093 = vadd.xlane.f32.xlu0 %v7092
        %v7094 = vpop.xlane.xlu0 %7093
        %v7095 = vsel %vm454, %v6073, 0.0
        %7096 = vadd.xlane.f32.xlu0 %v7095
        %v7097 = vpop.xlane.xlu0 %7096
        %v7098 = vsub.f32 %v6716, %v6332
        %v7099 = vsub.f32 %v6719, %v6335
        %v7100 = vsub.f32 %v6722, %v6338
        %v7101 = vsub.f32 %v6725, %v6341
        %v7102 = vsub.f32 %v6728, %v6344
        %v7103 = vsub.f32 %v6731, %v6347
        %v7104 = vsub.f32 %v6734, %v6350
        %v7105 = vsub.f32 %v6737, %v6353
        %v7106 = vsub.f32 %v6740, %v6356
        %v7107 = vsub.f32 %v6743, %v6359
        %v7108 = vsub.f32 %v6746, %v6362
        %v7109 = vsub.f32 %v6749, %v6365
        %v7110 = vsub.f32 %v6752, %v6368
        %v7111 = vsub.f32 %v6755, %v6371
        %v7112 = vsub.f32 %v6758, %v6374
        %v7113 = vsub.f32 %v6761, %v6377
        %v7114 = vsub.f32 %v6764, %v6380
        %v7115 = vsub.f32 %v6767, %v6383
        %v7116 = vsub.f32 %v6770, %v6386
        %v7117 = vsub.f32 %v6773, %v6389
        %v7118 = vsub.f32 %v6776, %v6392
        %v7119 = vsub.f32 %v6779, %v6395
        %v7120 = vsub.f32 %v6782, %v6398
        %v7121 = vsub.f32 %v6785, %v6401
        %v7122 = vsub.f32 %v6788, %v6404
        %v7123 = vsub.f32 %v6791, %v6407
        %v7124 = vsub.f32 %v6794, %v6410
        %v7125 = vsub.f32 %v6797, %v6413
        %v7126 = vsub.f32 %v6800, %v6416
        %v7127 = vsub.f32 %v6803, %v6419
        %v7128 = vsub.f32 %v6806, %v6422
        %v7129 = vsub.f32 %v6809, %v6425
        %v7130 = vsub.f32 %v6812, %v6428
        %v7131 = vsub.f32 %v6815, %v6431
        %v7132 = vsub.f32 %v6818, %v6434
        %v7133 = vsub.f32 %v6821, %v6437
        %v7134 = vsub.f32 %v6824, %v6440
        %v7135 = vsub.f32 %v6827, %v6443
        %v7136 = vsub.f32 %v6830, %v6446
        %v7137 = vsub.f32 %v6833, %v6449
        %v7138 = vsub.f32 %v6836, %v6452
        %v7139 = vsub.f32 %v6839, %v6455
        %v7140 = vsub.f32 %v6842, %v6458
        %v7141 = vsub.f32 %v6845, %v6461
        %v7142 = vsub.f32 %v6848, %v6464
        %v7143 = vsub.f32 %v6851, %v6467
        %v7144 = vsub.f32 %v6854, %v6470
        %v7145 = vsub.f32 %v6857, %v6473
        %v7146 = vsub.f32 %v6860, %v6476
        %v7147 = vsub.f32 %v6863, %v6479
        %v7148 = vsub.f32 %v6866, %v6482
        %v7149 = vsub.f32 %v6869, %v6485
        %v7150 = vsub.f32 %v6872, %v6488
        %v7151 = vsub.f32 %v6875, %v6491
        %v7152 = vsub.f32 %v6878, %v6494
        %v7153 = vsub.f32 %v6881, %v6497
        %v7154 = vsub.f32 %v6884, %v6500
        %v7155 = vsub.f32 %v6887, %v6503
        %v7156 = vsub.f32 %v6890, %v6506
        %v7157 = vsub.f32 %v6893, %v6509
        %v7158 = vsub.f32 %v6896, %v6512
        %v7159 = vsub.f32 %v6899, %v6515
        %v7160 = vsub.f32 %v6902, %v6518
        %v7161 = vsub.f32 %v6905, %v6521
        %v7162 = vsub.f32 %v6908, %v6524
        %v7163 = vsub.f32 %v6911, %v6527
        %v7164 = vsub.f32 %v6914, %v6530
        %v7165 = vsub.f32 %v6917, %v6533
        %v7166 = vsub.f32 %v6920, %v6536
        %v7167 = vsub.f32 %v6923, %v6539
        %v7168 = vsub.f32 %v6926, %v6542
        %v7169 = vsub.f32 %v6929, %v6545
        %v7170 = vsub.f32 %v6932, %v6548
        %v7171 = vsub.f32 %v6935, %v6551
        %v7172 = vsub.f32 %v6938, %v6554
        %v7173 = vsub.f32 %v6941, %v6557
        %v7174 = vsub.f32 %v6944, %v6560
        %v7175 = vsub.f32 %v6947, %v6563
        %v7176 = vsub.f32 %v6950, %v6566
        %v7177 = vsub.f32 %v6953, %v6569
        %v7178 = vsub.f32 %v6956, %v6572
        %v7179 = vsub.f32 %v6959, %v6575
        %v7180 = vsub.f32 %v6962, %v6578
        %v7181 = vsub.f32 %v6965, %v6581
        %v7182 = vsub.f32 %v6968, %v6584
        %v7183 = vsub.f32 %v6971, %v6587
        %v7184 = vsub.f32 %v6974, %v6590
        %v7185 = vsub.f32 %v6977, %v6593
        %v7186 = vsub.f32 %v6980, %v6596
        %v7187 = vsub.f32 %v6983, %v6599
        %v7188 = vsub.f32 %v6986, %v6602
        %v7189 = vsub.f32 %v6989, %v6605
        %v7190 = vsub.f32 %v6992, %v6608
        %v7191 = vsub.f32 %v6995, %v6611
        %v7192 = vsub.f32 %v6998, %v6614
        %v7193 = vsub.f32 %v7001, %v6617
        %v7194 = vsub.f32 %v7004, %v6620
        %v7195 = vsub.f32 %v7007, %v6623
        %v7196 = vsub.f32 %v7010, %v6626
        %v7197 = vsub.f32 %v7013, %v6629
        %v7198 = vsub.f32 %v7016, %v6632
        %v7199 = vsub.f32 %v7019, %v6635
        %v7200 = vsub.f32 %v7022, %v6638
        %v7201 = vsub.f32 %v7025, %v6641
        %v7202 = vsub.f32 %v7028, %v6644
        %v7203 = vsub.f32 %v7031, %v6647
        %v7204 = vsub.f32 %v7034, %v6650
        %v7205 = vsub.f32 %v7037, %v6653
        %v7206 = vsub.f32 %v7040, %v6656
        %v7207 = vsub.f32 %v7043, %v6659
        %v7208 = vsub.f32 %v7046, %v6662
        %v7209 = vsub.f32 %v7049, %v6665
        %v7210 = vsub.f32 %v7052, %v6668
        %v7211 = vsub.f32 %v7055, %v6671
        %v7212 = vsub.f32 %v7058, %v6674
        %v7213 = vsub.f32 %v7061, %v6677
        %v7214 = vsub.f32 %v7064, %v6680
        %v7215 = vsub.f32 %v7067, %v6683
        %v7216 = vsub.f32 %v7070, %v6686
        %v7217 = vsub.f32 %v7073, %v6689
        %v7218 = vsub.f32 %v7076, %v6692
        %v7219 = vsub.f32 %v7079, %v6695
        %v7220 = vsub.f32 %v7082, %v6698
        %v7221 = vsub.f32 %v7085, %v6701
        %v7222 = vsub.f32 %v7088, %v6704
        %v7223 = vsub.f32 %v7091, %v6707
        %v7224 = vsub.f32 %v7094, %v6710
        %v7225 = vsub.f32 %v7097, %v6713
        %v7226 = vsel %vm1196, %v6332, %v7098
        %v7227 = vsel %vm1196, %v6335, %v7099
        %v7228 = vsel %vm1196, %v6338, %v7100
        %v7229 = vsel %vm1196, %v6341, %v7101
        %v7230 = vsel %vm1196, %v6344, %v7102
        %v7231 = vsel %vm1196, %v6347, %v7103
        %v7232 = vsel %vm1196, %v6350, %v7104
        %v7233 = vsel %vm1196, %v6353, %v7105
        %v7234 = vsel %vm1196, %v6356, %v7106
        %v7235 = vsel %vm1196, %v6359, %v7107
        %v7236 = vsel %vm1196, %v6362, %v7108
        %v7237 = vsel %vm1196, %v6365, %v7109
        %v7238 = vsel %vm1196, %v6368, %v7110
        %v7239 = vsel %vm1196, %v6371, %v7111
        %v7240 = vsel %vm1196, %v6374, %v7112
        %v7241 = vsel %vm1196, %v6377, %v7113
        %v7242 = vsel %vm1196, %v6380, %v7114
        %v7243 = vsel %vm1196, %v6383, %v7115
        %v7244 = vsel %vm1196, %v6386, %v7116
        %v7245 = vsel %vm1196, %v6389, %v7117
        %v7246 = vsel %vm1196, %v6392, %v7118
        %v7247 = vsel %vm1196, %v6395, %v7119
        %v7248 = vsel %vm1196, %v6398, %v7120
        %v7249 = vsel %vm1196, %v6401, %v7121
        %v7250 = vsel %vm1196, %v6404, %v7122
        %v7251 = vsel %vm1196, %v6407, %v7123
        %v7252 = vsel %vm1196, %v6410, %v7124
        %v7253 = vsel %vm1196, %v6413, %v7125
        %v7254 = vsel %vm1196, %v6416, %v7126
        %v7255 = vsel %vm1196, %v6419, %v7127
        %v7256 = vsel %vm1196, %v6422, %v7128
        %v7257 = vsel %vm1196, %v6425, %v7129
        %v7258 = vsel %vm1196, %v6428, %v7130
        %v7259 = vsel %vm1196, %v6431, %v7131
        %v7260 = vsel %vm1196, %v6434, %v7132
        %v7261 = vsel %vm1196, %v6437, %v7133
        %v7262 = vsel %vm1196, %v6440, %v7134
        %v7263 = vsel %vm1196, %v6443, %v7135
        %v7264 = vsel %vm1196, %v6446, %v7136
        %v7265 = vsel %vm1196, %v6449, %v7137
        %v7266 = vsel %vm1196, %v6452, %v7138
        %v7267 = vsel %vm1196, %v6455, %v7139
        %v7268 = vsel %vm1196, %v6458, %v7140
        %v7269 = vsel %vm1196, %v6461, %v7141
        %v7270 = vsel %vm1196, %v6464, %v7142
        %v7271 = vsel %vm1196, %v6467, %v7143
        %v7272 = vsel %vm1196, %v6470, %v7144
        %v7273 = vsel %vm1196, %v6473, %v7145
        %v7274 = vsel %vm1196, %v6476, %v7146
        %v7275 = vsel %vm1196, %v6479, %v7147
        %v7276 = vsel %vm1196, %v6482, %v7148
        %v7277 = vsel %vm1196, %v6485, %v7149
        %v7278 = vsel %vm1196, %v6488, %v7150
        %v7279 = vsel %vm1196, %v6491, %v7151
        %v7280 = vsel %vm1196, %v6494, %v7152
        %v7281 = vsel %vm1196, %v6497, %v7153
        %v7282 = vsel %vm1196, %v6500, %v7154
        %v7283 = vsel %vm1196, %v6503, %v7155
        %v7284 = vsel %vm1196, %v6506, %v7156
        %v7285 = vsel %vm1196, %v6509, %v7157
        %v7286 = vsel %vm1196, %v6512, %v7158
        %v7287 = vsel %vm1196, %v6515, %v7159
        %v7288 = vsel %vm1196, %v6518, %v7160
        %v7289 = vsel %vm1196, %v6521, %v7161
        %v7290 = vsel %vm1196, %v6524, %v7162
        %v7291 = vsel %vm1196, %v6527, %v7163
        %v7292 = vsel %vm1196, %v6530, %v7164
        %v7293 = vsel %vm1196, %v6533, %v7165
        %v7294 = vsel %vm1196, %v6536, %v7166
        %v7295 = vsel %vm1196, %v6539, %v7167
        %v7296 = vsel %vm1196, %v6542, %v7168
        %v7297 = vsel %vm1196, %v6545, %v7169
        %v7298 = vsel %vm1196, %v6548, %v7170
        %v7299 = vsel %vm1196, %v6551, %v7171
        %v7300 = vsel %vm1196, %v6554, %v7172
        %v7301 = vsel %vm1196, %v6557, %v7173
        %v7302 = vsel %vm1196, %v6560, %v7174
        %v7303 = vsel %vm1196, %v6563, %v7175
        %v7304 = vsel %vm1196, %v6566, %v7176
        %v7305 = vsel %vm1196, %v6569, %v7177
        %v7306 = vsel %vm1196, %v6572, %v7178
        %v7307 = vsel %vm1196, %v6575, %v7179
        %v7308 = vsel %vm1196, %v6578, %v7180
        %v7309 = vsel %vm1196, %v6581, %v7181
        %v7310 = vsel %vm1196, %v6584, %v7182
        %v7311 = vsel %vm1196, %v6587, %v7183
        %v7312 = vsel %vm1196, %v6590, %v7184
        %v7313 = vsel %vm1196, %v6593, %v7185
        %v7314 = vsel %vm1196, %v6596, %v7186
        %v7315 = vsel %vm1196, %v6599, %v7187
        %v7316 = vsel %vm1196, %v6602, %v7188
        %v7317 = vsel %vm1196, %v6605, %v7189
        %v7318 = vsel %vm1196, %v6608, %v7190
        %v7319 = vsel %vm1196, %v6611, %v7191
        %v7320 = vsel %vm1196, %v6614, %v7192
        %v7321 = vsel %vm1196, %v6617, %v7193
        %v7322 = vsel %vm1196, %v6620, %v7194
        %v7323 = vsel %vm1196, %v6623, %v7195
        %v7324 = vsel %vm1196, %v6626, %v7196
        %v7325 = vsel %vm1196, %v6629, %v7197
        %v7326 = vsel %vm1196, %v6632, %v7198
        %v7327 = vsel %vm1196, %v6635, %v7199
        %v7328 = vsel %vm1196, %v6638, %v7200
        %v7329 = vsel %vm1196, %v6641, %v7201
        %v7330 = vsel %vm1196, %v6644, %v7202
        %v7331 = vsel %vm1196, %v6647, %v7203
        %v7332 = vsel %vm1196, %v6650, %v7204
        %v7333 = vsel %vm1196, %v6653, %v7205
        %v7334 = vsel %vm1196, %v6656, %v7206
        %v7335 = vsel %vm1196, %v6659, %v7207
        %v7336 = vsel %vm1196, %v6662, %v7208
        %v7337 = vsel %vm1196, %v6665, %v7209
        %v7338 = vsel %vm1196, %v6668, %v7210
        %v7339 = vsel %vm1196, %v6671, %v7211
        %v7340 = vsel %vm1196, %v6674, %v7212
        %v7341 = vsel %vm1196, %v6677, %v7213
        %v7342 = vsel %vm1196, %v6680, %v7214
        %v7343 = vsel %vm1196, %v6683, %v7215
        %v7344 = vsel %vm1196, %v6686, %v7216
        %v7345 = vsel %vm1196, %v6689, %v7217
        %v7346 = vsel %vm1196, %v6692, %v7218
        %v7347 = vsel %vm1196, %v6695, %v7219
        %v7348 = vsel %vm1196, %v6698, %v7220
        %v7349 = vsel %vm1196, %v6701, %v7221
        %v7350 = vsel %vm1196, %v6704, %v7222
        %v7351 = vsel %vm1196, %v6707, %v7223
        %v7352 = vsel %vm1196, %v6710, %v7224
        %v7353 = vsel %vm1196, %v6713, %v7225
        %v7354 = vmul.f32 %v7226, 0.03125
        %v7355 = vmul.f32 %v7227, 0.03125
        %v7356 = vmul.f32 %v7228, 0.03125
        %v7357 = vmul.f32 %v7229, 0.03125
        %v7358 = vmul.f32 %v7230, 0.03125
        %v7359 = vmul.f32 %v7231, 0.03125
        %v7360 = vmul.f32 %v7232, 0.03125
        %v7361 = vmul.f32 %v7233, 0.03125
        %v7362 = vmul.f32 %v7234, 0.03125
        %v7363 = vmul.f32 %v7235, 0.03125
        %v7364 = vmul.f32 %v7236, 0.03125
        %v7365 = vmul.f32 %v7237, 0.03125
        %v7366 = vmul.f32 %v7238, 0.03125
        %v7367 = vmul.f32 %v7239, 0.03125
        %v7368 = vmul.f32 %v7240, 0.03125
        %v7369 = vmul.f32 %v7241, 0.03125
        %v7370 = vmul.f32 %v7242, 0.03125
        %v7371 = vmul.f32 %v7243, 0.03125
        %v7372 = vmul.f32 %v7244, 0.03125
        %v7373 = vmul.f32 %v7245, 0.03125
        %v7374 = vmul.f32 %v7246, 0.03125
        %v7375 = vmul.f32 %v7247, 0.03125
        %v7376 = vmul.f32 %v7248, 0.03125
        %v7377 = vmul.f32 %v7249, 0.03125
        %v7378 = vmul.f32 %v7250, 0.03125
        %v7379 = vmul.f32 %v7251, 0.03125
        %v7380 = vmul.f32 %v7252, 0.03125
        %v7381 = vmul.f32 %v7253, 0.03125
        %v7382 = vmul.f32 %v7254, 0.03125
        %v7383 = vmul.f32 %v7255, 0.03125
        %v7384 = vmul.f32 %v7256, 0.03125
        %v7385 = vmul.f32 %v7257, 0.03125
        %v7386 = vmul.f32 %v7258, 0.03125
        %v7387 = vmul.f32 %v7259, 0.03125
        %v7388 = vmul.f32 %v7260, 0.03125
        %v7389 = vmul.f32 %v7261, 0.03125
        %v7390 = vmul.f32 %v7262, 0.03125
        %v7391 = vmul.f32 %v7263, 0.03125
        %v7392 = vmul.f32 %v7264, 0.03125
        %v7393 = vmul.f32 %v7265, 0.03125
        %v7394 = vmul.f32 %v7266, 0.03125
        %v7395 = vmul.f32 %v7267, 0.03125
        %v7396 = vmul.f32 %v7268, 0.03125
        %v7397 = vmul.f32 %v7269, 0.03125
        %v7398 = vmul.f32 %v7270, 0.03125
        %v7399 = vmul.f32 %v7271, 0.03125
        %v7400 = vmul.f32 %v7272, 0.03125
        %v7401 = vmul.f32 %v7273, 0.03125
        %v7402 = vmul.f32 %v7274, 0.03125
        %v7403 = vmul.f32 %v7275, 0.03125
        %v7404 = vmul.f32 %v7276, 0.03125
        %v7405 = vmul.f32 %v7277, 0.03125
        %v7406 = vmul.f32 %v7278, 0.03125
        %v7407 = vmul.f32 %v7279, 0.03125
        %v7408 = vmul.f32 %v7280, 0.03125
        %v7409 = vmul.f32 %v7281, 0.03125
        %v7410 = vmul.f32 %v7282, 0.03125
        %v7411 = vmul.f32 %v7283, 0.03125
        %v7412 = vmul.f32 %v7284, 0.03125
        %v7413 = vmul.f32 %v7285, 0.03125
        %v7414 = vmul.f32 %v7286, 0.03125
        %v7415 = vmul.f32 %v7287, 0.03125
        %v7416 = vmul.f32 %v7288, 0.03125
        %v7417 = vmul.f32 %v7289, 0.03125
        %v7418 = vmul.f32 %v7290, 0.03125
        %v7419 = vmul.f32 %v7291, 0.03125
        %v7420 = vmul.f32 %v7292, 0.03125
        %v7421 = vmul.f32 %v7293, 0.03125
        %v7422 = vmul.f32 %v7294, 0.03125
        %v7423 = vmul.f32 %v7295, 0.03125
        %v7424 = vmul.f32 %v7296, 0.03125
        %v7425 = vmul.f32 %v7297, 0.03125
        %v7426 = vmul.f32 %v7298, 0.03125
        %v7427 = vmul.f32 %v7299, 0.03125
        %v7428 = vmul.f32 %v7300, 0.03125
        %v7429 = vmul.f32 %v7301, 0.03125
        %v7430 = vmul.f32 %v7302, 0.03125
        %v7431 = vmul.f32 %v7303, 0.03125
        %v7432 = vmul.f32 %v7304, 0.03125
        %v7433 = vmul.f32 %v7305, 0.03125
        %v7434 = vmul.f32 %v7306, 0.03125
        %v7435 = vmul.f32 %v7307, 0.03125
        %v7436 = vmul.f32 %v7308, 0.03125
        %v7437 = vmul.f32 %v7309, 0.03125
        %v7438 = vmul.f32 %v7310, 0.03125
        %v7439 = vmul.f32 %v7311, 0.03125
        %v7440 = vmul.f32 %v7312, 0.03125
        %v7441 = vmul.f32 %v7313, 0.03125
        %v7442 = vmul.f32 %v7314, 0.03125
        %v7443 = vmul.f32 %v7315, 0.03125
        %v7444 = vmul.f32 %v7316, 0.03125
        %v7445 = vmul.f32 %v7317, 0.03125
        %v7446 = vmul.f32 %v7318, 0.03125
        %v7447 = vmul.f32 %v7319, 0.03125
        %v7448 = vmul.f32 %v7320, 0.03125
        %v7449 = vmul.f32 %v7321, 0.03125
        %v7450 = vmul.f32 %v7322, 0.03125
        %v7451 = vmul.f32 %v7323, 0.03125
        %v7452 = vmul.f32 %v7324, 0.03125
        %v7453 = vmul.f32 %v7325, 0.03125
        %v7454 = vmul.f32 %v7326, 0.03125
        %v7455 = vmul.f32 %v7327, 0.03125
        %v7456 = vmul.f32 %v7328, 0.03125
        %v7457 = vmul.f32 %v7329, 0.03125
        %v7458 = vmul.f32 %v7330, 0.03125
        %v7459 = vmul.f32 %v7331, 0.03125
        %v7460 = vmul.f32 %v7332, 0.03125
        %v7461 = vmul.f32 %v7333, 0.03125
        %v7462 = vmul.f32 %v7334, 0.03125
        %v7463 = vmul.f32 %v7335, 0.03125
        %v7464 = vmul.f32 %v7336, 0.03125
        %v7465 = vmul.f32 %v7337, 0.03125
        %v7466 = vmul.f32 %v7338, 0.03125
        %v7467 = vmul.f32 %v7339, 0.03125
        %v7468 = vmul.f32 %v7340, 0.03125
        %v7469 = vmul.f32 %v7341, 0.03125
        %v7470 = vmul.f32 %v7342, 0.03125
        %v7471 = vmul.f32 %v7343, 0.03125
        %v7472 = vmul.f32 %v7344, 0.03125
        %v7473 = vmul.f32 %v7345, 0.03125
        %v7474 = vmul.f32 %v7346, 0.03125
        %v7475 = vmul.f32 %v7347, 0.03125
        %v7476 = vmul.f32 %v7348, 0.03125
        %v7477 = vmul.f32 %v7349, 0.03125
        %v7478 = vmul.f32 %v7350, 0.03125
        %v7479 = vmul.f32 %v7351, 0.03125
        %v7480 = vmul.f32 %v7352, 0.03125
        %v7481 = vmul.f32 %v7353, 0.03125
        %7610 = vrot.lane.b32.xlu0 %v7354, 64
        %v7611 = vpop.permute.xlu0 %7610
        %7612 = vrot.lane.b32.xlu0 %v7355, 64
        %v7613 = vpop.permute.xlu0 %7612
        %7614 = vrot.lane.b32.xlu0 %v7356, 64
        %v7615 = vpop.permute.xlu0 %7614
        %7616 = vrot.lane.b32.xlu0 %v7357, 64
        %v7617 = vpop.permute.xlu0 %7616
        %7618 = vrot.lane.b32.xlu0 %v7358, 64
        %v7619 = vpop.permute.xlu0 %7618
        %7620 = vrot.lane.b32.xlu0 %v7359, 64
        %v7621 = vpop.permute.xlu0 %7620
        %7622 = vrot.lane.b32.xlu0 %v7360, 64
        %v7623 = vpop.permute.xlu0 %7622
        %7624 = vrot.lane.b32.xlu0 %v7361, 64
        %v7625 = vpop.permute.xlu0 %7624
        %7626 = vrot.lane.b32.xlu0 %v7362, 64
        %v7627 = vpop.permute.xlu0 %7626
        %7628 = vrot.lane.b32.xlu0 %v7363, 64
        %v7629 = vpop.permute.xlu0 %7628
        %7630 = vrot.lane.b32.xlu0 %v7364, 64
        %v7631 = vpop.permute.xlu0 %7630
        %7632 = vrot.lane.b32.xlu0 %v7365, 64
        %v7633 = vpop.permute.xlu0 %7632
        %7634 = vrot.lane.b32.xlu0 %v7366, 64
        %v7635 = vpop.permute.xlu0 %7634
        %7636 = vrot.lane.b32.xlu0 %v7367, 64
        %v7637 = vpop.permute.xlu0 %7636
        %7638 = vrot.lane.b32.xlu0 %v7368, 64
        %v7639 = vpop.permute.xlu0 %7638
        %7640 = vrot.lane.b32.xlu0 %v7369, 64
        %v7641 = vpop.permute.xlu0 %7640
        %7642 = vrot.lane.b32.xlu0 %v7370, 64
        %v7643 = vpop.permute.xlu0 %7642
        %7644 = vrot.lane.b32.xlu0 %v7371, 64
        %v7645 = vpop.permute.xlu0 %7644
        %7646 = vrot.lane.b32.xlu0 %v7372, 64
        %v7647 = vpop.permute.xlu0 %7646
        %7648 = vrot.lane.b32.xlu0 %v7373, 64
        %v7649 = vpop.permute.xlu0 %7648
        %7650 = vrot.lane.b32.xlu0 %v7374, 64
        %v7651 = vpop.permute.xlu0 %7650
        %7652 = vrot.lane.b32.xlu0 %v7375, 64
        %v7653 = vpop.permute.xlu0 %7652
        %7654 = vrot.lane.b32.xlu0 %v7376, 64
        %v7655 = vpop.permute.xlu0 %7654
        %7656 = vrot.lane.b32.xlu0 %v7377, 64
        %v7657 = vpop.permute.xlu0 %7656
        %7658 = vrot.lane.b32.xlu0 %v7378, 64
        %v7659 = vpop.permute.xlu0 %7658
        %7660 = vrot.lane.b32.xlu0 %v7379, 64
        %v7661 = vpop.permute.xlu0 %7660
        %7662 = vrot.lane.b32.xlu0 %v7380, 64
        %v7663 = vpop.permute.xlu0 %7662
        %7664 = vrot.lane.b32.xlu0 %v7381, 64
        %v7665 = vpop.permute.xlu0 %7664
        %7666 = vrot.lane.b32.xlu0 %v7382, 64
        %v7667 = vpop.permute.xlu0 %7666
        %7668 = vrot.lane.b32.xlu0 %v7383, 64
        %v7669 = vpop.permute.xlu0 %7668
        %7670 = vrot.lane.b32.xlu0 %v7384, 64
        %v7671 = vpop.permute.xlu0 %7670
        %7672 = vrot.lane.b32.xlu0 %v7385, 64
        %v7673 = vpop.permute.xlu0 %7672
        %7674 = vrot.lane.b32.xlu0 %v7386, 64
        %v7675 = vpop.permute.xlu0 %7674
        %7676 = vrot.lane.b32.xlu0 %v7387, 64
        %v7677 = vpop.permute.xlu0 %7676
        %7678 = vrot.lane.b32.xlu0 %v7388, 64
        %v7679 = vpop.permute.xlu0 %7678
        %7680 = vrot.lane.b32.xlu0 %v7389, 64
        %v7681 = vpop.permute.xlu0 %7680
        %7682 = vrot.lane.b32.xlu0 %v7390, 64
        %v7683 = vpop.permute.xlu0 %7682
        %7684 = vrot.lane.b32.xlu0 %v7391, 64
        %v7685 = vpop.permute.xlu0 %7684
        %7686 = vrot.lane.b32.xlu0 %v7392, 64
        %v7687 = vpop.permute.xlu0 %7686
        %7688 = vrot.lane.b32.xlu0 %v7393, 64
        %v7689 = vpop.permute.xlu0 %7688
        %7690 = vrot.lane.b32.xlu0 %v7394, 64
        %v7691 = vpop.permute.xlu0 %7690
        %7692 = vrot.lane.b32.xlu0 %v7395, 64
        %v7693 = vpop.permute.xlu0 %7692
        %7694 = vrot.lane.b32.xlu0 %v7396, 64
        %v7695 = vpop.permute.xlu0 %7694
        %7696 = vrot.lane.b32.xlu0 %v7397, 64
        %v7697 = vpop.permute.xlu0 %7696
        %7698 = vrot.lane.b32.xlu0 %v7398, 64
        %v7699 = vpop.permute.xlu0 %7698
        %7700 = vrot.lane.b32.xlu0 %v7399, 64
        %v7701 = vpop.permute.xlu0 %7700
        %7702 = vrot.lane.b32.xlu0 %v7400, 64
        %v7703 = vpop.permute.xlu0 %7702
        %7704 = vrot.lane.b32.xlu0 %v7401, 64
        %v7705 = vpop.permute.xlu0 %7704
        %7706 = vrot.lane.b32.xlu0 %v7402, 64
        %v7707 = vpop.permute.xlu0 %7706
        %7708 = vrot.lane.b32.xlu0 %v7403, 64
        %v7709 = vpop.permute.xlu0 %7708
        %7710 = vrot.lane.b32.xlu0 %v7404, 64
        %v7711 = vpop.permute.xlu0 %7710
        %7712 = vrot.lane.b32.xlu0 %v7405, 64
        %v7713 = vpop.permute.xlu0 %7712
        %7714 = vrot.lane.b32.xlu0 %v7406, 64
        %v7715 = vpop.permute.xlu0 %7714
        %7716 = vrot.lane.b32.xlu0 %v7407, 64
        %v7717 = vpop.permute.xlu0 %7716
        %7718 = vrot.lane.b32.xlu0 %v7408, 64
        %v7719 = vpop.permute.xlu0 %7718
        %7720 = vrot.lane.b32.xlu0 %v7409, 64
        %v7721 = vpop.permute.xlu0 %7720
        %7722 = vrot.lane.b32.xlu0 %v7410, 64
        %v7723 = vpop.permute.xlu0 %7722
        %7724 = vrot.lane.b32.xlu0 %v7411, 64
        %v7725 = vpop.permute.xlu0 %7724
        %7726 = vrot.lane.b32.xlu0 %v7412, 64
        %v7727 = vpop.permute.xlu0 %7726
        %7728 = vrot.lane.b32.xlu0 %v7413, 64
        %v7729 = vpop.permute.xlu0 %7728
        %7730 = vrot.lane.b32.xlu0 %v7414, 64
        %v7731 = vpop.permute.xlu0 %7730
        %7732 = vrot.lane.b32.xlu0 %v7415, 64
        %v7733 = vpop.permute.xlu0 %7732
        %7734 = vrot.lane.b32.xlu0 %v7416, 64
        %v7735 = vpop.permute.xlu0 %7734
        %7736 = vrot.lane.b32.xlu0 %v7417, 64
        %v7737 = vpop.permute.xlu0 %7736
        %7738 = vrot.lane.b32.xlu0 %v7418, 64
        %v7739 = vpop.permute.xlu0 %7738
        %7740 = vrot.lane.b32.xlu0 %v7419, 64
        %v7741 = vpop.permute.xlu0 %7740
        %7742 = vrot.lane.b32.xlu0 %v7420, 64
        %v7743 = vpop.permute.xlu0 %7742
        %7744 = vrot.lane.b32.xlu0 %v7421, 64
        %v7745 = vpop.permute.xlu0 %7744
        %7746 = vrot.lane.b32.xlu0 %v7422, 64
        %v7747 = vpop.permute.xlu0 %7746
        %7748 = vrot.lane.b32.xlu0 %v7423, 64
        %v7749 = vpop.permute.xlu0 %7748
        %7750 = vrot.lane.b32.xlu0 %v7424, 64
        %v7751 = vpop.permute.xlu0 %7750
        %7752 = vrot.lane.b32.xlu0 %v7425, 64
        %v7753 = vpop.permute.xlu0 %7752
        %7754 = vrot.lane.b32.xlu0 %v7426, 64
        %v7755 = vpop.permute.xlu0 %7754
        %7756 = vrot.lane.b32.xlu0 %v7427, 64
        %v7757 = vpop.permute.xlu0 %7756
        %7758 = vrot.lane.b32.xlu0 %v7428, 64
        %v7759 = vpop.permute.xlu0 %7758
        %7760 = vrot.lane.b32.xlu0 %v7429, 64
        %v7761 = vpop.permute.xlu0 %7760
        %7762 = vrot.lane.b32.xlu0 %v7430, 64
        %v7763 = vpop.permute.xlu0 %7762
        %7764 = vrot.lane.b32.xlu0 %v7431, 64
        %v7765 = vpop.permute.xlu0 %7764
        %7766 = vrot.lane.b32.xlu0 %v7432, 64
        %v7767 = vpop.permute.xlu0 %7766
        %7768 = vrot.lane.b32.xlu0 %v7433, 64
        %v7769 = vpop.permute.xlu0 %7768
        %7770 = vrot.lane.b32.xlu0 %v7434, 64
        %v7771 = vpop.permute.xlu0 %7770
        %7772 = vrot.lane.b32.xlu0 %v7435, 64
        %v7773 = vpop.permute.xlu0 %7772
        %7774 = vrot.lane.b32.xlu0 %v7436, 64
        %v7775 = vpop.permute.xlu0 %7774
        %7776 = vrot.lane.b32.xlu0 %v7437, 64
        %v7777 = vpop.permute.xlu0 %7776
        %7778 = vrot.lane.b32.xlu0 %v7438, 64
        %v7779 = vpop.permute.xlu0 %7778
        %7780 = vrot.lane.b32.xlu0 %v7439, 64
        %v7781 = vpop.permute.xlu0 %7780
        %7782 = vrot.lane.b32.xlu0 %v7440, 64
        %v7783 = vpop.permute.xlu0 %7782
        %7784 = vrot.lane.b32.xlu0 %v7441, 64
        %v7785 = vpop.permute.xlu0 %7784
        %7786 = vrot.lane.b32.xlu0 %v7442, 64
        %v7787 = vpop.permute.xlu0 %7786
        %7788 = vrot.lane.b32.xlu0 %v7443, 64
        %v7789 = vpop.permute.xlu0 %7788
        %7790 = vrot.lane.b32.xlu0 %v7444, 64
        %v7791 = vpop.permute.xlu0 %7790
        %7792 = vrot.lane.b32.xlu0 %v7445, 64
        %v7793 = vpop.permute.xlu0 %7792
        %7794 = vrot.lane.b32.xlu0 %v7446, 64
        %v7795 = vpop.permute.xlu0 %7794
        %7796 = vrot.lane.b32.xlu0 %v7447, 64
        %v7797 = vpop.permute.xlu0 %7796
        %7798 = vrot.lane.b32.xlu0 %v7448, 64
        %v7799 = vpop.permute.xlu0 %7798
        %7800 = vrot.lane.b32.xlu0 %v7449, 64
        %v7801 = vpop.permute.xlu0 %7800
        %7802 = vrot.lane.b32.xlu0 %v7450, 64
        %v7803 = vpop.permute.xlu0 %7802
        %7804 = vrot.lane.b32.xlu0 %v7451, 64
        %v7805 = vpop.permute.xlu0 %7804
        %7806 = vrot.lane.b32.xlu0 %v7452, 64
        %v7807 = vpop.permute.xlu0 %7806
        %7808 = vrot.lane.b32.xlu0 %v7453, 64
        %v7809 = vpop.permute.xlu0 %7808
        %7810 = vrot.lane.b32.xlu0 %v7454, 64
        %v7811 = vpop.permute.xlu0 %7810
        %7812 = vrot.lane.b32.xlu0 %v7455, 64
        %v7813 = vpop.permute.xlu0 %7812
        %7814 = vrot.lane.b32.xlu0 %v7456, 64
        %v7815 = vpop.permute.xlu0 %7814
        %7816 = vrot.lane.b32.xlu0 %v7457, 64
        %v7817 = vpop.permute.xlu0 %7816
        %7818 = vrot.lane.b32.xlu0 %v7458, 64
        %v7819 = vpop.permute.xlu0 %7818
        %7820 = vrot.lane.b32.xlu0 %v7459, 64
        %v7821 = vpop.permute.xlu0 %7820
        %7822 = vrot.lane.b32.xlu0 %v7460, 64
        %v7823 = vpop.permute.xlu0 %7822
        %7824 = vrot.lane.b32.xlu0 %v7461, 64
        %v7825 = vpop.permute.xlu0 %7824
        %7826 = vrot.lane.b32.xlu0 %v7462, 64
        %v7827 = vpop.permute.xlu0 %7826
        %7828 = vrot.lane.b32.xlu0 %v7463, 64
        %v7829 = vpop.permute.xlu0 %7828
        %7830 = vrot.lane.b32.xlu0 %v7464, 64
        %v7831 = vpop.permute.xlu0 %7830
        %7832 = vrot.lane.b32.xlu0 %v7465, 64
        %v7833 = vpop.permute.xlu0 %7832
        %7834 = vrot.lane.b32.xlu0 %v7466, 64
        %v7835 = vpop.permute.xlu0 %7834
        %7836 = vrot.lane.b32.xlu0 %v7467, 64
        %v7837 = vpop.permute.xlu0 %7836
        %7838 = vrot.lane.b32.xlu0 %v7468, 64
        %v7839 = vpop.permute.xlu0 %7838
        %7840 = vrot.lane.b32.xlu0 %v7469, 64
        %v7841 = vpop.permute.xlu0 %7840
        %7842 = vrot.lane.b32.xlu0 %v7470, 64
        %v7843 = vpop.permute.xlu0 %7842
        %7844 = vrot.lane.b32.xlu0 %v7471, 64
        %v7845 = vpop.permute.xlu0 %7844
        %7846 = vrot.lane.b32.xlu0 %v7472, 64
        %v7847 = vpop.permute.xlu0 %7846
        %7848 = vrot.lane.b32.xlu0 %v7473, 64
        %v7849 = vpop.permute.xlu0 %7848
        %7850 = vrot.lane.b32.xlu0 %v7474, 64
        %v7851 = vpop.permute.xlu0 %7850
        %7852 = vrot.lane.b32.xlu0 %v7475, 64
        %v7853 = vpop.permute.xlu0 %7852
        %7854 = vrot.lane.b32.xlu0 %v7476, 64
        %v7855 = vpop.permute.xlu0 %7854
        %7856 = vrot.lane.b32.xlu0 %v7477, 64
        %v7857 = vpop.permute.xlu0 %7856
        %7858 = vrot.lane.b32.xlu0 %v7478, 64
        %v7859 = vpop.permute.xlu0 %7858
        %7860 = vrot.lane.b32.xlu0 %v7479, 64
        %v7861 = vpop.permute.xlu0 %7860
        %7862 = vrot.lane.b32.xlu0 %v7480, 64
        %v7863 = vpop.permute.xlu0 %7862
        %7864 = vrot.lane.b32.xlu0 %v7481, 64
        %v7865 = vpop.permute.xlu0 %7864
        %v7994 = vsub.f32 %v682, %v7611
        %v7995 = vsub.f32 %v685, %v7613
        %v7996 = vsub.f32 %v690, %v7615
        %v7997 = vsub.f32 %v693, %v7617
        %v7998 = vsub.f32 %v698, %v7619
        %v7999 = vsub.f32 %v701, %v7621
        %v8000 = vsub.f32 %v706, %v7623
        %v8001 = vsub.f32 %v709, %v7625
        %v8002 = vsub.f32 %v714, %v7627
        %v8003 = vsub.f32 %v717, %v7629
        %v8004 = vsub.f32 %v722, %v7631
        %v8005 = vsub.f32 %v725, %v7633
        %v8006 = vsub.f32 %v730, %v7635
        %v8007 = vsub.f32 %v733, %v7637
        %v8008 = vsub.f32 %v738, %v7639
        %v8009 = vsub.f32 %v741, %v7641
        %v8010 = vsub.f32 %v746, %v7643
        %v8011 = vsub.f32 %v749, %v7645
        %v8012 = vsub.f32 %v754, %v7647
        %v8013 = vsub.f32 %v757, %v7649
        %v8014 = vsub.f32 %v762, %v7651
        %v8015 = vsub.f32 %v765, %v7653
        %v8016 = vsub.f32 %v770, %v7655
        %v8017 = vsub.f32 %v773, %v7657
        %v8018 = vsub.f32 %v778, %v7659
        %v8019 = vsub.f32 %v781, %v7661
        %v8020 = vsub.f32 %v786, %v7663
        %v8021 = vsub.f32 %v789, %v7665
        %v8022 = vsub.f32 %v794, %v7667
        %v8023 = vsub.f32 %v797, %v7669
        %v8024 = vsub.f32 %v802, %v7671
        %v8025 = vsub.f32 %v805, %v7673
        %v8026 = vsub.f32 %v810, %v7675
        %v8027 = vsub.f32 %v813, %v7677
        %v8028 = vsub.f32 %v818, %v7679
        %v8029 = vsub.f32 %v821, %v7681
        %v8030 = vsub.f32 %v826, %v7683
        %v8031 = vsub.f32 %v829, %v7685
        %v8032 = vsub.f32 %v834, %v7687
        %v8033 = vsub.f32 %v837, %v7689
        %v8034 = vsub.f32 %v842, %v7691
        %v8035 = vsub.f32 %v845, %v7693
        %v8036 = vsub.f32 %v850, %v7695
        %v8037 = vsub.f32 %v853, %v7697
        %v8038 = vsub.f32 %v858, %v7699
        %v8039 = vsub.f32 %v861, %v7701
        %v8040 = vsub.f32 %v866, %v7703
        %v8041 = vsub.f32 %v869, %v7705
        %v8042 = vsub.f32 %v874, %v7707
        %v8043 = vsub.f32 %v877, %v7709
        %v8044 = vsub.f32 %v882, %v7711
        %v8045 = vsub.f32 %v885, %v7713
        %v8046 = vsub.f32 %v890, %v7715
        %v8047 = vsub.f32 %v893, %v7717
        %v8048 = vsub.f32 %v898, %v7719
        %v8049 = vsub.f32 %v901, %v7721
        %v8050 = vsub.f32 %v906, %v7723
        %v8051 = vsub.f32 %v909, %v7725
        %v8052 = vsub.f32 %v914, %v7727
        %v8053 = vsub.f32 %v917, %v7729
        %v8054 = vsub.f32 %v922, %v7731
        %v8055 = vsub.f32 %v925, %v7733
        %v8056 = vsub.f32 %v930, %v7735
        %v8057 = vsub.f32 %v933, %v7737
        %v8058 = vsub.f32 %v938, %v7739
        %v8059 = vsub.f32 %v941, %v7741
        %v8060 = vsub.f32 %v946, %v7743
        %v8061 = vsub.f32 %v949, %v7745
        %v8062 = vsub.f32 %v954, %v7747
        %v8063 = vsub.f32 %v957, %v7749
        %v8064 = vsub.f32 %v962, %v7751
        %v8065 = vsub.f32 %v965, %v7753
        %v8066 = vsub.f32 %v970, %v7755
        %v8067 = vsub.f32 %v973, %v7757
        %v8068 = vsub.f32 %v978, %v7759
        %v8069 = vsub.f32 %v981, %v7761
        %v8070 = vsub.f32 %v986, %v7763
        %v8071 = vsub.f32 %v989, %v7765
        %v8072 = vsub.f32 %v994, %v7767
        %v8073 = vsub.f32 %v997, %v7769
        %v8074 = vsub.f32 %v1002, %v7771
        %v8075 = vsub.f32 %v1005, %v7773
        %v8076 = vsub.f32 %v1010, %v7775
        %v8077 = vsub.f32 %v1013, %v7777
        %v8078 = vsub.f32 %v1018, %v7779
        %v8079 = vsub.f32 %v1021, %v7781
        %v8080 = vsub.f32 %v1026, %v7783
        %v8081 = vsub.f32 %v1029, %v7785
        %v8082 = vsub.f32 %v1034, %v7787
        %v8083 = vsub.f32 %v1037, %v7789
        %v8084 = vsub.f32 %v1042, %v7791
        %v8085 = vsub.f32 %v1045, %v7793
        %v8086 = vsub.f32 %v1050, %v7795
        %v8087 = vsub.f32 %v1053, %v7797
        %v8088 = vsub.f32 %v1058, %v7799
        %v8089 = vsub.f32 %v1061, %v7801
        %v8090 = vsub.f32 %v1066, %v7803
        %v8091 = vsub.f32 %v1069, %v7805
        %v8092 = vsub.f32 %v1074, %v7807
        %v8093 = vsub.f32 %v1077, %v7809
        %v8094 = vsub.f32 %v1082, %v7811
        %v8095 = vsub.f32 %v1085, %v7813
        %v8096 = vsub.f32 %v1090, %v7815
        %v8097 = vsub.f32 %v1093, %v7817
        %v8098 = vsub.f32 %v1098, %v7819
        %v8099 = vsub.f32 %v1101, %v7821
        %v8100 = vsub.f32 %v1106, %v7823
        %v8101 = vsub.f32 %v1109, %v7825
        %v8102 = vsub.f32 %v1114, %v7827
        %v8103 = vsub.f32 %v1117, %v7829
        %v8104 = vsub.f32 %v1122, %v7831
        %v8105 = vsub.f32 %v1125, %v7833
        %v8106 = vsub.f32 %v1130, %v7835
        %v8107 = vsub.f32 %v1133, %v7837
        %v8108 = vsub.f32 %v1138, %v7839
        %v8109 = vsub.f32 %v1141, %v7841
        %v8110 = vsub.f32 %v1146, %v7843
        %v8111 = vsub.f32 %v1149, %v7845
        %v8112 = vsub.f32 %v1154, %v7847
        %v8113 = vsub.f32 %v1157, %v7849
        %v8114 = vsub.f32 %v1162, %v7851
        %v8115 = vsub.f32 %v1165, %v7853
        %v8116 = vsub.f32 %v1170, %v7855
        %v8117 = vsub.f32 %v1173, %v7857
        %v8118 = vsub.f32 %v1178, %v7859
        %v8119 = vsub.f32 %v1181, %v7861
        %v8120 = vsub.f32 %v1186, %v7863
        %v8121 = vsub.f32 %v1189, %v7865
        %v8122 = vmul.f32 %v7994, %v7994
        %v8123 = vmul.f32 %v7995, %v7995
        %v8124 = vmul.f32 %v7996, %v7996
        %v8125 = vmul.f32 %v7997, %v7997
        %v8126 = vmul.f32 %v7998, %v7998
        %v8127 = vmul.f32 %v7999, %v7999
        %v8128 = vmul.f32 %v8000, %v8000
        %v8129 = vmul.f32 %v8001, %v8001
        %v8130 = vmul.f32 %v8002, %v8002
        %v8131 = vmul.f32 %v8003, %v8003
        %v8132 = vmul.f32 %v8004, %v8004
        %v8133 = vmul.f32 %v8005, %v8005
        %v8134 = vmul.f32 %v8006, %v8006
        %v8135 = vmul.f32 %v8007, %v8007
        %v8136 = vmul.f32 %v8008, %v8008
        %v8137 = vmul.f32 %v8009, %v8009
        %v8138 = vmul.f32 %v8010, %v8010
        %v8139 = vmul.f32 %v8011, %v8011
        %v8140 = vmul.f32 %v8012, %v8012
        %v8141 = vmul.f32 %v8013, %v8013
        %v8142 = vmul.f32 %v8014, %v8014
        %v8143 = vmul.f32 %v8015, %v8015
        %v8144 = vmul.f32 %v8016, %v8016
        %v8145 = vmul.f32 %v8017, %v8017
        %v8146 = vmul.f32 %v8018, %v8018
        %v8147 = vmul.f32 %v8019, %v8019
        %v8148 = vmul.f32 %v8020, %v8020
        %v8149 = vmul.f32 %v8021, %v8021
        %v8150 = vmul.f32 %v8022, %v8022
        %v8151 = vmul.f32 %v8023, %v8023
        %v8152 = vmul.f32 %v8024, %v8024
        %v8153 = vmul.f32 %v8025, %v8025
        %v8154 = vmul.f32 %v8026, %v8026
        %v8155 = vmul.f32 %v8027, %v8027
        %v8156 = vmul.f32 %v8028, %v8028
        %v8157 = vmul.f32 %v8029, %v8029
        %v8158 = vmul.f32 %v8030, %v8030
        %v8159 = vmul.f32 %v8031, %v8031
        %v8160 = vmul.f32 %v8032, %v8032
        %v8161 = vmul.f32 %v8033, %v8033
        %v8162 = vmul.f32 %v8034, %v8034
        %v8163 = vmul.f32 %v8035, %v8035
        %v8164 = vmul.f32 %v8036, %v8036
        %v8165 = vmul.f32 %v8037, %v8037
        %v8166 = vmul.f32 %v8038, %v8038
        %v8167 = vmul.f32 %v8039, %v8039
        %v8168 = vmul.f32 %v8040, %v8040
        %v8169 = vmul.f32 %v8041, %v8041
        %v8170 = vmul.f32 %v8042, %v8042
        %v8171 = vmul.f32 %v8043, %v8043
        %v8172 = vmul.f32 %v8044, %v8044
        %v8173 = vmul.f32 %v8045, %v8045
        %v8174 = vmul.f32 %v8046, %v8046
        %v8175 = vmul.f32 %v8047, %v8047
        %v8176 = vmul.f32 %v8048, %v8048
        %v8177 = vmul.f32 %v8049, %v8049
        %v8178 = vmul.f32 %v8050, %v8050
        %v8179 = vmul.f32 %v8051, %v8051
        %v8180 = vmul.f32 %v8052, %v8052
        %v8181 = vmul.f32 %v8053, %v8053
        %v8182 = vmul.f32 %v8054, %v8054
        %v8183 = vmul.f32 %v8055, %v8055
        %v8184 = vmul.f32 %v8056, %v8056
        %v8185 = vmul.f32 %v8057, %v8057
        %v8186 = vmul.f32 %v8058, %v8058
        %v8187 = vmul.f32 %v8059, %v8059
        %v8188 = vmul.f32 %v8060, %v8060
        %v8189 = vmul.f32 %v8061, %v8061
        %v8190 = vmul.f32 %v8062, %v8062
        %v8191 = vmul.f32 %v8063, %v8063
        %v8192 = vmul.f32 %v8064, %v8064
        %v8193 = vmul.f32 %v8065, %v8065
        %v8194 = vmul.f32 %v8066, %v8066
        %v8195 = vmul.f32 %v8067, %v8067
        %v8196 = vmul.f32 %v8068, %v8068
        %v8197 = vmul.f32 %v8069, %v8069
        %v8198 = vmul.f32 %v8070, %v8070
        %v8199 = vmul.f32 %v8071, %v8071
        %v8200 = vmul.f32 %v8072, %v8072
        %v8201 = vmul.f32 %v8073, %v8073
        %v8202 = vmul.f32 %v8074, %v8074
        %v8203 = vmul.f32 %v8075, %v8075
        %v8204 = vmul.f32 %v8076, %v8076
        %v8205 = vmul.f32 %v8077, %v8077
        %v8206 = vmul.f32 %v8078, %v8078
        %v8207 = vmul.f32 %v8079, %v8079
        %v8208 = vmul.f32 %v8080, %v8080
        %v8209 = vmul.f32 %v8081, %v8081
        %v8210 = vmul.f32 %v8082, %v8082
        %v8211 = vmul.f32 %v8083, %v8083
        %v8212 = vmul.f32 %v8084, %v8084
        %v8213 = vmul.f32 %v8085, %v8085
        %v8214 = vmul.f32 %v8086, %v8086
        %v8215 = vmul.f32 %v8087, %v8087
        %v8216 = vmul.f32 %v8088, %v8088
        %v8217 = vmul.f32 %v8089, %v8089
        %v8218 = vmul.f32 %v8090, %v8090
        %v8219 = vmul.f32 %v8091, %v8091
        %v8220 = vmul.f32 %v8092, %v8092
        %v8221 = vmul.f32 %v8093, %v8093
        %v8222 = vmul.f32 %v8094, %v8094
        %v8223 = vmul.f32 %v8095, %v8095
        %v8224 = vmul.f32 %v8096, %v8096
        %v8225 = vmul.f32 %v8097, %v8097
        %v8226 = vmul.f32 %v8098, %v8098
        %v8227 = vmul.f32 %v8099, %v8099
        %v8228 = vmul.f32 %v8100, %v8100
        %v8229 = vmul.f32 %v8101, %v8101
        %v8230 = vmul.f32 %v8102, %v8102
        %v8231 = vmul.f32 %v8103, %v8103
        %v8232 = vmul.f32 %v8104, %v8104
        %v8233 = vmul.f32 %v8105, %v8105
        %v8234 = vmul.f32 %v8106, %v8106
        %v8235 = vmul.f32 %v8107, %v8107
        %v8236 = vmul.f32 %v8108, %v8108
        %v8237 = vmul.f32 %v8109, %v8109
        %v8238 = vmul.f32 %v8110, %v8110
        %v8239 = vmul.f32 %v8111, %v8111
        %v8240 = vmul.f32 %v8112, %v8112
        %v8241 = vmul.f32 %v8113, %v8113
        %v8242 = vmul.f32 %v8114, %v8114
        %v8243 = vmul.f32 %v8115, %v8115
        %v8244 = vmul.f32 %v8116, %v8116
        %v8245 = vmul.f32 %v8117, %v8117
        %v8246 = vmul.f32 %v8118, %v8118
        %v8247 = vmul.f32 %v8119, %v8119
        %v8248 = vmul.f32 %v8120, %v8120
        %v8249 = vmul.f32 %v8121, %v8121
        %8378 = vrot.lane.b32.xlu0 %v8122, 64
        %v8379 = vpop.permute.xlu0 %8378
        %8380 = vrot.lane.b32.xlu0 %v8123, 64
        %v8381 = vpop.permute.xlu0 %8380
        %8382 = vrot.lane.b32.xlu0 %v8124, 64
        %v8383 = vpop.permute.xlu0 %8382
        %8384 = vrot.lane.b32.xlu0 %v8125, 64
        %v8385 = vpop.permute.xlu0 %8384
        %8386 = vrot.lane.b32.xlu0 %v8126, 64
        %v8387 = vpop.permute.xlu0 %8386
        %8388 = vrot.lane.b32.xlu0 %v8127, 64
        %v8389 = vpop.permute.xlu0 %8388
        %8390 = vrot.lane.b32.xlu0 %v8128, 64
        %v8391 = vpop.permute.xlu0 %8390
        %8392 = vrot.lane.b32.xlu0 %v8129, 64
        %v8393 = vpop.permute.xlu0 %8392
        %8394 = vrot.lane.b32.xlu0 %v8130, 64
        %v8395 = vpop.permute.xlu0 %8394
        %8396 = vrot.lane.b32.xlu0 %v8131, 64
        %v8397 = vpop.permute.xlu0 %8396
        %8398 = vrot.lane.b32.xlu0 %v8132, 64
        %v8399 = vpop.permute.xlu0 %8398
        %8400 = vrot.lane.b32.xlu0 %v8133, 64
        %v8401 = vpop.permute.xlu0 %8400
        %8402 = vrot.lane.b32.xlu0 %v8134, 64
        %v8403 = vpop.permute.xlu0 %8402
        %8404 = vrot.lane.b32.xlu0 %v8135, 64
        %v8405 = vpop.permute.xlu0 %8404
        %8406 = vrot.lane.b32.xlu0 %v8136, 64
        %v8407 = vpop.permute.xlu0 %8406
        %8408 = vrot.lane.b32.xlu0 %v8137, 64
        %v8409 = vpop.permute.xlu0 %8408
        %8410 = vrot.lane.b32.xlu0 %v8138, 64
        %v8411 = vpop.permute.xlu0 %8410
        %8412 = vrot.lane.b32.xlu0 %v8139, 64
        %v8413 = vpop.permute.xlu0 %8412
        %8414 = vrot.lane.b32.xlu0 %v8140, 64
        %v8415 = vpop.permute.xlu0 %8414
        %8416 = vrot.lane.b32.xlu0 %v8141, 64
        %v8417 = vpop.permute.xlu0 %8416
        %8418 = vrot.lane.b32.xlu0 %v8142, 64
        %v8419 = vpop.permute.xlu0 %8418
        %8420 = vrot.lane.b32.xlu0 %v8143, 64
        %v8421 = vpop.permute.xlu0 %8420
        %8422 = vrot.lane.b32.xlu0 %v8144, 64
        %v8423 = vpop.permute.xlu0 %8422
        %8424 = vrot.lane.b32.xlu0 %v8145, 64
        %v8425 = vpop.permute.xlu0 %8424
        %8426 = vrot.lane.b32.xlu0 %v8146, 64
        %v8427 = vpop.permute.xlu0 %8426
        %8428 = vrot.lane.b32.xlu0 %v8147, 64
        %v8429 = vpop.permute.xlu0 %8428
        %8430 = vrot.lane.b32.xlu0 %v8148, 64
        %v8431 = vpop.permute.xlu0 %8430
        %8432 = vrot.lane.b32.xlu0 %v8149, 64
        %v8433 = vpop.permute.xlu0 %8432
        %8434 = vrot.lane.b32.xlu0 %v8150, 64
        %v8435 = vpop.permute.xlu0 %8434
        %8436 = vrot.lane.b32.xlu0 %v8151, 64
        %v8437 = vpop.permute.xlu0 %8436
        %8438 = vrot.lane.b32.xlu0 %v8152, 64
        %v8439 = vpop.permute.xlu0 %8438
        %8440 = vrot.lane.b32.xlu0 %v8153, 64
        %v8441 = vpop.permute.xlu0 %8440
        %8442 = vrot.lane.b32.xlu0 %v8154, 64
        %v8443 = vpop.permute.xlu0 %8442
        %8444 = vrot.lane.b32.xlu0 %v8155, 64
        %v8445 = vpop.permute.xlu0 %8444
        %8446 = vrot.lane.b32.xlu0 %v8156, 64
        %v8447 = vpop.permute.xlu0 %8446
        %8448 = vrot.lane.b32.xlu0 %v8157, 64
        %v8449 = vpop.permute.xlu0 %8448
        %8450 = vrot.lane.b32.xlu0 %v8158, 64
        %v8451 = vpop.permute.xlu0 %8450
        %8452 = vrot.lane.b32.xlu0 %v8159, 64
        %v8453 = vpop.permute.xlu0 %8452
        %8454 = vrot.lane.b32.xlu0 %v8160, 64
        %v8455 = vpop.permute.xlu0 %8454
        %8456 = vrot.lane.b32.xlu0 %v8161, 64
        %v8457 = vpop.permute.xlu0 %8456
        %8458 = vrot.lane.b32.xlu0 %v8162, 64
        %v8459 = vpop.permute.xlu0 %8458
        %8460 = vrot.lane.b32.xlu0 %v8163, 64
        %v8461 = vpop.permute.xlu0 %8460
        %8462 = vrot.lane.b32.xlu0 %v8164, 64
        %v8463 = vpop.permute.xlu0 %8462
        %8464 = vrot.lane.b32.xlu0 %v8165, 64
        %v8465 = vpop.permute.xlu0 %8464
        %8466 = vrot.lane.b32.xlu0 %v8166, 64
        %v8467 = vpop.permute.xlu0 %8466
        %8468 = vrot.lane.b32.xlu0 %v8167, 64
        %v8469 = vpop.permute.xlu0 %8468
        %8470 = vrot.lane.b32.xlu0 %v8168, 64
        %v8471 = vpop.permute.xlu0 %8470
        %8472 = vrot.lane.b32.xlu0 %v8169, 64
        %v8473 = vpop.permute.xlu0 %8472
        %8474 = vrot.lane.b32.xlu0 %v8170, 64
        %v8475 = vpop.permute.xlu0 %8474
        %8476 = vrot.lane.b32.xlu0 %v8171, 64
        %v8477 = vpop.permute.xlu0 %8476
        %8478 = vrot.lane.b32.xlu0 %v8172, 64
        %v8479 = vpop.permute.xlu0 %8478
        %8480 = vrot.lane.b32.xlu0 %v8173, 64
        %v8481 = vpop.permute.xlu0 %8480
        %8482 = vrot.lane.b32.xlu0 %v8174, 64
        %v8483 = vpop.permute.xlu0 %8482
        %8484 = vrot.lane.b32.xlu0 %v8175, 64
        %v8485 = vpop.permute.xlu0 %8484
        %8486 = vrot.lane.b32.xlu0 %v8176, 64
        %v8487 = vpop.permute.xlu0 %8486
        %8488 = vrot.lane.b32.xlu0 %v8177, 64
        %v8489 = vpop.permute.xlu0 %8488
        %8490 = vrot.lane.b32.xlu0 %v8178, 64
        %v8491 = vpop.permute.xlu0 %8490
        %8492 = vrot.lane.b32.xlu0 %v8179, 64
        %v8493 = vpop.permute.xlu0 %8492
        %8494 = vrot.lane.b32.xlu0 %v8180, 64
        %v8495 = vpop.permute.xlu0 %8494
        %8496 = vrot.lane.b32.xlu0 %v8181, 64
        %v8497 = vpop.permute.xlu0 %8496
        %8498 = vrot.lane.b32.xlu0 %v8182, 64
        %v8499 = vpop.permute.xlu0 %8498
        %8500 = vrot.lane.b32.xlu0 %v8183, 64
        %v8501 = vpop.permute.xlu0 %8500
        %8502 = vrot.lane.b32.xlu0 %v8184, 64
        %v8503 = vpop.permute.xlu0 %8502
        %8504 = vrot.lane.b32.xlu0 %v8185, 64
        %v8505 = vpop.permute.xlu0 %8504
        %8506 = vrot.lane.b32.xlu0 %v8186, 64
        %v8507 = vpop.permute.xlu0 %8506
        %8508 = vrot.lane.b32.xlu0 %v8187, 64
        %v8509 = vpop.permute.xlu0 %8508
        %8510 = vrot.lane.b32.xlu0 %v8188, 64
        %v8511 = vpop.permute.xlu0 %8510
        %8512 = vrot.lane.b32.xlu0 %v8189, 64
        %v8513 = vpop.permute.xlu0 %8512
        %8514 = vrot.lane.b32.xlu0 %v8190, 64
        %v8515 = vpop.permute.xlu0 %8514
        %8516 = vrot.lane.b32.xlu0 %v8191, 64
        %v8517 = vpop.permute.xlu0 %8516
        %8518 = vrot.lane.b32.xlu0 %v8192, 64
        %v8519 = vpop.permute.xlu0 %8518
        %8520 = vrot.lane.b32.xlu0 %v8193, 64
        %v8521 = vpop.permute.xlu0 %8520
        %8522 = vrot.lane.b32.xlu0 %v8194, 64
        %v8523 = vpop.permute.xlu0 %8522
        %8524 = vrot.lane.b32.xlu0 %v8195, 64
        %v8525 = vpop.permute.xlu0 %8524
        %8526 = vrot.lane.b32.xlu0 %v8196, 64
        %v8527 = vpop.permute.xlu0 %8526
        %8528 = vrot.lane.b32.xlu0 %v8197, 64
        %v8529 = vpop.permute.xlu0 %8528
        %8530 = vrot.lane.b32.xlu0 %v8198, 64
        %v8531 = vpop.permute.xlu0 %8530
        %8532 = vrot.lane.b32.xlu0 %v8199, 64
        %v8533 = vpop.permute.xlu0 %8532
        %8534 = vrot.lane.b32.xlu0 %v8200, 64
        %v8535 = vpop.permute.xlu0 %8534
        %8536 = vrot.lane.b32.xlu0 %v8201, 64
        %v8537 = vpop.permute.xlu0 %8536
        %8538 = vrot.lane.b32.xlu0 %v8202, 64
        %v8539 = vpop.permute.xlu0 %8538
        %8540 = vrot.lane.b32.xlu0 %v8203, 64
        %v8541 = vpop.permute.xlu0 %8540
        %8542 = vrot.lane.b32.xlu0 %v8204, 64
        %v8543 = vpop.permute.xlu0 %8542
        %8544 = vrot.lane.b32.xlu0 %v8205, 64
        %v8545 = vpop.permute.xlu0 %8544
        %8546 = vrot.lane.b32.xlu0 %v8206, 64
        %v8547 = vpop.permute.xlu0 %8546
        %8548 = vrot.lane.b32.xlu0 %v8207, 64
        %v8549 = vpop.permute.xlu0 %8548
        %8550 = vrot.lane.b32.xlu0 %v8208, 64
        %v8551 = vpop.permute.xlu0 %8550
        %8552 = vrot.lane.b32.xlu0 %v8209, 64
        %v8553 = vpop.permute.xlu0 %8552
        %8554 = vrot.lane.b32.xlu0 %v8210, 64
        %v8555 = vpop.permute.xlu0 %8554
        %8556 = vrot.lane.b32.xlu0 %v8211, 64
        %v8557 = vpop.permute.xlu0 %8556
        %8558 = vrot.lane.b32.xlu0 %v8212, 64
        %v8559 = vpop.permute.xlu0 %8558
        %8560 = vrot.lane.b32.xlu0 %v8213, 64
        %v8561 = vpop.permute.xlu0 %8560
        %8562 = vrot.lane.b32.xlu0 %v8214, 64
        %v8563 = vpop.permute.xlu0 %8562
        %8564 = vrot.lane.b32.xlu0 %v8215, 64
        %v8565 = vpop.permute.xlu0 %8564
        %8566 = vrot.lane.b32.xlu0 %v8216, 64
        %v8567 = vpop.permute.xlu0 %8566
        %8568 = vrot.lane.b32.xlu0 %v8217, 64
        %v8569 = vpop.permute.xlu0 %8568
        %8570 = vrot.lane.b32.xlu0 %v8218, 64
        %v8571 = vpop.permute.xlu0 %8570
        %8572 = vrot.lane.b32.xlu0 %v8219, 64
        %v8573 = vpop.permute.xlu0 %8572
        %8574 = vrot.lane.b32.xlu0 %v8220, 64
        %v8575 = vpop.permute.xlu0 %8574
        %8576 = vrot.lane.b32.xlu0 %v8221, 64
        %v8577 = vpop.permute.xlu0 %8576
        %8578 = vrot.lane.b32.xlu0 %v8222, 64
        %v8579 = vpop.permute.xlu0 %8578
        %8580 = vrot.lane.b32.xlu0 %v8223, 64
        %v8581 = vpop.permute.xlu0 %8580
        %8582 = vrot.lane.b32.xlu0 %v8224, 64
        %v8583 = vpop.permute.xlu0 %8582
        %8584 = vrot.lane.b32.xlu0 %v8225, 64
        %v8585 = vpop.permute.xlu0 %8584
        %8586 = vrot.lane.b32.xlu0 %v8226, 64
        %v8587 = vpop.permute.xlu0 %8586
        %8588 = vrot.lane.b32.xlu0 %v8227, 64
        %v8589 = vpop.permute.xlu0 %8588
        %8590 = vrot.lane.b32.xlu0 %v8228, 64
        %v8591 = vpop.permute.xlu0 %8590
        %8592 = vrot.lane.b32.xlu0 %v8229, 64
        %v8593 = vpop.permute.xlu0 %8592
        %8594 = vrot.lane.b32.xlu0 %v8230, 64
        %v8595 = vpop.permute.xlu0 %8594
        %8596 = vrot.lane.b32.xlu0 %v8231, 64
        %v8597 = vpop.permute.xlu0 %8596
        %8598 = vrot.lane.b32.xlu0 %v8232, 64
        %v8599 = vpop.permute.xlu0 %8598
        %8600 = vrot.lane.b32.xlu0 %v8233, 64
        %v8601 = vpop.permute.xlu0 %8600
        %8602 = vrot.lane.b32.xlu0 %v8234, 64
        %v8603 = vpop.permute.xlu0 %8602
        %8604 = vrot.lane.b32.xlu0 %v8235, 64
        %v8605 = vpop.permute.xlu0 %8604
        %8606 = vrot.lane.b32.xlu0 %v8236, 64
        %v8607 = vpop.permute.xlu0 %8606
        %8608 = vrot.lane.b32.xlu0 %v8237, 64
        %v8609 = vpop.permute.xlu0 %8608
        %8610 = vrot.lane.b32.xlu0 %v8238, 64
        %v8611 = vpop.permute.xlu0 %8610
        %8612 = vrot.lane.b32.xlu0 %v8239, 64
        %v8613 = vpop.permute.xlu0 %8612
        %8614 = vrot.lane.b32.xlu0 %v8240, 64
        %v8615 = vpop.permute.xlu0 %8614
        %8616 = vrot.lane.b32.xlu0 %v8241, 64
        %v8617 = vpop.permute.xlu0 %8616
        %8618 = vrot.lane.b32.xlu0 %v8242, 64
        %v8619 = vpop.permute.xlu0 %8618
        %8620 = vrot.lane.b32.xlu0 %v8243, 64
        %v8621 = vpop.permute.xlu0 %8620
        %8622 = vrot.lane.b32.xlu0 %v8244, 64
        %v8623 = vpop.permute.xlu0 %8622
        %8624 = vrot.lane.b32.xlu0 %v8245, 64
        %v8625 = vpop.permute.xlu0 %8624
        %8626 = vrot.lane.b32.xlu0 %v8246, 64
        %v8627 = vpop.permute.xlu0 %8626
        %8628 = vrot.lane.b32.xlu0 %v8247, 64
        %v8629 = vpop.permute.xlu0 %8628
        %8630 = vrot.lane.b32.xlu0 %v8248, 64
        %v8631 = vpop.permute.xlu0 %8630
        %8632 = vrot.lane.b32.xlu0 %v8249, 64
        %v8633 = vpop.permute.xlu0 %8632
        %v8762 = vsel %vm1196, %v8379, 0.0
        %v8763 = vsel %vm1196, %v8381, 0.0
        %v8764 = vsel %vm1196, %v8383, 0.0
        %v8765 = vsel %vm1196, %v8385, 0.0
        %v8766 = vsel %vm1196, %v8387, 0.0
        %v8767 = vsel %vm1196, %v8389, 0.0
        %v8768 = vsel %vm1196, %v8391, 0.0
        %v8769 = vsel %vm1196, %v8393, 0.0
        %v8770 = vsel %vm1196, %v8395, 0.0
        %v8771 = vsel %vm1196, %v8397, 0.0
        %v8772 = vsel %vm1196, %v8399, 0.0
        %v8773 = vsel %vm1196, %v8401, 0.0
        %v8774 = vsel %vm1196, %v8403, 0.0
        %v8775 = vsel %vm1196, %v8405, 0.0
        %v8776 = vsel %vm1196, %v8407, 0.0
        %v8777 = vsel %vm1196, %v8409, 0.0
        %v8778 = vsel %vm1196, %v8411, 0.0
        %v8779 = vsel %vm1196, %v8413, 0.0
        %v8780 = vsel %vm1196, %v8415, 0.0
        %v8781 = vsel %vm1196, %v8417, 0.0
        %v8782 = vsel %vm1196, %v8419, 0.0
        %v8783 = vsel %vm1196, %v8421, 0.0
        %v8784 = vsel %vm1196, %v8423, 0.0
        %v8785 = vsel %vm1196, %v8425, 0.0
        %v8786 = vsel %vm1196, %v8427, 0.0
        %v8787 = vsel %vm1196, %v8429, 0.0
        %v8788 = vsel %vm1196, %v8431, 0.0
        %v8789 = vsel %vm1196, %v8433, 0.0
        %v8790 = vsel %vm1196, %v8435, 0.0
        %v8791 = vsel %vm1196, %v8437, 0.0
        %v8792 = vsel %vm1196, %v8439, 0.0
        %v8793 = vsel %vm1196, %v8441, 0.0
        %v8794 = vsel %vm1196, %v8443, 0.0
        %v8795 = vsel %vm1196, %v8445, 0.0
        %v8796 = vsel %vm1196, %v8447, 0.0
        %v8797 = vsel %vm1196, %v8449, 0.0
        %v8798 = vsel %vm1196, %v8451, 0.0
        %v8799 = vsel %vm1196, %v8453, 0.0
        %v8800 = vsel %vm1196, %v8455, 0.0
        %v8801 = vsel %vm1196, %v8457, 0.0
        %v8802 = vsel %vm1196, %v8459, 0.0
        %v8803 = vsel %vm1196, %v8461, 0.0
        %v8804 = vsel %vm1196, %v8463, 0.0
        %v8805 = vsel %vm1196, %v8465, 0.0
        %v8806 = vsel %vm1196, %v8467, 0.0
        %v8807 = vsel %vm1196, %v8469, 0.0
        %v8808 = vsel %vm1196, %v8471, 0.0
        %v8809 = vsel %vm1196, %v8473, 0.0
        %v8810 = vsel %vm1196, %v8475, 0.0
        %v8811 = vsel %vm1196, %v8477, 0.0
        %v8812 = vsel %vm1196, %v8479, 0.0
        %v8813 = vsel %vm1196, %v8481, 0.0
        %v8814 = vsel %vm1196, %v8483, 0.0
        %v8815 = vsel %vm1196, %v8485, 0.0
        %v8816 = vsel %vm1196, %v8487, 0.0
        %v8817 = vsel %vm1196, %v8489, 0.0
        %v8818 = vsel %vm1196, %v8491, 0.0
        %v8819 = vsel %vm1196, %v8493, 0.0
        %v8820 = vsel %vm1196, %v8495, 0.0
        %v8821 = vsel %vm1196, %v8497, 0.0
        %v8822 = vsel %vm1196, %v8499, 0.0
        %v8823 = vsel %vm1196, %v8501, 0.0
        %v8824 = vsel %vm1196, %v8503, 0.0
        %v8825 = vsel %vm1196, %v8505, 0.0
        %v8826 = vsel %vm1196, %v8507, 0.0
        %v8827 = vsel %vm1196, %v8509, 0.0
        %v8828 = vsel %vm1196, %v8511, 0.0
        %v8829 = vsel %vm1196, %v8513, 0.0
        %v8830 = vsel %vm1196, %v8515, 0.0
        %v8831 = vsel %vm1196, %v8517, 0.0
        %v8832 = vsel %vm1196, %v8519, 0.0
        %v8833 = vsel %vm1196, %v8521, 0.0
        %v8834 = vsel %vm1196, %v8523, 0.0
        %v8835 = vsel %vm1196, %v8525, 0.0
        %v8836 = vsel %vm1196, %v8527, 0.0
        %v8837 = vsel %vm1196, %v8529, 0.0
        %v8838 = vsel %vm1196, %v8531, 0.0
        %v8839 = vsel %vm1196, %v8533, 0.0
        %v8840 = vsel %vm1196, %v8535, 0.0
        %v8841 = vsel %vm1196, %v8537, 0.0
        %v8842 = vsel %vm1196, %v8539, 0.0
        %v8843 = vsel %vm1196, %v8541, 0.0
        %v8844 = vsel %vm1196, %v8543, 0.0
        %v8845 = vsel %vm1196, %v8545, 0.0
        %v8846 = vsel %vm1196, %v8547, 0.0
        %v8847 = vsel %vm1196, %v8549, 0.0
        %v8848 = vsel %vm1196, %v8551, 0.0
        %v8849 = vsel %vm1196, %v8553, 0.0
        %v8850 = vsel %vm1196, %v8555, 0.0
        %v8851 = vsel %vm1196, %v8557, 0.0
        %v8852 = vsel %vm1196, %v8559, 0.0
        %v8853 = vsel %vm1196, %v8561, 0.0
        %v8854 = vsel %vm1196, %v8563, 0.0
        %v8855 = vsel %vm1196, %v8565, 0.0
        %v8856 = vsel %vm1196, %v8567, 0.0
        %v8857 = vsel %vm1196, %v8569, 0.0
        %v8858 = vsel %vm1196, %v8571, 0.0
        %v8859 = vsel %vm1196, %v8573, 0.0
        %v8860 = vsel %vm1196, %v8575, 0.0
        %v8861 = vsel %vm1196, %v8577, 0.0
        %v8862 = vsel %vm1196, %v8579, 0.0
        %v8863 = vsel %vm1196, %v8581, 0.0
        %v8864 = vsel %vm1196, %v8583, 0.0
        %v8865 = vsel %vm1196, %v8585, 0.0
        %v8866 = vsel %vm1196, %v8587, 0.0
        %v8867 = vsel %vm1196, %v8589, 0.0
        %v8868 = vsel %vm1196, %v8591, 0.0
        %v8869 = vsel %vm1196, %v8593, 0.0
        %v8870 = vsel %vm1196, %v8595, 0.0
        %v8871 = vsel %vm1196, %v8597, 0.0
        %v8872 = vsel %vm1196, %v8599, 0.0
        %v8873 = vsel %vm1196, %v8601, 0.0
        %v8874 = vsel %vm1196, %v8603, 0.0
        %v8875 = vsel %vm1196, %v8605, 0.0
        %v8876 = vsel %vm1196, %v8607, 0.0
        %v8877 = vsel %vm1196, %v8609, 0.0
        %v8878 = vsel %vm1196, %v8611, 0.0
        %v8879 = vsel %vm1196, %v8613, 0.0
        %v8880 = vsel %vm1196, %v8615, 0.0
        %v8881 = vsel %vm1196, %v8617, 0.0
        %v8882 = vsel %vm1196, %v8619, 0.0
        %v8883 = vsel %vm1196, %v8621, 0.0
        %v8884 = vsel %vm1196, %v8623, 0.0
        %v8885 = vsel %vm1196, %v8625, 0.0
        %v8886 = vsel %vm1196, %v8627, 0.0
        %v8887 = vsel %vm1196, %v8629, 0.0
        %v8888 = vsel %vm1196, %v8631, 0.0
        %v8889 = vsel %vm1196, %v8633, 0.0
        %v8890 = vsel %vm454, %v8762, 0.0
        %8891 = vadd.xlane.f32.xlu0 %v8890
        %v8892 = vpop.xlane.xlu0 %8891
        %v8893 = vsel %vm454, %v8763, 0.0
        %8894 = vadd.xlane.f32.xlu0 %v8893
        %v8895 = vpop.xlane.xlu0 %8894
        %v8896 = vsel %vm454, %v8764, 0.0
        %8897 = vadd.xlane.f32.xlu0 %v8896
        %v8898 = vpop.xlane.xlu0 %8897
        %v8899 = vsel %vm454, %v8765, 0.0
        %8900 = vadd.xlane.f32.xlu0 %v8899
        %v8901 = vpop.xlane.xlu0 %8900
        %v8902 = vsel %vm454, %v8766, 0.0
        %8903 = vadd.xlane.f32.xlu0 %v8902
        %v8904 = vpop.xlane.xlu0 %8903
        %v8905 = vsel %vm454, %v8767, 0.0
        %8906 = vadd.xlane.f32.xlu0 %v8905
        %v8907 = vpop.xlane.xlu0 %8906
        %v8908 = vsel %vm454, %v8768, 0.0
        %8909 = vadd.xlane.f32.xlu0 %v8908
        %v8910 = vpop.xlane.xlu0 %8909
        %v8911 = vsel %vm454, %v8769, 0.0
        %8912 = vadd.xlane.f32.xlu0 %v8911
        %v8913 = vpop.xlane.xlu0 %8912
        %v8914 = vsel %vm454, %v8770, 0.0
        %8915 = vadd.xlane.f32.xlu0 %v8914
        %v8916 = vpop.xlane.xlu0 %8915
        %v8917 = vsel %vm454, %v8771, 0.0
        %8918 = vadd.xlane.f32.xlu0 %v8917
        %v8919 = vpop.xlane.xlu0 %8918
        %v8920 = vsel %vm454, %v8772, 0.0
        %8921 = vadd.xlane.f32.xlu0 %v8920
        %v8922 = vpop.xlane.xlu0 %8921
        %v8923 = vsel %vm454, %v8773, 0.0
        %8924 = vadd.xlane.f32.xlu0 %v8923
        %v8925 = vpop.xlane.xlu0 %8924
        %v8926 = vsel %vm454, %v8774, 0.0
        %8927 = vadd.xlane.f32.xlu0 %v8926
        %v8928 = vpop.xlane.xlu0 %8927
        %v8929 = vsel %vm454, %v8775, 0.0
        %8930 = vadd.xlane.f32.xlu0 %v8929
        %v8931 = vpop.xlane.xlu0 %8930
        %v8932 = vsel %vm454, %v8776, 0.0
        %8933 = vadd.xlane.f32.xlu0 %v8932
        %v8934 = vpop.xlane.xlu0 %8933
        %v8935 = vsel %vm454, %v8777, 0.0
        %8936 = vadd.xlane.f32.xlu0 %v8935
        %v8937 = vpop.xlane.xlu0 %8936
        %v8938 = vsel %vm454, %v8778, 0.0
        %8939 = vadd.xlane.f32.xlu0 %v8938
        %v8940 = vpop.xlane.xlu0 %8939
        %v8941 = vsel %vm454, %v8779, 0.0
        %8942 = vadd.xlane.f32.xlu0 %v8941
        %v8943 = vpop.xlane.xlu0 %8942
        %v8944 = vsel %vm454, %v8780, 0.0
        %8945 = vadd.xlane.f32.xlu0 %v8944
        %v8946 = vpop.xlane.xlu0 %8945
        %v8947 = vsel %vm454, %v8781, 0.0
        %8948 = vadd.xlane.f32.xlu0 %v8947
        %v8949 = vpop.xlane.xlu0 %8948
        %v8950 = vsel %vm454, %v8782, 0.0
        %8951 = vadd.xlane.f32.xlu0 %v8950
        %v8952 = vpop.xlane.xlu0 %8951
        %v8953 = vsel %vm454, %v8783, 0.0
        %8954 = vadd.xlane.f32.xlu0 %v8953
        %v8955 = vpop.xlane.xlu0 %8954
        %v8956 = vsel %vm454, %v8784, 0.0
        %8957 = vadd.xlane.f32.xlu0 %v8956
        %v8958 = vpop.xlane.xlu0 %8957
        %v8959 = vsel %vm454, %v8785, 0.0
        %8960 = vadd.xlane.f32.xlu0 %v8959
        %v8961 = vpop.xlane.xlu0 %8960
        %v8962 = vsel %vm454, %v8786, 0.0
        %8963 = vadd.xlane.f32.xlu0 %v8962
        %v8964 = vpop.xlane.xlu0 %8963
        %v8965 = vsel %vm454, %v8787, 0.0
        %8966 = vadd.xlane.f32.xlu0 %v8965
        %v8967 = vpop.xlane.xlu0 %8966
        %v8968 = vsel %vm454, %v8788, 0.0
        %8969 = vadd.xlane.f32.xlu0 %v8968
        %v8970 = vpop.xlane.xlu0 %8969
        %v8971 = vsel %vm454, %v8789, 0.0
        %8972 = vadd.xlane.f32.xlu0 %v8971
        %v8973 = vpop.xlane.xlu0 %8972
        %v8974 = vsel %vm454, %v8790, 0.0
        %8975 = vadd.xlane.f32.xlu0 %v8974
        %v8976 = vpop.xlane.xlu0 %8975
        %v8977 = vsel %vm454, %v8791, 0.0
        %8978 = vadd.xlane.f32.xlu0 %v8977
        %v8979 = vpop.xlane.xlu0 %8978
        %v8980 = vsel %vm454, %v8792, 0.0
        %8981 = vadd.xlane.f32.xlu0 %v8980
        %v8982 = vpop.xlane.xlu0 %8981
        %v8983 = vsel %vm454, %v8793, 0.0
        %8984 = vadd.xlane.f32.xlu0 %v8983
        %v8985 = vpop.xlane.xlu0 %8984
        %v8986 = vsel %vm454, %v8794, 0.0
        %8987 = vadd.xlane.f32.xlu0 %v8986
        %v8988 = vpop.xlane.xlu0 %8987
        %v8989 = vsel %vm454, %v8795, 0.0
        %8990 = vadd.xlane.f32.xlu0 %v8989
        %v8991 = vpop.xlane.xlu0 %8990
        %v8992 = vsel %vm454, %v8796, 0.0
        %8993 = vadd.xlane.f32.xlu0 %v8992
        %v8994 = vpop.xlane.xlu0 %8993
        %v8995 = vsel %vm454, %v8797, 0.0
        %8996 = vadd.xlane.f32.xlu0 %v8995
        %v8997 = vpop.xlane.xlu0 %8996
        %v8998 = vsel %vm454, %v8798, 0.0
        %8999 = vadd.xlane.f32.xlu0 %v8998
        %v9000 = vpop.xlane.xlu0 %8999
        %v9001 = vsel %vm454, %v8799, 0.0
        %9002 = vadd.xlane.f32.xlu0 %v9001
        %v9003 = vpop.xlane.xlu0 %9002
        %v9004 = vsel %vm454, %v8800, 0.0
        %9005 = vadd.xlane.f32.xlu0 %v9004
        %v9006 = vpop.xlane.xlu0 %9005
        %v9007 = vsel %vm454, %v8801, 0.0
        %9008 = vadd.xlane.f32.xlu0 %v9007
        %v9009 = vpop.xlane.xlu0 %9008
        %v9010 = vsel %vm454, %v8802, 0.0
        %9011 = vadd.xlane.f32.xlu0 %v9010
        %v9012 = vpop.xlane.xlu0 %9011
        %v9013 = vsel %vm454, %v8803, 0.0
        %9014 = vadd.xlane.f32.xlu0 %v9013
        %v9015 = vpop.xlane.xlu0 %9014
        %v9016 = vsel %vm454, %v8804, 0.0
        %9017 = vadd.xlane.f32.xlu0 %v9016
        %v9018 = vpop.xlane.xlu0 %9017
        %v9019 = vsel %vm454, %v8805, 0.0
        %9020 = vadd.xlane.f32.xlu0 %v9019
        %v9021 = vpop.xlane.xlu0 %9020
        %v9022 = vsel %vm454, %v8806, 0.0
        %9023 = vadd.xlane.f32.xlu0 %v9022
        %v9024 = vpop.xlane.xlu0 %9023
        %v9025 = vsel %vm454, %v8807, 0.0
        %9026 = vadd.xlane.f32.xlu0 %v9025
        %v9027 = vpop.xlane.xlu0 %9026
        %v9028 = vsel %vm454, %v8808, 0.0
        %9029 = vadd.xlane.f32.xlu0 %v9028
        %v9030 = vpop.xlane.xlu0 %9029
        %v9031 = vsel %vm454, %v8809, 0.0
        %9032 = vadd.xlane.f32.xlu0 %v9031
        %v9033 = vpop.xlane.xlu0 %9032
        %v9034 = vsel %vm454, %v8810, 0.0
        %9035 = vadd.xlane.f32.xlu0 %v9034
        %v9036 = vpop.xlane.xlu0 %9035
        %v9037 = vsel %vm454, %v8811, 0.0
        %9038 = vadd.xlane.f32.xlu0 %v9037
        %v9039 = vpop.xlane.xlu0 %9038
        %v9040 = vsel %vm454, %v8812, 0.0
        %9041 = vadd.xlane.f32.xlu0 %v9040
        %v9042 = vpop.xlane.xlu0 %9041
        %v9043 = vsel %vm454, %v8813, 0.0
        %9044 = vadd.xlane.f32.xlu0 %v9043
        %v9045 = vpop.xlane.xlu0 %9044
        %v9046 = vsel %vm454, %v8814, 0.0
        %9047 = vadd.xlane.f32.xlu0 %v9046
        %v9048 = vpop.xlane.xlu0 %9047
        %v9049 = vsel %vm454, %v8815, 0.0
        %9050 = vadd.xlane.f32.xlu0 %v9049
        %v9051 = vpop.xlane.xlu0 %9050
        %v9052 = vsel %vm454, %v8816, 0.0
        %9053 = vadd.xlane.f32.xlu0 %v9052
        %v9054 = vpop.xlane.xlu0 %9053
        %v9055 = vsel %vm454, %v8817, 0.0
        %9056 = vadd.xlane.f32.xlu0 %v9055
        %v9057 = vpop.xlane.xlu0 %9056
        %v9058 = vsel %vm454, %v8818, 0.0
        %9059 = vadd.xlane.f32.xlu0 %v9058
        %v9060 = vpop.xlane.xlu0 %9059
        %v9061 = vsel %vm454, %v8819, 0.0
        %9062 = vadd.xlane.f32.xlu0 %v9061
        %v9063 = vpop.xlane.xlu0 %9062
        %v9064 = vsel %vm454, %v8820, 0.0
        %9065 = vadd.xlane.f32.xlu0 %v9064
        %v9066 = vpop.xlane.xlu0 %9065
        %v9067 = vsel %vm454, %v8821, 0.0
        %9068 = vadd.xlane.f32.xlu0 %v9067
        %v9069 = vpop.xlane.xlu0 %9068
        %v9070 = vsel %vm454, %v8822, 0.0
        %9071 = vadd.xlane.f32.xlu0 %v9070
        %v9072 = vpop.xlane.xlu0 %9071
        %v9073 = vsel %vm454, %v8823, 0.0
        %9074 = vadd.xlane.f32.xlu0 %v9073
        %v9075 = vpop.xlane.xlu0 %9074
        %v9076 = vsel %vm454, %v8824, 0.0
        %9077 = vadd.xlane.f32.xlu0 %v9076
        %v9078 = vpop.xlane.xlu0 %9077
        %v9079 = vsel %vm454, %v8825, 0.0
        %9080 = vadd.xlane.f32.xlu0 %v9079
        %v9081 = vpop.xlane.xlu0 %9080
        %v9082 = vsel %vm454, %v8826, 0.0
        %9083 = vadd.xlane.f32.xlu0 %v9082
        %v9084 = vpop.xlane.xlu0 %9083
        %v9085 = vsel %vm454, %v8827, 0.0
        %9086 = vadd.xlane.f32.xlu0 %v9085
        %v9087 = vpop.xlane.xlu0 %9086
        %v9088 = vsel %vm454, %v8828, 0.0
        %9089 = vadd.xlane.f32.xlu0 %v9088
        %v9090 = vpop.xlane.xlu0 %9089
        %v9091 = vsel %vm454, %v8829, 0.0
        %9092 = vadd.xlane.f32.xlu0 %v9091
        %v9093 = vpop.xlane.xlu0 %9092
        %v9094 = vsel %vm454, %v8830, 0.0
        %9095 = vadd.xlane.f32.xlu0 %v9094
        %v9096 = vpop.xlane.xlu0 %9095
        %v9097 = vsel %vm454, %v8831, 0.0
        %9098 = vadd.xlane.f32.xlu0 %v9097
        %v9099 = vpop.xlane.xlu0 %9098
        %v9100 = vsel %vm454, %v8832, 0.0
        %9101 = vadd.xlane.f32.xlu0 %v9100
        %v9102 = vpop.xlane.xlu0 %9101
        %v9103 = vsel %vm454, %v8833, 0.0
        %9104 = vadd.xlane.f32.xlu0 %v9103
        %v9105 = vpop.xlane.xlu0 %9104
        %v9106 = vsel %vm454, %v8834, 0.0
        %9107 = vadd.xlane.f32.xlu0 %v9106
        %v9108 = vpop.xlane.xlu0 %9107
        %v9109 = vsel %vm454, %v8835, 0.0
        %9110 = vadd.xlane.f32.xlu0 %v9109
        %v9111 = vpop.xlane.xlu0 %9110
        %v9112 = vsel %vm454, %v8836, 0.0
        %9113 = vadd.xlane.f32.xlu0 %v9112
        %v9114 = vpop.xlane.xlu0 %9113
        %v9115 = vsel %vm454, %v8837, 0.0
        %9116 = vadd.xlane.f32.xlu0 %v9115
        %v9117 = vpop.xlane.xlu0 %9116
        %v9118 = vsel %vm454, %v8838, 0.0
        %9119 = vadd.xlane.f32.xlu0 %v9118
        %v9120 = vpop.xlane.xlu0 %9119
        %v9121 = vsel %vm454, %v8839, 0.0
        %9122 = vadd.xlane.f32.xlu0 %v9121
        %v9123 = vpop.xlane.xlu0 %9122
        %v9124 = vsel %vm454, %v8840, 0.0
        %9125 = vadd.xlane.f32.xlu0 %v9124
        %v9126 = vpop.xlane.xlu0 %9125
        %v9127 = vsel %vm454, %v8841, 0.0
        %9128 = vadd.xlane.f32.xlu0 %v9127
        %v9129 = vpop.xlane.xlu0 %9128
        %v9130 = vsel %vm454, %v8842, 0.0
        %9131 = vadd.xlane.f32.xlu0 %v9130
        %v9132 = vpop.xlane.xlu0 %9131
        %v9133 = vsel %vm454, %v8843, 0.0
        %9134 = vadd.xlane.f32.xlu0 %v9133
        %v9135 = vpop.xlane.xlu0 %9134
        %v9136 = vsel %vm454, %v8844, 0.0
        %9137 = vadd.xlane.f32.xlu0 %v9136
        %v9138 = vpop.xlane.xlu0 %9137
        %v9139 = vsel %vm454, %v8845, 0.0
        %9140 = vadd.xlane.f32.xlu0 %v9139
        %v9141 = vpop.xlane.xlu0 %9140
        %v9142 = vsel %vm454, %v8846, 0.0
        %9143 = vadd.xlane.f32.xlu0 %v9142
        %v9144 = vpop.xlane.xlu0 %9143
        %v9145 = vsel %vm454, %v8847, 0.0
        %9146 = vadd.xlane.f32.xlu0 %v9145
        %v9147 = vpop.xlane.xlu0 %9146
        %v9148 = vsel %vm454, %v8848, 0.0
        %9149 = vadd.xlane.f32.xlu0 %v9148
        %v9150 = vpop.xlane.xlu0 %9149
        %v9151 = vsel %vm454, %v8849, 0.0
        %9152 = vadd.xlane.f32.xlu0 %v9151
        %v9153 = vpop.xlane.xlu0 %9152
        %v9154 = vsel %vm454, %v8850, 0.0
        %9155 = vadd.xlane.f32.xlu0 %v9154
        %v9156 = vpop.xlane.xlu0 %9155
        %v9157 = vsel %vm454, %v8851, 0.0
        %9158 = vadd.xlane.f32.xlu0 %v9157
        %v9159 = vpop.xlane.xlu0 %9158
        %v9160 = vsel %vm454, %v8852, 0.0
        %9161 = vadd.xlane.f32.xlu0 %v9160
        %v9162 = vpop.xlane.xlu0 %9161
        %v9163 = vsel %vm454, %v8853, 0.0
        %9164 = vadd.xlane.f32.xlu0 %v9163
        %v9165 = vpop.xlane.xlu0 %9164
        %v9166 = vsel %vm454, %v8854, 0.0
        %9167 = vadd.xlane.f32.xlu0 %v9166
        %v9168 = vpop.xlane.xlu0 %9167
        %v9169 = vsel %vm454, %v8855, 0.0
        %9170 = vadd.xlane.f32.xlu0 %v9169
        %v9171 = vpop.xlane.xlu0 %9170
        %v9172 = vsel %vm454, %v8856, 0.0
        %9173 = vadd.xlane.f32.xlu0 %v9172
        %v9174 = vpop.xlane.xlu0 %9173
        %v9175 = vsel %vm454, %v8857, 0.0
        %9176 = vadd.xlane.f32.xlu0 %v9175
        %v9177 = vpop.xlane.xlu0 %9176
        %v9178 = vsel %vm454, %v8858, 0.0
        %9179 = vadd.xlane.f32.xlu0 %v9178
        %v9180 = vpop.xlane.xlu0 %9179
        %v9181 = vsel %vm454, %v8859, 0.0
        %9182 = vadd.xlane.f32.xlu0 %v9181
        %v9183 = vpop.xlane.xlu0 %9182
        %v9184 = vsel %vm454, %v8860, 0.0
        %9185 = vadd.xlane.f32.xlu0 %v9184
        %v9186 = vpop.xlane.xlu0 %9185
        %v9187 = vsel %vm454, %v8861, 0.0
        %9188 = vadd.xlane.f32.xlu0 %v9187
        %v9189 = vpop.xlane.xlu0 %9188
        %v9190 = vsel %vm454, %v8862, 0.0
        %9191 = vadd.xlane.f32.xlu0 %v9190
        %v9192 = vpop.xlane.xlu0 %9191
        %v9193 = vsel %vm454, %v8863, 0.0
        %9194 = vadd.xlane.f32.xlu0 %v9193
        %v9195 = vpop.xlane.xlu0 %9194
        %v9196 = vsel %vm454, %v8864, 0.0
        %9197 = vadd.xlane.f32.xlu0 %v9196
        %v9198 = vpop.xlane.xlu0 %9197
        %v9199 = vsel %vm454, %v8865, 0.0
        %9200 = vadd.xlane.f32.xlu0 %v9199
        %v9201 = vpop.xlane.xlu0 %9200
        %v9202 = vsel %vm454, %v8866, 0.0
        %9203 = vadd.xlane.f32.xlu0 %v9202
        %v9204 = vpop.xlane.xlu0 %9203
        %v9205 = vsel %vm454, %v8867, 0.0
        %9206 = vadd.xlane.f32.xlu0 %v9205
        %v9207 = vpop.xlane.xlu0 %9206
        %v9208 = vsel %vm454, %v8868, 0.0
        %9209 = vadd.xlane.f32.xlu0 %v9208
        %v9210 = vpop.xlane.xlu0 %9209
        %v9211 = vsel %vm454, %v8869, 0.0
        %9212 = vadd.xlane.f32.xlu0 %v9211
        %v9213 = vpop.xlane.xlu0 %9212
        %v9214 = vsel %vm454, %v8870, 0.0
        %9215 = vadd.xlane.f32.xlu0 %v9214
        %v9216 = vpop.xlane.xlu0 %9215
        %v9217 = vsel %vm454, %v8871, 0.0
        %9218 = vadd.xlane.f32.xlu0 %v9217
        %v9219 = vpop.xlane.xlu0 %9218
        %v9220 = vsel %vm454, %v8872, 0.0
        %9221 = vadd.xlane.f32.xlu0 %v9220
        %v9222 = vpop.xlane.xlu0 %9221
        %v9223 = vsel %vm454, %v8873, 0.0
        %9224 = vadd.xlane.f32.xlu0 %v9223
        %v9225 = vpop.xlane.xlu0 %9224
        %v9226 = vsel %vm454, %v8874, 0.0
        %9227 = vadd.xlane.f32.xlu0 %v9226
        %v9228 = vpop.xlane.xlu0 %9227
        %v9229 = vsel %vm454, %v8875, 0.0
        %9230 = vadd.xlane.f32.xlu0 %v9229
        %v9231 = vpop.xlane.xlu0 %9230
        %v9232 = vsel %vm454, %v8876, 0.0
        %9233 = vadd.xlane.f32.xlu0 %v9232
        %v9234 = vpop.xlane.xlu0 %9233
        %v9235 = vsel %vm454, %v8877, 0.0
        %9236 = vadd.xlane.f32.xlu0 %v9235
        %v9237 = vpop.xlane.xlu0 %9236
        %v9238 = vsel %vm454, %v8878, 0.0
        %9239 = vadd.xlane.f32.xlu0 %v9238
        %v9240 = vpop.xlane.xlu0 %9239
        %v9241 = vsel %vm454, %v8879, 0.0
        %9242 = vadd.xlane.f32.xlu0 %v9241
        %v9243 = vpop.xlane.xlu0 %9242
        %v9244 = vsel %vm454, %v8880, 0.0
        %9245 = vadd.xlane.f32.xlu0 %v9244
        %v9246 = vpop.xlane.xlu0 %9245
        %v9247 = vsel %vm454, %v8881, 0.0
        %9248 = vadd.xlane.f32.xlu0 %v9247
        %v9249 = vpop.xlane.xlu0 %9248
        %v9250 = vsel %vm454, %v8882, 0.0
        %9251 = vadd.xlane.f32.xlu0 %v9250
        %v9252 = vpop.xlane.xlu0 %9251
        %v9253 = vsel %vm454, %v8883, 0.0
        %9254 = vadd.xlane.f32.xlu0 %v9253
        %v9255 = vpop.xlane.xlu0 %9254
        %v9256 = vsel %vm454, %v8884, 0.0
        %9257 = vadd.xlane.f32.xlu0 %v9256
        %v9258 = vpop.xlane.xlu0 %9257
        %v9259 = vsel %vm454, %v8885, 0.0
        %9260 = vadd.xlane.f32.xlu0 %v9259
        %v9261 = vpop.xlane.xlu0 %9260
        %v9262 = vsel %vm454, %v8886, 0.0
        %9263 = vadd.xlane.f32.xlu0 %v9262
        %v9264 = vpop.xlane.xlu0 %9263
        %v9265 = vsel %vm454, %v8887, 0.0
        %9266 = vadd.xlane.f32.xlu0 %v9265
        %v9267 = vpop.xlane.xlu0 %9266
        %v9268 = vsel %vm454, %v8888, 0.0
        %9269 = vadd.xlane.f32.xlu0 %v9268
        %v9270 = vpop.xlane.xlu0 %9269
        %v9271 = vsel %vm454, %v8889, 0.0
        %9272 = vadd.xlane.f32.xlu0 %v9271
        %v9273 = vpop.xlane.xlu0 %9272
        %v9274 = vsel %vm454, %v8379, 0.0
        %9275 = vadd.xlane.f32.xlu0 %v9274
        %v9276 = vpop.xlane.xlu0 %9275
        %v9277 = vsel %vm454, %v8381, 0.0
        %9278 = vadd.xlane.f32.xlu0 %v9277
        %v9279 = vpop.xlane.xlu0 %9278
        %v9280 = vsel %vm454, %v8383, 0.0
        %9281 = vadd.xlane.f32.xlu0 %v9280
        %v9282 = vpop.xlane.xlu0 %9281
        %v9283 = vsel %vm454, %v8385, 0.0
        %9284 = vadd.xlane.f32.xlu0 %v9283
        %v9285 = vpop.xlane.xlu0 %9284
        %v9286 = vsel %vm454, %v8387, 0.0
        %9287 = vadd.xlane.f32.xlu0 %v9286
        %v9288 = vpop.xlane.xlu0 %9287
        %v9289 = vsel %vm454, %v8389, 0.0
        %9290 = vadd.xlane.f32.xlu0 %v9289
        %v9291 = vpop.xlane.xlu0 %9290
        %v9292 = vsel %vm454, %v8391, 0.0
        %9293 = vadd.xlane.f32.xlu0 %v9292
        %v9294 = vpop.xlane.xlu0 %9293
        %v9295 = vsel %vm454, %v8393, 0.0
        %9296 = vadd.xlane.f32.xlu0 %v9295
        %v9297 = vpop.xlane.xlu0 %9296
        %v9298 = vsel %vm454, %v8395, 0.0
        %9299 = vadd.xlane.f32.xlu0 %v9298
        %v9300 = vpop.xlane.xlu0 %9299
        %v9301 = vsel %vm454, %v8397, 0.0
        %9302 = vadd.xlane.f32.xlu0 %v9301
        %v9303 = vpop.xlane.xlu0 %9302
        %v9304 = vsel %vm454, %v8399, 0.0
        %9305 = vadd.xlane.f32.xlu0 %v9304
        %v9306 = vpop.xlane.xlu0 %9305
        %v9307 = vsel %vm454, %v8401, 0.0
        %9308 = vadd.xlane.f32.xlu0 %v9307
        %v9309 = vpop.xlane.xlu0 %9308
        %v9310 = vsel %vm454, %v8403, 0.0
        %9311 = vadd.xlane.f32.xlu0 %v9310
        %v9312 = vpop.xlane.xlu0 %9311
        %v9313 = vsel %vm454, %v8405, 0.0
        %9314 = vadd.xlane.f32.xlu0 %v9313
        %v9315 = vpop.xlane.xlu0 %9314
        %v9316 = vsel %vm454, %v8407, 0.0
        %9317 = vadd.xlane.f32.xlu0 %v9316
        %v9318 = vpop.xlane.xlu0 %9317
        %v9319 = vsel %vm454, %v8409, 0.0
        %9320 = vadd.xlane.f32.xlu0 %v9319
        %v9321 = vpop.xlane.xlu0 %9320
        %v9322 = vsel %vm454, %v8411, 0.0
        %9323 = vadd.xlane.f32.xlu0 %v9322
        %v9324 = vpop.xlane.xlu0 %9323
        %v9325 = vsel %vm454, %v8413, 0.0
        %9326 = vadd.xlane.f32.xlu0 %v9325
        %v9327 = vpop.xlane.xlu0 %9326
        %v9328 = vsel %vm454, %v8415, 0.0
        %9329 = vadd.xlane.f32.xlu0 %v9328
        %v9330 = vpop.xlane.xlu0 %9329
        %v9331 = vsel %vm454, %v8417, 0.0
        %9332 = vadd.xlane.f32.xlu0 %v9331
        %v9333 = vpop.xlane.xlu0 %9332
        %v9334 = vsel %vm454, %v8419, 0.0
        %9335 = vadd.xlane.f32.xlu0 %v9334
        %v9336 = vpop.xlane.xlu0 %9335
        %v9337 = vsel %vm454, %v8421, 0.0
        %9338 = vadd.xlane.f32.xlu0 %v9337
        %v9339 = vpop.xlane.xlu0 %9338
        %v9340 = vsel %vm454, %v8423, 0.0
        %9341 = vadd.xlane.f32.xlu0 %v9340
        %v9342 = vpop.xlane.xlu0 %9341
        %v9343 = vsel %vm454, %v8425, 0.0
        %9344 = vadd.xlane.f32.xlu0 %v9343
        %v9345 = vpop.xlane.xlu0 %9344
        %v9346 = vsel %vm454, %v8427, 0.0
        %9347 = vadd.xlane.f32.xlu0 %v9346
        %v9348 = vpop.xlane.xlu0 %9347
        %v9349 = vsel %vm454, %v8429, 0.0
        %9350 = vadd.xlane.f32.xlu0 %v9349
        %v9351 = vpop.xlane.xlu0 %9350
        %v9352 = vsel %vm454, %v8431, 0.0
        %9353 = vadd.xlane.f32.xlu0 %v9352
        %v9354 = vpop.xlane.xlu0 %9353
        %v9355 = vsel %vm454, %v8433, 0.0
        %9356 = vadd.xlane.f32.xlu0 %v9355
        %v9357 = vpop.xlane.xlu0 %9356
        %v9358 = vsel %vm454, %v8435, 0.0
        %9359 = vadd.xlane.f32.xlu0 %v9358
        %v9360 = vpop.xlane.xlu0 %9359
        %v9361 = vsel %vm454, %v8437, 0.0
        %9362 = vadd.xlane.f32.xlu0 %v9361
        %v9363 = vpop.xlane.xlu0 %9362
        %v9364 = vsel %vm454, %v8439, 0.0
        %9365 = vadd.xlane.f32.xlu0 %v9364
        %v9366 = vpop.xlane.xlu0 %9365
        %v9367 = vsel %vm454, %v8441, 0.0
        %9368 = vadd.xlane.f32.xlu0 %v9367
        %v9369 = vpop.xlane.xlu0 %9368
        %v9370 = vsel %vm454, %v8443, 0.0
        %9371 = vadd.xlane.f32.xlu0 %v9370
        %v9372 = vpop.xlane.xlu0 %9371
        %v9373 = vsel %vm454, %v8445, 0.0
        %9374 = vadd.xlane.f32.xlu0 %v9373
        %v9375 = vpop.xlane.xlu0 %9374
        %v9376 = vsel %vm454, %v8447, 0.0
        %9377 = vadd.xlane.f32.xlu0 %v9376
        %v9378 = vpop.xlane.xlu0 %9377
        %v9379 = vsel %vm454, %v8449, 0.0
        %9380 = vadd.xlane.f32.xlu0 %v9379
        %v9381 = vpop.xlane.xlu0 %9380
        %v9382 = vsel %vm454, %v8451, 0.0
        %9383 = vadd.xlane.f32.xlu0 %v9382
        %v9384 = vpop.xlane.xlu0 %9383
        %v9385 = vsel %vm454, %v8453, 0.0
        %9386 = vadd.xlane.f32.xlu0 %v9385
        %v9387 = vpop.xlane.xlu0 %9386
        %v9388 = vsel %vm454, %v8455, 0.0
        %9389 = vadd.xlane.f32.xlu0 %v9388
        %v9390 = vpop.xlane.xlu0 %9389
        %v9391 = vsel %vm454, %v8457, 0.0
        %9392 = vadd.xlane.f32.xlu0 %v9391
        %v9393 = vpop.xlane.xlu0 %9392
        %v9394 = vsel %vm454, %v8459, 0.0
        %9395 = vadd.xlane.f32.xlu0 %v9394
        %v9396 = vpop.xlane.xlu0 %9395
        %v9397 = vsel %vm454, %v8461, 0.0
        %9398 = vadd.xlane.f32.xlu0 %v9397
        %v9399 = vpop.xlane.xlu0 %9398
        %v9400 = vsel %vm454, %v8463, 0.0
        %9401 = vadd.xlane.f32.xlu0 %v9400
        %v9402 = vpop.xlane.xlu0 %9401
        %v9403 = vsel %vm454, %v8465, 0.0
        %9404 = vadd.xlane.f32.xlu0 %v9403
        %v9405 = vpop.xlane.xlu0 %9404
        %v9406 = vsel %vm454, %v8467, 0.0
        %9407 = vadd.xlane.f32.xlu0 %v9406
        %v9408 = vpop.xlane.xlu0 %9407
        %v9409 = vsel %vm454, %v8469, 0.0
        %9410 = vadd.xlane.f32.xlu0 %v9409
        %v9411 = vpop.xlane.xlu0 %9410
        %v9412 = vsel %vm454, %v8471, 0.0
        %9413 = vadd.xlane.f32.xlu0 %v9412
        %v9414 = vpop.xlane.xlu0 %9413
        %v9415 = vsel %vm454, %v8473, 0.0
        %9416 = vadd.xlane.f32.xlu0 %v9415
        %v9417 = vpop.xlane.xlu0 %9416
        %v9418 = vsel %vm454, %v8475, 0.0
        %9419 = vadd.xlane.f32.xlu0 %v9418
        %v9420 = vpop.xlane.xlu0 %9419
        %v9421 = vsel %vm454, %v8477, 0.0
        %9422 = vadd.xlane.f32.xlu0 %v9421
        %v9423 = vpop.xlane.xlu0 %9422
        %v9424 = vsel %vm454, %v8479, 0.0
        %9425 = vadd.xlane.f32.xlu0 %v9424
        %v9426 = vpop.xlane.xlu0 %9425
        %v9427 = vsel %vm454, %v8481, 0.0
        %9428 = vadd.xlane.f32.xlu0 %v9427
        %v9429 = vpop.xlane.xlu0 %9428
        %v9430 = vsel %vm454, %v8483, 0.0
        %9431 = vadd.xlane.f32.xlu0 %v9430
        %v9432 = vpop.xlane.xlu0 %9431
        %v9433 = vsel %vm454, %v8485, 0.0
        %9434 = vadd.xlane.f32.xlu0 %v9433
        %v9435 = vpop.xlane.xlu0 %9434
        %v9436 = vsel %vm454, %v8487, 0.0
        %9437 = vadd.xlane.f32.xlu0 %v9436
        %v9438 = vpop.xlane.xlu0 %9437
        %v9439 = vsel %vm454, %v8489, 0.0
        %9440 = vadd.xlane.f32.xlu0 %v9439
        %v9441 = vpop.xlane.xlu0 %9440
        %v9442 = vsel %vm454, %v8491, 0.0
        %9443 = vadd.xlane.f32.xlu0 %v9442
        %v9444 = vpop.xlane.xlu0 %9443
        %v9445 = vsel %vm454, %v8493, 0.0
        %9446 = vadd.xlane.f32.xlu0 %v9445
        %v9447 = vpop.xlane.xlu0 %9446
        %v9448 = vsel %vm454, %v8495, 0.0
        %9449 = vadd.xlane.f32.xlu0 %v9448
        %v9450 = vpop.xlane.xlu0 %9449
        %v9451 = vsel %vm454, %v8497, 0.0
        %9452 = vadd.xlane.f32.xlu0 %v9451
        %v9453 = vpop.xlane.xlu0 %9452
        %v9454 = vsel %vm454, %v8499, 0.0
        %9455 = vadd.xlane.f32.xlu0 %v9454
        %v9456 = vpop.xlane.xlu0 %9455
        %v9457 = vsel %vm454, %v8501, 0.0
        %9458 = vadd.xlane.f32.xlu0 %v9457
        %v9459 = vpop.xlane.xlu0 %9458
        %v9460 = vsel %vm454, %v8503, 0.0
        %9461 = vadd.xlane.f32.xlu0 %v9460
        %v9462 = vpop.xlane.xlu0 %9461
        %v9463 = vsel %vm454, %v8505, 0.0
        %9464 = vadd.xlane.f32.xlu0 %v9463
        %v9465 = vpop.xlane.xlu0 %9464
        %v9466 = vsel %vm454, %v8507, 0.0
        %9467 = vadd.xlane.f32.xlu0 %v9466
        %v9468 = vpop.xlane.xlu0 %9467
        %v9469 = vsel %vm454, %v8509, 0.0
        %9470 = vadd.xlane.f32.xlu0 %v9469
        %v9471 = vpop.xlane.xlu0 %9470
        %v9472 = vsel %vm454, %v8511, 0.0
        %9473 = vadd.xlane.f32.xlu0 %v9472
        %v9474 = vpop.xlane.xlu0 %9473
        %v9475 = vsel %vm454, %v8513, 0.0
        %9476 = vadd.xlane.f32.xlu0 %v9475
        %v9477 = vpop.xlane.xlu0 %9476
        %v9478 = vsel %vm454, %v8515, 0.0
        %9479 = vadd.xlane.f32.xlu0 %v9478
        %v9480 = vpop.xlane.xlu0 %9479
        %v9481 = vsel %vm454, %v8517, 0.0
        %9482 = vadd.xlane.f32.xlu0 %v9481
        %v9483 = vpop.xlane.xlu0 %9482
        %v9484 = vsel %vm454, %v8519, 0.0
        %9485 = vadd.xlane.f32.xlu0 %v9484
        %v9486 = vpop.xlane.xlu0 %9485
        %v9487 = vsel %vm454, %v8521, 0.0
        %9488 = vadd.xlane.f32.xlu0 %v9487
        %v9489 = vpop.xlane.xlu0 %9488
        %v9490 = vsel %vm454, %v8523, 0.0
        %9491 = vadd.xlane.f32.xlu0 %v9490
        %v9492 = vpop.xlane.xlu0 %9491
        %v9493 = vsel %vm454, %v8525, 0.0
        %9494 = vadd.xlane.f32.xlu0 %v9493
        %v9495 = vpop.xlane.xlu0 %9494
        %v9496 = vsel %vm454, %v8527, 0.0
        %9497 = vadd.xlane.f32.xlu0 %v9496
        %v9498 = vpop.xlane.xlu0 %9497
        %v9499 = vsel %vm454, %v8529, 0.0
        %9500 = vadd.xlane.f32.xlu0 %v9499
        %v9501 = vpop.xlane.xlu0 %9500
        %v9502 = vsel %vm454, %v8531, 0.0
        %9503 = vadd.xlane.f32.xlu0 %v9502
        %v9504 = vpop.xlane.xlu0 %9503
        %v9505 = vsel %vm454, %v8533, 0.0
        %9506 = vadd.xlane.f32.xlu0 %v9505
        %v9507 = vpop.xlane.xlu0 %9506
        %v9508 = vsel %vm454, %v8535, 0.0
        %9509 = vadd.xlane.f32.xlu0 %v9508
        %v9510 = vpop.xlane.xlu0 %9509
        %v9511 = vsel %vm454, %v8537, 0.0
        %9512 = vadd.xlane.f32.xlu0 %v9511
        %v9513 = vpop.xlane.xlu0 %9512
        %v9514 = vsel %vm454, %v8539, 0.0
        %9515 = vadd.xlane.f32.xlu0 %v9514
        %v9516 = vpop.xlane.xlu0 %9515
        %v9517 = vsel %vm454, %v8541, 0.0
        %9518 = vadd.xlane.f32.xlu0 %v9517
        %v9519 = vpop.xlane.xlu0 %9518
        %v9520 = vsel %vm454, %v8543, 0.0
        %9521 = vadd.xlane.f32.xlu0 %v9520
        %v9522 = vpop.xlane.xlu0 %9521
        %v9523 = vsel %vm454, %v8545, 0.0
        %9524 = vadd.xlane.f32.xlu0 %v9523
        %v9525 = vpop.xlane.xlu0 %9524
        %v9526 = vsel %vm454, %v8547, 0.0
        %9527 = vadd.xlane.f32.xlu0 %v9526
        %v9528 = vpop.xlane.xlu0 %9527
        %v9529 = vsel %vm454, %v8549, 0.0
        %9530 = vadd.xlane.f32.xlu0 %v9529
        %v9531 = vpop.xlane.xlu0 %9530
        %v9532 = vsel %vm454, %v8551, 0.0
        %9533 = vadd.xlane.f32.xlu0 %v9532
        %v9534 = vpop.xlane.xlu0 %9533
        %v9535 = vsel %vm454, %v8553, 0.0
        %9536 = vadd.xlane.f32.xlu0 %v9535
        %v9537 = vpop.xlane.xlu0 %9536
        %v9538 = vsel %vm454, %v8555, 0.0
        %9539 = vadd.xlane.f32.xlu0 %v9538
        %v9540 = vpop.xlane.xlu0 %9539
        %v9541 = vsel %vm454, %v8557, 0.0
        %9542 = vadd.xlane.f32.xlu0 %v9541
        %v9543 = vpop.xlane.xlu0 %9542
        %v9544 = vsel %vm454, %v8559, 0.0
        %9545 = vadd.xlane.f32.xlu0 %v9544
        %v9546 = vpop.xlane.xlu0 %9545
        %v9547 = vsel %vm454, %v8561, 0.0
        %9548 = vadd.xlane.f32.xlu0 %v9547
        %v9549 = vpop.xlane.xlu0 %9548
        %v9550 = vsel %vm454, %v8563, 0.0
        %9551 = vadd.xlane.f32.xlu0 %v9550
        %v9552 = vpop.xlane.xlu0 %9551
        %v9553 = vsel %vm454, %v8565, 0.0
        %9554 = vadd.xlane.f32.xlu0 %v9553
        %v9555 = vpop.xlane.xlu0 %9554
        %v9556 = vsel %vm454, %v8567, 0.0
        %9557 = vadd.xlane.f32.xlu0 %v9556
        %v9558 = vpop.xlane.xlu0 %9557
        %v9559 = vsel %vm454, %v8569, 0.0
        %9560 = vadd.xlane.f32.xlu0 %v9559
        %v9561 = vpop.xlane.xlu0 %9560
        %v9562 = vsel %vm454, %v8571, 0.0
        %9563 = vadd.xlane.f32.xlu0 %v9562
        %v9564 = vpop.xlane.xlu0 %9563
        %v9565 = vsel %vm454, %v8573, 0.0
        %9566 = vadd.xlane.f32.xlu0 %v9565
        %v9567 = vpop.xlane.xlu0 %9566
        %v9568 = vsel %vm454, %v8575, 0.0
        %9569 = vadd.xlane.f32.xlu0 %v9568
        %v9570 = vpop.xlane.xlu0 %9569
        %v9571 = vsel %vm454, %v8577, 0.0
        %9572 = vadd.xlane.f32.xlu0 %v9571
        %v9573 = vpop.xlane.xlu0 %9572
        %v9574 = vsel %vm454, %v8579, 0.0
        %9575 = vadd.xlane.f32.xlu0 %v9574
        %v9576 = vpop.xlane.xlu0 %9575
        %v9577 = vsel %vm454, %v8581, 0.0
        %9578 = vadd.xlane.f32.xlu0 %v9577
        %v9579 = vpop.xlane.xlu0 %9578
        %v9580 = vsel %vm454, %v8583, 0.0
        %9581 = vadd.xlane.f32.xlu0 %v9580
        %v9582 = vpop.xlane.xlu0 %9581
        %v9583 = vsel %vm454, %v8585, 0.0
        %9584 = vadd.xlane.f32.xlu0 %v9583
        %v9585 = vpop.xlane.xlu0 %9584
        %v9586 = vsel %vm454, %v8587, 0.0
        %9587 = vadd.xlane.f32.xlu0 %v9586
        %v9588 = vpop.xlane.xlu0 %9587
        %v9589 = vsel %vm454, %v8589, 0.0
        %9590 = vadd.xlane.f32.xlu0 %v9589
        %v9591 = vpop.xlane.xlu0 %9590
        %v9592 = vsel %vm454, %v8591, 0.0
        %9593 = vadd.xlane.f32.xlu0 %v9592
        %v9594 = vpop.xlane.xlu0 %9593
        %v9595 = vsel %vm454, %v8593, 0.0
        %9596 = vadd.xlane.f32.xlu0 %v9595
        %v9597 = vpop.xlane.xlu0 %9596
        %v9598 = vsel %vm454, %v8595, 0.0
        %9599 = vadd.xlane.f32.xlu0 %v9598
        %v9600 = vpop.xlane.xlu0 %9599
        %v9601 = vsel %vm454, %v8597, 0.0
        %9602 = vadd.xlane.f32.xlu0 %v9601
        %v9603 = vpop.xlane.xlu0 %9602
        %v9604 = vsel %vm454, %v8599, 0.0
        %9605 = vadd.xlane.f32.xlu0 %v9604
        %v9606 = vpop.xlane.xlu0 %9605
        %v9607 = vsel %vm454, %v8601, 0.0
        %9608 = vadd.xlane.f32.xlu0 %v9607
        %v9609 = vpop.xlane.xlu0 %9608
        %v9610 = vsel %vm454, %v8603, 0.0
        %9611 = vadd.xlane.f32.xlu0 %v9610
        %v9612 = vpop.xlane.xlu0 %9611
        %v9613 = vsel %vm454, %v8605, 0.0
        %9614 = vadd.xlane.f32.xlu0 %v9613
        %v9615 = vpop.xlane.xlu0 %9614
        %v9616 = vsel %vm454, %v8607, 0.0
        %9617 = vadd.xlane.f32.xlu0 %v9616
        %v9618 = vpop.xlane.xlu0 %9617
        %v9619 = vsel %vm454, %v8609, 0.0
        %9620 = vadd.xlane.f32.xlu0 %v9619
        %v9621 = vpop.xlane.xlu0 %9620
        %v9622 = vsel %vm454, %v8611, 0.0
        %9623 = vadd.xlane.f32.xlu0 %v9622
        %v9624 = vpop.xlane.xlu0 %9623
        %v9625 = vsel %vm454, %v8613, 0.0
        %9626 = vadd.xlane.f32.xlu0 %v9625
        %v9627 = vpop.xlane.xlu0 %9626
        %v9628 = vsel %vm454, %v8615, 0.0
        %9629 = vadd.xlane.f32.xlu0 %v9628
        %v9630 = vpop.xlane.xlu0 %9629
        %v9631 = vsel %vm454, %v8617, 0.0
        %9632 = vadd.xlane.f32.xlu0 %v9631
        %v9633 = vpop.xlane.xlu0 %9632
        %v9634 = vsel %vm454, %v8619, 0.0
        %9635 = vadd.xlane.f32.xlu0 %v9634
        %v9636 = vpop.xlane.xlu0 %9635
        %v9637 = vsel %vm454, %v8621, 0.0
        %9638 = vadd.xlane.f32.xlu0 %v9637
        %v9639 = vpop.xlane.xlu0 %9638
        %v9640 = vsel %vm454, %v8623, 0.0
        %9641 = vadd.xlane.f32.xlu0 %v9640
        %v9642 = vpop.xlane.xlu0 %9641
        %v9643 = vsel %vm454, %v8625, 0.0
        %9644 = vadd.xlane.f32.xlu0 %v9643
        %v9645 = vpop.xlane.xlu0 %9644
        %v9646 = vsel %vm454, %v8627, 0.0
        %9647 = vadd.xlane.f32.xlu0 %v9646
        %v9648 = vpop.xlane.xlu0 %9647
        %v9649 = vsel %vm454, %v8629, 0.0
        %9650 = vadd.xlane.f32.xlu0 %v9649
        %v9651 = vpop.xlane.xlu0 %9650
        %v9652 = vsel %vm454, %v8631, 0.0
        %9653 = vadd.xlane.f32.xlu0 %v9652
        %v9654 = vpop.xlane.xlu0 %9653
        %v9655 = vsel %vm454, %v8633, 0.0
        %9656 = vadd.xlane.f32.xlu0 %v9655
        %v9657 = vpop.xlane.xlu0 %9656
        %v9658 = vmul.f32 %v8892, 0.03125
        %v9659 = vmul.f32 %v8895, 0.03125
        %v9660 = vmul.f32 %v8898, 0.03125
        %v9661 = vmul.f32 %v8901, 0.03125
        %v9662 = vmul.f32 %v8904, 0.03125
        %v9663 = vmul.f32 %v8907, 0.03125
        %v9664 = vmul.f32 %v8910, 0.03125
        %v9665 = vmul.f32 %v8913, 0.03125
        %v9666 = vmul.f32 %v8916, 0.03125
        %v9667 = vmul.f32 %v8919, 0.03125
        %v9668 = vmul.f32 %v8922, 0.03125
        %v9669 = vmul.f32 %v8925, 0.03125
        %v9670 = vmul.f32 %v8928, 0.03125
        %v9671 = vmul.f32 %v8931, 0.03125
        %v9672 = vmul.f32 %v8934, 0.03125
        %v9673 = vmul.f32 %v8937, 0.03125
        %v9674 = vmul.f32 %v8940, 0.03125
        %v9675 = vmul.f32 %v8943, 0.03125
        %v9676 = vmul.f32 %v8946, 0.03125
        %v9677 = vmul.f32 %v8949, 0.03125
        %v9678 = vmul.f32 %v8952, 0.03125
        %v9679 = vmul.f32 %v8955, 0.03125
        %v9680 = vmul.f32 %v8958, 0.03125
        %v9681 = vmul.f32 %v8961, 0.03125
        %v9682 = vmul.f32 %v8964, 0.03125
        %v9683 = vmul.f32 %v8967, 0.03125
        %v9684 = vmul.f32 %v8970, 0.03125
        %v9685 = vmul.f32 %v8973, 0.03125
        %v9686 = vmul.f32 %v8976, 0.03125
        %v9687 = vmul.f32 %v8979, 0.03125
        %v9688 = vmul.f32 %v8982, 0.03125
        %v9689 = vmul.f32 %v8985, 0.03125
        %v9690 = vmul.f32 %v8988, 0.03125
        %v9691 = vmul.f32 %v8991, 0.03125
        %v9692 = vmul.f32 %v8994, 0.03125
        %v9693 = vmul.f32 %v8997, 0.03125
        %v9694 = vmul.f32 %v9000, 0.03125
        %v9695 = vmul.f32 %v9003, 0.03125
        %v9696 = vmul.f32 %v9006, 0.03125
        %v9697 = vmul.f32 %v9009, 0.03125
        %v9698 = vmul.f32 %v9012, 0.03125
        %v9699 = vmul.f32 %v9015, 0.03125
        %v9700 = vmul.f32 %v9018, 0.03125
        %v9701 = vmul.f32 %v9021, 0.03125
        %v9702 = vmul.f32 %v9024, 0.03125
        %v9703 = vmul.f32 %v9027, 0.03125
        %v9704 = vmul.f32 %v9030, 0.03125
        %v9705 = vmul.f32 %v9033, 0.03125
        %v9706 = vmul.f32 %v9036, 0.03125
        %v9707 = vmul.f32 %v9039, 0.03125
        %v9708 = vmul.f32 %v9042, 0.03125
        %v9709 = vmul.f32 %v9045, 0.03125
        %v9710 = vmul.f32 %v9048, 0.03125
        %v9711 = vmul.f32 %v9051, 0.03125
        %v9712 = vmul.f32 %v9054, 0.03125
        %v9713 = vmul.f32 %v9057, 0.03125
        %v9714 = vmul.f32 %v9060, 0.03125
        %v9715 = vmul.f32 %v9063, 0.03125
        %v9716 = vmul.f32 %v9066, 0.03125
        %v9717 = vmul.f32 %v9069, 0.03125
        %v9718 = vmul.f32 %v9072, 0.03125
        %v9719 = vmul.f32 %v9075, 0.03125
        %v9720 = vmul.f32 %v9078, 0.03125
        %v9721 = vmul.f32 %v9081, 0.03125
        %v9722 = vmul.f32 %v9084, 0.03125
        %v9723 = vmul.f32 %v9087, 0.03125
        %v9724 = vmul.f32 %v9090, 0.03125
        %v9725 = vmul.f32 %v9093, 0.03125
        %v9726 = vmul.f32 %v9096, 0.03125
        %v9727 = vmul.f32 %v9099, 0.03125
        %v9728 = vmul.f32 %v9102, 0.03125
        %v9729 = vmul.f32 %v9105, 0.03125
        %v9730 = vmul.f32 %v9108, 0.03125
        %v9731 = vmul.f32 %v9111, 0.03125
        %v9732 = vmul.f32 %v9114, 0.03125
        %v9733 = vmul.f32 %v9117, 0.03125
        %v9734 = vmul.f32 %v9120, 0.03125
        %v9735 = vmul.f32 %v9123, 0.03125
        %v9736 = vmul.f32 %v9126, 0.03125
        %v9737 = vmul.f32 %v9129, 0.03125
        %v9738 = vmul.f32 %v9132, 0.03125
        %v9739 = vmul.f32 %v9135, 0.03125
        %v9740 = vmul.f32 %v9138, 0.03125
        %v9741 = vmul.f32 %v9141, 0.03125
        %v9742 = vmul.f32 %v9144, 0.03125
        %v9743 = vmul.f32 %v9147, 0.03125
        %v9744 = vmul.f32 %v9150, 0.03125
        %v9745 = vmul.f32 %v9153, 0.03125
        %v9746 = vmul.f32 %v9156, 0.03125
        %v9747 = vmul.f32 %v9159, 0.03125
        %v9748 = vmul.f32 %v9162, 0.03125
        %v9749 = vmul.f32 %v9165, 0.03125
        %v9750 = vmul.f32 %v9168, 0.03125
        %v9751 = vmul.f32 %v9171, 0.03125
        %v9752 = vmul.f32 %v9174, 0.03125
        %v9753 = vmul.f32 %v9177, 0.03125
        %v9754 = vmul.f32 %v9180, 0.03125
        %v9755 = vmul.f32 %v9183, 0.03125
        %v9756 = vmul.f32 %v9186, 0.03125
        %v9757 = vmul.f32 %v9189, 0.03125
        %v9758 = vmul.f32 %v9192, 0.03125
        %v9759 = vmul.f32 %v9195, 0.03125
        %v9760 = vmul.f32 %v9198, 0.03125
        %v9761 = vmul.f32 %v9201, 0.03125
        %v9762 = vmul.f32 %v9204, 0.03125
        %v9763 = vmul.f32 %v9207, 0.03125
        %v9764 = vmul.f32 %v9210, 0.03125
        %v9765 = vmul.f32 %v9213, 0.03125
        %v9766 = vmul.f32 %v9216, 0.03125
        %v9767 = vmul.f32 %v9219, 0.03125
        %v9768 = vmul.f32 %v9222, 0.03125
        %v9769 = vmul.f32 %v9225, 0.03125
        %v9770 = vmul.f32 %v9228, 0.03125
        %v9771 = vmul.f32 %v9231, 0.03125
        %v9772 = vmul.f32 %v9234, 0.03125
        %v9773 = vmul.f32 %v9237, 0.03125
        %v9774 = vmul.f32 %v9240, 0.03125
        %v9775 = vmul.f32 %v9243, 0.03125
        %v9776 = vmul.f32 %v9246, 0.03125
        %v9777 = vmul.f32 %v9249, 0.03125
        %v9778 = vmul.f32 %v9252, 0.03125
        %v9779 = vmul.f32 %v9255, 0.03125
        %v9780 = vmul.f32 %v9258, 0.03125
        %v9781 = vmul.f32 %v9261, 0.03125
        %v9782 = vmul.f32 %v9264, 0.03125
        %v9783 = vmul.f32 %v9267, 0.03125
        %v9784 = vmul.f32 %v9270, 0.03125
        %v9785 = vmul.f32 %v9273, 0.03125
        %v9786 = vadd.f32 %v9658, 1e-05
        %v9787 = vadd.f32 %v9659, 1e-05
        %v9788 = vadd.f32 %v9660, 1e-05
        %v9789 = vadd.f32 %v9661, 1e-05
        %v9790 = vadd.f32 %v9662, 1e-05
        %v9791 = vadd.f32 %v9663, 1e-05
        %v9792 = vadd.f32 %v9664, 1e-05
        %v9793 = vadd.f32 %v9665, 1e-05
        %v9794 = vadd.f32 %v9666, 1e-05
        %v9795 = vadd.f32 %v9667, 1e-05
        %v9796 = vadd.f32 %v9668, 1e-05
        %v9797 = vadd.f32 %v9669, 1e-05
        %v9798 = vadd.f32 %v9670, 1e-05
        %v9799 = vadd.f32 %v9671, 1e-05
        %v9800 = vadd.f32 %v9672, 1e-05
        %v9801 = vadd.f32 %v9673, 1e-05
        %v9802 = vadd.f32 %v9674, 1e-05
        %v9803 = vadd.f32 %v9675, 1e-05
        %v9804 = vadd.f32 %v9676, 1e-05
        %v9805 = vadd.f32 %v9677, 1e-05
        %v9806 = vadd.f32 %v9678, 1e-05
        %v9807 = vadd.f32 %v9679, 1e-05
        %v9808 = vadd.f32 %v9680, 1e-05
        %v9809 = vadd.f32 %v9681, 1e-05
        %v9810 = vadd.f32 %v9682, 1e-05
        %v9811 = vadd.f32 %v9683, 1e-05
        %v9812 = vadd.f32 %v9684, 1e-05
        %v9813 = vadd.f32 %v9685, 1e-05
        %v9814 = vadd.f32 %v9686, 1e-05
        %v9815 = vadd.f32 %v9687, 1e-05
        %v9816 = vadd.f32 %v9688, 1e-05
        %v9817 = vadd.f32 %v9689, 1e-05
        %v9818 = vadd.f32 %v9690, 1e-05
        %v9819 = vadd.f32 %v9691, 1e-05
        %v9820 = vadd.f32 %v9692, 1e-05
        %v9821 = vadd.f32 %v9693, 1e-05
        %v9822 = vadd.f32 %v9694, 1e-05
        %v9823 = vadd.f32 %v9695, 1e-05
        %v9824 = vadd.f32 %v9696, 1e-05
        %v9825 = vadd.f32 %v9697, 1e-05
        %v9826 = vadd.f32 %v9698, 1e-05
        %v9827 = vadd.f32 %v9699, 1e-05
        %v9828 = vadd.f32 %v9700, 1e-05
        %v9829 = vadd.f32 %v9701, 1e-05
        %v9830 = vadd.f32 %v9702, 1e-05
        %v9831 = vadd.f32 %v9703, 1e-05
        %v9832 = vadd.f32 %v9704, 1e-05
        %v9833 = vadd.f32 %v9705, 1e-05
        %v9834 = vadd.f32 %v9706, 1e-05
        %v9835 = vadd.f32 %v9707, 1e-05
        %v9836 = vadd.f32 %v9708, 1e-05
        %v9837 = vadd.f32 %v9709, 1e-05
        %v9838 = vadd.f32 %v9710, 1e-05
        %v9839 = vadd.f32 %v9711, 1e-05
        %v9840 = vadd.f32 %v9712, 1e-05
        %v9841 = vadd.f32 %v9713, 1e-05
        %v9842 = vadd.f32 %v9714, 1e-05
        %v9843 = vadd.f32 %v9715, 1e-05
        %v9844 = vadd.f32 %v9716, 1e-05
        %v9845 = vadd.f32 %v9717, 1e-05
        %v9846 = vadd.f32 %v9718, 1e-05
        %v9847 = vadd.f32 %v9719, 1e-05
        %v9848 = vadd.f32 %v9720, 1e-05
        %v9849 = vadd.f32 %v9721, 1e-05
        %v9850 = vadd.f32 %v9722, 1e-05
        %v9851 = vadd.f32 %v9723, 1e-05
        %v9852 = vadd.f32 %v9724, 1e-05
        %v9853 = vadd.f32 %v9725, 1e-05
        %v9854 = vadd.f32 %v9726, 1e-05
        %v9855 = vadd.f32 %v9727, 1e-05
        %v9856 = vadd.f32 %v9728, 1e-05
        %v9857 = vadd.f32 %v9729, 1e-05
        %v9858 = vadd.f32 %v9730, 1e-05
        %v9859 = vadd.f32 %v9731, 1e-05
        %v9860 = vadd.f32 %v9732, 1e-05
        %v9861 = vadd.f32 %v9733, 1e-05
        %v9862 = vadd.f32 %v9734, 1e-05
        %v9863 = vadd.f32 %v9735, 1e-05
        %v9864 = vadd.f32 %v9736, 1e-05
        %v9865 = vadd.f32 %v9737, 1e-05
        %v9866 = vadd.f32 %v9738, 1e-05
        %v9867 = vadd.f32 %v9739, 1e-05
        %v9868 = vadd.f32 %v9740, 1e-05
        %v9869 = vadd.f32 %v9741, 1e-05
        %v9870 = vadd.f32 %v9742, 1e-05
        %v9871 = vadd.f32 %v9743, 1e-05
        %v9872 = vadd.f32 %v9744, 1e-05
        %v9873 = vadd.f32 %v9745, 1e-05
        %v9874 = vadd.f32 %v9746, 1e-05
        %v9875 = vadd.f32 %v9747, 1e-05
        %v9876 = vadd.f32 %v9748, 1e-05
        %v9877 = vadd.f32 %v9749, 1e-05
        %v9878 = vadd.f32 %v9750, 1e-05
        %v9879 = vadd.f32 %v9751, 1e-05
        %v9880 = vadd.f32 %v9752, 1e-05
        %v9881 = vadd.f32 %v9753, 1e-05
        %v9882 = vadd.f32 %v9754, 1e-05
        %v9883 = vadd.f32 %v9755, 1e-05
        %v9884 = vadd.f32 %v9756, 1e-05
        %v9885 = vadd.f32 %v9757, 1e-05
        %v9886 = vadd.f32 %v9758, 1e-05
        %v9887 = vadd.f32 %v9759, 1e-05
        %v9888 = vadd.f32 %v9760, 1e-05
        %v9889 = vadd.f32 %v9761, 1e-05
        %v9890 = vadd.f32 %v9762, 1e-05
        %v9891 = vadd.f32 %v9763, 1e-05
        %v9892 = vadd.f32 %v9764, 1e-05
        %v9893 = vadd.f32 %v9765, 1e-05
        %v9894 = vadd.f32 %v9766, 1e-05
        %v9895 = vadd.f32 %v9767, 1e-05
        %v9896 = vadd.f32 %v9768, 1e-05
        %v9897 = vadd.f32 %v9769, 1e-05
        %v9898 = vadd.f32 %v9770, 1e-05
        %v9899 = vadd.f32 %v9771, 1e-05
        %v9900 = vadd.f32 %v9772, 1e-05
        %v9901 = vadd.f32 %v9773, 1e-05
        %v9902 = vadd.f32 %v9774, 1e-05
        %v9903 = vadd.f32 %v9775, 1e-05
        %v9904 = vadd.f32 %v9776, 1e-05
        %v9905 = vadd.f32 %v9777, 1e-05
        %v9906 = vadd.f32 %v9778, 1e-05
        %v9907 = vadd.f32 %v9779, 1e-05
        %v9908 = vadd.f32 %v9780, 1e-05
        %v9909 = vadd.f32 %v9781, 1e-05
        %v9910 = vadd.f32 %v9782, 1e-05
        %v9911 = vadd.f32 %v9783, 1e-05
        %v9912 = vadd.f32 %v9784, 1e-05
        %v9913 = vadd.f32 %v9785, 1e-05
        %v9914 = vrsqrt.pop %v9786
        %v9915 = vrsqrt.pop %v9787
        %v9916 = vrsqrt.pop %v9788
        %v9917 = vrsqrt.pop %v9789
        %v9918 = vrsqrt.pop %v9790
        %v9919 = vrsqrt.pop %v9791
        %v9920 = vrsqrt.pop %v9792
        %v9921 = vrsqrt.pop %v9793
        %v9922 = vrsqrt.pop %v9794
        %v9923 = vrsqrt.pop %v9795
        %v9924 = vrsqrt.pop %v9796
        %v9925 = vrsqrt.pop %v9797
        %v9926 = vrsqrt.pop %v9798
        %v9927 = vrsqrt.pop %v9799
        %v9928 = vrsqrt.pop %v9800
        %v9929 = vrsqrt.pop %v9801
        %v9930 = vrsqrt.pop %v9802
        %v9931 = vrsqrt.pop %v9803
        %v9932 = vrsqrt.pop %v9804
        %v9933 = vrsqrt.pop %v9805
        %v9934 = vrsqrt.pop %v9806
        %v9935 = vrsqrt.pop %v9807
        %v9936 = vrsqrt.pop %v9808
        %v9937 = vrsqrt.pop %v9809
        %v9938 = vrsqrt.pop %v9810
        %v9939 = vrsqrt.pop %v9811
        %v9940 = vrsqrt.pop %v9812
        %v9941 = vrsqrt.pop %v9813
        %v9942 = vrsqrt.pop %v9814
        %v9943 = vrsqrt.pop %v9815
        %v9944 = vrsqrt.pop %v9816
        %v9945 = vrsqrt.pop %v9817
        %v9946 = vrsqrt.pop %v9818
        %v9947 = vrsqrt.pop %v9819
        %v9948 = vrsqrt.pop %v9820
        %v9949 = vrsqrt.pop %v9821
        %v9950 = vrsqrt.pop %v9822
        %v9951 = vrsqrt.pop %v9823
        %v9952 = vrsqrt.pop %v9824
        %v9953 = vrsqrt.pop %v9825
        %v9954 = vrsqrt.pop %v9826
        %v9955 = vrsqrt.pop %v9827
        %v9956 = vrsqrt.pop %v9828
        %v9957 = vrsqrt.pop %v9829
        %v9958 = vrsqrt.pop %v9830
        %v9959 = vrsqrt.pop %v9831
        %v9960 = vrsqrt.pop %v9832
        %v9961 = vrsqrt.pop %v9833
        %v9962 = vrsqrt.pop %v9834
        %v9963 = vrsqrt.pop %v9835
        %v9964 = vrsqrt.pop %v9836
        %v9965 = vrsqrt.pop %v9837
        %v9966 = vrsqrt.pop %v9838
        %v9967 = vrsqrt.pop %v9839
        %v9968 = vrsqrt.pop %v9840
        %v9969 = vrsqrt.pop %v9841
        %v9970 = vrsqrt.pop %v9842
        %v9971 = vrsqrt.pop %v9843
        %v9972 = vrsqrt.pop %v9844
        %v9973 = vrsqrt.pop %v9845
        %v9974 = vrsqrt.pop %v9846
        %v9975 = vrsqrt.pop %v9847
        %v9976 = vrsqrt.pop %v9848
        %v9977 = vrsqrt.pop %v9849
        %v9978 = vrsqrt.pop %v9850
        %v9979 = vrsqrt.pop %v9851
        %v9980 = vrsqrt.pop %v9852
        %v9981 = vrsqrt.pop %v9853
        %v9982 = vrsqrt.pop %v9854
        %v9983 = vrsqrt.pop %v9855
        %v9984 = vrsqrt.pop %v9856
        %v9985 = vrsqrt.pop %v9857
        %v9986 = vrsqrt.pop %v9858
        %v9987 = vrsqrt.pop %v9859
        %v9988 = vrsqrt.pop %v9860
        %v9989 = vrsqrt.pop %v9861
        %v9990 = vrsqrt.pop %v9862
        %v9991 = vrsqrt.pop %v9863
        %v9992 = vrsqrt.pop %v9864
        %v9993 = vrsqrt.pop %v9865
        %v9994 = vrsqrt.pop %v9866
        %v9995 = vrsqrt.pop %v9867
        %v9996 = vrsqrt.pop %v9868
        %v9997 = vrsqrt.pop %v9869
        %v9998 = vrsqrt.pop %v9870
        %v9999 = vrsqrt.pop %v9871
        %v10000 = vrsqrt.pop %v9872
        %v10001 = vrsqrt.pop %v9873
        %v10002 = vrsqrt.pop %v9874
        %v10003 = vrsqrt.pop %v9875
        %v10004 = vrsqrt.pop %v9876
        %v10005 = vrsqrt.pop %v9877
        %v10006 = vrsqrt.pop %v9878
        %v10007 = vrsqrt.pop %v9879
        %v10008 = vrsqrt.pop %v9880
        %v10009 = vrsqrt.pop %v9881
        %v10010 = vrsqrt.pop %v9882
        %v10011 = vrsqrt.pop %v9883
        %v10012 = vrsqrt.pop %v9884
        %v10013 = vrsqrt.pop %v9885
        %v10014 = vrsqrt.pop %v9886
        %v10015 = vrsqrt.pop %v9887
        %v10016 = vrsqrt.pop %v9888
        %v10017 = vrsqrt.pop %v9889
        %v10018 = vrsqrt.pop %v9890
        %v10019 = vrsqrt.pop %v9891
        %v10020 = vrsqrt.pop %v9892
        %v10021 = vrsqrt.pop %v9893
        %v10022 = vrsqrt.pop %v9894
        %v10023 = vrsqrt.pop %v9895
        %v10024 = vrsqrt.pop %v9896
        %v10025 = vrsqrt.pop %v9897
        %v10026 = vrsqrt.pop %v9898
        %v10027 = vrsqrt.pop %v9899
        %v10028 = vrsqrt.pop %v9900
        %v10029 = vrsqrt.pop %v9901
        %v10030 = vrsqrt.pop %v9902
        %v10031 = vrsqrt.pop %v9903
        %v10032 = vrsqrt.pop %v9904
        %v10033 = vrsqrt.pop %v9905
        %v10034 = vrsqrt.pop %v9906
        %v10035 = vrsqrt.pop %v9907
        %v10036 = vrsqrt.pop %v9908
        %v10037 = vrsqrt.pop %v9909
        %v10038 = vrsqrt.pop %v9910
        %v10039 = vrsqrt.pop %v9911
        %v10040 = vrsqrt.pop %v9912
        %v10041 = vrsqrt.pop %v9913
        %v10042 = vsub.f32 %v9276, %v8892
        %v10043 = vsub.f32 %v9279, %v8895
        %v10044 = vsub.f32 %v9282, %v8898
        %v10045 = vsub.f32 %v9285, %v8901
        %v10046 = vsub.f32 %v9288, %v8904
        %v10047 = vsub.f32 %v9291, %v8907
        %v10048 = vsub.f32 %v9294, %v8910
        %v10049 = vsub.f32 %v9297, %v8913
        %v10050 = vsub.f32 %v9300, %v8916
        %v10051 = vsub.f32 %v9303, %v8919
        %v10052 = vsub.f32 %v9306, %v8922
        %v10053 = vsub.f32 %v9309, %v8925
        %v10054 = vsub.f32 %v9312, %v8928
        %v10055 = vsub.f32 %v9315, %v8931
        %v10056 = vsub.f32 %v9318, %v8934
        %v10057 = vsub.f32 %v9321, %v8937
        %v10058 = vsub.f32 %v9324, %v8940
        %v10059 = vsub.f32 %v9327, %v8943
        %v10060 = vsub.f32 %v9330, %v8946
        %v10061 = vsub.f32 %v9333, %v8949
        %v10062 = vsub.f32 %v9336, %v8952
        %v10063 = vsub.f32 %v9339, %v8955
        %v10064 = vsub.f32 %v9342, %v8958
        %v10065 = vsub.f32 %v9345, %v8961
        %v10066 = vsub.f32 %v9348, %v8964
        %v10067 = vsub.f32 %v9351, %v8967
        %v10068 = vsub.f32 %v9354, %v8970
        %v10069 = vsub.f32 %v9357, %v8973
        %v10070 = vsub.f32 %v9360, %v8976
        %v10071 = vsub.f32 %v9363, %v8979
        %v10072 = vsub.f32 %v9366, %v8982
        %v10073 = vsub.f32 %v9369, %v8985
        %v10074 = vsub.f32 %v9372, %v8988
        %v10075 = vsub.f32 %v9375, %v8991
        %v10076 = vsub.f32 %v9378, %v8994
        %v10077 = vsub.f32 %v9381, %v8997
        %v10078 = vsub.f32 %v9384, %v9000
        %v10079 = vsub.f32 %v9387, %v9003
        %v10080 = vsub.f32 %v9390, %v9006
        %v10081 = vsub.f32 %v9393, %v9009
        %v10082 = vsub.f32 %v9396, %v9012
        %v10083 = vsub.f32 %v9399, %v9015
        %v10084 = vsub.f32 %v9402, %v9018
        %v10085 = vsub.f32 %v9405, %v9021
        %v10086 = vsub.f32 %v9408, %v9024
        %v10087 = vsub.f32 %v9411, %v9027
        %v10088 = vsub.f32 %v9414, %v9030
        %v10089 = vsub.f32 %v9417, %v9033
        %v10090 = vsub.f32 %v9420, %v9036
        %v10091 = vsub.f32 %v9423, %v9039
        %v10092 = vsub.f32 %v9426, %v9042
        %v10093 = vsub.f32 %v9429, %v9045
        %v10094 = vsub.f32 %v9432, %v9048
        %v10095 = vsub.f32 %v9435, %v9051
        %v10096 = vsub.f32 %v9438, %v9054
        %v10097 = vsub.f32 %v9441, %v9057
        %v10098 = vsub.f32 %v9444, %v9060
        %v10099 = vsub.f32 %v9447, %v9063
        %v10100 = vsub.f32 %v9450, %v9066
        %v10101 = vsub.f32 %v9453, %v9069
        %v10102 = vsub.f32 %v9456, %v9072
        %v10103 = vsub.f32 %v9459, %v9075
        %v10104 = vsub.f32 %v9462, %v9078
        %v10105 = vsub.f32 %v9465, %v9081
        %v10106 = vsub.f32 %v9468, %v9084
        %v10107 = vsub.f32 %v9471, %v9087
        %v10108 = vsub.f32 %v9474, %v9090
        %v10109 = vsub.f32 %v9477, %v9093
        %v10110 = vsub.f32 %v9480, %v9096
        %v10111 = vsub.f32 %v9483, %v9099
        %v10112 = vsub.f32 %v9486, %v9102
        %v10113 = vsub.f32 %v9489, %v9105
        %v10114 = vsub.f32 %v9492, %v9108
        %v10115 = vsub.f32 %v9495, %v9111
        %v10116 = vsub.f32 %v9498, %v9114
        %v10117 = vsub.f32 %v9501, %v9117
        %v10118 = vsub.f32 %v9504, %v9120
        %v10119 = vsub.f32 %v9507, %v9123
        %v10120 = vsub.f32 %v9510, %v9126
        %v10121 = vsub.f32 %v9513, %v9129
        %v10122 = vsub.f32 %v9516, %v9132
        %v10123 = vsub.f32 %v9519, %v9135
        %v10124 = vsub.f32 %v9522, %v9138
        %v10125 = vsub.f32 %v9525, %v9141
        %v10126 = vsub.f32 %v9528, %v9144
        %v10127 = vsub.f32 %v9531, %v9147
        %v10128 = vsub.f32 %v9534, %v9150
        %v10129 = vsub.f32 %v9537, %v9153
        %v10130 = vsub.f32 %v9540, %v9156
        %v10131 = vsub.f32 %v9543, %v9159
        %v10132 = vsub.f32 %v9546, %v9162
        %v10133 = vsub.f32 %v9549, %v9165
        %v10134 = vsub.f32 %v9552, %v9168
        %v10135 = vsub.f32 %v9555, %v9171
        %v10136 = vsub.f32 %v9558, %v9174
        %v10137 = vsub.f32 %v9561, %v9177
        %v10138 = vsub.f32 %v9564, %v9180
        %v10139 = vsub.f32 %v9567, %v9183
        %v10140 = vsub.f32 %v9570, %v9186
        %v10141 = vsub.f32 %v9573, %v9189
        %v10142 = vsub.f32 %v9576, %v9192
        %v10143 = vsub.f32 %v9579, %v9195
        %v10144 = vsub.f32 %v9582, %v9198
        %v10145 = vsub.f32 %v9585, %v9201
        %v10146 = vsub.f32 %v9588, %v9204
        %v10147 = vsub.f32 %v9591, %v9207
        %v10148 = vsub.f32 %v9594, %v9210
        %v10149 = vsub.f32 %v9597, %v9213
        %v10150 = vsub.f32 %v9600, %v9216
        %v10151 = vsub.f32 %v9603, %v9219
        %v10152 = vsub.f32 %v9606, %v9222
        %v10153 = vsub.f32 %v9609, %v9225
        %v10154 = vsub.f32 %v9612, %v9228
        %v10155 = vsub.f32 %v9615, %v9231
        %v10156 = vsub.f32 %v9618, %v9234
        %v10157 = vsub.f32 %v9621, %v9237
        %v10158 = vsub.f32 %v9624, %v9240
        %v10159 = vsub.f32 %v9627, %v9243
        %v10160 = vsub.f32 %v9630, %v9246
        %v10161 = vsub.f32 %v9633, %v9249
        %v10162 = vsub.f32 %v9636, %v9252
        %v10163 = vsub.f32 %v9639, %v9255
        %v10164 = vsub.f32 %v9642, %v9258
        %v10165 = vsub.f32 %v9645, %v9261
        %v10166 = vsub.f32 %v9648, %v9264
        %v10167 = vsub.f32 %v9651, %v9267
        %v10168 = vsub.f32 %v9654, %v9270
        %v10169 = vsub.f32 %v9657, %v9273
        %v10170 = vmul.f32 %v10042, 0.03125
        %v10171 = vmul.f32 %v10043, 0.03125
        %v10172 = vmul.f32 %v10044, 0.03125
        %v10173 = vmul.f32 %v10045, 0.03125
        %v10174 = vmul.f32 %v10046, 0.03125
        %v10175 = vmul.f32 %v10047, 0.03125
        %v10176 = vmul.f32 %v10048, 0.03125
        %v10177 = vmul.f32 %v10049, 0.03125
        %v10178 = vmul.f32 %v10050, 0.03125
        %v10179 = vmul.f32 %v10051, 0.03125
        %v10180 = vmul.f32 %v10052, 0.03125
        %v10181 = vmul.f32 %v10053, 0.03125
        %v10182 = vmul.f32 %v10054, 0.03125
        %v10183 = vmul.f32 %v10055, 0.03125
        %v10184 = vmul.f32 %v10056, 0.03125
        %v10185 = vmul.f32 %v10057, 0.03125
        %v10186 = vmul.f32 %v10058, 0.03125
        %v10187 = vmul.f32 %v10059, 0.03125
        %v10188 = vmul.f32 %v10060, 0.03125
        %v10189 = vmul.f32 %v10061, 0.03125
        %v10190 = vmul.f32 %v10062, 0.03125
        %v10191 = vmul.f32 %v10063, 0.03125
        %v10192 = vmul.f32 %v10064, 0.03125
        %v10193 = vmul.f32 %v10065, 0.03125
        %v10194 = vmul.f32 %v10066, 0.03125
        %v10195 = vmul.f32 %v10067, 0.03125
        %v10196 = vmul.f32 %v10068, 0.03125
        %v10197 = vmul.f32 %v10069, 0.03125
        %v10198 = vmul.f32 %v10070, 0.03125
        %v10199 = vmul.f32 %v10071, 0.03125
        %v10200 = vmul.f32 %v10072, 0.03125
        %v10201 = vmul.f32 %v10073, 0.03125
        %v10202 = vmul.f32 %v10074, 0.03125
        %v10203 = vmul.f32 %v10075, 0.03125
        %v10204 = vmul.f32 %v10076, 0.03125
        %v10205 = vmul.f32 %v10077, 0.03125
        %v10206 = vmul.f32 %v10078, 0.03125
        %v10207 = vmul.f32 %v10079, 0.03125
        %v10208 = vmul.f32 %v10080, 0.03125
        %v10209 = vmul.f32 %v10081, 0.03125
        %v10210 = vmul.f32 %v10082, 0.03125
        %v10211 = vmul.f32 %v10083, 0.03125
        %v10212 = vmul.f32 %v10084, 0.03125
        %v10213 = vmul.f32 %v10085, 0.03125
        %v10214 = vmul.f32 %v10086, 0.03125
        %v10215 = vmul.f32 %v10087, 0.03125
        %v10216 = vmul.f32 %v10088, 0.03125
        %v10217 = vmul.f32 %v10089, 0.03125
        %v10218 = vmul.f32 %v10090, 0.03125
        %v10219 = vmul.f32 %v10091, 0.03125
        %v10220 = vmul.f32 %v10092, 0.03125
        %v10221 = vmul.f32 %v10093, 0.03125
        %v10222 = vmul.f32 %v10094, 0.03125
        %v10223 = vmul.f32 %v10095, 0.03125
        %v10224 = vmul.f32 %v10096, 0.03125
        %v10225 = vmul.f32 %v10097, 0.03125
        %v10226 = vmul.f32 %v10098, 0.03125
        %v10227 = vmul.f32 %v10099, 0.03125
        %v10228 = vmul.f32 %v10100, 0.03125
        %v10229 = vmul.f32 %v10101, 0.03125
        %v10230 = vmul.f32 %v10102, 0.03125
        %v10231 = vmul.f32 %v10103, 0.03125
        %v10232 = vmul.f32 %v10104, 0.03125
        %v10233 = vmul.f32 %v10105, 0.03125
        %v10234 = vmul.f32 %v10106, 0.03125
        %v10235 = vmul.f32 %v10107, 0.03125
        %v10236 = vmul.f32 %v10108, 0.03125
        %v10237 = vmul.f32 %v10109, 0.03125
        %v10238 = vmul.f32 %v10110, 0.03125
        %v10239 = vmul.f32 %v10111, 0.03125
        %v10240 = vmul.f32 %v10112, 0.03125
        %v10241 = vmul.f32 %v10113, 0.03125
        %v10242 = vmul.f32 %v10114, 0.03125
        %v10243 = vmul.f32 %v10115, 0.03125
        %v10244 = vmul.f32 %v10116, 0.03125
        %v10245 = vmul.f32 %v10117, 0.03125
        %v10246 = vmul.f32 %v10118, 0.03125
        %v10247 = vmul.f32 %v10119, 0.03125
        %v10248 = vmul.f32 %v10120, 0.03125
        %v10249 = vmul.f32 %v10121, 0.03125
        %v10250 = vmul.f32 %v10122, 0.03125
        %v10251 = vmul.f32 %v10123, 0.03125
        %v10252 = vmul.f32 %v10124, 0.03125
        %v10253 = vmul.f32 %v10125, 0.03125
        %v10254 = vmul.f32 %v10126, 0.03125
        %v10255 = vmul.f32 %v10127, 0.03125
        %v10256 = vmul.f32 %v10128, 0.03125
        %v10257 = vmul.f32 %v10129, 0.03125
        %v10258 = vmul.f32 %v10130, 0.03125
        %v10259 = vmul.f32 %v10131, 0.03125
        %v10260 = vmul.f32 %v10132, 0.03125
        %v10261 = vmul.f32 %v10133, 0.03125
        %v10262 = vmul.f32 %v10134, 0.03125
        %v10263 = vmul.f32 %v10135, 0.03125
        %v10264 = vmul.f32 %v10136, 0.03125
        %v10265 = vmul.f32 %v10137, 0.03125
        %v10266 = vmul.f32 %v10138, 0.03125
        %v10267 = vmul.f32 %v10139, 0.03125
        %v10268 = vmul.f32 %v10140, 0.03125
        %v10269 = vmul.f32 %v10141, 0.03125
        %v10270 = vmul.f32 %v10142, 0.03125
        %v10271 = vmul.f32 %v10143, 0.03125
        %v10272 = vmul.f32 %v10144, 0.03125
        %v10273 = vmul.f32 %v10145, 0.03125
        %v10274 = vmul.f32 %v10146, 0.03125
        %v10275 = vmul.f32 %v10147, 0.03125
        %v10276 = vmul.f32 %v10148, 0.03125
        %v10277 = vmul.f32 %v10149, 0.03125
        %v10278 = vmul.f32 %v10150, 0.03125
        %v10279 = vmul.f32 %v10151, 0.03125
        %v10280 = vmul.f32 %v10152, 0.03125
        %v10281 = vmul.f32 %v10153, 0.03125
        %v10282 = vmul.f32 %v10154, 0.03125
        %v10283 = vmul.f32 %v10155, 0.03125
        %v10284 = vmul.f32 %v10156, 0.03125
        %v10285 = vmul.f32 %v10157, 0.03125
        %v10286 = vmul.f32 %v10158, 0.03125
        %v10287 = vmul.f32 %v10159, 0.03125
        %v10288 = vmul.f32 %v10160, 0.03125
        %v10289 = vmul.f32 %v10161, 0.03125
        %v10290 = vmul.f32 %v10162, 0.03125
        %v10291 = vmul.f32 %v10163, 0.03125
        %v10292 = vmul.f32 %v10164, 0.03125
        %v10293 = vmul.f32 %v10165, 0.03125
        %v10294 = vmul.f32 %v10166, 0.03125
        %v10295 = vmul.f32 %v10167, 0.03125
        %v10296 = vmul.f32 %v10168, 0.03125
        %v10297 = vmul.f32 %v10169, 0.03125
        %v10298 = vadd.f32 %v10170, 1e-05
        %v10299 = vadd.f32 %v10171, 1e-05
        %v10300 = vadd.f32 %v10172, 1e-05
        %v10301 = vadd.f32 %v10173, 1e-05
        %v10302 = vadd.f32 %v10174, 1e-05
        %v10303 = vadd.f32 %v10175, 1e-05
        %v10304 = vadd.f32 %v10176, 1e-05
        %v10305 = vadd.f32 %v10177, 1e-05
        %v10306 = vadd.f32 %v10178, 1e-05
        %v10307 = vadd.f32 %v10179, 1e-05
        %v10308 = vadd.f32 %v10180, 1e-05
        %v10309 = vadd.f32 %v10181, 1e-05
        %v10310 = vadd.f32 %v10182, 1e-05
        %v10311 = vadd.f32 %v10183, 1e-05
        %v10312 = vadd.f32 %v10184, 1e-05
        %v10313 = vadd.f32 %v10185, 1e-05
        %v10314 = vadd.f32 %v10186, 1e-05
        %v10315 = vadd.f32 %v10187, 1e-05
        %v10316 = vadd.f32 %v10188, 1e-05
        %v10317 = vadd.f32 %v10189, 1e-05
        %v10318 = vadd.f32 %v10190, 1e-05
        %v10319 = vadd.f32 %v10191, 1e-05
        %v10320 = vadd.f32 %v10192, 1e-05
        %v10321 = vadd.f32 %v10193, 1e-05
        %v10322 = vadd.f32 %v10194, 1e-05
        %v10323 = vadd.f32 %v10195, 1e-05
        %v10324 = vadd.f32 %v10196, 1e-05
        %v10325 = vadd.f32 %v10197, 1e-05
        %v10326 = vadd.f32 %v10198, 1e-05
        %v10327 = vadd.f32 %v10199, 1e-05
        %v10328 = vadd.f32 %v10200, 1e-05
        %v10329 = vadd.f32 %v10201, 1e-05
        %v10330 = vadd.f32 %v10202, 1e-05
        %v10331 = vadd.f32 %v10203, 1e-05
        %v10332 = vadd.f32 %v10204, 1e-05
        %v10333 = vadd.f32 %v10205, 1e-05
        %v10334 = vadd.f32 %v10206, 1e-05
        %v10335 = vadd.f32 %v10207, 1e-05
        %v10336 = vadd.f32 %v10208, 1e-05
        %v10337 = vadd.f32 %v10209, 1e-05
        %v10338 = vadd.f32 %v10210, 1e-05
        %v10339 = vadd.f32 %v10211, 1e-05
        %v10340 = vadd.f32 %v10212, 1e-05
        %v10341 = vadd.f32 %v10213, 1e-05
        %v10342 = vadd.f32 %v10214, 1e-05
        %v10343 = vadd.f32 %v10215, 1e-05
        %v10344 = vadd.f32 %v10216, 1e-05
        %v10345 = vadd.f32 %v10217, 1e-05
        %v10346 = vadd.f32 %v10218, 1e-05
        %v10347 = vadd.f32 %v10219, 1e-05
        %v10348 = vadd.f32 %v10220, 1e-05
        %v10349 = vadd.f32 %v10221, 1e-05
        %v10350 = vadd.f32 %v10222, 1e-05
        %v10351 = vadd.f32 %v10223, 1e-05
        %v10352 = vadd.f32 %v10224, 1e-05
        %v10353 = vadd.f32 %v10225, 1e-05
        %v10354 = vadd.f32 %v10226, 1e-05
        %v10355 = vadd.f32 %v10227, 1e-05
        %v10356 = vadd.f32 %v10228, 1e-05
        %v10357 = vadd.f32 %v10229, 1e-05
        %v10358 = vadd.f32 %v10230, 1e-05
        %v10359 = vadd.f32 %v10231, 1e-05
        %v10360 = vadd.f32 %v10232, 1e-05
        %v10361 = vadd.f32 %v10233, 1e-05
        %v10362 = vadd.f32 %v10234, 1e-05
        %v10363 = vadd.f32 %v10235, 1e-05
        %v10364 = vadd.f32 %v10236, 1e-05
        %v10365 = vadd.f32 %v10237, 1e-05
        %v10366 = vadd.f32 %v10238, 1e-05
        %v10367 = vadd.f32 %v10239, 1e-05
        %v10368 = vadd.f32 %v10240, 1e-05
        %v10369 = vadd.f32 %v10241, 1e-05
        %v10370 = vadd.f32 %v10242, 1e-05
        %v10371 = vadd.f32 %v10243, 1e-05
        %v10372 = vadd.f32 %v10244, 1e-05
        %v10373 = vadd.f32 %v10245, 1e-05
        %v10374 = vadd.f32 %v10246, 1e-05
        %v10375 = vadd.f32 %v10247, 1e-05
        %v10376 = vadd.f32 %v10248, 1e-05
        %v10377 = vadd.f32 %v10249, 1e-05
        %v10378 = vadd.f32 %v10250, 1e-05
        %v10379 = vadd.f32 %v10251, 1e-05
        %v10380 = vadd.f32 %v10252, 1e-05
        %v10381 = vadd.f32 %v10253, 1e-05
        %v10382 = vadd.f32 %v10254, 1e-05
        %v10383 = vadd.f32 %v10255, 1e-05
        %v10384 = vadd.f32 %v10256, 1e-05
        %v10385 = vadd.f32 %v10257, 1e-05
        %v10386 = vadd.f32 %v10258, 1e-05
        %v10387 = vadd.f32 %v10259, 1e-05
        %v10388 = vadd.f32 %v10260, 1e-05
        %v10389 = vadd.f32 %v10261, 1e-05
        %v10390 = vadd.f32 %v10262, 1e-05
        %v10391 = vadd.f32 %v10263, 1e-05
        %v10392 = vadd.f32 %v10264, 1e-05
        %v10393 = vadd.f32 %v10265, 1e-05
        %v10394 = vadd.f32 %v10266, 1e-05
        %v10395 = vadd.f32 %v10267, 1e-05
        %v10396 = vadd.f32 %v10268, 1e-05
        %v10397 = vadd.f32 %v10269, 1e-05
        %v10398 = vadd.f32 %v10270, 1e-05
        %v10399 = vadd.f32 %v10271, 1e-05
        %v10400 = vadd.f32 %v10272, 1e-05
        %v10401 = vadd.f32 %v10273, 1e-05
        %v10402 = vadd.f32 %v10274, 1e-05
        %v10403 = vadd.f32 %v10275, 1e-05
        %v10404 = vadd.f32 %v10276, 1e-05
        %v10405 = vadd.f32 %v10277, 1e-05
        %v10406 = vadd.f32 %v10278, 1e-05
        %v10407 = vadd.f32 %v10279, 1e-05
        %v10408 = vadd.f32 %v10280, 1e-05
        %v10409 = vadd.f32 %v10281, 1e-05
        %v10410 = vadd.f32 %v10282, 1e-05
        %v10411 = vadd.f32 %v10283, 1e-05
        %v10412 = vadd.f32 %v10284, 1e-05
        %v10413 = vadd.f32 %v10285, 1e-05
        %v10414 = vadd.f32 %v10286, 1e-05
        %v10415 = vadd.f32 %v10287, 1e-05
        %v10416 = vadd.f32 %v10288, 1e-05
        %v10417 = vadd.f32 %v10289, 1e-05
        %v10418 = vadd.f32 %v10290, 1e-05
        %v10419 = vadd.f32 %v10291, 1e-05
        %v10420 = vadd.f32 %v10292, 1e-05
        %v10421 = vadd.f32 %v10293, 1e-05
        %v10422 = vadd.f32 %v10294, 1e-05
        %v10423 = vadd.f32 %v10295, 1e-05
        %v10424 = vadd.f32 %v10296, 1e-05
        %v10425 = vadd.f32 %v10297, 1e-05
        %v10426 = vrsqrt.pop %v10298
        %v10427 = vrsqrt.pop %v10299
        %v10428 = vrsqrt.pop %v10300
        %v10429 = vrsqrt.pop %v10301
        %v10430 = vrsqrt.pop %v10302
        %v10431 = vrsqrt.pop %v10303
        %v10432 = vrsqrt.pop %v10304
        %v10433 = vrsqrt.pop %v10305
        %v10434 = vrsqrt.pop %v10306
        %v10435 = vrsqrt.pop %v10307
        %v10436 = vrsqrt.pop %v10308
        %v10437 = vrsqrt.pop %v10309
        %v10438 = vrsqrt.pop %v10310
        %v10439 = vrsqrt.pop %v10311
        %v10440 = vrsqrt.pop %v10312
        %v10441 = vrsqrt.pop %v10313
        %v10442 = vrsqrt.pop %v10314
        %v10443 = vrsqrt.pop %v10315
        %v10444 = vrsqrt.pop %v10316
        %v10445 = vrsqrt.pop %v10317
        %v10446 = vrsqrt.pop %v10318
        %v10447 = vrsqrt.pop %v10319
        %v10448 = vrsqrt.pop %v10320
        %v10449 = vrsqrt.pop %v10321
        %v10450 = vrsqrt.pop %v10322
        %v10451 = vrsqrt.pop %v10323
        %v10452 = vrsqrt.pop %v10324
        %v10453 = vrsqrt.pop %v10325
        %v10454 = vrsqrt.pop %v10326
        %v10455 = vrsqrt.pop %v10327
        %v10456 = vrsqrt.pop %v10328
        %v10457 = vrsqrt.pop %v10329
        %v10458 = vrsqrt.pop %v10330
        %v10459 = vrsqrt.pop %v10331
        %v10460 = vrsqrt.pop %v10332
        %v10461 = vrsqrt.pop %v10333
        %v10462 = vrsqrt.pop %v10334
        %v10463 = vrsqrt.pop %v10335
        %v10464 = vrsqrt.pop %v10336
        %v10465 = vrsqrt.pop %v10337
        %v10466 = vrsqrt.pop %v10338
        %v10467 = vrsqrt.pop %v10339
        %v10468 = vrsqrt.pop %v10340
        %v10469 = vrsqrt.pop %v10341
        %v10470 = vrsqrt.pop %v10342
        %v10471 = vrsqrt.pop %v10343
        %v10472 = vrsqrt.pop %v10344
        %v10473 = vrsqrt.pop %v10345
        %v10474 = vrsqrt.pop %v10346
        %v10475 = vrsqrt.pop %v10347
        %v10476 = vrsqrt.pop %v10348
        %v10477 = vrsqrt.pop %v10349
        %v10478 = vrsqrt.pop %v10350
        %v10479 = vrsqrt.pop %v10351
        %v10480 = vrsqrt.pop %v10352
        %v10481 = vrsqrt.pop %v10353
        %v10482 = vrsqrt.pop %v10354
        %v10483 = vrsqrt.pop %v10355
        %v10484 = vrsqrt.pop %v10356
        %v10485 = vrsqrt.pop %v10357
        %v10486 = vrsqrt.pop %v10358
        %v10487 = vrsqrt.pop %v10359
        %v10488 = vrsqrt.pop %v10360
        %v10489 = vrsqrt.pop %v10361
        %v10490 = vrsqrt.pop %v10362
        %v10491 = vrsqrt.pop %v10363
        %v10492 = vrsqrt.pop %v10364
        %v10493 = vrsqrt.pop %v10365
        %v10494 = vrsqrt.pop %v10366
        %v10495 = vrsqrt.pop %v10367
        %v10496 = vrsqrt.pop %v10368
        %v10497 = vrsqrt.pop %v10369
        %v10498 = vrsqrt.pop %v10370
        %v10499 = vrsqrt.pop %v10371
        %v10500 = vrsqrt.pop %v10372
        %v10501 = vrsqrt.pop %v10373
        %v10502 = vrsqrt.pop %v10374
        %v10503 = vrsqrt.pop %v10375
        %v10504 = vrsqrt.pop %v10376
        %v10505 = vrsqrt.pop %v10377
        %v10506 = vrsqrt.pop %v10378
        %v10507 = vrsqrt.pop %v10379
        %v10508 = vrsqrt.pop %v10380
        %v10509 = vrsqrt.pop %v10381
        %v10510 = vrsqrt.pop %v10382
        %v10511 = vrsqrt.pop %v10383
        %v10512 = vrsqrt.pop %v10384
        %v10513 = vrsqrt.pop %v10385
        %v10514 = vrsqrt.pop %v10386
        %v10515 = vrsqrt.pop %v10387
        %v10516 = vrsqrt.pop %v10388
        %v10517 = vrsqrt.pop %v10389
        %v10518 = vrsqrt.pop %v10390
        %v10519 = vrsqrt.pop %v10391
        %v10520 = vrsqrt.pop %v10392
        %v10521 = vrsqrt.pop %v10393
        %v10522 = vrsqrt.pop %v10394
        %v10523 = vrsqrt.pop %v10395
        %v10524 = vrsqrt.pop %v10396
        %v10525 = vrsqrt.pop %v10397
        %v10526 = vrsqrt.pop %v10398
        %v10527 = vrsqrt.pop %v10399
        %v10528 = vrsqrt.pop %v10400
        %v10529 = vrsqrt.pop %v10401
        %v10530 = vrsqrt.pop %v10402
        %v10531 = vrsqrt.pop %v10403
        %v10532 = vrsqrt.pop %v10404
        %v10533 = vrsqrt.pop %v10405
        %v10534 = vrsqrt.pop %v10406
        %v10535 = vrsqrt.pop %v10407
        %v10536 = vrsqrt.pop %v10408
        %v10537 = vrsqrt.pop %v10409
        %v10538 = vrsqrt.pop %v10410
        %v10539 = vrsqrt.pop %v10411
        %v10540 = vrsqrt.pop %v10412
        %v10541 = vrsqrt.pop %v10413
        %v10542 = vrsqrt.pop %v10414
        %v10543 = vrsqrt.pop %v10415
        %v10544 = vrsqrt.pop %v10416
        %v10545 = vrsqrt.pop %v10417
        %v10546 = vrsqrt.pop %v10418
        %v10547 = vrsqrt.pop %v10419
        %v10548 = vrsqrt.pop %v10420
        %v10549 = vrsqrt.pop %v10421
        %v10550 = vrsqrt.pop %v10422
        %v10551 = vrsqrt.pop %v10423
        %v10552 = vrsqrt.pop %v10424
        %v10553 = vrsqrt.pop %v10425
        %v10554 = vsel %vm1196, %v9914, %v10426
        %v10555 = vsel %vm1196, %v9915, %v10427
        %v10556 = vsel %vm1196, %v9916, %v10428
        %v10557 = vsel %vm1196, %v9917, %v10429
        %v10558 = vsel %vm1196, %v9918, %v10430
        %v10559 = vsel %vm1196, %v9919, %v10431
        %v10560 = vsel %vm1196, %v9920, %v10432
        %v10561 = vsel %vm1196, %v9921, %v10433
        %v10562 = vsel %vm1196, %v9922, %v10434
        %v10563 = vsel %vm1196, %v9923, %v10435
        %v10564 = vsel %vm1196, %v9924, %v10436
        %v10565 = vsel %vm1196, %v9925, %v10437
        %v10566 = vsel %vm1196, %v9926, %v10438
        %v10567 = vsel %vm1196, %v9927, %v10439
        %v10568 = vsel %vm1196, %v9928, %v10440
        %v10569 = vsel %vm1196, %v9929, %v10441
        %v10570 = vsel %vm1196, %v9930, %v10442
        %v10571 = vsel %vm1196, %v9931, %v10443
        %v10572 = vsel %vm1196, %v9932, %v10444
        %v10573 = vsel %vm1196, %v9933, %v10445
        %v10574 = vsel %vm1196, %v9934, %v10446
        %v10575 = vsel %vm1196, %v9935, %v10447
        %v10576 = vsel %vm1196, %v9936, %v10448
        %v10577 = vsel %vm1196, %v9937, %v10449
        %v10578 = vsel %vm1196, %v9938, %v10450
        %v10579 = vsel %vm1196, %v9939, %v10451
        %v10580 = vsel %vm1196, %v9940, %v10452
        %v10581 = vsel %vm1196, %v9941, %v10453
        %v10582 = vsel %vm1196, %v9942, %v10454
        %v10583 = vsel %vm1196, %v9943, %v10455
        %v10584 = vsel %vm1196, %v9944, %v10456
        %v10585 = vsel %vm1196, %v9945, %v10457
        %v10586 = vsel %vm1196, %v9946, %v10458
        %v10587 = vsel %vm1196, %v9947, %v10459
        %v10588 = vsel %vm1196, %v9948, %v10460
        %v10589 = vsel %vm1196, %v9949, %v10461
        %v10590 = vsel %vm1196, %v9950, %v10462
        %v10591 = vsel %vm1196, %v9951, %v10463
        %v10592 = vsel %vm1196, %v9952, %v10464
        %v10593 = vsel %vm1196, %v9953, %v10465
        %v10594 = vsel %vm1196, %v9954, %v10466
        %v10595 = vsel %vm1196, %v9955, %v10467
        %v10596 = vsel %vm1196, %v9956, %v10468
        %v10597 = vsel %vm1196, %v9957, %v10469
        %v10598 = vsel %vm1196, %v9958, %v10470
        %v10599 = vsel %vm1196, %v9959, %v10471
        %v10600 = vsel %vm1196, %v9960, %v10472
        %v10601 = vsel %vm1196, %v9961, %v10473
        %v10602 = vsel %vm1196, %v9962, %v10474
        %v10603 = vsel %vm1196, %v9963, %v10475
        %v10604 = vsel %vm1196, %v9964, %v10476
        %v10605 = vsel %vm1196, %v9965, %v10477
        %v10606 = vsel %vm1196, %v9966, %v10478
        %v10607 = vsel %vm1196, %v9967, %v10479
        %v10608 = vsel %vm1196, %v9968, %v10480
        %v10609 = vsel %vm1196, %v9969, %v10481
        %v10610 = vsel %vm1196, %v9970, %v10482
        %v10611 = vsel %vm1196, %v9971, %v10483
        %v10612 = vsel %vm1196, %v9972, %v10484
        %v10613 = vsel %vm1196, %v9973, %v10485
        %v10614 = vsel %vm1196, %v9974, %v10486
        %v10615 = vsel %vm1196, %v9975, %v10487
        %v10616 = vsel %vm1196, %v9976, %v10488
        %v10617 = vsel %vm1196, %v9977, %v10489
        %v10618 = vsel %vm1196, %v9978, %v10490
        %v10619 = vsel %vm1196, %v9979, %v10491
        %v10620 = vsel %vm1196, %v9980, %v10492
        %v10621 = vsel %vm1196, %v9981, %v10493
        %v10622 = vsel %vm1196, %v9982, %v10494
        %v10623 = vsel %vm1196, %v9983, %v10495
        %v10624 = vsel %vm1196, %v9984, %v10496
        %v10625 = vsel %vm1196, %v9985, %v10497
        %v10626 = vsel %vm1196, %v9986, %v10498
        %v10627 = vsel %vm1196, %v9987, %v10499
        %v10628 = vsel %vm1196, %v9988, %v10500
        %v10629 = vsel %vm1196, %v9989, %v10501
        %v10630 = vsel %vm1196, %v9990, %v10502
        %v10631 = vsel %vm1196, %v9991, %v10503
        %v10632 = vsel %vm1196, %v9992, %v10504
        %v10633 = vsel %vm1196, %v9993, %v10505
        %v10634 = vsel %vm1196, %v9994, %v10506
        %v10635 = vsel %vm1196, %v9995, %v10507
        %v10636 = vsel %vm1196, %v9996, %v10508
        %v10637 = vsel %vm1196, %v9997, %v10509
        %v10638 = vsel %vm1196, %v9998, %v10510
        %v10639 = vsel %vm1196, %v9999, %v10511
        %v10640 = vsel %vm1196, %v10000, %v10512
        %v10641 = vsel %vm1196, %v10001, %v10513
        %v10642 = vsel %vm1196, %v10002, %v10514
        %v10643 = vsel %vm1196, %v10003, %v10515
        %v10644 = vsel %vm1196, %v10004, %v10516
        %v10645 = vsel %vm1196, %v10005, %v10517
        %v10646 = vsel %vm1196, %v10006, %v10518
        %v10647 = vsel %vm1196, %v10007, %v10519
        %v10648 = vsel %vm1196, %v10008, %v10520
        %v10649 = vsel %vm1196, %v10009, %v10521
        %v10650 = vsel %vm1196, %v10010, %v10522
        %v10651 = vsel %vm1196, %v10011, %v10523
        %v10652 = vsel %vm1196, %v10012, %v10524
        %v10653 = vsel %vm1196, %v10013, %v10525
        %v10654 = vsel %vm1196, %v10014, %v10526
        %v10655 = vsel %vm1196, %v10015, %v10527
        %v10656 = vsel %vm1196, %v10016, %v10528
        %v10657 = vsel %vm1196, %v10017, %v10529
        %v10658 = vsel %vm1196, %v10018, %v10530
        %v10659 = vsel %vm1196, %v10019, %v10531
        %v10660 = vsel %vm1196, %v10020, %v10532
        %v10661 = vsel %vm1196, %v10021, %v10533
        %v10662 = vsel %vm1196, %v10022, %v10534
        %v10663 = vsel %vm1196, %v10023, %v10535
        %v10664 = vsel %vm1196, %v10024, %v10536
        %v10665 = vsel %vm1196, %v10025, %v10537
        %v10666 = vsel %vm1196, %v10026, %v10538
        %v10667 = vsel %vm1196, %v10027, %v10539
        %v10668 = vsel %vm1196, %v10028, %v10540
        %v10669 = vsel %vm1196, %v10029, %v10541
        %v10670 = vsel %vm1196, %v10030, %v10542
        %v10671 = vsel %vm1196, %v10031, %v10543
        %v10672 = vsel %vm1196, %v10032, %v10544
        %v10673 = vsel %vm1196, %v10033, %v10545
        %v10674 = vsel %vm1196, %v10034, %v10546
        %v10675 = vsel %vm1196, %v10035, %v10547
        %v10676 = vsel %vm1196, %v10036, %v10548
        %v10677 = vsel %vm1196, %v10037, %v10549
        %v10678 = vsel %vm1196, %v10038, %v10550
        %v10679 = vsel %vm1196, %v10039, %v10551
        %v10680 = vsel %vm1196, %v10040, %v10552
        %v10681 = vsel %vm1196, %v10041, %v10553
        %10810 = vrot.lane.b32.xlu0 %v10554, 64
        %v10811 = vpop.permute.xlu0 %10810
        %10812 = vrot.lane.b32.xlu0 %v10555, 64
        %v10813 = vpop.permute.xlu0 %10812
        %10814 = vrot.lane.b32.xlu0 %v10556, 64
        %v10815 = vpop.permute.xlu0 %10814
        %10816 = vrot.lane.b32.xlu0 %v10557, 64
        %v10817 = vpop.permute.xlu0 %10816
        %10818 = vrot.lane.b32.xlu0 %v10558, 64
        %v10819 = vpop.permute.xlu0 %10818
        %10820 = vrot.lane.b32.xlu0 %v10559, 64
        %v10821 = vpop.permute.xlu0 %10820
        %10822 = vrot.lane.b32.xlu0 %v10560, 64
        %v10823 = vpop.permute.xlu0 %10822
        %10824 = vrot.lane.b32.xlu0 %v10561, 64
        %v10825 = vpop.permute.xlu0 %10824
        %10826 = vrot.lane.b32.xlu0 %v10562, 64
        %v10827 = vpop.permute.xlu0 %10826
        %10828 = vrot.lane.b32.xlu0 %v10563, 64
        %v10829 = vpop.permute.xlu0 %10828
        %10830 = vrot.lane.b32.xlu0 %v10564, 64
        %v10831 = vpop.permute.xlu0 %10830
        %10832 = vrot.lane.b32.xlu0 %v10565, 64
        %v10833 = vpop.permute.xlu0 %10832
        %10834 = vrot.lane.b32.xlu0 %v10566, 64
        %v10835 = vpop.permute.xlu0 %10834
        %10836 = vrot.lane.b32.xlu0 %v10567, 64
        %v10837 = vpop.permute.xlu0 %10836
        %10838 = vrot.lane.b32.xlu0 %v10568, 64
        %v10839 = vpop.permute.xlu0 %10838
        %10840 = vrot.lane.b32.xlu0 %v10569, 64
        %v10841 = vpop.permute.xlu0 %10840
        %10842 = vrot.lane.b32.xlu0 %v10570, 64
        %v10843 = vpop.permute.xlu0 %10842
        %10844 = vrot.lane.b32.xlu0 %v10571, 64
        %v10845 = vpop.permute.xlu0 %10844
        %10846 = vrot.lane.b32.xlu0 %v10572, 64
        %v10847 = vpop.permute.xlu0 %10846
        %10848 = vrot.lane.b32.xlu0 %v10573, 64
        %v10849 = vpop.permute.xlu0 %10848
        %10850 = vrot.lane.b32.xlu0 %v10574, 64
        %v10851 = vpop.permute.xlu0 %10850
        %10852 = vrot.lane.b32.xlu0 %v10575, 64
        %v10853 = vpop.permute.xlu0 %10852
        %10854 = vrot.lane.b32.xlu0 %v10576, 64
        %v10855 = vpop.permute.xlu0 %10854
        %10856 = vrot.lane.b32.xlu0 %v10577, 64
        %v10857 = vpop.permute.xlu0 %10856
        %10858 = vrot.lane.b32.xlu0 %v10578, 64
        %v10859 = vpop.permute.xlu0 %10858
        %10860 = vrot.lane.b32.xlu0 %v10579, 64
        %v10861 = vpop.permute.xlu0 %10860
        %10862 = vrot.lane.b32.xlu0 %v10580, 64
        %v10863 = vpop.permute.xlu0 %10862
        %10864 = vrot.lane.b32.xlu0 %v10581, 64
        %v10865 = vpop.permute.xlu0 %10864
        %10866 = vrot.lane.b32.xlu0 %v10582, 64
        %v10867 = vpop.permute.xlu0 %10866
        %10868 = vrot.lane.b32.xlu0 %v10583, 64
        %v10869 = vpop.permute.xlu0 %10868
        %10870 = vrot.lane.b32.xlu0 %v10584, 64
        %v10871 = vpop.permute.xlu0 %10870
        %10872 = vrot.lane.b32.xlu0 %v10585, 64
        %v10873 = vpop.permute.xlu0 %10872
        %10874 = vrot.lane.b32.xlu0 %v10586, 64
        %v10875 = vpop.permute.xlu0 %10874
        %10876 = vrot.lane.b32.xlu0 %v10587, 64
        %v10877 = vpop.permute.xlu0 %10876
        %10878 = vrot.lane.b32.xlu0 %v10588, 64
        %v10879 = vpop.permute.xlu0 %10878
        %10880 = vrot.lane.b32.xlu0 %v10589, 64
        %v10881 = vpop.permute.xlu0 %10880
        %10882 = vrot.lane.b32.xlu0 %v10590, 64
        %v10883 = vpop.permute.xlu0 %10882
        %10884 = vrot.lane.b32.xlu0 %v10591, 64
        %v10885 = vpop.permute.xlu0 %10884
        %10886 = vrot.lane.b32.xlu0 %v10592, 64
        %v10887 = vpop.permute.xlu0 %10886
        %10888 = vrot.lane.b32.xlu0 %v10593, 64
        %v10889 = vpop.permute.xlu0 %10888
        %10890 = vrot.lane.b32.xlu0 %v10594, 64
        %v10891 = vpop.permute.xlu0 %10890
        %10892 = vrot.lane.b32.xlu0 %v10595, 64
        %v10893 = vpop.permute.xlu0 %10892
        %10894 = vrot.lane.b32.xlu0 %v10596, 64
        %v10895 = vpop.permute.xlu0 %10894
        %10896 = vrot.lane.b32.xlu0 %v10597, 64
        %v10897 = vpop.permute.xlu0 %10896
        %10898 = vrot.lane.b32.xlu0 %v10598, 64
        %v10899 = vpop.permute.xlu0 %10898
        %10900 = vrot.lane.b32.xlu0 %v10599, 64
        %v10901 = vpop.permute.xlu0 %10900
        %10902 = vrot.lane.b32.xlu0 %v10600, 64
        %v10903 = vpop.permute.xlu0 %10902
        %10904 = vrot.lane.b32.xlu0 %v10601, 64
        %v10905 = vpop.permute.xlu0 %10904
        %10906 = vrot.lane.b32.xlu0 %v10602, 64
        %v10907 = vpop.permute.xlu0 %10906
        %10908 = vrot.lane.b32.xlu0 %v10603, 64
        %v10909 = vpop.permute.xlu0 %10908
        %10910 = vrot.lane.b32.xlu0 %v10604, 64
        %v10911 = vpop.permute.xlu0 %10910
        %10912 = vrot.lane.b32.xlu0 %v10605, 64
        %v10913 = vpop.permute.xlu0 %10912
        %10914 = vrot.lane.b32.xlu0 %v10606, 64
        %v10915 = vpop.permute.xlu0 %10914
        %10916 = vrot.lane.b32.xlu0 %v10607, 64
        %v10917 = vpop.permute.xlu0 %10916
        %10918 = vrot.lane.b32.xlu0 %v10608, 64
        %v10919 = vpop.permute.xlu0 %10918
        %10920 = vrot.lane.b32.xlu0 %v10609, 64
        %v10921 = vpop.permute.xlu0 %10920
        %10922 = vrot.lane.b32.xlu0 %v10610, 64
        %v10923 = vpop.permute.xlu0 %10922
        %10924 = vrot.lane.b32.xlu0 %v10611, 64
        %v10925 = vpop.permute.xlu0 %10924
        %10926 = vrot.lane.b32.xlu0 %v10612, 64
        %v10927 = vpop.permute.xlu0 %10926
        %10928 = vrot.lane.b32.xlu0 %v10613, 64
        %v10929 = vpop.permute.xlu0 %10928
        %10930 = vrot.lane.b32.xlu0 %v10614, 64
        %v10931 = vpop.permute.xlu0 %10930
        %10932 = vrot.lane.b32.xlu0 %v10615, 64
        %v10933 = vpop.permute.xlu0 %10932
        %10934 = vrot.lane.b32.xlu0 %v10616, 64
        %v10935 = vpop.permute.xlu0 %10934
        %10936 = vrot.lane.b32.xlu0 %v10617, 64
        %v10937 = vpop.permute.xlu0 %10936
        %10938 = vrot.lane.b32.xlu0 %v10618, 64
        %v10939 = vpop.permute.xlu0 %10938
        %10940 = vrot.lane.b32.xlu0 %v10619, 64
        %v10941 = vpop.permute.xlu0 %10940
        %10942 = vrot.lane.b32.xlu0 %v10620, 64
        %v10943 = vpop.permute.xlu0 %10942
        %10944 = vrot.lane.b32.xlu0 %v10621, 64
        %v10945 = vpop.permute.xlu0 %10944
        %10946 = vrot.lane.b32.xlu0 %v10622, 64
        %v10947 = vpop.permute.xlu0 %10946
        %10948 = vrot.lane.b32.xlu0 %v10623, 64
        %v10949 = vpop.permute.xlu0 %10948
        %10950 = vrot.lane.b32.xlu0 %v10624, 64
        %v10951 = vpop.permute.xlu0 %10950
        %10952 = vrot.lane.b32.xlu0 %v10625, 64
        %v10953 = vpop.permute.xlu0 %10952
        %10954 = vrot.lane.b32.xlu0 %v10626, 64
        %v10955 = vpop.permute.xlu0 %10954
        %10956 = vrot.lane.b32.xlu0 %v10627, 64
        %v10957 = vpop.permute.xlu0 %10956
        %10958 = vrot.lane.b32.xlu0 %v10628, 64
        %v10959 = vpop.permute.xlu0 %10958
        %10960 = vrot.lane.b32.xlu0 %v10629, 64
        %v10961 = vpop.permute.xlu0 %10960
        %10962 = vrot.lane.b32.xlu0 %v10630, 64
        %v10963 = vpop.permute.xlu0 %10962
        %10964 = vrot.lane.b32.xlu0 %v10631, 64
        %v10965 = vpop.permute.xlu0 %10964
        %10966 = vrot.lane.b32.xlu0 %v10632, 64
        %v10967 = vpop.permute.xlu0 %10966
        %10968 = vrot.lane.b32.xlu0 %v10633, 64
        %v10969 = vpop.permute.xlu0 %10968
        %10970 = vrot.lane.b32.xlu0 %v10634, 64
        %v10971 = vpop.permute.xlu0 %10970
        %10972 = vrot.lane.b32.xlu0 %v10635, 64
        %v10973 = vpop.permute.xlu0 %10972
        %10974 = vrot.lane.b32.xlu0 %v10636, 64
        %v10975 = vpop.permute.xlu0 %10974
        %10976 = vrot.lane.b32.xlu0 %v10637, 64
        %v10977 = vpop.permute.xlu0 %10976
        %10978 = vrot.lane.b32.xlu0 %v10638, 64
        %v10979 = vpop.permute.xlu0 %10978
        %10980 = vrot.lane.b32.xlu0 %v10639, 64
        %v10981 = vpop.permute.xlu0 %10980
        %10982 = vrot.lane.b32.xlu0 %v10640, 64
        %v10983 = vpop.permute.xlu0 %10982
        %10984 = vrot.lane.b32.xlu0 %v10641, 64
        %v10985 = vpop.permute.xlu0 %10984
        %10986 = vrot.lane.b32.xlu0 %v10642, 64
        %v10987 = vpop.permute.xlu0 %10986
        %10988 = vrot.lane.b32.xlu0 %v10643, 64
        %v10989 = vpop.permute.xlu0 %10988
        %10990 = vrot.lane.b32.xlu0 %v10644, 64
        %v10991 = vpop.permute.xlu0 %10990
        %10992 = vrot.lane.b32.xlu0 %v10645, 64
        %v10993 = vpop.permute.xlu0 %10992
        %10994 = vrot.lane.b32.xlu0 %v10646, 64
        %v10995 = vpop.permute.xlu0 %10994
        %10996 = vrot.lane.b32.xlu0 %v10647, 64
        %v10997 = vpop.permute.xlu0 %10996
        %10998 = vrot.lane.b32.xlu0 %v10648, 64
        %v10999 = vpop.permute.xlu0 %10998
        %11000 = vrot.lane.b32.xlu0 %v10649, 64
        %v11001 = vpop.permute.xlu0 %11000
        %11002 = vrot.lane.b32.xlu0 %v10650, 64
        %v11003 = vpop.permute.xlu0 %11002
        %11004 = vrot.lane.b32.xlu0 %v10651, 64
        %v11005 = vpop.permute.xlu0 %11004
        %11006 = vrot.lane.b32.xlu0 %v10652, 64
        %v11007 = vpop.permute.xlu0 %11006
        %11008 = vrot.lane.b32.xlu0 %v10653, 64
        %v11009 = vpop.permute.xlu0 %11008
        %11010 = vrot.lane.b32.xlu0 %v10654, 64
        %v11011 = vpop.permute.xlu0 %11010
        %11012 = vrot.lane.b32.xlu0 %v10655, 64
        %v11013 = vpop.permute.xlu0 %11012
        %11014 = vrot.lane.b32.xlu0 %v10656, 64
        %v11015 = vpop.permute.xlu0 %11014
        %11016 = vrot.lane.b32.xlu0 %v10657, 64
        %v11017 = vpop.permute.xlu0 %11016
        %11018 = vrot.lane.b32.xlu0 %v10658, 64
        %v11019 = vpop.permute.xlu0 %11018
        %11020 = vrot.lane.b32.xlu0 %v10659, 64
        %v11021 = vpop.permute.xlu0 %11020
        %11022 = vrot.lane.b32.xlu0 %v10660, 64
        %v11023 = vpop.permute.xlu0 %11022
        %11024 = vrot.lane.b32.xlu0 %v10661, 64
        %v11025 = vpop.permute.xlu0 %11024
        %11026 = vrot.lane.b32.xlu0 %v10662, 64
        %v11027 = vpop.permute.xlu0 %11026
        %11028 = vrot.lane.b32.xlu0 %v10663, 64
        %v11029 = vpop.permute.xlu0 %11028
        %11030 = vrot.lane.b32.xlu0 %v10664, 64
        %v11031 = vpop.permute.xlu0 %11030
        %11032 = vrot.lane.b32.xlu0 %v10665, 64
        %v11033 = vpop.permute.xlu0 %11032
        %11034 = vrot.lane.b32.xlu0 %v10666, 64
        %v11035 = vpop.permute.xlu0 %11034
        %11036 = vrot.lane.b32.xlu0 %v10667, 64
        %v11037 = vpop.permute.xlu0 %11036
        %11038 = vrot.lane.b32.xlu0 %v10668, 64
        %v11039 = vpop.permute.xlu0 %11038
        %11040 = vrot.lane.b32.xlu0 %v10669, 64
        %v11041 = vpop.permute.xlu0 %11040
        %11042 = vrot.lane.b32.xlu0 %v10670, 64
        %v11043 = vpop.permute.xlu0 %11042
        %11044 = vrot.lane.b32.xlu0 %v10671, 64
        %v11045 = vpop.permute.xlu0 %11044
        %11046 = vrot.lane.b32.xlu0 %v10672, 64
        %v11047 = vpop.permute.xlu0 %11046
        %11048 = vrot.lane.b32.xlu0 %v10673, 64
        %v11049 = vpop.permute.xlu0 %11048
        %11050 = vrot.lane.b32.xlu0 %v10674, 64
        %v11051 = vpop.permute.xlu0 %11050
        %11052 = vrot.lane.b32.xlu0 %v10675, 64
        %v11053 = vpop.permute.xlu0 %11052
        %11054 = vrot.lane.b32.xlu0 %v10676, 64
        %v11055 = vpop.permute.xlu0 %11054
        %11056 = vrot.lane.b32.xlu0 %v10677, 64
        %v11057 = vpop.permute.xlu0 %11056
        %11058 = vrot.lane.b32.xlu0 %v10678, 64
        %v11059 = vpop.permute.xlu0 %11058
        %11060 = vrot.lane.b32.xlu0 %v10679, 64
        %v11061 = vpop.permute.xlu0 %11060
        %11062 = vrot.lane.b32.xlu0 %v10680, 64
        %v11063 = vpop.permute.xlu0 %11062
        %11064 = vrot.lane.b32.xlu0 %v10681, 64
        %v11065 = vpop.permute.xlu0 %11064
        %v11194 = vmul.f32 %v7994, %v10811
        %v11195 = vmul.f32 %v7995, %v10813
        %v11196 = vmul.f32 %v7996, %v10815
        %v11197 = vmul.f32 %v7997, %v10817
        %v11198 = vmul.f32 %v7998, %v10819
        %v11199 = vmul.f32 %v7999, %v10821
        %v11200 = vmul.f32 %v8000, %v10823
        %v11201 = vmul.f32 %v8001, %v10825
        %v11202 = vmul.f32 %v8002, %v10827
        %v11203 = vmul.f32 %v8003, %v10829
        %v11204 = vmul.f32 %v8004, %v10831
        %v11205 = vmul.f32 %v8005, %v10833
        %v11206 = vmul.f32 %v8006, %v10835
        %v11207 = vmul.f32 %v8007, %v10837
        %v11208 = vmul.f32 %v8008, %v10839
        %v11209 = vmul.f32 %v8009, %v10841
        %v11210 = vmul.f32 %v8010, %v10843
        %v11211 = vmul.f32 %v8011, %v10845
        %v11212 = vmul.f32 %v8012, %v10847
        %v11213 = vmul.f32 %v8013, %v10849
        %v11214 = vmul.f32 %v8014, %v10851
        %v11215 = vmul.f32 %v8015, %v10853
        %v11216 = vmul.f32 %v8016, %v10855
        %v11217 = vmul.f32 %v8017, %v10857
        %v11218 = vmul.f32 %v8018, %v10859
        %v11219 = vmul.f32 %v8019, %v10861
        %v11220 = vmul.f32 %v8020, %v10863
        %v11221 = vmul.f32 %v8021, %v10865
        %v11222 = vmul.f32 %v8022, %v10867
        %v11223 = vmul.f32 %v8023, %v10869
        %v11224 = vmul.f32 %v8024, %v10871
        %v11225 = vmul.f32 %v8025, %v10873
        %v11226 = vmul.f32 %v8026, %v10875
        %v11227 = vmul.f32 %v8027, %v10877
        %v11228 = vmul.f32 %v8028, %v10879
        %v11229 = vmul.f32 %v8029, %v10881
        %v11230 = vmul.f32 %v8030, %v10883
        %v11231 = vmul.f32 %v8031, %v10885
        %v11232 = vmul.f32 %v8032, %v10887
        %v11233 = vmul.f32 %v8033, %v10889
        %v11234 = vmul.f32 %v8034, %v10891
        %v11235 = vmul.f32 %v8035, %v10893
        %v11236 = vmul.f32 %v8036, %v10895
        %v11237 = vmul.f32 %v8037, %v10897
        %v11238 = vmul.f32 %v8038, %v10899
        %v11239 = vmul.f32 %v8039, %v10901
        %v11240 = vmul.f32 %v8040, %v10903
        %v11241 = vmul.f32 %v8041, %v10905
        %v11242 = vmul.f32 %v8042, %v10907
        %v11243 = vmul.f32 %v8043, %v10909
        %v11244 = vmul.f32 %v8044, %v10911
        %v11245 = vmul.f32 %v8045, %v10913
        %v11246 = vmul.f32 %v8046, %v10915
        %v11247 = vmul.f32 %v8047, %v10917
        %v11248 = vmul.f32 %v8048, %v10919
        %v11249 = vmul.f32 %v8049, %v10921
        %v11250 = vmul.f32 %v8050, %v10923
        %v11251 = vmul.f32 %v8051, %v10925
        %v11252 = vmul.f32 %v8052, %v10927
        %v11253 = vmul.f32 %v8053, %v10929
        %v11254 = vmul.f32 %v8054, %v10931
        %v11255 = vmul.f32 %v8055, %v10933
        %v11256 = vmul.f32 %v8056, %v10935
        %v11257 = vmul.f32 %v8057, %v10937
        %v11258 = vmul.f32 %v8058, %v10939
        %v11259 = vmul.f32 %v8059, %v10941
        %v11260 = vmul.f32 %v8060, %v10943
        %v11261 = vmul.f32 %v8061, %v10945
        %v11262 = vmul.f32 %v8062, %v10947
        %v11263 = vmul.f32 %v8063, %v10949
        %v11264 = vmul.f32 %v8064, %v10951
        %v11265 = vmul.f32 %v8065, %v10953
        %v11266 = vmul.f32 %v8066, %v10955
        %v11267 = vmul.f32 %v8067, %v10957
        %v11268 = vmul.f32 %v8068, %v10959
        %v11269 = vmul.f32 %v8069, %v10961
        %v11270 = vmul.f32 %v8070, %v10963
        %v11271 = vmul.f32 %v8071, %v10965
        %v11272 = vmul.f32 %v8072, %v10967
        %v11273 = vmul.f32 %v8073, %v10969
        %v11274 = vmul.f32 %v8074, %v10971
        %v11275 = vmul.f32 %v8075, %v10973
        %v11276 = vmul.f32 %v8076, %v10975
        %v11277 = vmul.f32 %v8077, %v10977
        %v11278 = vmul.f32 %v8078, %v10979
        %v11279 = vmul.f32 %v8079, %v10981
        %v11280 = vmul.f32 %v8080, %v10983
        %v11281 = vmul.f32 %v8081, %v10985
        %v11282 = vmul.f32 %v8082, %v10987
        %v11283 = vmul.f32 %v8083, %v10989
        %v11284 = vmul.f32 %v8084, %v10991
        %v11285 = vmul.f32 %v8085, %v10993
        %v11286 = vmul.f32 %v8086, %v10995
        %v11287 = vmul.f32 %v8087, %v10997
        %v11288 = vmul.f32 %v8088, %v10999
        %v11289 = vmul.f32 %v8089, %v11001
        %v11290 = vmul.f32 %v8090, %v11003
        %v11291 = vmul.f32 %v8091, %v11005
        %v11292 = vmul.f32 %v8092, %v11007
        %v11293 = vmul.f32 %v8093, %v11009
        %v11294 = vmul.f32 %v8094, %v11011
        %v11295 = vmul.f32 %v8095, %v11013
        %v11296 = vmul.f32 %v8096, %v11015
        %v11297 = vmul.f32 %v8097, %v11017
        %v11298 = vmul.f32 %v8098, %v11019
        %v11299 = vmul.f32 %v8099, %v11021
        %v11300 = vmul.f32 %v8100, %v11023
        %v11301 = vmul.f32 %v8101, %v11025
        %v11302 = vmul.f32 %v8102, %v11027
        %v11303 = vmul.f32 %v8103, %v11029
        %v11304 = vmul.f32 %v8104, %v11031
        %v11305 = vmul.f32 %v8105, %v11033
        %v11306 = vmul.f32 %v8106, %v11035
        %v11307 = vmul.f32 %v8107, %v11037
        %v11308 = vmul.f32 %v8108, %v11039
        %v11309 = vmul.f32 %v8109, %v11041
        %v11310 = vmul.f32 %v8110, %v11043
        %v11311 = vmul.f32 %v8111, %v11045
        %v11312 = vmul.f32 %v8112, %v11047
        %v11313 = vmul.f32 %v8113, %v11049
        %v11314 = vmul.f32 %v8114, %v11051
        %v11315 = vmul.f32 %v8115, %v11053
        %v11316 = vmul.f32 %v8116, %v11055
        %v11317 = vmul.f32 %v8117, %v11057
        %v11318 = vmul.f32 %v8118, %v11059
        %v11319 = vmul.f32 %v8119, %v11061
        %v11320 = vmul.f32 %v8120, %v11063
        %v11321 = vmul.f32 %v8121, %v11065
        %11322 = vrot.lane.b32.xlu0 %v4785, 64
        %v11323 = vpop.permute.xlu0 %11322
        %v11325 = vmul.f32 %v11194, %v11323
        %v11326 = vmul.f32 %v11195, %v11323
        %v11327 = vmul.f32 %v11196, %v11323
        %v11328 = vmul.f32 %v11197, %v11323
        %v11329 = vmul.f32 %v11198, %v11323
        %v11330 = vmul.f32 %v11199, %v11323
        %v11331 = vmul.f32 %v11200, %v11323
        %v11332 = vmul.f32 %v11201, %v11323
        %v11333 = vmul.f32 %v11202, %v11323
        %v11334 = vmul.f32 %v11203, %v11323
        %v11335 = vmul.f32 %v11204, %v11323
        %v11336 = vmul.f32 %v11205, %v11323
        %v11337 = vmul.f32 %v11206, %v11323
        %v11338 = vmul.f32 %v11207, %v11323
        %v11339 = vmul.f32 %v11208, %v11323
        %v11340 = vmul.f32 %v11209, %v11323
        %v11341 = vmul.f32 %v11210, %v11323
        %v11342 = vmul.f32 %v11211, %v11323
        %v11343 = vmul.f32 %v11212, %v11323
        %v11344 = vmul.f32 %v11213, %v11323
        %v11345 = vmul.f32 %v11214, %v11323
        %v11346 = vmul.f32 %v11215, %v11323
        %v11347 = vmul.f32 %v11216, %v11323
        %v11348 = vmul.f32 %v11217, %v11323
        %v11349 = vmul.f32 %v11218, %v11323
        %v11350 = vmul.f32 %v11219, %v11323
        %v11351 = vmul.f32 %v11220, %v11323
        %v11352 = vmul.f32 %v11221, %v11323
        %v11353 = vmul.f32 %v11222, %v11323
        %v11354 = vmul.f32 %v11223, %v11323
        %v11355 = vmul.f32 %v11224, %v11323
        %v11356 = vmul.f32 %v11225, %v11323
        %v11357 = vmul.f32 %v11226, %v11323
        %v11358 = vmul.f32 %v11227, %v11323
        %v11359 = vmul.f32 %v11228, %v11323
        %v11360 = vmul.f32 %v11229, %v11323
        %v11361 = vmul.f32 %v11230, %v11323
        %v11362 = vmul.f32 %v11231, %v11323
        %v11363 = vmul.f32 %v11232, %v11323
        %v11364 = vmul.f32 %v11233, %v11323
        %v11365 = vmul.f32 %v11234, %v11323
        %v11366 = vmul.f32 %v11235, %v11323
        %v11367 = vmul.f32 %v11236, %v11323
        %v11368 = vmul.f32 %v11237, %v11323
        %v11369 = vmul.f32 %v11238, %v11323
        %v11370 = vmul.f32 %v11239, %v11323
        %v11371 = vmul.f32 %v11240, %v11323
        %v11372 = vmul.f32 %v11241, %v11323
        %v11373 = vmul.f32 %v11242, %v11323
        %v11374 = vmul.f32 %v11243, %v11323
        %v11375 = vmul.f32 %v11244, %v11323
        %v11376 = vmul.f32 %v11245, %v11323
        %v11377 = vmul.f32 %v11246, %v11323
        %v11378 = vmul.f32 %v11247, %v11323
        %v11379 = vmul.f32 %v11248, %v11323
        %v11380 = vmul.f32 %v11249, %v11323
        %v11381 = vmul.f32 %v11250, %v11323
        %v11382 = vmul.f32 %v11251, %v11323
        %v11383 = vmul.f32 %v11252, %v11323
        %v11384 = vmul.f32 %v11253, %v11323
        %v11385 = vmul.f32 %v11254, %v11323
        %v11386 = vmul.f32 %v11255, %v11323
        %v11387 = vmul.f32 %v11256, %v11323
        %v11388 = vmul.f32 %v11257, %v11323
        %v11389 = vmul.f32 %v11258, %v11323
        %v11390 = vmul.f32 %v11259, %v11323
        %v11391 = vmul.f32 %v11260, %v11323
        %v11392 = vmul.f32 %v11261, %v11323
        %v11393 = vmul.f32 %v11262, %v11323
        %v11394 = vmul.f32 %v11263, %v11323
        %v11395 = vmul.f32 %v11264, %v11323
        %v11396 = vmul.f32 %v11265, %v11323
        %v11397 = vmul.f32 %v11266, %v11323
        %v11398 = vmul.f32 %v11267, %v11323
        %v11399 = vmul.f32 %v11268, %v11323
        %v11400 = vmul.f32 %v11269, %v11323
        %v11401 = vmul.f32 %v11270, %v11323
        %v11402 = vmul.f32 %v11271, %v11323
        %v11403 = vmul.f32 %v11272, %v11323
        %v11404 = vmul.f32 %v11273, %v11323
        %v11405 = vmul.f32 %v11274, %v11323
        %v11406 = vmul.f32 %v11275, %v11323
        %v11407 = vmul.f32 %v11276, %v11323
        %v11408 = vmul.f32 %v11277, %v11323
        %v11409 = vmul.f32 %v11278, %v11323
        %v11410 = vmul.f32 %v11279, %v11323
        %v11411 = vmul.f32 %v11280, %v11323
        %v11412 = vmul.f32 %v11281, %v11323
        %v11413 = vmul.f32 %v11282, %v11323
        %v11414 = vmul.f32 %v11283, %v11323
        %v11415 = vmul.f32 %v11284, %v11323
        %v11416 = vmul.f32 %v11285, %v11323
        %v11417 = vmul.f32 %v11286, %v11323
        %v11418 = vmul.f32 %v11287, %v11323
        %v11419 = vmul.f32 %v11288, %v11323
        %v11420 = vmul.f32 %v11289, %v11323
        %v11421 = vmul.f32 %v11290, %v11323
        %v11422 = vmul.f32 %v11291, %v11323
        %v11423 = vmul.f32 %v11292, %v11323
        %v11424 = vmul.f32 %v11293, %v11323
        %v11425 = vmul.f32 %v11294, %v11323
        %v11426 = vmul.f32 %v11295, %v11323
        %v11427 = vmul.f32 %v11296, %v11323
        %v11428 = vmul.f32 %v11297, %v11323
        %v11429 = vmul.f32 %v11298, %v11323
        %v11430 = vmul.f32 %v11299, %v11323
        %v11431 = vmul.f32 %v11300, %v11323
        %v11432 = vmul.f32 %v11301, %v11323
        %v11433 = vmul.f32 %v11302, %v11323
        %v11434 = vmul.f32 %v11303, %v11323
        %v11435 = vmul.f32 %v11304, %v11323
        %v11436 = vmul.f32 %v11305, %v11323
        %v11437 = vmul.f32 %v11306, %v11323
        %v11438 = vmul.f32 %v11307, %v11323
        %v11439 = vmul.f32 %v11308, %v11323
        %v11440 = vmul.f32 %v11309, %v11323
        %v11441 = vmul.f32 %v11310, %v11323
        %v11442 = vmul.f32 %v11311, %v11323
        %v11443 = vmul.f32 %v11312, %v11323
        %v11444 = vmul.f32 %v11313, %v11323
        %v11445 = vmul.f32 %v11314, %v11323
        %v11446 = vmul.f32 %v11315, %v11323
        %v11447 = vmul.f32 %v11316, %v11323
        %v11448 = vmul.f32 %v11317, %v11323
        %v11449 = vmul.f32 %v11318, %v11323
        %v11450 = vmul.f32 %v11319, %v11323
        %v11451 = vmul.f32 %v11320, %v11323
        %v11452 = vmul.f32 %v11321, %v11323
        %11453 = vrot.lane.b32.xlu0 %v4919, 64
        %v11454 = vpop.permute.xlu0 %11453
        %v11456 = vadd.f32 %v11325, %v11454
        %v11457 = vadd.f32 %v11326, %v11454
        %v11458 = vadd.f32 %v11327, %v11454
        %v11459 = vadd.f32 %v11328, %v11454
        %v11460 = vadd.f32 %v11329, %v11454
        %v11461 = vadd.f32 %v11330, %v11454
        %v11462 = vadd.f32 %v11331, %v11454
        %v11463 = vadd.f32 %v11332, %v11454
        %v11464 = vadd.f32 %v11333, %v11454
        %v11465 = vadd.f32 %v11334, %v11454
        %v11466 = vadd.f32 %v11335, %v11454
        %v11467 = vadd.f32 %v11336, %v11454
        %v11468 = vadd.f32 %v11337, %v11454
        %v11469 = vadd.f32 %v11338, %v11454
        %v11470 = vadd.f32 %v11339, %v11454
        %v11471 = vadd.f32 %v11340, %v11454
        %v11472 = vadd.f32 %v11341, %v11454
        %v11473 = vadd.f32 %v11342, %v11454
        %v11474 = vadd.f32 %v11343, %v11454
        %v11475 = vadd.f32 %v11344, %v11454
        %v11476 = vadd.f32 %v11345, %v11454
        %v11477 = vadd.f32 %v11346, %v11454
        %v11478 = vadd.f32 %v11347, %v11454
        %v11479 = vadd.f32 %v11348, %v11454
        %v11480 = vadd.f32 %v11349, %v11454
        %v11481 = vadd.f32 %v11350, %v11454
        %v11482 = vadd.f32 %v11351, %v11454
        %v11483 = vadd.f32 %v11352, %v11454
        %v11484 = vadd.f32 %v11353, %v11454
        %v11485 = vadd.f32 %v11354, %v11454
        %v11486 = vadd.f32 %v11355, %v11454
        %v11487 = vadd.f32 %v11356, %v11454
        %v11488 = vadd.f32 %v11357, %v11454
        %v11489 = vadd.f32 %v11358, %v11454
        %v11490 = vadd.f32 %v11359, %v11454
        %v11491 = vadd.f32 %v11360, %v11454
        %v11492 = vadd.f32 %v11361, %v11454
        %v11493 = vadd.f32 %v11362, %v11454
        %v11494 = vadd.f32 %v11363, %v11454
        %v11495 = vadd.f32 %v11364, %v11454
        %v11496 = vadd.f32 %v11365, %v11454
        %v11497 = vadd.f32 %v11366, %v11454
        %v11498 = vadd.f32 %v11367, %v11454
        %v11499 = vadd.f32 %v11368, %v11454
        %v11500 = vadd.f32 %v11369, %v11454
        %v11501 = vadd.f32 %v11370, %v11454
        %v11502 = vadd.f32 %v11371, %v11454
        %v11503 = vadd.f32 %v11372, %v11454
        %v11504 = vadd.f32 %v11373, %v11454
        %v11505 = vadd.f32 %v11374, %v11454
        %v11506 = vadd.f32 %v11375, %v11454
        %v11507 = vadd.f32 %v11376, %v11454
        %v11508 = vadd.f32 %v11377, %v11454
        %v11509 = vadd.f32 %v11378, %v11454
        %v11510 = vadd.f32 %v11379, %v11454
        %v11511 = vadd.f32 %v11380, %v11454
        %v11512 = vadd.f32 %v11381, %v11454
        %v11513 = vadd.f32 %v11382, %v11454
        %v11514 = vadd.f32 %v11383, %v11454
        %v11515 = vadd.f32 %v11384, %v11454
        %v11516 = vadd.f32 %v11385, %v11454
        %v11517 = vadd.f32 %v11386, %v11454
        %v11518 = vadd.f32 %v11387, %v11454
        %v11519 = vadd.f32 %v11388, %v11454
        %v11520 = vadd.f32 %v11389, %v11454
        %v11521 = vadd.f32 %v11390, %v11454
        %v11522 = vadd.f32 %v11391, %v11454
        %v11523 = vadd.f32 %v11392, %v11454
        %v11524 = vadd.f32 %v11393, %v11454
        %v11525 = vadd.f32 %v11394, %v11454
        %v11526 = vadd.f32 %v11395, %v11454
        %v11527 = vadd.f32 %v11396, %v11454
        %v11528 = vadd.f32 %v11397, %v11454
        %v11529 = vadd.f32 %v11398, %v11454
        %v11530 = vadd.f32 %v11399, %v11454
        %v11531 = vadd.f32 %v11400, %v11454
        %v11532 = vadd.f32 %v11401, %v11454
        %v11533 = vadd.f32 %v11402, %v11454
        %v11534 = vadd.f32 %v11403, %v11454
        %v11535 = vadd.f32 %v11404, %v11454
        %v11536 = vadd.f32 %v11405, %v11454
        %v11537 = vadd.f32 %v11406, %v11454
        %v11538 = vadd.f32 %v11407, %v11454
        %v11539 = vadd.f32 %v11408, %v11454
        %v11540 = vadd.f32 %v11409, %v11454
        %v11541 = vadd.f32 %v11410, %v11454
        %v11542 = vadd.f32 %v11411, %v11454
        %v11543 = vadd.f32 %v11412, %v11454
        %v11544 = vadd.f32 %v11413, %v11454
        %v11545 = vadd.f32 %v11414, %v11454
        %v11546 = vadd.f32 %v11415, %v11454
        %v11547 = vadd.f32 %v11416, %v11454
        %v11548 = vadd.f32 %v11417, %v11454
        %v11549 = vadd.f32 %v11418, %v11454
        %v11550 = vadd.f32 %v11419, %v11454
        %v11551 = vadd.f32 %v11420, %v11454
        %v11552 = vadd.f32 %v11421, %v11454
        %v11553 = vadd.f32 %v11422, %v11454
        %v11554 = vadd.f32 %v11423, %v11454
        %v11555 = vadd.f32 %v11424, %v11454
        %v11556 = vadd.f32 %v11425, %v11454
        %v11557 = vadd.f32 %v11426, %v11454
        %v11558 = vadd.f32 %v11427, %v11454
        %v11559 = vadd.f32 %v11428, %v11454
        %v11560 = vadd.f32 %v11429, %v11454
        %v11561 = vadd.f32 %v11430, %v11454
        %v11562 = vadd.f32 %v11431, %v11454
        %v11563 = vadd.f32 %v11432, %v11454
        %v11564 = vadd.f32 %v11433, %v11454
        %v11565 = vadd.f32 %v11434, %v11454
        %v11566 = vadd.f32 %v11435, %v11454
        %v11567 = vadd.f32 %v11436, %v11454
        %v11568 = vadd.f32 %v11437, %v11454
        %v11569 = vadd.f32 %v11438, %v11454
        %v11570 = vadd.f32 %v11439, %v11454
        %v11571 = vadd.f32 %v11440, %v11454
        %v11572 = vadd.f32 %v11441, %v11454
        %v11573 = vadd.f32 %v11442, %v11454
        %v11574 = vadd.f32 %v11443, %v11454
        %v11575 = vadd.f32 %v11444, %v11454
        %v11576 = vadd.f32 %v11445, %v11454
        %v11577 = vadd.f32 %v11446, %v11454
        %v11578 = vadd.f32 %v11447, %v11454
        %v11579 = vadd.f32 %v11448, %v11454
        %v11580 = vadd.f32 %v11449, %v11454
        %v11581 = vadd.f32 %v11450, %v11454
        %v11582 = vadd.f32 %v11451, %v11454
        %v11583 = vadd.f32 %v11452, %v11454
        %v11584 = vpack.c.bf16 %v11457, %v11456
        %v11585 = vpack.c.bf16 %v11459, %v11458
        %v11586 = vpack.c.bf16 %v11461, %v11460
        %v11587 = vpack.c.bf16 %v11463, %v11462
        %v11588 = vpack.c.bf16 %v11465, %v11464
        %v11589 = vpack.c.bf16 %v11467, %v11466
        %v11590 = vpack.c.bf16 %v11469, %v11468
        %v11591 = vpack.c.bf16 %v11471, %v11470
        %v11592 = vpack.c.bf16 %v11473, %v11472
        %v11593 = vpack.c.bf16 %v11475, %v11474
        %v11594 = vpack.c.bf16 %v11477, %v11476
        %v11595 = vpack.c.bf16 %v11479, %v11478
        %v11596 = vpack.c.bf16 %v11481, %v11480
        %v11597 = vpack.c.bf16 %v11483, %v11482
        %v11598 = vpack.c.bf16 %v11485, %v11484
        %v11599 = vpack.c.bf16 %v11487, %v11486
        %v11600 = vpack.c.bf16 %v11489, %v11488
        %v11601 = vpack.c.bf16 %v11491, %v11490
        %v11602 = vpack.c.bf16 %v11493, %v11492
        %v11603 = vpack.c.bf16 %v11495, %v11494
        %v11604 = vpack.c.bf16 %v11497, %v11496
        %v11605 = vpack.c.bf16 %v11499, %v11498
        %v11606 = vpack.c.bf16 %v11501, %v11500
        %v11607 = vpack.c.bf16 %v11503, %v11502
        %v11608 = vpack.c.bf16 %v11505, %v11504
        %v11609 = vpack.c.bf16 %v11507, %v11506
        %v11610 = vpack.c.bf16 %v11509, %v11508
        %v11611 = vpack.c.bf16 %v11511, %v11510
        %v11612 = vpack.c.bf16 %v11513, %v11512
        %v11613 = vpack.c.bf16 %v11515, %v11514
        %v11614 = vpack.c.bf16 %v11517, %v11516
        %v11615 = vpack.c.bf16 %v11519, %v11518
        %v11616 = vpack.c.bf16 %v11521, %v11520
        %v11617 = vpack.c.bf16 %v11523, %v11522
        %v11618 = vpack.c.bf16 %v11525, %v11524
        %v11619 = vpack.c.bf16 %v11527, %v11526
        %v11620 = vpack.c.bf16 %v11529, %v11528
        %v11621 = vpack.c.bf16 %v11531, %v11530
        %v11622 = vpack.c.bf16 %v11533, %v11532
        %v11623 = vpack.c.bf16 %v11535, %v11534
        %v11624 = vpack.c.bf16 %v11537, %v11536
        %v11625 = vpack.c.bf16 %v11539, %v11538
        %v11626 = vpack.c.bf16 %v11541, %v11540
        %v11627 = vpack.c.bf16 %v11543, %v11542
        %v11628 = vpack.c.bf16 %v11545, %v11544
        %v11629 = vpack.c.bf16 %v11547, %v11546
        %v11630 = vpack.c.bf16 %v11549, %v11548
        %v11631 = vpack.c.bf16 %v11551, %v11550
        %v11632 = vpack.c.bf16 %v11553, %v11552
        %v11633 = vpack.c.bf16 %v11555, %v11554
        %v11634 = vpack.c.bf16 %v11557, %v11556
        %v11635 = vpack.c.bf16 %v11559, %v11558
        %v11636 = vpack.c.bf16 %v11561, %v11560
        %v11637 = vpack.c.bf16 %v11563, %v11562
        %v11638 = vpack.c.bf16 %v11565, %v11564
        %v11639 = vpack.c.bf16 %v11567, %v11566
        %v11640 = vpack.c.bf16 %v11569, %v11568
        %v11641 = vpack.c.bf16 %v11571, %v11570
        %v11642 = vpack.c.bf16 %v11573, %v11572
        %v11643 = vpack.c.bf16 %v11575, %v11574
        %v11644 = vpack.c.bf16 %v11577, %v11576
        %v11645 = vpack.c.bf16 %v11579, %v11578
        %v11646 = vpack.c.bf16 %v11581, %v11580
        %v11647 = vpack.c.bf16 %v11583, %v11582
        %v11712 = vunpack.c.l.b16 %v11584
        %v11713 = vunpack.c.h.b16 %v11584
        %v11714 = vunpack.c.l.b16 %v11585
        %v11715 = vunpack.c.h.b16 %v11585
        %v11716 = vunpack.c.l.b16 %v11586
        %v11717 = vunpack.c.h.b16 %v11586
        %v11718 = vunpack.c.l.b16 %v11587
        %v11719 = vunpack.c.h.b16 %v11587
        %v11720 = vunpack.c.l.b16 %v11588
        %v11721 = vunpack.c.h.b16 %v11588
        %v11722 = vunpack.c.l.b16 %v11589
        %v11723 = vunpack.c.h.b16 %v11589
        %v11724 = vunpack.c.l.b16 %v11590
        %v11725 = vunpack.c.h.b16 %v11590
        %v11726 = vunpack.c.l.b16 %v11591
        %v11727 = vunpack.c.h.b16 %v11591
        %v11728 = vunpack.c.l.b16 %v11592
        %v11729 = vunpack.c.h.b16 %v11592
        %v11730 = vunpack.c.l.b16 %v11593
        %v11731 = vunpack.c.h.b16 %v11593
        %v11732 = vunpack.c.l.b16 %v11594
        %v11733 = vunpack.c.h.b16 %v11594
        %v11734 = vunpack.c.l.b16 %v11595
        %v11735 = vunpack.c.h.b16 %v11595
        %v11736 = vunpack.c.l.b16 %v11596
        %v11737 = vunpack.c.h.b16 %v11596
        %v11738 = vunpack.c.l.b16 %v11597
        %v11739 = vunpack.c.h.b16 %v11597
        %v11740 = vunpack.c.l.b16 %v11598
        %v11741 = vunpack.c.h.b16 %v11598
        %v11742 = vunpack.c.l.b16 %v11599
        %v11743 = vunpack.c.h.b16 %v11599
        %v11744 = vunpack.c.l.b16 %v11600
        %v11745 = vunpack.c.h.b16 %v11600
        %v11746 = vunpack.c.l.b16 %v11601
        %v11747 = vunpack.c.h.b16 %v11601
        %v11748 = vunpack.c.l.b16 %v11602
        %v11749 = vunpack.c.h.b16 %v11602
        %v11750 = vunpack.c.l.b16 %v11603
        %v11751 = vunpack.c.h.b16 %v11603
        %v11752 = vunpack.c.l.b16 %v11604
        %v11753 = vunpack.c.h.b16 %v11604
        %v11754 = vunpack.c.l.b16 %v11605
        %v11755 = vunpack.c.h.b16 %v11605
        %v11756 = vunpack.c.l.b16 %v11606
        %v11757 = vunpack.c.h.b16 %v11606
        %v11758 = vunpack.c.l.b16 %v11607
        %v11759 = vunpack.c.h.b16 %v11607
        %v11760 = vunpack.c.l.b16 %v11608
        %v11761 = vunpack.c.h.b16 %v11608
        %v11762 = vunpack.c.l.b16 %v11609
        %v11763 = vunpack.c.h.b16 %v11609
        %v11764 = vunpack.c.l.b16 %v11610
        %v11765 = vunpack.c.h.b16 %v11610
        %v11766 = vunpack.c.l.b16 %v11611
        %v11767 = vunpack.c.h.b16 %v11611
        %v11768 = vunpack.c.l.b16 %v11612
        %v11769 = vunpack.c.h.b16 %v11612
        %v11770 = vunpack.c.l.b16 %v11613
        %v11771 = vunpack.c.h.b16 %v11613
        %v11772 = vunpack.c.l.b16 %v11614
        %v11773 = vunpack.c.h.b16 %v11614
        %v11774 = vunpack.c.l.b16 %v11615
        %v11775 = vunpack.c.h.b16 %v11615
        %v11776 = vunpack.c.l.b16 %v11616
        %v11777 = vunpack.c.h.b16 %v11616
        %v11778 = vunpack.c.l.b16 %v11617
        %v11779 = vunpack.c.h.b16 %v11617
        %v11780 = vunpack.c.l.b16 %v11618
        %v11781 = vunpack.c.h.b16 %v11618
        %v11782 = vunpack.c.l.b16 %v11619
        %v11783 = vunpack.c.h.b16 %v11619
        %v11784 = vunpack.c.l.b16 %v11620
        %v11785 = vunpack.c.h.b16 %v11620
        %v11786 = vunpack.c.l.b16 %v11621
        %v11787 = vunpack.c.h.b16 %v11621
        %v11788 = vunpack.c.l.b16 %v11622
        %v11789 = vunpack.c.h.b16 %v11622
        %v11790 = vunpack.c.l.b16 %v11623
        %v11791 = vunpack.c.h.b16 %v11623
        %v11792 = vunpack.c.l.b16 %v11624
        %v11793 = vunpack.c.h.b16 %v11624
        %v11794 = vunpack.c.l.b16 %v11625
        %v11795 = vunpack.c.h.b16 %v11625
        %v11796 = vunpack.c.l.b16 %v11626
        %v11797 = vunpack.c.h.b16 %v11626
        %v11798 = vunpack.c.l.b16 %v11627
        %v11799 = vunpack.c.h.b16 %v11627
        %v11800 = vunpack.c.l.b16 %v11628
        %v11801 = vunpack.c.h.b16 %v11628
        %v11802 = vunpack.c.l.b16 %v11629
        %v11803 = vunpack.c.h.b16 %v11629
        %v11804 = vunpack.c.l.b16 %v11630
        %v11805 = vunpack.c.h.b16 %v11630
        %v11806 = vunpack.c.l.b16 %v11631
        %v11807 = vunpack.c.h.b16 %v11631
        %v11808 = vunpack.c.l.b16 %v11632
        %v11809 = vunpack.c.h.b16 %v11632
        %v11810 = vunpack.c.l.b16 %v11633
        %v11811 = vunpack.c.h.b16 %v11633
        %v11812 = vunpack.c.l.b16 %v11634
        %v11813 = vunpack.c.h.b16 %v11634
        %v11814 = vunpack.c.l.b16 %v11635
        %v11815 = vunpack.c.h.b16 %v11635
        %v11816 = vunpack.c.l.b16 %v11636
        %v11817 = vunpack.c.h.b16 %v11636
        %v11818 = vunpack.c.l.b16 %v11637
        %v11819 = vunpack.c.h.b16 %v11637
        %v11820 = vunpack.c.l.b16 %v11638
        %v11821 = vunpack.c.h.b16 %v11638
        %v11822 = vunpack.c.l.b16 %v11639
        %v11823 = vunpack.c.h.b16 %v11639
        %v11824 = vunpack.c.l.b16 %v11640
        %v11825 = vunpack.c.h.b16 %v11640
        %v11826 = vunpack.c.l.b16 %v11641
        %v11827 = vunpack.c.h.b16 %v11641
        %v11828 = vunpack.c.l.b16 %v11642
        %v11829 = vunpack.c.h.b16 %v11642
        %v11830 = vunpack.c.l.b16 %v11643
        %v11831 = vunpack.c.h.b16 %v11643
        %v11832 = vunpack.c.l.b16 %v11644
        %v11833 = vunpack.c.h.b16 %v11644
        %v11834 = vunpack.c.l.b16 %v11645
        %v11835 = vunpack.c.h.b16 %v11645
        %v11836 = vunpack.c.l.b16 %v11646
        %v11837 = vunpack.c.h.b16 %v11646
        %v11838 = vunpack.c.l.b16 %v11647
        %v11839 = vunpack.c.h.b16 %v11647
        %v11840 = vpack.c.b16 %v11712, %v11712
        %v11841 = vpack.c.b16 %v11713, %v11713
        %v11842 = vpack.c.b16 %v11714, %v11714
        %v11843 = vpack.c.b16 %v11715, %v11715
        %v11844 = vpack.c.b16 %v11716, %v11716
        %v11845 = vpack.c.b16 %v11717, %v11717
        %v11846 = vpack.c.b16 %v11718, %v11718
        %v11847 = vpack.c.b16 %v11719, %v11719
        %v11848 = vpack.c.b16 %v11720, %v11720
        %v11849 = vpack.c.b16 %v11721, %v11721
        %v11850 = vpack.c.b16 %v11722, %v11722
        %v11851 = vpack.c.b16 %v11723, %v11723
        %v11852 = vpack.c.b16 %v11724, %v11724
        %v11853 = vpack.c.b16 %v11725, %v11725
        %v11854 = vpack.c.b16 %v11726, %v11726
        %v11855 = vpack.c.b16 %v11727, %v11727
        %v11856 = vpack.c.b16 %v11728, %v11728
        %v11857 = vpack.c.b16 %v11729, %v11729
        %v11858 = vpack.c.b16 %v11730, %v11730
        %v11859 = vpack.c.b16 %v11731, %v11731
        %v11860 = vpack.c.b16 %v11732, %v11732
        %v11861 = vpack.c.b16 %v11733, %v11733
        %v11862 = vpack.c.b16 %v11734, %v11734
        %v11863 = vpack.c.b16 %v11735, %v11735
        %v11864 = vpack.c.b16 %v11736, %v11736
        %v11865 = vpack.c.b16 %v11737, %v11737
        %v11866 = vpack.c.b16 %v11738, %v11738
        %v11867 = vpack.c.b16 %v11739, %v11739
        %v11868 = vpack.c.b16 %v11740, %v11740
        %v11869 = vpack.c.b16 %v11741, %v11741
        %v11870 = vpack.c.b16 %v11742, %v11742
        %v11871 = vpack.c.b16 %v11743, %v11743
        %v11872 = vpack.c.b16 %v11744, %v11744
        %v11873 = vpack.c.b16 %v11745, %v11745
        %v11874 = vpack.c.b16 %v11746, %v11746
        %v11875 = vpack.c.b16 %v11747, %v11747
        %v11876 = vpack.c.b16 %v11748, %v11748
        %v11877 = vpack.c.b16 %v11749, %v11749
        %v11878 = vpack.c.b16 %v11750, %v11750
        %v11879 = vpack.c.b16 %v11751, %v11751
        %v11880 = vpack.c.b16 %v11752, %v11752
        %v11881 = vpack.c.b16 %v11753, %v11753
        %v11882 = vpack.c.b16 %v11754, %v11754
        %v11883 = vpack.c.b16 %v11755, %v11755
        %v11884 = vpack.c.b16 %v11756, %v11756
        %v11885 = vpack.c.b16 %v11757, %v11757
        %v11886 = vpack.c.b16 %v11758, %v11758
        %v11887 = vpack.c.b16 %v11759, %v11759
        %v11888 = vpack.c.b16 %v11760, %v11760
        %v11889 = vpack.c.b16 %v11761, %v11761
        %v11890 = vpack.c.b16 %v11762, %v11762
        %v11891 = vpack.c.b16 %v11763, %v11763
        %v11892 = vpack.c.b16 %v11764, %v11764
        %v11893 = vpack.c.b16 %v11765, %v11765
        %v11894 = vpack.c.b16 %v11766, %v11766
        %v11895 = vpack.c.b16 %v11767, %v11767
        %v11896 = vpack.c.b16 %v11768, %v11768
        %v11897 = vpack.c.b16 %v11769, %v11769
        %v11898 = vpack.c.b16 %v11770, %v11770
        %v11899 = vpack.c.b16 %v11771, %v11771
        %v11900 = vpack.c.b16 %v11772, %v11772
        %v11901 = vpack.c.b16 %v11773, %v11773
        %v11902 = vpack.c.b16 %v11774, %v11774
        %v11903 = vpack.c.b16 %v11775, %v11775
        %v11904 = vpack.c.b16 %v11776, %v11776
        %v11905 = vpack.c.b16 %v11777, %v11777
        %v11906 = vpack.c.b16 %v11778, %v11778
        %v11907 = vpack.c.b16 %v11779, %v11779
        %v11908 = vpack.c.b16 %v11780, %v11780
        %v11909 = vpack.c.b16 %v11781, %v11781
        %v11910 = vpack.c.b16 %v11782, %v11782
        %v11911 = vpack.c.b16 %v11783, %v11783
        %v11912 = vpack.c.b16 %v11784, %v11784
        %v11913 = vpack.c.b16 %v11785, %v11785
        %v11914 = vpack.c.b16 %v11786, %v11786
        %v11915 = vpack.c.b16 %v11787, %v11787
        %v11916 = vpack.c.b16 %v11788, %v11788
        %v11917 = vpack.c.b16 %v11789, %v11789
        %v11918 = vpack.c.b16 %v11790, %v11790
        %v11919 = vpack.c.b16 %v11791, %v11791
        %v11920 = vpack.c.b16 %v11792, %v11792
        %v11921 = vpack.c.b16 %v11793, %v11793
        %v11922 = vpack.c.b16 %v11794, %v11794
        %v11923 = vpack.c.b16 %v11795, %v11795
        %v11924 = vpack.c.b16 %v11796, %v11796
        %v11925 = vpack.c.b16 %v11797, %v11797
        %v11926 = vpack.c.b16 %v11798, %v11798
        %v11927 = vpack.c.b16 %v11799, %v11799
        %v11928 = vpack.c.b16 %v11800, %v11800
        %v11929 = vpack.c.b16 %v11801, %v11801
        %v11930 = vpack.c.b16 %v11802, %v11802
        %v11931 = vpack.c.b16 %v11803, %v11803
        %v11932 = vpack.c.b16 %v11804, %v11804
        %v11933 = vpack.c.b16 %v11805, %v11805
        %v11934 = vpack.c.b16 %v11806, %v11806
        %v11935 = vpack.c.b16 %v11807, %v11807
        %v11936 = vpack.c.b16 %v11808, %v11808
        %v11937 = vpack.c.b16 %v11809, %v11809
        %v11938 = vpack.c.b16 %v11810, %v11810
        %v11939 = vpack.c.b16 %v11811, %v11811
        %v11940 = vpack.c.b16 %v11812, %v11812
        %v11941 = vpack.c.b16 %v11813, %v11813
        %v11942 = vpack.c.b16 %v11814, %v11814
        %v11943 = vpack.c.b16 %v11815, %v11815
        %v11944 = vpack.c.b16 %v11816, %v11816
        %v11945 = vpack.c.b16 %v11817, %v11817
        %v11946 = vpack.c.b16 %v11818, %v11818
        %v11947 = vpack.c.b16 %v11819, %v11819
        %v11948 = vpack.c.b16 %v11820, %v11820
        %v11949 = vpack.c.b16 %v11821, %v11821
        %v11950 = vpack.c.b16 %v11822, %v11822
        %v11951 = vpack.c.b16 %v11823, %v11823
        %v11952 = vpack.c.b16 %v11824, %v11824
        %v11953 = vpack.c.b16 %v11825, %v11825
        %v11954 = vpack.c.b16 %v11826, %v11826
        %v11955 = vpack.c.b16 %v11827, %v11827
        %v11956 = vpack.c.b16 %v11828, %v11828
        %v11957 = vpack.c.b16 %v11829, %v11829
        %v11958 = vpack.c.b16 %v11830, %v11830
        %v11959 = vpack.c.b16 %v11831, %v11831
        %v11960 = vpack.c.b16 %v11832, %v11832
        %v11961 = vpack.c.b16 %v11833, %v11833
        %v11962 = vpack.c.b16 %v11834, %v11834
        %v11963 = vpack.c.b16 %v11835, %v11835
        %v11964 = vpack.c.b16 %v11836, %v11836
        %v11965 = vpack.c.b16 %v11837, %v11837
        %v11966 = vpack.c.b16 %v11838, %v11838
        %v11967 = vpack.c.b16 %v11839, %v11839
        %11968 = vrot.lane.b32.xlu0 %v11840, 64
        %v11969 = vpop.permute.xlu0 %11968
        %11970 = vrot.lane.b32.xlu0 %v11841, 64
        %v11971 = vpop.permute.xlu0 %11970
        %11972 = vrot.lane.b32.xlu0 %v11842, 64
        %v11973 = vpop.permute.xlu0 %11972
        %11974 = vrot.lane.b32.xlu0 %v11843, 64
        %v11975 = vpop.permute.xlu0 %11974
        %11976 = vrot.lane.b32.xlu0 %v11844, 64
        %v11977 = vpop.permute.xlu0 %11976
        %11978 = vrot.lane.b32.xlu0 %v11845, 64
        %v11979 = vpop.permute.xlu0 %11978
        %11980 = vrot.lane.b32.xlu0 %v11846, 64
        %v11981 = vpop.permute.xlu0 %11980
        %11982 = vrot.lane.b32.xlu0 %v11847, 64
        %v11983 = vpop.permute.xlu0 %11982
        %11984 = vrot.lane.b32.xlu0 %v11848, 64
        %v11985 = vpop.permute.xlu0 %11984
        %11986 = vrot.lane.b32.xlu0 %v11849, 64
        %v11987 = vpop.permute.xlu0 %11986
        %11988 = vrot.lane.b32.xlu0 %v11850, 64
        %v11989 = vpop.permute.xlu0 %11988
        %11990 = vrot.lane.b32.xlu0 %v11851, 64
        %v11991 = vpop.permute.xlu0 %11990
        %11992 = vrot.lane.b32.xlu0 %v11852, 64
        %v11993 = vpop.permute.xlu0 %11992
        %11994 = vrot.lane.b32.xlu0 %v11853, 64
        %v11995 = vpop.permute.xlu0 %11994
        %11996 = vrot.lane.b32.xlu0 %v11854, 64
        %v11997 = vpop.permute.xlu0 %11996
        %11998 = vrot.lane.b32.xlu0 %v11855, 64
        %v11999 = vpop.permute.xlu0 %11998
        %12000 = vrot.lane.b32.xlu0 %v11856, 64
        %v12001 = vpop.permute.xlu0 %12000
        %12002 = vrot.lane.b32.xlu0 %v11857, 64
        %v12003 = vpop.permute.xlu0 %12002
        %12004 = vrot.lane.b32.xlu0 %v11858, 64
        %v12005 = vpop.permute.xlu0 %12004
        %12006 = vrot.lane.b32.xlu0 %v11859, 64
        %v12007 = vpop.permute.xlu0 %12006
        %12008 = vrot.lane.b32.xlu0 %v11860, 64
        %v12009 = vpop.permute.xlu0 %12008
        %12010 = vrot.lane.b32.xlu0 %v11861, 64
        %v12011 = vpop.permute.xlu0 %12010
        %12012 = vrot.lane.b32.xlu0 %v11862, 64
        %v12013 = vpop.permute.xlu0 %12012
        %12014 = vrot.lane.b32.xlu0 %v11863, 64
        %v12015 = vpop.permute.xlu0 %12014
        %12016 = vrot.lane.b32.xlu0 %v11864, 64
        %v12017 = vpop.permute.xlu0 %12016
        %12018 = vrot.lane.b32.xlu0 %v11865, 64
        %v12019 = vpop.permute.xlu0 %12018
        %12020 = vrot.lane.b32.xlu0 %v11866, 64
        %v12021 = vpop.permute.xlu0 %12020
        %12022 = vrot.lane.b32.xlu0 %v11867, 64
        %v12023 = vpop.permute.xlu0 %12022
        %12024 = vrot.lane.b32.xlu0 %v11868, 64
        %v12025 = vpop.permute.xlu0 %12024
        %12026 = vrot.lane.b32.xlu0 %v11869, 64
        %v12027 = vpop.permute.xlu0 %12026
        %12028 = vrot.lane.b32.xlu0 %v11870, 64
        %v12029 = vpop.permute.xlu0 %12028
        %12030 = vrot.lane.b32.xlu0 %v11871, 64
        %v12031 = vpop.permute.xlu0 %12030
        %12032 = vrot.lane.b32.xlu0 %v11872, 64
        %v12033 = vpop.permute.xlu0 %12032
        %12034 = vrot.lane.b32.xlu0 %v11873, 64
        %v12035 = vpop.permute.xlu0 %12034
        %12036 = vrot.lane.b32.xlu0 %v11874, 64
        %v12037 = vpop.permute.xlu0 %12036
        %12038 = vrot.lane.b32.xlu0 %v11875, 64
        %v12039 = vpop.permute.xlu0 %12038
        %12040 = vrot.lane.b32.xlu0 %v11876, 64
        %v12041 = vpop.permute.xlu0 %12040
        %12042 = vrot.lane.b32.xlu0 %v11877, 64
        %v12043 = vpop.permute.xlu0 %12042
        %12044 = vrot.lane.b32.xlu0 %v11878, 64
        %v12045 = vpop.permute.xlu0 %12044
        %12046 = vrot.lane.b32.xlu0 %v11879, 64
        %v12047 = vpop.permute.xlu0 %12046
        %12048 = vrot.lane.b32.xlu0 %v11880, 64
        %v12049 = vpop.permute.xlu0 %12048
        %12050 = vrot.lane.b32.xlu0 %v11881, 64
        %v12051 = vpop.permute.xlu0 %12050
        %12052 = vrot.lane.b32.xlu0 %v11882, 64
        %v12053 = vpop.permute.xlu0 %12052
        %12054 = vrot.lane.b32.xlu0 %v11883, 64
        %v12055 = vpop.permute.xlu0 %12054
        %12056 = vrot.lane.b32.xlu0 %v11884, 64
        %v12057 = vpop.permute.xlu0 %12056
        %12058 = vrot.lane.b32.xlu0 %v11885, 64
        %v12059 = vpop.permute.xlu0 %12058
        %12060 = vrot.lane.b32.xlu0 %v11886, 64
        %v12061 = vpop.permute.xlu0 %12060
        %12062 = vrot.lane.b32.xlu0 %v11887, 64
        %v12063 = vpop.permute.xlu0 %12062
        %12064 = vrot.lane.b32.xlu0 %v11888, 64
        %v12065 = vpop.permute.xlu0 %12064
        %12066 = vrot.lane.b32.xlu0 %v11889, 64
        %v12067 = vpop.permute.xlu0 %12066
        %12068 = vrot.lane.b32.xlu0 %v11890, 64
        %v12069 = vpop.permute.xlu0 %12068
        %12070 = vrot.lane.b32.xlu0 %v11891, 64
        %v12071 = vpop.permute.xlu0 %12070
        %12072 = vrot.lane.b32.xlu0 %v11892, 64
        %v12073 = vpop.permute.xlu0 %12072
        %12074 = vrot.lane.b32.xlu0 %v11893, 64
        %v12075 = vpop.permute.xlu0 %12074
        %12076 = vrot.lane.b32.xlu0 %v11894, 64
        %v12077 = vpop.permute.xlu0 %12076
        %12078 = vrot.lane.b32.xlu0 %v11895, 64
        %v12079 = vpop.permute.xlu0 %12078
        %12080 = vrot.lane.b32.xlu0 %v11896, 64
        %v12081 = vpop.permute.xlu0 %12080
        %12082 = vrot.lane.b32.xlu0 %v11897, 64
        %v12083 = vpop.permute.xlu0 %12082
        %12084 = vrot.lane.b32.xlu0 %v11898, 64
        %v12085 = vpop.permute.xlu0 %12084
        %12086 = vrot.lane.b32.xlu0 %v11899, 64
        %v12087 = vpop.permute.xlu0 %12086
        %12088 = vrot.lane.b32.xlu0 %v11900, 64
        %v12089 = vpop.permute.xlu0 %12088
        %12090 = vrot.lane.b32.xlu0 %v11901, 64
        %v12091 = vpop.permute.xlu0 %12090
        %12092 = vrot.lane.b32.xlu0 %v11902, 64
        %v12093 = vpop.permute.xlu0 %12092
        %12094 = vrot.lane.b32.xlu0 %v11903, 64
        %v12095 = vpop.permute.xlu0 %12094
        %12096 = vrot.lane.b32.xlu0 %v11904, 64
        %v12097 = vpop.permute.xlu0 %12096
        %12098 = vrot.lane.b32.xlu0 %v11905, 64
        %v12099 = vpop.permute.xlu0 %12098
        %12100 = vrot.lane.b32.xlu0 %v11906, 64
        %v12101 = vpop.permute.xlu0 %12100
        %12102 = vrot.lane.b32.xlu0 %v11907, 64
        %v12103 = vpop.permute.xlu0 %12102
        %12104 = vrot.lane.b32.xlu0 %v11908, 64
        %v12105 = vpop.permute.xlu0 %12104
        %12106 = vrot.lane.b32.xlu0 %v11909, 64
        %v12107 = vpop.permute.xlu0 %12106
        %12108 = vrot.lane.b32.xlu0 %v11910, 64
        %v12109 = vpop.permute.xlu0 %12108
        %12110 = vrot.lane.b32.xlu0 %v11911, 64
        %v12111 = vpop.permute.xlu0 %12110
        %12112 = vrot.lane.b32.xlu0 %v11912, 64
        %v12113 = vpop.permute.xlu0 %12112
        %12114 = vrot.lane.b32.xlu0 %v11913, 64
        %v12115 = vpop.permute.xlu0 %12114
        %12116 = vrot.lane.b32.xlu0 %v11914, 64
        %v12117 = vpop.permute.xlu0 %12116
        %12118 = vrot.lane.b32.xlu0 %v11915, 64
        %v12119 = vpop.permute.xlu0 %12118
        %12120 = vrot.lane.b32.xlu0 %v11916, 64
        %v12121 = vpop.permute.xlu0 %12120
        %12122 = vrot.lane.b32.xlu0 %v11917, 64
        %v12123 = vpop.permute.xlu0 %12122
        %12124 = vrot.lane.b32.xlu0 %v11918, 64
        %v12125 = vpop.permute.xlu0 %12124
        %12126 = vrot.lane.b32.xlu0 %v11919, 64
        %v12127 = vpop.permute.xlu0 %12126
        %12128 = vrot.lane.b32.xlu0 %v11920, 64
        %v12129 = vpop.permute.xlu0 %12128
        %12130 = vrot.lane.b32.xlu0 %v11921, 64
        %v12131 = vpop.permute.xlu0 %12130
        %12132 = vrot.lane.b32.xlu0 %v11922, 64
        %v12133 = vpop.permute.xlu0 %12132
        %12134 = vrot.lane.b32.xlu0 %v11923, 64
        %v12135 = vpop.permute.xlu0 %12134
        %12136 = vrot.lane.b32.xlu0 %v11924, 64
        %v12137 = vpop.permute.xlu0 %12136
        %12138 = vrot.lane.b32.xlu0 %v11925, 64
        %v12139 = vpop.permute.xlu0 %12138
        %12140 = vrot.lane.b32.xlu0 %v11926, 64
        %v12141 = vpop.permute.xlu0 %12140
        %12142 = vrot.lane.b32.xlu0 %v11927, 64
        %v12143 = vpop.permute.xlu0 %12142
        %12144 = vrot.lane.b32.xlu0 %v11928, 64
        %v12145 = vpop.permute.xlu0 %12144
        %12146 = vrot.lane.b32.xlu0 %v11929, 64
        %v12147 = vpop.permute.xlu0 %12146
        %12148 = vrot.lane.b32.xlu0 %v11930, 64
        %v12149 = vpop.permute.xlu0 %12148
        %12150 = vrot.lane.b32.xlu0 %v11931, 64
        %v12151 = vpop.permute.xlu0 %12150
        %12152 = vrot.lane.b32.xlu0 %v11932, 64
        %v12153 = vpop.permute.xlu0 %12152
        %12154 = vrot.lane.b32.xlu0 %v11933, 64
        %v12155 = vpop.permute.xlu0 %12154
        %12156 = vrot.lane.b32.xlu0 %v11934, 64
        %v12157 = vpop.permute.xlu0 %12156
        %12158 = vrot.lane.b32.xlu0 %v11935, 64
        %v12159 = vpop.permute.xlu0 %12158
        %12160 = vrot.lane.b32.xlu0 %v11936, 64
        %v12161 = vpop.permute.xlu0 %12160
        %12162 = vrot.lane.b32.xlu0 %v11937, 64
        %v12163 = vpop.permute.xlu0 %12162
        %12164 = vrot.lane.b32.xlu0 %v11938, 64
        %v12165 = vpop.permute.xlu0 %12164
        %12166 = vrot.lane.b32.xlu0 %v11939, 64
        %v12167 = vpop.permute.xlu0 %12166
        %12168 = vrot.lane.b32.xlu0 %v11940, 64
        %v12169 = vpop.permute.xlu0 %12168
        %12170 = vrot.lane.b32.xlu0 %v11941, 64
        %v12171 = vpop.permute.xlu0 %12170
        %12172 = vrot.lane.b32.xlu0 %v11942, 64
        %v12173 = vpop.permute.xlu0 %12172
        %12174 = vrot.lane.b32.xlu0 %v11943, 64
        %v12175 = vpop.permute.xlu0 %12174
        %12176 = vrot.lane.b32.xlu0 %v11944, 64
        %v12177 = vpop.permute.xlu0 %12176
        %12178 = vrot.lane.b32.xlu0 %v11945, 64
        %v12179 = vpop.permute.xlu0 %12178
        %12180 = vrot.lane.b32.xlu0 %v11946, 64
        %v12181 = vpop.permute.xlu0 %12180
        %12182 = vrot.lane.b32.xlu0 %v11947, 64
        %v12183 = vpop.permute.xlu0 %12182
        %12184 = vrot.lane.b32.xlu0 %v11948, 64
        %v12185 = vpop.permute.xlu0 %12184
        %12186 = vrot.lane.b32.xlu0 %v11949, 64
        %v12187 = vpop.permute.xlu0 %12186
        %12188 = vrot.lane.b32.xlu0 %v11950, 64
        %v12189 = vpop.permute.xlu0 %12188
        %12190 = vrot.lane.b32.xlu0 %v11951, 64
        %v12191 = vpop.permute.xlu0 %12190
        %12192 = vrot.lane.b32.xlu0 %v11952, 64
        %v12193 = vpop.permute.xlu0 %12192
        %12194 = vrot.lane.b32.xlu0 %v11953, 64
        %v12195 = vpop.permute.xlu0 %12194
        %12196 = vrot.lane.b32.xlu0 %v11954, 64
        %v12197 = vpop.permute.xlu0 %12196
        %12198 = vrot.lane.b32.xlu0 %v11955, 64
        %v12199 = vpop.permute.xlu0 %12198
        %12200 = vrot.lane.b32.xlu0 %v11956, 64
        %v12201 = vpop.permute.xlu0 %12200
        %12202 = vrot.lane.b32.xlu0 %v11957, 64
        %v12203 = vpop.permute.xlu0 %12202
        %12204 = vrot.lane.b32.xlu0 %v11958, 64
        %v12205 = vpop.permute.xlu0 %12204
        %12206 = vrot.lane.b32.xlu0 %v11959, 64
        %v12207 = vpop.permute.xlu0 %12206
        %12208 = vrot.lane.b32.xlu0 %v11960, 64
        %v12209 = vpop.permute.xlu0 %12208
        %12210 = vrot.lane.b32.xlu0 %v11961, 64
        %v12211 = vpop.permute.xlu0 %12210
        %12212 = vrot.lane.b32.xlu0 %v11962, 64
        %v12213 = vpop.permute.xlu0 %12212
        %12214 = vrot.lane.b32.xlu0 %v11963, 64
        %v12215 = vpop.permute.xlu0 %12214
        %12216 = vrot.lane.b32.xlu0 %v11964, 64
        %v12217 = vpop.permute.xlu0 %12216
        %12218 = vrot.lane.b32.xlu0 %v11965, 64
        %v12219 = vpop.permute.xlu0 %12218
        %12220 = vrot.lane.b32.xlu0 %v11966, 64
        %v12221 = vpop.permute.xlu0 %12220
        %12222 = vrot.lane.b32.xlu0 %v11967, 64
        %v12223 = vpop.permute.xlu0 %12222
        %s12352 = scalar_lea.vmem %s215, 16 [#allocation2]
        %12353 = vst.msk [vmem:[%s12352] sm:$0xf] %vm5561, %v11969
        %12354 = vst.msk [vmem:[%s12352 + $0x4] sm:$0xf] %vm5561, %v11971
        %12355 = vst.msk [vmem:[%s12352 + $0x8] sm:$0xf] %vm5561, %v11973
        %12356 = vst.msk [vmem:[%s12352 + $0xc] sm:$0xf] %vm5561, %v11975
        %12357 = vst.msk [vmem:[%s12352 + $0x20] sm:$0xf] %vm5561, %v11977
        %12358 = vst.msk [vmem:[%s12352 + $0x24] sm:$0xf] %vm5561, %v11979
        %12359 = vst.msk [vmem:[%s12352 + $0x28] sm:$0xf] %vm5561, %v11981
        %12360 = vst.msk [vmem:[%s12352 + $0x2c] sm:$0xf] %vm5561, %v11983
        %12361 = vst.msk [vmem:[%s12352 + $0x40] sm:$0xf] %vm5561, %v11985
        %12362 = vst.msk [vmem:[%s12352 + $0x44] sm:$0xf] %vm5561, %v11987
        %12363 = vst.msk [vmem:[%s12352 + $0x48] sm:$0xf] %vm5561, %v11989
        %12364 = vst.msk [vmem:[%s12352 + $0x4c] sm:$0xf] %vm5561, %v11991
        %12365 = vst.msk [vmem:[%s12352 + $0x60] sm:$0xf] %vm5561, %v11993
        %12366 = vst.msk [vmem:[%s12352 + $0x64] sm:$0xf] %vm5561, %v11995
        %12367 = vst.msk [vmem:[%s12352 + $0x68] sm:$0xf] %vm5561, %v11997
        %12368 = vst.msk [vmem:[%s12352 + $0x6c] sm:$0xf] %vm5561, %v11999
        %12369 = vst.msk [vmem:[%s12352 + $0x80] sm:$0xf] %vm5561, %v12001
        %12370 = vst.msk [vmem:[%s12352 + $0x84] sm:$0xf] %vm5561, %v12003
        %12371 = vst.msk [vmem:[%s12352 + $0x88] sm:$0xf] %vm5561, %v12005
        %12372 = vst.msk [vmem:[%s12352 + $0x8c] sm:$0xf] %vm5561, %v12007
        %12373 = vst.msk [vmem:[%s12352 + $0xa0] sm:$0xf] %vm5561, %v12009
        %12374 = vst.msk [vmem:[%s12352 + $0xa4] sm:$0xf] %vm5561, %v12011
        %12375 = vst.msk [vmem:[%s12352 + $0xa8] sm:$0xf] %vm5561, %v12013
        %12376 = vst.msk [vmem:[%s12352 + $0xac] sm:$0xf] %vm5561, %v12015
        %12377 = vst.msk [vmem:[%s12352 + $0xc0] sm:$0xf] %vm5561, %v12017
        %12378 = vst.msk [vmem:[%s12352 + $0xc4] sm:$0xf] %vm5561, %v12019
        %12379 = vst.msk [vmem:[%s12352 + $0xc8] sm:$0xf] %vm5561, %v12021
        %12380 = vst.msk [vmem:[%s12352 + $0xcc] sm:$0xf] %vm5561, %v12023
        %12381 = vst.msk [vmem:[%s12352 + $0xe0] sm:$0xf] %vm5561, %v12025
        %12382 = vst.msk [vmem:[%s12352 + $0xe4] sm:$0xf] %vm5561, %v12027
        %12383 = vst.msk [vmem:[%s12352 + $0xe8] sm:$0xf] %vm5561, %v12029
        %12384 = vst.msk [vmem:[%s12352 + $0xec] sm:$0xf] %vm5561, %v12031
        %12385 = vst.msk [vmem:[%s12352 + $0x100] sm:$0xf] %vm5561, %v12033
        %12386 = vst.msk [vmem:[%s12352 + $0x104] sm:$0xf] %vm5561, %v12035
        %12387 = vst.msk [vmem:[%s12352 + $0x108] sm:$0xf] %vm5561, %v12037
        %12388 = vst.msk [vmem:[%s12352 + $0x10c] sm:$0xf] %vm5561, %v12039
        %12389 = vst.msk [vmem:[%s12352 + $0x120] sm:$0xf] %vm5561, %v12041
        %12390 = vst.msk [vmem:[%s12352 + $0x124] sm:$0xf] %vm5561, %v12043
        %12391 = vst.msk [vmem:[%s12352 + $0x128] sm:$0xf] %vm5561, %v12045
        %12392 = vst.msk [vmem:[%s12352 + $0x12c] sm:$0xf] %vm5561, %v12047
        %12393 = vst.msk [vmem:[%s12352 + $0x140] sm:$0xf] %vm5561, %v12049
        %12394 = vst.msk [vmem:[%s12352 + $0x144] sm:$0xf] %vm5561, %v12051
        %12395 = vst.msk [vmem:[%s12352 + $0x148] sm:$0xf] %vm5561, %v12053
        %12396 = vst.msk [vmem:[%s12352 + $0x14c] sm:$0xf] %vm5561, %v12055
        %12397 = vst.msk [vmem:[%s12352 + $0x160] sm:$0xf] %vm5561, %v12057
        %12398 = vst.msk [vmem:[%s12352 + $0x164] sm:$0xf] %vm5561, %v12059
        %12399 = vst.msk [vmem:[%s12352 + $0x168] sm:$0xf] %vm5561, %v12061
        %12400 = vst.msk [vmem:[%s12352 + $0x16c] sm:$0xf] %vm5561, %v12063
        %12401 = vst.msk [vmem:[%s12352 + $0x180] sm:$0xf] %vm5561, %v12065
        %12402 = vst.msk [vmem:[%s12352 + $0x184] sm:$0xf] %vm5561, %v12067
        %12403 = vst.msk [vmem:[%s12352 + $0x188] sm:$0xf] %vm5561, %v12069
        %12404 = vst.msk [vmem:[%s12352 + $0x18c] sm:$0xf] %vm5561, %v12071
        %12405 = vst.msk [vmem:[%s12352 + $0x1a0] sm:$0xf] %vm5561, %v12073
        %12406 = vst.msk [vmem:[%s12352 + $0x1a4] sm:$0xf] %vm5561, %v12075
        %12407 = vst.msk [vmem:[%s12352 + $0x1a8] sm:$0xf] %vm5561, %v12077
        %12408 = vst.msk [vmem:[%s12352 + $0x1ac] sm:$0xf] %vm5561, %v12079
        %12409 = vst.msk [vmem:[%s12352 + $0x1c0] sm:$0xf] %vm5561, %v12081
        %12410 = vst.msk [vmem:[%s12352 + $0x1c4] sm:$0xf] %vm5561, %v12083
        %12411 = vst.msk [vmem:[%s12352 + $0x1c8] sm:$0xf] %vm5561, %v12085
        %12412 = vst.msk [vmem:[%s12352 + $0x1cc] sm:$0xf] %vm5561, %v12087
        %12413 = vst.msk [vmem:[%s12352 + $0x1e0] sm:$0xf] %vm5561, %v12089
        %12414 = vst.msk [vmem:[%s12352 + $0x1e4] sm:$0xf] %vm5561, %v12091
        %12415 = vst.msk [vmem:[%s12352 + $0x1e8] sm:$0xf] %vm5561, %v12093
        %12416 = vst.msk [vmem:[%s12352 + $0x1ec] sm:$0xf] %vm5561, %v12095
        %12417 = vst.msk [vmem:[%s12352 + $0x200] sm:$0xf] %vm5561, %v12097
        %12418 = vst.msk [vmem:[%s12352 + $0x204] sm:$0xf] %vm5561, %v12099
        %12419 = vst.msk [vmem:[%s12352 + $0x208] sm:$0xf] %vm5561, %v12101
        %12420 = vst.msk [vmem:[%s12352 + $0x20c] sm:$0xf] %vm5561, %v12103
        %12421 = vst.msk [vmem:[%s12352 + $0x220] sm:$0xf] %vm5561, %v12105
        %12422 = vst.msk [vmem:[%s12352 + $0x224] sm:$0xf] %vm5561, %v12107
        %12423 = vst.msk [vmem:[%s12352 + $0x228] sm:$0xf] %vm5561, %v12109
        %12424 = vst.msk [vmem:[%s12352 + $0x22c] sm:$0xf] %vm5561, %v12111
        %12425 = vst.msk [vmem:[%s12352 + $0x240] sm:$0xf] %vm5561, %v12113
        %12426 = vst.msk [vmem:[%s12352 + $0x244] sm:$0xf] %vm5561, %v12115
        %12427 = vst.msk [vmem:[%s12352 + $0x248] sm:$0xf] %vm5561, %v12117
        %12428 = vst.msk [vmem:[%s12352 + $0x24c] sm:$0xf] %vm5561, %v12119
        %12429 = vst.msk [vmem:[%s12352 + $0x260] sm:$0xf] %vm5561, %v12121
        %12430 = vst.msk [vmem:[%s12352 + $0x264] sm:$0xf] %vm5561, %v12123
        %12431 = vst.msk [vmem:[%s12352 + $0x268] sm:$0xf] %vm5561, %v12125
        %12432 = vst.msk [vmem:[%s12352 + $0x26c] sm:$0xf] %vm5561, %v12127
        %12433 = vst.msk [vmem:[%s12352 + $0x280] sm:$0xf] %vm5561, %v12129
        %12434 = vst.msk [vmem:[%s12352 + $0x284] sm:$0xf] %vm5561, %v12131
        %12435 = vst.msk [vmem:[%s12352 + $0x288] sm:$0xf] %vm5561, %v12133
        %12436 = vst.msk [vmem:[%s12352 + $0x28c] sm:$0xf] %vm5561, %v12135
        %12437 = vst.msk [vmem:[%s12352 + $0x2a0] sm:$0xf] %vm5561, %v12137
        %12438 = vst.msk [vmem:[%s12352 + $0x2a4] sm:$0xf] %vm5561, %v12139
        %12439 = vst.msk [vmem:[%s12352 + $0x2a8] sm:$0xf] %vm5561, %v12141
        %12440 = vst.msk [vmem:[%s12352 + $0x2ac] sm:$0xf] %vm5561, %v12143
        %12441 = vst.msk [vmem:[%s12352 + $0x2c0] sm:$0xf] %vm5561, %v12145
        %12442 = vst.msk [vmem:[%s12352 + $0x2c4] sm:$0xf] %vm5561, %v12147
        %12443 = vst.msk [vmem:[%s12352 + $0x2c8] sm:$0xf] %vm5561, %v12149
        %12444 = vst.msk [vmem:[%s12352 + $0x2cc] sm:$0xf] %vm5561, %v12151
        %12445 = vst.msk [vmem:[%s12352 + $0x2e0] sm:$0xf] %vm5561, %v12153
        %12446 = vst.msk [vmem:[%s12352 + $0x2e4] sm:$0xf] %vm5561, %v12155
        %12447 = vst.msk [vmem:[%s12352 + $0x2e8] sm:$0xf] %vm5561, %v12157
        %12448 = vst.msk [vmem:[%s12352 + $0x2ec] sm:$0xf] %vm5561, %v12159
        %12449 = vst.msk [vmem:[%s12352 + $0x300] sm:$0xf] %vm5561, %v12161
        %12450 = vst.msk [vmem:[%s12352 + $0x304] sm:$0xf] %vm5561, %v12163
        %12451 = vst.msk [vmem:[%s12352 + $0x308] sm:$0xf] %vm5561, %v12165
        %12452 = vst.msk [vmem:[%s12352 + $0x30c] sm:$0xf] %vm5561, %v12167
        %12453 = vst.msk [vmem:[%s12352 + $0x320] sm:$0xf] %vm5561, %v12169
        %12454 = vst.msk [vmem:[%s12352 + $0x324] sm:$0xf] %vm5561, %v12171
        %12455 = vst.msk [vmem:[%s12352 + $0x328] sm:$0xf] %vm5561, %v12173
        %12456 = vst.msk [vmem:[%s12352 + $0x32c] sm:$0xf] %vm5561, %v12175
        %12457 = vst.msk [vmem:[%s12352 + $0x340] sm:$0xf] %vm5561, %v12177
        %12458 = vst.msk [vmem:[%s12352 + $0x344] sm:$0xf] %vm5561, %v12179
        %12459 = vst.msk [vmem:[%s12352 + $0x348] sm:$0xf] %vm5561, %v12181
        %12460 = vst.msk [vmem:[%s12352 + $0x34c] sm:$0xf] %vm5561, %v12183
        %12461 = vst.msk [vmem:[%s12352 + $0x360] sm:$0xf] %vm5561, %v12185
        %12462 = vst.msk [vmem:[%s12352 + $0x364] sm:$0xf] %vm5561, %v12187
        %12463 = vst.msk [vmem:[%s12352 + $0x368] sm:$0xf] %vm5561, %v12189
        %12464 = vst.msk [vmem:[%s12352 + $0x36c] sm:$0xf] %vm5561, %v12191
        %12465 = vst.msk [vmem:[%s12352 + $0x380] sm:$0xf] %vm5561, %v12193
        %12466 = vst.msk [vmem:[%s12352 + $0x384] sm:$0xf] %vm5561, %v12195
        %12467 = vst.msk [vmem:[%s12352 + $0x388] sm:$0xf] %vm5561, %v12197
        %12468 = vst.msk [vmem:[%s12352 + $0x38c] sm:$0xf] %vm5561, %v12199
        %12469 = vst.msk [vmem:[%s12352 + $0x3a0] sm:$0xf] %vm5561, %v12201
        %12470 = vst.msk [vmem:[%s12352 + $0x3a4] sm:$0xf] %vm5561, %v12203
        %12471 = vst.msk [vmem:[%s12352 + $0x3a8] sm:$0xf] %vm5561, %v12205
        %12472 = vst.msk [vmem:[%s12352 + $0x3ac] sm:$0xf] %vm5561, %v12207
        %12473 = vst.msk [vmem:[%s12352 + $0x3c0] sm:$0xf] %vm5561, %v12209
        %12474 = vst.msk [vmem:[%s12352 + $0x3c4] sm:$0xf] %vm5561, %v12211
        %12475 = vst.msk [vmem:[%s12352 + $0x3c8] sm:$0xf] %vm5561, %v12213
        %12476 = vst.msk [vmem:[%s12352 + $0x3cc] sm:$0xf] %vm5561, %v12215
        %12477 = vst.msk [vmem:[%s12352 + $0x3e0] sm:$0xf] %vm5561, %v12217
        %12478 = vst.msk [vmem:[%s12352 + $0x3e4] sm:$0xf] %vm5561, %v12219
        %12479 = vst.msk [vmem:[%s12352 + $0x3e8] sm:$0xf] %vm5561, %v12221
        %12480 = vst.msk [vmem:[%s12352 + $0x3ec] sm:$0xf] %vm5561, %v12223
        %s12481 = sand.u32 %s131, 1
        %s12482 = scalar_lea.sflag [#allocation3], %s12481
        %s12483 = sand.u32 %s131, 1
        %s12484 = smul.addr %s12483, 1024
        %s12485 = scalar_lea.vmem [#allocation2], %s12484
        // Predicated region
        $region37: #{tpu_custom_call.1} parent=35 // pred_check
          %p12486 = pneg %p141
        $region38: #{tpu_custom_call.1} parent=35 // pred_check_branch
          %12488 = sbr.rel (%p12486) target = $region40
        $region39: #{tpu_custom_call.1} parent=35 // pred_region
          %s12489 = smul.u32 32, %s23
          %s12491 = ssub.s32 16384, 16384
          %12492 = vsyncadd %s12482, %s12491
          %s12493 = smul.addr %s12489, 8
          %s12494 = smul.addr %s22, 256
          %s12495 = sadd.s32 %s12493, %s12494
          %s12496 = smul.addr %s12495, 64
          %s12497 = scalar_lea.hbm %s4, %s12496
          %s12498 = sshll.u32 %s12485, 4
          %s12499 = int_to_ptr.vmem [resolvable:$true] %s12498
          %12504 = dma.vmem_to_hbm [thread:$0]  %s12499, 16384, %s12497, %s12482, 64, 64, 4
        $region40: #{tpu_custom_call.1} parent=35 // pred_fallthru
          _
      $region36: #{tpu_custom_call.1} parent=5 // pred_fallthru
        _
      %p12505 = scmp.le.s32.totalorder 2, %s13
      // Predicated region
      $region41: #{tpu_custom_call.1} parent=5 // pred_check
        %p12506 = pneg %p12505
      $region42: #{tpu_custom_call.1} parent=5 // pred_check_branch
        %12508 = sbr.rel (%p12506) target = $region44
      $region43: #{tpu_custom_call.1} parent=5 // pred_region
        %s12509 = ssub.s32 %s13, 2
        // Predicated region
        $region45: #{tpu_custom_call.1} parent=43 // pred_check
          %p12510 = pneg %p147
        $region46: #{tpu_custom_call.1} parent=43 // pred_check_branch
          %12512 = sbr.rel (%p12510) target = $region48
        $region47: #{tpu_custom_call.1} parent=43 // pred_region
          %s12513 = sand.u32 %s132, 1
          %s12514 = scalar_lea.sflag [#allocation3], %s12513
          %s12515 = sand.u32 %s132, 1
          %s12516 = smul.addr %s12515, 1024
          %s12517 = scalar_lea.vmem [#allocation2], %s12516
          %12518 = dma.done %s12514, 16384
        $region48: #{tpu_custom_call.1} parent=43 // pred_fallthru
          _
      $region44: #{tpu_custom_call.1} parent=5 // pred_fallthru
        _
    $region6: #{tpu_custom_call.1} parent=1 // loop_footer
      %s17 = sadd.s32 1, %s13
    $region7: #{tpu_custom_call.1} parent=1 // loop_footer_branch
      %12 = sbr.rel target = $region3
    $region8: #{tpu_custom_call.1} parent=1 // loop_exit
      _
    %12519 = vsyncpa [#allocation3], 1
    %s12520 = scalar_lea.sflag [#allocation3], 1
    %12521 = vsyncpa %s12520, 1

</llo_original>
